<compile_context>
chip_gen: v5e
topology: v5e:2x2
jax: 0.10.0
libtpu: 0.0.40
codegen_flags: <defaults>
</compile_context>

<pallas_src>
import functools

import jax
import jax.numpy as jnp
import numpy as np
from jax import lax
from jax.experimental import pallas as pl
from jax.experimental.pallas import tpu as pltpu


# ---------------------------------------------------------------------------
# Fused per-sample kernel.
# ---------------------------------------------------------------------------
def _stn_fused_kernel(
    x_flat_ref, x_rows_ref, w1m_ref, b1_ref, w2m_ref, b2_ref,
    sel_ref, cmask_ref, w1fc_ref, b1fc_ref, w2fc_ref, b2fc_ref,
    o_ref,
    xpad_ref, taps1_ref, y1pad_ref, h1pad_ref, taps2_ref, y2pad_ref,
    *, cin, c1, c2, k1, k2, h, w, hout, wout):
  f32 = jnp.float32
  hw = h * w
  dot_dt = taps1_ref.dtype

  # ------------------------------------------------------------- conv1 ----
  # Stage the flattened sample with a zero tail so every im2col tap is a
  # static shifted-window load (lane shift only).  The zero tail keeps the
  # unused "garbage" lanes finite so they can never poison a later matmul.
  xpad_ref[:, pl.ds(0, hw)] = x_flat_ref[...]
  xpad_ref[:, pl.ds(hw, xpad_ref.shape[1] - hw)] = jnp.zeros(
      (cin, xpad_ref.shape[1] - hw), xpad_ref.dtype)
  for kh in range(k1):
    for kw in range(k1):
      taps1_ref[pl.ds((kh * k1 + kw) * cin, cin), :] = (
          xpad_ref[:, pl.ds(kh * w + kw, hw)].astype(dot_dt))
  # Single lane-dense MXU dot: (c1, cin*k1*k1) @ (cin*k1*k1, h*w).
  y1 = jnp.dot(w1m_ref[...], taps1_ref[...], preferred_element_type=f32)
  y1pad_ref[:, pl.ds(0, hw)] = y1 + b1_ref[...]
  y1pad_ref[:, pl.ds(hw, y1pad_ref.shape[1] - hw)] = jnp.zeros(
      (c1, y1pad_ref.shape[1] - hw), y1pad_ref.dtype)

  # --------------------------------------- maxpool 2x2 stride 2 + ReLU ----
  # Lane-dense pool over all channels at once: elementwise max of 4 shifted
  # windows.  Valid results live on the stride-2 sub-grid p = 2*ip*w + 2*jp.
  m1 = jnp.maximum(
      jnp.maximum(y1pad_ref[:, pl.ds(0, hw)], y1pad_ref[:, pl.ds(1, hw)]),
      jnp.maximum(y1pad_ref[:, pl.ds(w, hw)], y1pad_ref[:, pl.ds(w + 1, hw)]))
  h1pad_ref[:, pl.ds(0, hw)] = jnp.maximum(m1, 0.0)
  h1pad_ref[:, pl.ds(hw, h1pad_ref.shape[1] - hw)] = jnp.zeros(
      (c1, h1pad_ref.shape[1] - hw), h1pad_ref.dtype)

  # ------------------------------------------------------------- conv2 ----
  # Layer-1 features sit on the stride-2 grid, so conv2's im2col taps are
  # shifts by 2*kh*w + 2*kw on the same flat lanes (a dilated im2col).
  for kh in range(k2):
    for kw in range(k2):
      taps2_ref[pl.ds((kh * k2 + kw) * c1, c1), :] = (
          h1pad_ref[:, pl.ds(2 * kh * w + 2 * kw, hw)].astype(dot_dt))
  y2 = jnp.dot(w2m_ref[...], taps2_ref[...], preferred_element_type=f32)
  y2pad_ref[:, pl.ds(0, hw)] = y2 + b2_ref[...]
  y2pad_ref[:, pl.ds(hw, y2pad_ref.shape[1] - hw)] = jnp.zeros(
      (c2, y2pad_ref.shape[1] - hw), y2pad_ref.dtype)

  # ----------------------------- maxpool + ReLU on the stride-2 grid ------
  m2 = jnp.maximum(
      jnp.maximum(y2pad_ref[:, pl.ds(0, hw)], y2pad_ref[:, pl.ds(2, hw)]),
      jnp.maximum(y2pad_ref[:, pl.ds(2 * w, hw)],
                  y2pad_ref[:, pl.ds(2 * w + 2, hw)]))
  h2 = jnp.maximum(m2, 0.0)     # (c2, hw); valid features at 4*ip2*w + 4*jp2

  # ----------------------------------------- feature gather + fc_loc ------
  # One constant selection matmul gathers all c2*hp2*wp2 valid features for
  # every channel at once; channel mask + sublane sum yields them in the
  # torch .view(-1, C*H*W) order without any in-kernel reshape / relayout.
  z = jnp.dot(h2.astype(dot_dt), sel_ref[...], preferred_element_type=f32)
  feats = jnp.sum(z * cmask_ref[...], axis=0, keepdims=True)    # (1, fcdims)
  hidden = jnp.dot(feats, w1fc_ref[...], preferred_element_type=f32)
  hidden = jnp.maximum(hidden + b1fc_ref[...], 0.0)             # (1, 32)
  theta = jnp.dot(hidden, w2fc_ref[...], preferred_element_type=f32)
  theta = theta + b2fc_ref[...]                                 # (1, 6)

  # --------------------- affine_grid + grid_sample (bilinear, zeros) ------
  p = hout * wout
  ta, tb, tc = theta[:, 0:1], theta[:, 1:2], theta[:, 2:3]
  td, te, tf_ = theta[:, 3:4], theta[:, 4:5], theta[:, 5:6]

  pf = lax.broadcasted_iota(jnp.int32, (1, p), 1).astype(f32)
  # Exact row/col decode for any wout: +0.5 keeps floor() a 0.5/wout margin
  # away from the integer boundary (>> f32 rounding of the product).
  i_out = jnp.floor((pf + 0.5) * (1.0 / wout))
  j_out = pf - i_out * wout
  # affine_grid, align_corners=False
  xn = (2.0 * j_out + 1.0) / wout - 1.0
  yn = (2.0 * i_out + 1.0) / hout - 1.0
  gx = ta * xn + tb * yn + tc
  gy = td * xn + te * yn + tf_
  # grid_sample unnormalisation, align_corners=False
  ix = ((gx + 1.0) * w - 1.0) * 0.5
  iy = ((gy + 1.0) * h - 1.0) * 0.5
  ix0 = jnp.floor(ix)
  iy0 = jnp.floor(iy)
  tx = ix - ix0
  ty = iy - iy0

  # Separable bilinear gather: column weights (win, P) and row weights
  # (hin, P); out-of-range corners simply match no row/column, which is
  # exactly padding_mode='zeros'.
  col_i = lax.broadcasted_iota(jnp.int32, (w, p), 0).astype(f32)
  wcol = (jnp.where(col_i == ix0, 1.0 - tx, 0.0)
          + jnp.where(col_i == ix0 + 1.0, tx, 0.0))
  row_i = lax.broadcasted_iota(jnp.int32, (h, p), 0).astype(f32)
  wrow = (jnp.where(row_i == iy0, 1.0 - ty, 0.0)
          + jnp.where(row_i == iy0 + 1.0, ty, 0.0))

  # Column gather on the MXU (M = cin*hin rows, N = P = hout*wout lanes),
  # then the row interpolation as a broadcast multiply + sublane reduction.
  xc = jnp.dot(x_rows_ref[...], wcol, preferred_element_type=f32)  # (cin*h, p)
  for ic in range(cin):
    o_ref[pl.ds(ic, 1), :] = jnp.sum(
        xc[ic * h:(ic + 1) * h, :] * wrow, axis=0, keepdims=True
    ).astype(o_ref.dtype)


def _round_up(v, m):
  return ((v + m - 1) // m) * m


# ---------------------------------------------------------------------------
# Wrapper: one fused pallas_call over the batch.
# ---------------------------------------------------------------------------
def stn_forward_pallas(params, x, target_hw, *, dot_dtype=jnp.bfloat16):
  n, cin, h, w = x.shape
  c1, _, k1, _ = params["conv1_w"].shape
  c2, _, k2, _ = params["conv2_w"].shape
  hid = params["fc1_w"].shape[0]
  hout, wout = target_hw
  hw = h * w
  p = hout * wout
  ho1, wo1 = h - k1 + 1, w - k1 + 1
  hp1, wp1 = ho1 // 2, wo1 // 2
  ho2, wo2 = hp1 - k2 + 1, wp1 - k2 + 1
  hp2, wp2 = ho2 // 2, wo2 // 2
  fcdims = c2 * hp2 * wp2
  assert params["fc1_w"].shape == (hid, fcdims)

  # conv weights in im2col/matmul form; tap order (kh, kw, ic) matches the
  # order the kernel writes tap rows.
  w1m = jnp.transpose(params["conv1_w"], (0, 2, 3, 1)).reshape(c1, k1 * k1 * cin)
  w2m = jnp.transpose(params["conv2_w"], (0, 2, 3, 1)).reshape(c2, k2 * k2 * c1)

  # Constant feature-selection matrix: column f = co*hp2*wp2 + ip2*wp2 + jp2
  # picks flat position 4*ip2*w + 4*jp2 (where the fused conv/pool stack leaves
  # its valid features); chanmask keeps only channel co's row of the product.
  q = np.arange(hp2 * wp2)
  pos = np.tile(4 * (q // wp2) * w + 4 * (q % wp2), c2)
  selbig = (np.arange(hw)[:, None] == pos[None, :]).astype(np.float32)
  chanmask = (np.arange(fcdims)[None, :] // (hp2 * wp2)
              == np.arange(c2)[:, None]).astype(np.float32)

  # stage pads for the static shifted-window (im2col / pool) loads
  pad1 = max(128, _round_up((k1 - 1) * (w + 1), 128))
  padp = max(128, _round_up(2 * w + 2, 128))
  pad2 = max(128, _round_up(2 * (k2 - 1) * (w + 1), 128))

  kernel = functools.partial(
      _stn_fused_kernel, cin=cin, c1=c1, c2=c2, k1=k1, k2=k2, h=h, w=w,
      hout=hout, wout=wout)

  mm_flops = 2 * n * (c1 * cin * k1 * k1 * hw + c2 * c1 * k2 * k2 * hw
                      + c2 * hw * fcdims + fcdims * hid + hid * 6
                      + cin * h * w * p)
  ew_flops = n * (8 * hw * (c1 + c2) + 12 * (h + w + 4) * p)
  bytes_accessed = int(
      4 * (2 * x.size + chanmask.size + n * cin * p
           + params["fc1_w"].size + params["fc2_w"].size + hid + 6 + c1 + c2)
      + 2 * (w1m.size + w2m.size + selbig.size))

  out = pl.pallas_call(
      kernel,
      out_shape=jax.ShapeDtypeStruct((n, cin, p), jnp.float32),
      grid=(n,),
      in_specs=[
          pl.BlockSpec((None, cin, hw), lambda i: (i, 0, 0)),
          pl.BlockSpec((None, cin * h, w), lambda i: (i, 0, 0)),
          pl.BlockSpec((c1, cin * k1 * k1), lambda i: (0, 0)),
          pl.BlockSpec((c1, 1), lambda i: (0, 0)),
          pl.BlockSpec((c2, c1 * k2 * k2), lambda i: (0, 0)),
          pl.BlockSpec((c2, 1), lambda i: (0, 0)),
          pl.BlockSpec((hw, fcdims), lambda i: (0, 0)),
          pl.BlockSpec((c2, fcdims), lambda i: (0, 0)),
          pl.BlockSpec((fcdims, hid), lambda i: (0, 0)),
          pl.BlockSpec((1, hid), lambda i: (0, 0)),
          pl.BlockSpec((hid, 6), lambda i: (0, 0)),
          pl.BlockSpec((1, 6), lambda i: (0, 0)),
      ],
      out_specs=pl.BlockSpec((None, cin, p), lambda i: (i, 0, 0)),
      scratch_shapes=[
          pltpu.VMEM((cin, hw + pad1), jnp.float32),      # staged sample
          pltpu.VMEM((cin * k1 * k1, hw), dot_dtype),     # conv1 im2col taps
          pltpu.VMEM((c1, hw + padp), jnp.float32),       # conv1 out (+pad)
          pltpu.VMEM((c1, hw + pad2), jnp.float32),       # pooled1 (+pad)
          pltpu.VMEM((c1 * k2 * k2, hw), dot_dtype),      # conv2 im2col taps
          pltpu.VMEM((c2, hw + padp), jnp.float32),       # conv2 out (+pad)
      ],
      compiler_params=pltpu.CompilerParams(
          dimension_semantics=("parallel",),
          # ~2.5 MiB live per step (taps + staged buffers + constants);
          # 16 MiB keeps double-buffer headroom on v5e/v6e/v7x alike.
          vmem_limit_bytes=16 * 1024 * 1024),
      cost_estimate=pl.CostEstimate(flops=mm_flops + ew_flops,
                                    transcendentals=0,
                                    bytes_accessed=bytes_accessed),
  )(
      x.reshape(n, cin, hw),
      x.reshape(n, cin * h, w),
      w1m.astype(dot_dtype),
      params["conv1_b"].reshape(c1, 1).astype(jnp.float32),
      w2m.astype(dot_dtype),
      params["conv2_b"].reshape(c2, 1).astype(jnp.float32),
      jnp.asarray(selbig, dot_dtype),
      jnp.asarray(chanmask, jnp.float32),
      params["fc1_w"].T.astype(jnp.float32),
      params["fc1_b"].reshape(1, hid).astype(jnp.float32),
      params["fc2_w"].T.astype(jnp.float32),
      params["fc2_b"].reshape(1, 6).astype(jnp.float32),
  )
  return out.reshape(n, cin, hout, wout)


# ---------------------------------------------------------------------------
# STNblock (type='2d') equivalent.
# ---------------------------------------------------------------------------
class STNblockPallas:
  """JAX/Pallas port of STNblock with type='2d'.

  The PyTorch original hard-codes FCdims=70400 (the flattened localization
  size of its 3-D [96,48,192] default); here the fc input size is derived
  from the actual 2-D input resolution so the same architecture runs at a
  small test size.
  """
  # TODO(synk): the type='3d' branch (Conv3d/MaxPool3d localization, 3x4
  # affine theta, trilinear grid_sample) is not implemented here.

  def __init__(self, key, n_channels=1, input_grid_size=(32, 32),
               target_grid_size=(2, 1, 16, 16)):
    c1, c2, k1, k2, fc_final = 8, 10, 7, 5, 32
    h, w = input_grid_size
    hp2 = ((h - k1 + 1) // 2 - k2 + 1) // 2
    wp2 = ((w - k1 + 1) // 2 - k2 + 1) // 2
    fcdims = c2 * hp2 * wp2
    self.target_grid_size = tuple(target_grid_size)

    ks = jax.random.split(key, 6)

    def uinit(k, shape, fan_in):
      bound = 1.0 / float(fan_in) ** 0.5
      return jax.random.uniform(k, shape, jnp.float32, -bound, bound)

    self.params = {
        "conv1_w": uinit(ks[0], (c1, n_channels, k1, k1), n_channels * k1 * k1),
        "conv1_b": uinit(ks[1], (c1,), n_channels * k1 * k1),
        "conv2_w": uinit(ks[2], (c2, c1, k2, k2), c1 * k2 * k2),
        "conv2_b": uinit(ks[3], (c2,), c1 * k2 * k2),
        "fc1_w": uinit(ks[4], (fc_final, fcdims), fcdims),  # torch Linear (out,in)
        "fc1_b": uinit(ks[5], (fc_final,), fcdims),
        # PyTorch init: final affine layer zeroed, bias = identity transform.
        "fc2_w": jnp.zeros((6, fc_final), jnp.float32),
        "fc2_b": jnp.array([1., 0., 0., 0., 1., 0.], jnp.float32),
    }

  def forward(self, x):
    hout, wout = self.target_grid_size[2], self.target_grid_size[3]
    return stn_forward_pallas(self.params, x, (hout, wout))


# ---------------------------------------------------------------------------
# Pure-JAX reference for a silent correctness check.
# ---------------------------------------------------------------------------
def _ref_localization(x, w1, b1, w2, b2):
  def conv_pool_relu(y, wgt, b):
    y = lax.conv_general_dilated(y, wgt, (1, 1), "VALID",
                                 dimension_numbers=("NCHW", "OIHW", "NCHW"))
    y = y + b.reshape(1, -1, 1, 1)
    y = lax.reduce_window(y, -jnp.inf, lax.max, (1, 1, 2, 2), (1, 1, 2, 2),
                          "VALID")
    return jnp.maximum(y, 0.0)
  return conv_pool_relu(conv_pool_relu(x, w1, b1), w2, b2)


def _ref_affine_grid_sample(theta, x, hout, wout):
  n, c, hin, win = x.shape
  ysn = (2.0 * jnp.arange(hout) + 1.0) / hout - 1.0
  xsn = (2.0 * jnp.arange(wout) + 1.0) / wout - 1.0
  yn, xn = jnp.meshgrid(ysn, xsn, indexing="ij")
  base = jnp.stack([xn, yn, jnp.ones_like(xn)], axis=-1)        # (hout,wout,3)
  grid = jnp.einsum("nij,hwj->nhwi", theta, base)               # (...,2)=(x,y)
  ix = ((grid[..., 0] + 1.0) * win - 1.0) * 0.5
  iy = ((grid[..., 1] + 1.0) * hin - 1.0) * 0.5
  ix0, iy0 = jnp.floor(ix), jnp.floor(iy)
  tx, ty = ix - ix0, iy - iy0
  ix0, iy0 = ix0.astype(jnp.int32), iy0.astype(jnp.int32)
  nidx = jnp.arange(n)[:, None, None, None]
  cidx = jnp.arange(c)[None, :, None, None]
  out = jnp.zeros((n, c, hout, wout), jnp.float32)
  for dy in (0, 1):
    for dx in (0, 1):
      xi, yi = ix0 + dx, iy0 + dy
      wgt = (tx if dx else 1.0 - tx) * (ty if dy else 1.0 - ty)
      inb = (xi >= 0) & (xi < win) & (yi >= 0) & (yi < hin)
      wgt = jnp.where(inb, wgt, 0.0)
      xi = jnp.clip(xi, 0, win - 1)
      yi = jnp.clip(yi, 0, hin - 1)
      vals = x[nidx, cidx, yi[:, None], xi[:, None]]
      out = out + wgt[:, None] * vals
  return out


def _ref_forward(params, x, hout, wout):
  feats = _ref_localization(x, params["conv1_w"], params["conv1_b"],
                            params["conv2_w"], params["conv2_b"])
  xs = feats.reshape(x.shape[0], -1)
  hdn = jnp.maximum(xs @ params["fc1_w"].T + params["fc1_b"], 0.0)
  theta = (hdn @ params["fc2_w"].T + params["fc2_b"]).reshape(-1, 2, 3)
  return _ref_affine_grid_sample(theta, x, hout, wout)


if __name__ == "__main__":
  key = jax.random.PRNGKey(0)
  kx, kparam, kperturb = jax.random.split(key, 3)

  n, cin, hgt, wid = 2, 1, 32, 32
  hout, wout = 16, 16
  x = jax.random.normal(kx, (n, cin, hgt, wid), jnp.float32)

  model = STNblockPallas(kparam, n_channels=cin, input_grid_size=(hgt, wid),
                         target_grid_size=(n, cin, hout, wout))
  # PyTorch zero-inits the final affine layer (theta == identity for any
  # input); perturb it so theta is data-dependent and the whole
  # conv -> fc -> affine_grid -> grid_sample path is exercised numerically.
  model.params["fc2_w"] = 0.02 * jax.random.normal(kperturb, (6, 32), jnp.float32)

  out = jax.jit(model.forward)(x)
  out = jax.block_until_ready(out)

  assert out.shape == (n, cin, hout, wout)
  assert out.dtype == jnp.float32

  # Silent numerical check against a pure-JAX/XLA f32 reference.  bf16 MXU
  # operands in the conv stack introduce ~1e-3 relative rounding, slightly
  # amplified by the 200-term conv2 reduction and the data-dependent sample
  # positions; 3e-2 bounds that comfortably while still catching any real
  # indexing / layout bug (those show up as O(1) errors).
  out_ref = _ref_forward(model.params, x, hout, wout)
  assert jnp.allclose(out, out_ref, atol=3e-2, rtol=3e-2), \
      float(jnp.max(jnp.abs(out - out_ref)))

  print("KERNEL_OK")
</pallas_src>

<mosaic_0001>
module attributes {stable_mosaic.version = 11 : i64} {
  func.func @_stn_fused_kernel(%arg0: i32, %arg1: memref<1x1x1024xf32, #tpu.memory_space<vmem>>, %arg2: memref<1x32x32xf32, #tpu.memory_space<vmem>>, %arg3: memref<8x49xbf16, #tpu.memory_space<vmem>>, %arg4: memref<8x1xf32, #tpu.memory_space<vmem>>, %arg5: memref<10x200xbf16, #tpu.memory_space<vmem>>, %arg6: memref<10x1xf32, #tpu.memory_space<vmem>>, %arg7: memref<1024x160xbf16, #tpu.memory_space<vmem>>, %arg8: memref<10x160xf32, #tpu.memory_space<vmem>>, %arg9: memref<160x32xf32, #tpu.memory_space<vmem>>, %arg10: memref<1x32xf32, #tpu.memory_space<vmem>>, %arg11: memref<32x6xf32, #tpu.memory_space<vmem>>, %arg12: memref<1x6xf32, #tpu.memory_space<vmem>>, %arg13: memref<1x1x256xf32, #tpu.memory_space<vmem>>, %arg14: memref<1x1280xf32, #tpu.memory_space<vmem>>, %arg15: memref<49x1024xbf16, #tpu.memory_space<vmem>>, %arg16: memref<8x1152xf32, #tpu.memory_space<vmem>>, %arg17: memref<8x1408xf32, #tpu.memory_space<vmem>>, %arg18: memref<200x1024xbf16, #tpu.memory_space<vmem>>, %arg19: memref<10x1152xf32, #tpu.memory_space<vmem>>) attributes {dimension_semantics = [#tpu.dimension_semantics<parallel>], iteration_bounds = array<i64: 2>, scalar_prefetch = 0 : i64, scratch_operands = 6 : i64, tpu.core_type = #tpu.core_type<tc>, window_params = [{transform_indices = @transform_0, window_bounds = array<i64: 1, 1, 1024>}, {transform_indices = @transform_1, window_bounds = array<i64: 1, 32, 32>}, {pipeline_mode = #tpu.pipeline_mode<synchronous>, transform_indices = @transform_2, window_bounds = array<i64: 8, 49>}, {pipeline_mode = #tpu.pipeline_mode<synchronous>, transform_indices = @transform_3, window_bounds = array<i64: 8, 1>}, {pipeline_mode = #tpu.pipeline_mode<synchronous>, transform_indices = @transform_4, window_bounds = array<i64: 10, 200>}, {pipeline_mode = #tpu.pipeline_mode<synchronous>, transform_indices = @transform_5, window_bounds = array<i64: 10, 1>}, {pipeline_mode = #tpu.pipeline_mode<synchronous>, transform_indices = @transform_6, window_bounds = array<i64: 1024, 160>}, {pipeline_mode = #tpu.pipeline_mode<synchronous>, transform_indices = @transform_7, window_bounds = array<i64: 10, 160>}, {pipeline_mode = #tpu.pipeline_mode<synchronous>, transform_indices = @transform_8, window_bounds = array<i64: 160, 32>}, {pipeline_mode = #tpu.pipeline_mode<synchronous>, transform_indices = @transform_9, window_bounds = array<i64: 1, 32>}, {pipeline_mode = #tpu.pipeline_mode<synchronous>, transform_indices = @transform_10, window_bounds = array<i64: 32, 6>}, {pipeline_mode = #tpu.pipeline_mode<synchronous>, transform_indices = @transform_11, window_bounds = array<i64: 1, 6>}, {transform_indices = @transform_12, window_bounds = array<i64: 1, 1, 256>}]} {
    %c0 = arith.constant 0 : index
    %c0_0 = arith.constant 0 : index
    %c0_1 = arith.constant 0 : index
    %0 = vector.load %arg1[%c0, %c0_0, %c0_1] : memref<1x1x1024xf32, #tpu.memory_space<vmem>>, vector<1x1x1024xf32>
    %1 = vector.shape_cast %0 : vector<1x1x1024xf32> to vector<1x1024xf32>
    %c0_2 = arith.constant 0 : index
    %c0_3 = arith.constant 0 : index
    %2 = vector.load %arg14[%c0_2, %c0_3] : memref<1x1280xf32, #tpu.memory_space<vmem>>, vector<1x1024xf32>
    tpu.vector_store %arg14[%c0_2, %c0_3], %1 {strides = array<i32>} : memref<1x1280xf32, #tpu.memory_space<vmem>>, vector<1x1024xf32>,
    %cst = arith.constant 0.000000e+00 : f32
    %3 = vector.broadcast %cst : f32 to vector<1x256xf32>
    %c0_4 = arith.constant 0 : index
    %c1024 = arith.constant 1024 : index
    %4 = vector.load %arg14[%c0_4, %c1024] : memref<1x1280xf32, #tpu.memory_space<vmem>>, vector<1x256xf32>
    tpu.vector_store %arg14[%c0_4, %c1024], %3 {strides = array<i32>} : memref<1x1280xf32, #tpu.memory_space<vmem>>, vector<1x256xf32>,
    %c0_5 = arith.constant 0 : index
    %c0_6 = arith.constant 0 : index
    %5 = vector.load %arg14[%c0_5, %c0_6] : memref<1x1280xf32, #tpu.memory_space<vmem>>, vector<1x1024xf32>
    %6 = arith.truncf %5 : vector<1x1024xf32> to vector<1x1024xbf16>
    %c0_7 = arith.constant 0 : index
    %c0_8 = arith.constant 0 : index
    %7 = vector.load %arg15[%c0_7, %c0_8] : memref<49x1024xbf16, #tpu.memory_space<vmem>>, vector<1x1024xbf16>
    tpu.vector_store %arg15[%c0_7, %c0_8], %6 {strides = array<i32>} : memref<49x1024xbf16, #tpu.memory_space<vmem>>, vector<1x1024xbf16>,
    %c0_9 = arith.constant 0 : index
    %c1 = arith.constant 1 : index
    %8 = vector.load %arg14[%c0_9, %c1] : memref<1x1280xf32, #tpu.memory_space<vmem>>, vector<1x1024xf32>
    %9 = arith.truncf %8 : vector<1x1024xf32> to vector<1x1024xbf16>
    %c1_10 = arith.constant 1 : index
    %c0_11 = arith.constant 0 : index
    %10 = vector.load %arg15[%c1_10, %c0_11] : memref<49x1024xbf16, #tpu.memory_space<vmem>>, vector<1x1024xbf16>
    tpu.vector_store %arg15[%c1_10, %c0_11], %9 {strides = array<i32>} : memref<49x1024xbf16, #tpu.memory_space<vmem>>, vector<1x1024xbf16>,
    %c0_12 = arith.constant 0 : index
    %c2 = arith.constant 2 : index
    %11 = vector.load %arg14[%c0_12, %c2] : memref<1x1280xf32, #tpu.memory_space<vmem>>, vector<1x1024xf32>
    %12 = arith.truncf %11 : vector<1x1024xf32> to vector<1x1024xbf16>
    %c2_13 = arith.constant 2 : index
    %c0_14 = arith.constant 0 : index
    %13 = vector.load %arg15[%c2_13, %c0_14] : memref<49x1024xbf16, #tpu.memory_space<vmem>>, vector<1x1024xbf16>
    tpu.vector_store %arg15[%c2_13, %c0_14], %12 {strides = array<i32>} : memref<49x1024xbf16, #tpu.memory_space<vmem>>, vector<1x1024xbf16>,
    %c0_15 = arith.constant 0 : index
    %c3 = arith.constant 3 : index
    %14 = vector.load %arg14[%c0_15, %c3] : memref<1x1280xf32, #tpu.memory_space<vmem>>, vector<1x1024xf32>
    %15 = arith.truncf %14 : vector<1x1024xf32> to vector<1x1024xbf16>
    %c3_16 = arith.constant 3 : index
    %c0_17 = arith.constant 0 : index
    %16 = vector.load %arg15[%c3_16, %c0_17] : memref<49x1024xbf16, #tpu.memory_space<vmem>>, vector<1x1024xbf16>
    tpu.vector_store %arg15[%c3_16, %c0_17], %15 {strides = array<i32>} : memref<49x1024xbf16, #tpu.memory_space<vmem>>, vector<1x1024xbf16>,
    %c0_18 = arith.constant 0 : index
    %c4 = arith.constant 4 : index
    %17 = vector.load %arg14[%c0_18, %c4] : memref<1x1280xf32, #tpu.memory_space<vmem>>, vector<1x1024xf32>
    %18 = arith.truncf %17 : vector<1x1024xf32> to vector<1x1024xbf16>
    %c4_19 = arith.constant 4 : index
    %c0_20 = arith.constant 0 : index
    %19 = vector.load %arg15[%c4_19, %c0_20] : memref<49x1024xbf16, #tpu.memory_space<vmem>>, vector<1x1024xbf16>
    tpu.vector_store %arg15[%c4_19, %c0_20], %18 {strides = array<i32>} : memref<49x1024xbf16, #tpu.memory_space<vmem>>, vector<1x1024xbf16>,
    %c0_21 = arith.constant 0 : index
    %c5 = arith.constant 5 : index
    %20 = vector.load %arg14[%c0_21, %c5] : memref<1x1280xf32, #tpu.memory_space<vmem>>, vector<1x1024xf32>
    %21 = arith.truncf %20 : vector<1x1024xf32> to vector<1x1024xbf16>
    %c5_22 = arith.constant 5 : index
    %c0_23 = arith.constant 0 : index
    %22 = vector.load %arg15[%c5_22, %c0_23] : memref<49x1024xbf16, #tpu.memory_space<vmem>>, vector<1x1024xbf16>
    tpu.vector_store %arg15[%c5_22, %c0_23], %21 {strides = array<i32>} : memref<49x1024xbf16, #tpu.memory_space<vmem>>, vector<1x1024xbf16>,
    %c0_24 = arith.constant 0 : index
    %c6 = arith.constant 6 : index
    %23 = vector.load %arg14[%c0_24, %c6] : memref<1x1280xf32, #tpu.memory_space<vmem>>, vector<1x1024xf32>
    %24 = arith.truncf %23 : vector<1x1024xf32> to vector<1x1024xbf16>
    %c6_25 = arith.constant 6 : index
    %c0_26 = arith.constant 0 : index
    %25 = vector.load %arg15[%c6_25, %c0_26] : memref<49x1024xbf16, #tpu.memory_space<vmem>>, vector<1x1024xbf16>
    tpu.vector_store %arg15[%c6_25, %c0_26], %24 {strides = array<i32>} : memref<49x1024xbf16, #tpu.memory_space<vmem>>, vector<1x1024xbf16>,
    %c0_27 = arith.constant 0 : index
    %c32 = arith.constant 32 : index
    %26 = vector.load %arg14[%c0_27, %c32] : memref<1x1280xf32, #tpu.memory_space<vmem>>, vector<1x1024xf32>
    %27 = arith.truncf %26 : vector<1x1024xf32> to vector<1x1024xbf16>
    %c7 = arith.constant 7 : index
    %c0_28 = arith.constant 0 : index
    %28 = vector.load %arg15[%c7, %c0_28] : memref<49x1024xbf16, #tpu.memory_space<vmem>>, vector<1x1024xbf16>
    tpu.vector_store %arg15[%c7, %c0_28], %27 {strides = array<i32>} : memref<49x1024xbf16, #tpu.memory_space<vmem>>, vector<1x1024xbf16>,
    %c0_29 = arith.constant 0 : index
    %c33 = arith.constant 33 : index
    %29 = vector.load %arg14[%c0_29, %c33] : memref<1x1280xf32, #tpu.memory_space<vmem>>, vector<1x1024xf32>
    %30 = arith.truncf %29 : vector<1x1024xf32> to vector<1x1024xbf16>
    %c8 = arith.constant 8 : index
    %c0_30 = arith.constant 0 : index
    %31 = vector.load %arg15[%c8, %c0_30] : memref<49x1024xbf16, #tpu.memory_space<vmem>>, vector<1x1024xbf16>
    tpu.vector_store %arg15[%c8, %c0_30], %30 {strides = array<i32>} : memref<49x1024xbf16, #tpu.memory_space<vmem>>, vector<1x1024xbf16>,
    %c0_31 = arith.constant 0 : index
    %c34 = arith.constant 34 : index
    %32 = vector.load %arg14[%c0_31, %c34] : memref<1x1280xf32, #tpu.memory_space<vmem>>, vector<1x1024xf32>
    %33 = arith.truncf %32 : vector<1x1024xf32> to vector<1x1024xbf16>
    %c9 = arith.constant 9 : index
    %c0_32 = arith.constant 0 : index
    %34 = vector.load %arg15[%c9, %c0_32] : memref<49x1024xbf16, #tpu.memory_space<vmem>>, vector<1x1024xbf16>
    tpu.vector_store %arg15[%c9, %c0_32], %33 {strides = array<i32>} : memref<49x1024xbf16, #tpu.memory_space<vmem>>, vector<1x1024xbf16>,
    %c0_33 = arith.constant 0 : index
    %c35 = arith.constant 35 : index
    %35 = vector.load %arg14[%c0_33, %c35] : memref<1x1280xf32, #tpu.memory_space<vmem>>, vector<1x1024xf32>
    %36 = arith.truncf %35 : vector<1x1024xf32> to vector<1x1024xbf16>
    %c10 = arith.constant 10 : index
    %c0_34 = arith.constant 0 : index
    %37 = vector.load %arg15[%c10, %c0_34] : memref<49x1024xbf16, #tpu.memory_space<vmem>>, vector<1x1024xbf16>
    tpu.vector_store %arg15[%c10, %c0_34], %36 {strides = array<i32>} : memref<49x1024xbf16, #tpu.memory_space<vmem>>, vector<1x1024xbf16>,
    %c0_35 = arith.constant 0 : index
    %c36 = arith.constant 36 : index
    %38 = vector.load %arg14[%c0_35, %c36] : memref<1x1280xf32, #tpu.memory_space<vmem>>, vector<1x1024xf32>
    %39 = arith.truncf %38 : vector<1x1024xf32> to vector<1x1024xbf16>
    %c11 = arith.constant 11 : index
    %c0_36 = arith.constant 0 : index
    %40 = vector.load %arg15[%c11, %c0_36] : memref<49x1024xbf16, #tpu.memory_space<vmem>>, vector<1x1024xbf16>
    tpu.vector_store %arg15[%c11, %c0_36], %39 {strides = array<i32>} : memref<49x1024xbf16, #tpu.memory_space<vmem>>, vector<1x1024xbf16>,
    %c0_37 = arith.constant 0 : index
    %c37 = arith.constant 37 : index
    %41 = vector.load %arg14[%c0_37, %c37] : memref<1x1280xf32, #tpu.memory_space<vmem>>, vector<1x1024xf32>
    %42 = arith.truncf %41 : vector<1x1024xf32> to vector<1x1024xbf16>
    %c12 = arith.constant 12 : index
    %c0_38 = arith.constant 0 : index
    %43 = vector.load %arg15[%c12, %c0_38] : memref<49x1024xbf16, #tpu.memory_space<vmem>>, vector<1x1024xbf16>
    tpu.vector_store %arg15[%c12, %c0_38], %42 {strides = array<i32>} : memref<49x1024xbf16, #tpu.memory_space<vmem>>, vector<1x1024xbf16>,
    %c0_39 = arith.constant 0 : index
    %c38 = arith.constant 38 : index
    %44 = vector.load %arg14[%c0_39, %c38] : memref<1x1280xf32, #tpu.memory_space<vmem>>, vector<1x1024xf32>
    %45 = arith.truncf %44 : vector<1x1024xf32> to vector<1x1024xbf16>
    %c13 = arith.constant 13 : index
    %c0_40 = arith.constant 0 : index
    %46 = vector.load %arg15[%c13, %c0_40] : memref<49x1024xbf16, #tpu.memory_space<vmem>>, vector<1x1024xbf16>
    tpu.vector_store %arg15[%c13, %c0_40], %45 {strides = array<i32>} : memref<49x1024xbf16, #tpu.memory_space<vmem>>, vector<1x1024xbf16>,
    %c0_41 = arith.constant 0 : index
    %c64 = arith.constant 64 : index
    %47 = vector.load %arg14[%c0_41, %c64] : memref<1x1280xf32, #tpu.memory_space<vmem>>, vector<1x1024xf32>
    %48 = arith.truncf %47 : vector<1x1024xf32> to vector<1x1024xbf16>
    %c14 = arith.constant 14 : index
    %c0_42 = arith.constant 0 : index
    %49 = vector.load %arg15[%c14, %c0_42] : memref<49x1024xbf16, #tpu.memory_space<vmem>>, vector<1x1024xbf16>
    tpu.vector_store %arg15[%c14, %c0_42], %48 {strides = array<i32>} : memref<49x1024xbf16, #tpu.memory_space<vmem>>, vector<1x1024xbf16>,
    %c0_43 = arith.constant 0 : index
    %c65 = arith.constant 65 : index
    %50 = vector.load %arg14[%c0_43, %c65] : memref<1x1280xf32, #tpu.memory_space<vmem>>, vector<1x1024xf32>
    %51 = arith.truncf %50 : vector<1x1024xf32> to vector<1x1024xbf16>
    %c15 = arith.constant 15 : index
    %c0_44 = arith.constant 0 : index
    %52 = vector.load %arg15[%c15, %c0_44] : memref<49x1024xbf16, #tpu.memory_space<vmem>>, vector<1x1024xbf16>
    tpu.vector_store %arg15[%c15, %c0_44], %51 {strides = array<i32>} : memref<49x1024xbf16, #tpu.memory_space<vmem>>, vector<1x1024xbf16>,
    %c0_45 = arith.constant 0 : index
    %c66 = arith.constant 66 : index
    %53 = vector.load %arg14[%c0_45, %c66] : memref<1x1280xf32, #tpu.memory_space<vmem>>, vector<1x1024xf32>
    %54 = arith.truncf %53 : vector<1x1024xf32> to vector<1x1024xbf16>
    %c16 = arith.constant 16 : index
    %c0_46 = arith.constant 0 : index
    %55 = vector.load %arg15[%c16, %c0_46] : memref<49x1024xbf16, #tpu.memory_space<vmem>>, vector<1x1024xbf16>
    tpu.vector_store %arg15[%c16, %c0_46], %54 {strides = array<i32>} : memref<49x1024xbf16, #tpu.memory_space<vmem>>, vector<1x1024xbf16>,
    %c0_47 = arith.constant 0 : index
    %c67 = arith.constant 67 : index
    %56 = vector.load %arg14[%c0_47, %c67] : memref<1x1280xf32, #tpu.memory_space<vmem>>, vector<1x1024xf32>
    %57 = arith.truncf %56 : vector<1x1024xf32> to vector<1x1024xbf16>
    %c17 = arith.constant 17 : index
    %c0_48 = arith.constant 0 : index
    %58 = vector.load %arg15[%c17, %c0_48] : memref<49x1024xbf16, #tpu.memory_space<vmem>>, vector<1x1024xbf16>
    tpu.vector_store %arg15[%c17, %c0_48], %57 {strides = array<i32>} : memref<49x1024xbf16, #tpu.memory_space<vmem>>, vector<1x1024xbf16>,
    %c0_49 = arith.constant 0 : index
    %c68 = arith.constant 68 : index
    %59 = vector.load %arg14[%c0_49, %c68] : memref<1x1280xf32, #tpu.memory_space<vmem>>, vector<1x1024xf32>
    %60 = arith.truncf %59 : vector<1x1024xf32> to vector<1x1024xbf16>
    %c18 = arith.constant 18 : index
    %c0_50 = arith.constant 0 : index
    %61 = vector.load %arg15[%c18, %c0_50] : memref<49x1024xbf16, #tpu.memory_space<vmem>>, vector<1x1024xbf16>
    tpu.vector_store %arg15[%c18, %c0_50], %60 {strides = array<i32>} : memref<49x1024xbf16, #tpu.memory_space<vmem>>, vector<1x1024xbf16>,
    %c0_51 = arith.constant 0 : index
    %c69 = arith.constant 69 : index
    %62 = vector.load %arg14[%c0_51, %c69] : memref<1x1280xf32, #tpu.memory_space<vmem>>, vector<1x1024xf32>
    %63 = arith.truncf %62 : vector<1x1024xf32> to vector<1x1024xbf16>
    %c19 = arith.constant 19 : index
    %c0_52 = arith.constant 0 : index
    %64 = vector.load %arg15[%c19, %c0_52] : memref<49x1024xbf16, #tpu.memory_space<vmem>>, vector<1x1024xbf16>
    tpu.vector_store %arg15[%c19, %c0_52], %63 {strides = array<i32>} : memref<49x1024xbf16, #tpu.memory_space<vmem>>, vector<1x1024xbf16>,
    %c0_53 = arith.constant 0 : index
    %c70 = arith.constant 70 : index
    %65 = vector.load %arg14[%c0_53, %c70] : memref<1x1280xf32, #tpu.memory_space<vmem>>, vector<1x1024xf32>
    %66 = arith.truncf %65 : vector<1x1024xf32> to vector<1x1024xbf16>
    %c20 = arith.constant 20 : index
    %c0_54 = arith.constant 0 : index
    %67 = vector.load %arg15[%c20, %c0_54] : memref<49x1024xbf16, #tpu.memory_space<vmem>>, vector<1x1024xbf16>
    tpu.vector_store %arg15[%c20, %c0_54], %66 {strides = array<i32>} : memref<49x1024xbf16, #tpu.memory_space<vmem>>, vector<1x1024xbf16>,
    %c0_55 = arith.constant 0 : index
    %c96 = arith.constant 96 : index
    %68 = vector.load %arg14[%c0_55, %c96] : memref<1x1280xf32, #tpu.memory_space<vmem>>, vector<1x1024xf32>
    %69 = arith.truncf %68 : vector<1x1024xf32> to vector<1x1024xbf16>
    %c21 = arith.constant 21 : index
    %c0_56 = arith.constant 0 : index
    %70 = vector.load %arg15[%c21, %c0_56] : memref<49x1024xbf16, #tpu.memory_space<vmem>>, vector<1x1024xbf16>
    tpu.vector_store %arg15[%c21, %c0_56], %69 {strides = array<i32>} : memref<49x1024xbf16, #tpu.memory_space<vmem>>, vector<1x1024xbf16>,
    %c0_57 = arith.constant 0 : index
    %c97 = arith.constant 97 : index
    %71 = vector.load %arg14[%c0_57, %c97] : memref<1x1280xf32, #tpu.memory_space<vmem>>, vector<1x1024xf32>
    %72 = arith.truncf %71 : vector<1x1024xf32> to vector<1x1024xbf16>
    %c22 = arith.constant 22 : index
    %c0_58 = arith.constant 0 : index
    %73 = vector.load %arg15[%c22, %c0_58] : memref<49x1024xbf16, #tpu.memory_space<vmem>>, vector<1x1024xbf16>
    tpu.vector_store %arg15[%c22, %c0_58], %72 {strides = array<i32>} : memref<49x1024xbf16, #tpu.memory_space<vmem>>, vector<1x1024xbf16>,
    %c0_59 = arith.constant 0 : index
    %c98 = arith.constant 98 : index
    %74 = vector.load %arg14[%c0_59, %c98] : memref<1x1280xf32, #tpu.memory_space<vmem>>, vector<1x1024xf32>
    %75 = arith.truncf %74 : vector<1x1024xf32> to vector<1x1024xbf16>
    %c23 = arith.constant 23 : index
    %c0_60 = arith.constant 0 : index
    %76 = vector.load %arg15[%c23, %c0_60] : memref<49x1024xbf16, #tpu.memory_space<vmem>>, vector<1x1024xbf16>
    tpu.vector_store %arg15[%c23, %c0_60], %75 {strides = array<i32>} : memref<49x1024xbf16, #tpu.memory_space<vmem>>, vector<1x1024xbf16>,
    %c0_61 = arith.constant 0 : index
    %c99 = arith.constant 99 : index
    %77 = vector.load %arg14[%c0_61, %c99] : memref<1x1280xf32, #tpu.memory_space<vmem>>, vector<1x1024xf32>
    %78 = arith.truncf %77 : vector<1x1024xf32> to vector<1x1024xbf16>
    %c24 = arith.constant 24 : index
    %c0_62 = arith.constant 0 : index
    %79 = vector.load %arg15[%c24, %c0_62] : memref<49x1024xbf16, #tpu.memory_space<vmem>>, vector<1x1024xbf16>
    tpu.vector_store %arg15[%c24, %c0_62], %78 {strides = array<i32>} : memref<49x1024xbf16, #tpu.memory_space<vmem>>, vector<1x1024xbf16>,
    %c0_63 = arith.constant 0 : index
    %c100 = arith.constant 100 : index
    %80 = vector.load %arg14[%c0_63, %c100] : memref<1x1280xf32, #tpu.memory_space<vmem>>, vector<1x1024xf32>
    %81 = arith.truncf %80 : vector<1x1024xf32> to vector<1x1024xbf16>
    %c25 = arith.constant 25 : index
    %c0_64 = arith.constant 0 : index
    %82 = vector.load %arg15[%c25, %c0_64] : memref<49x1024xbf16, #tpu.memory_space<vmem>>, vector<1x1024xbf16>
    tpu.vector_store %arg15[%c25, %c0_64], %81 {strides = array<i32>} : memref<49x1024xbf16, #tpu.memory_space<vmem>>, vector<1x1024xbf16>,
    %c0_65 = arith.constant 0 : index
    %c101 = arith.constant 101 : index
    %83 = vector.load %arg14[%c0_65, %c101] : memref<1x1280xf32, #tpu.memory_space<vmem>>, vector<1x1024xf32>
    %84 = arith.truncf %83 : vector<1x1024xf32> to vector<1x1024xbf16>
    %c26 = arith.constant 26 : index
    %c0_66 = arith.constant 0 : index
    %85 = vector.load %arg15[%c26, %c0_66] : memref<49x1024xbf16, #tpu.memory_space<vmem>>, vector<1x1024xbf16>
    tpu.vector_store %arg15[%c26, %c0_66], %84 {strides = array<i32>} : memref<49x1024xbf16, #tpu.memory_space<vmem>>, vector<1x1024xbf16>,
    %c0_67 = arith.constant 0 : index
    %c102 = arith.constant 102 : index
    %86 = vector.load %arg14[%c0_67, %c102] : memref<1x1280xf32, #tpu.memory_space<vmem>>, vector<1x1024xf32>
    %87 = arith.truncf %86 : vector<1x1024xf32> to vector<1x1024xbf16>
    %c27 = arith.constant 27 : index
    %c0_68 = arith.constant 0 : index
    %88 = vector.load %arg15[%c27, %c0_68] : memref<49x1024xbf16, #tpu.memory_space<vmem>>, vector<1x1024xbf16>
    tpu.vector_store %arg15[%c27, %c0_68], %87 {strides = array<i32>} : memref<49x1024xbf16, #tpu.memory_space<vmem>>, vector<1x1024xbf16>,
    %c0_69 = arith.constant 0 : index
    %c128 = arith.constant 128 : index
    %89 = vector.load %arg14[%c0_69, %c128] : memref<1x1280xf32, #tpu.memory_space<vmem>>, vector<1x1024xf32>
    %90 = arith.truncf %89 : vector<1x1024xf32> to vector<1x1024xbf16>
    %c28 = arith.constant 28 : index
    %c0_70 = arith.constant 0 : index
    %91 = vector.load %arg15[%c28, %c0_70] : memref<49x1024xbf16, #tpu.memory_space<vmem>>, vector<1x1024xbf16>
    tpu.vector_store %arg15[%c28, %c0_70], %90 {strides = array<i32>} : memref<49x1024xbf16, #tpu.memory_space<vmem>>, vector<1x1024xbf16>,
    %c0_71 = arith.constant 0 : index
    %c129 = arith.constant 129 : index
    %92 = vector.load %arg14[%c0_71, %c129] : memref<1x1280xf32, #tpu.memory_space<vmem>>, vector<1x1024xf32>
    %93 = arith.truncf %92 : vector<1x1024xf32> to vector<1x1024xbf16>
    %c29 = arith.constant 29 : index
    %c0_72 = arith.constant 0 : index
    %94 = vector.load %arg15[%c29, %c0_72] : memref<49x1024xbf16, #tpu.memory_space<vmem>>, vector<1x1024xbf16>
    tpu.vector_store %arg15[%c29, %c0_72], %93 {strides = array<i32>} : memref<49x1024xbf16, #tpu.memory_space<vmem>>, vector<1x1024xbf16>,
    %c0_73 = arith.constant 0 : index
    %c130 = arith.constant 130 : index
    %95 = vector.load %arg14[%c0_73, %c130] : memref<1x1280xf32, #tpu.memory_space<vmem>>, vector<1x1024xf32>
    %96 = arith.truncf %95 : vector<1x1024xf32> to vector<1x1024xbf16>
    %c30 = arith.constant 30 : index
    %c0_74 = arith.constant 0 : index
    %97 = vector.load %arg15[%c30, %c0_74] : memref<49x1024xbf16, #tpu.memory_space<vmem>>, vector<1x1024xbf16>
    tpu.vector_store %arg15[%c30, %c0_74], %96 {strides = array<i32>} : memref<49x1024xbf16, #tpu.memory_space<vmem>>, vector<1x1024xbf16>,
    %c0_75 = arith.constant 0 : index
    %c131 = arith.constant 131 : index
    %98 = vector.load %arg14[%c0_75, %c131] : memref<1x1280xf32, #tpu.memory_space<vmem>>, vector<1x1024xf32>
    %99 = arith.truncf %98 : vector<1x1024xf32> to vector<1x1024xbf16>
    %c31 = arith.constant 31 : index
    %c0_76 = arith.constant 0 : index
    %100 = vector.load %arg15[%c31, %c0_76] : memref<49x1024xbf16, #tpu.memory_space<vmem>>, vector<1x1024xbf16>
    tpu.vector_store %arg15[%c31, %c0_76], %99 {strides = array<i32>} : memref<49x1024xbf16, #tpu.memory_space<vmem>>, vector<1x1024xbf16>,
    %c0_77 = arith.constant 0 : index
    %c132 = arith.constant 132 : index
    %101 = vector.load %arg14[%c0_77, %c132] : memref<1x1280xf32, #tpu.memory_space<vmem>>, vector<1x1024xf32>
    %102 = arith.truncf %101 : vector<1x1024xf32> to vector<1x1024xbf16>
    %c32_78 = arith.constant 32 : index
    %c0_79 = arith.constant 0 : index
    %103 = vector.load %arg15[%c32_78, %c0_79] : memref<49x1024xbf16, #tpu.memory_space<vmem>>, vector<1x1024xbf16>
    tpu.vector_store %arg15[%c32_78, %c0_79], %102 {strides = array<i32>} : memref<49x1024xbf16, #tpu.memory_space<vmem>>, vector<1x1024xbf16>,
    %c0_80 = arith.constant 0 : index
    %c133 = arith.constant 133 : index
    %104 = vector.load %arg14[%c0_80, %c133] : memref<1x1280xf32, #tpu.memory_space<vmem>>, vector<1x1024xf32>
    %105 = arith.truncf %104 : vector<1x1024xf32> to vector<1x1024xbf16>
    %c33_81 = arith.constant 33 : index
    %c0_82 = arith.constant 0 : index
    %106 = vector.load %arg15[%c33_81, %c0_82] : memref<49x1024xbf16, #tpu.memory_space<vmem>>, vector<1x1024xbf16>
    tpu.vector_store %arg15[%c33_81, %c0_82], %105 {strides = array<i32>} : memref<49x1024xbf16, #tpu.memory_space<vmem>>, vector<1x1024xbf16>,
    %c0_83 = arith.constant 0 : index
    %c134 = arith.constant 134 : index
    %107 = vector.load %arg14[%c0_83, %c134] : memref<1x1280xf32, #tpu.memory_space<vmem>>, vector<1x1024xf32>
    %108 = arith.truncf %107 : vector<1x1024xf32> to vector<1x1024xbf16>
    %c34_84 = arith.constant 34 : index
    %c0_85 = arith.constant 0 : index
    %109 = vector.load %arg15[%c34_84, %c0_85] : memref<49x1024xbf16, #tpu.memory_space<vmem>>, vector<1x1024xbf16>
    tpu.vector_store %arg15[%c34_84, %c0_85], %108 {strides = array<i32>} : memref<49x1024xbf16, #tpu.memory_space<vmem>>, vector<1x1024xbf16>,
    %c0_86 = arith.constant 0 : index
    %c160 = arith.constant 160 : index
    %110 = vector.load %arg14[%c0_86, %c160] : memref<1x1280xf32, #tpu.memory_space<vmem>>, vector<1x1024xf32>
    %111 = arith.truncf %110 : vector<1x1024xf32> to vector<1x1024xbf16>
    %c35_87 = arith.constant 35 : index
    %c0_88 = arith.constant 0 : index
    %112 = vector.load %arg15[%c35_87, %c0_88] : memref<49x1024xbf16, #tpu.memory_space<vmem>>, vector<1x1024xbf16>
    tpu.vector_store %arg15[%c35_87, %c0_88], %111 {strides = array<i32>} : memref<49x1024xbf16, #tpu.memory_space<vmem>>, vector<1x1024xbf16>,
    %c0_89 = arith.constant 0 : index
    %c161 = arith.constant 161 : index
    %113 = vector.load %arg14[%c0_89, %c161] : memref<1x1280xf32, #tpu.memory_space<vmem>>, vector<1x1024xf32>
    %114 = arith.truncf %113 : vector<1x1024xf32> to vector<1x1024xbf16>
    %c36_90 = arith.constant 36 : index
    %c0_91 = arith.constant 0 : index
    %115 = vector.load %arg15[%c36_90, %c0_91] : memref<49x1024xbf16, #tpu.memory_space<vmem>>, vector<1x1024xbf16>
    tpu.vector_store %arg15[%c36_90, %c0_91], %114 {strides = array<i32>} : memref<49x1024xbf16, #tpu.memory_space<vmem>>, vector<1x1024xbf16>,
    %c0_92 = arith.constant 0 : index
    %c162 = arith.constant 162 : index
    %116 = vector.load %arg14[%c0_92, %c162] : memref<1x1280xf32, #tpu.memory_space<vmem>>, vector<1x1024xf32>
    %117 = arith.truncf %116 : vector<1x1024xf32> to vector<1x1024xbf16>
    %c37_93 = arith.constant 37 : index
    %c0_94 = arith.constant 0 : index
    %118 = vector.load %arg15[%c37_93, %c0_94] : memref<49x1024xbf16, #tpu.memory_space<vmem>>, vector<1x1024xbf16>
    tpu.vector_store %arg15[%c37_93, %c0_94], %117 {strides = array<i32>} : memref<49x1024xbf16, #tpu.memory_space<vmem>>, vector<1x1024xbf16>,
    %c0_95 = arith.constant 0 : index
    %c163 = arith.constant 163 : index
    %119 = vector.load %arg14[%c0_95, %c163] : memref<1x1280xf32, #tpu.memory_space<vmem>>, vector<1x1024xf32>
    %120 = arith.truncf %119 : vector<1x1024xf32> to vector<1x1024xbf16>
    %c38_96 = arith.constant 38 : index
    %c0_97 = arith.constant 0 : index
    %121 = vector.load %arg15[%c38_96, %c0_97] : memref<49x1024xbf16, #tpu.memory_space<vmem>>, vector<1x1024xbf16>
    tpu.vector_store %arg15[%c38_96, %c0_97], %120 {strides = array<i32>} : memref<49x1024xbf16, #tpu.memory_space<vmem>>, vector<1x1024xbf16>,
    %c0_98 = arith.constant 0 : index
    %c164 = arith.constant 164 : index
    %122 = vector.load %arg14[%c0_98, %c164] : memref<1x1280xf32, #tpu.memory_space<vmem>>, vector<1x1024xf32>
    %123 = arith.truncf %122 : vector<1x1024xf32> to vector<1x1024xbf16>
    %c39 = arith.constant 39 : index
    %c0_99 = arith.constant 0 : index
    %124 = vector.load %arg15[%c39, %c0_99] : memref<49x1024xbf16, #tpu.memory_space<vmem>>, vector<1x1024xbf16>
    tpu.vector_store %arg15[%c39, %c0_99], %123 {strides = array<i32>} : memref<49x1024xbf16, #tpu.memory_space<vmem>>, vector<1x1024xbf16>,
    %c0_100 = arith.constant 0 : index
    %c165 = arith.constant 165 : index
    %125 = vector.load %arg14[%c0_100, %c165] : memref<1x1280xf32, #tpu.memory_space<vmem>>, vector<1x1024xf32>
    %126 = arith.truncf %125 : vector<1x1024xf32> to vector<1x1024xbf16>
    %c40 = arith.constant 40 : index
    %c0_101 = arith.constant 0 : index
    %127 = vector.load %arg15[%c40, %c0_101] : memref<49x1024xbf16, #tpu.memory_space<vmem>>, vector<1x1024xbf16>
    tpu.vector_store %arg15[%c40, %c0_101], %126 {strides = array<i32>} : memref<49x1024xbf16, #tpu.memory_space<vmem>>, vector<1x1024xbf16>,
    %c0_102 = arith.constant 0 : index
    %c166 = arith.constant 166 : index
    %128 = vector.load %arg14[%c0_102, %c166] : memref<1x1280xf32, #tpu.memory_space<vmem>>, vector<1x1024xf32>
    %129 = arith.truncf %128 : vector<1x1024xf32> to vector<1x1024xbf16>
    %c41 = arith.constant 41 : index
    %c0_103 = arith.constant 0 : index
    %130 = vector.load %arg15[%c41, %c0_103] : memref<49x1024xbf16, #tpu.memory_space<vmem>>, vector<1x1024xbf16>
    tpu.vector_store %arg15[%c41, %c0_103], %129 {strides = array<i32>} : memref<49x1024xbf16, #tpu.memory_space<vmem>>, vector<1x1024xbf16>,
    %c0_104 = arith.constant 0 : index
    %c192 = arith.constant 192 : index
    %131 = vector.load %arg14[%c0_104, %c192] : memref<1x1280xf32, #tpu.memory_space<vmem>>, vector<1x1024xf32>
    %132 = arith.truncf %131 : vector<1x1024xf32> to vector<1x1024xbf16>
    %c42 = arith.constant 42 : index
    %c0_105 = arith.constant 0 : index
    %133 = vector.load %arg15[%c42, %c0_105] : memref<49x1024xbf16, #tpu.memory_space<vmem>>, vector<1x1024xbf16>
    tpu.vector_store %arg15[%c42, %c0_105], %132 {strides = array<i32>} : memref<49x1024xbf16, #tpu.memory_space<vmem>>, vector<1x1024xbf16>,
    %c0_106 = arith.constant 0 : index
    %c193 = arith.constant 193 : index
    %134 = vector.load %arg14[%c0_106, %c193] : memref<1x1280xf32, #tpu.memory_space<vmem>>, vector<1x1024xf32>
    %135 = arith.truncf %134 : vector<1x1024xf32> to vector<1x1024xbf16>
    %c43 = arith.constant 43 : index
    %c0_107 = arith.constant 0 : index
    %136 = vector.load %arg15[%c43, %c0_107] : memref<49x1024xbf16, #tpu.memory_space<vmem>>, vector<1x1024xbf16>
    tpu.vector_store %arg15[%c43, %c0_107], %135 {strides = array<i32>} : memref<49x1024xbf16, #tpu.memory_space<vmem>>, vector<1x1024xbf16>,
    %c0_108 = arith.constant 0 : index
    %c194 = arith.constant 194 : index
    %137 = vector.load %arg14[%c0_108, %c194] : memref<1x1280xf32, #tpu.memory_space<vmem>>, vector<1x1024xf32>
    %138 = arith.truncf %137 : vector<1x1024xf32> to vector<1x1024xbf16>
    %c44 = arith.constant 44 : index
    %c0_109 = arith.constant 0 : index
    %139 = vector.load %arg15[%c44, %c0_109] : memref<49x1024xbf16, #tpu.memory_space<vmem>>, vector<1x1024xbf16>
    tpu.vector_store %arg15[%c44, %c0_109], %138 {strides = array<i32>} : memref<49x1024xbf16, #tpu.memory_space<vmem>>, vector<1x1024xbf16>,
    %c0_110 = arith.constant 0 : index
    %c195 = arith.constant 195 : index
    %140 = vector.load %arg14[%c0_110, %c195] : memref<1x1280xf32, #tpu.memory_space<vmem>>, vector<1x1024xf32>
    %141 = arith.truncf %140 : vector<1x1024xf32> to vector<1x1024xbf16>
    %c45 = arith.constant 45 : index
    %c0_111 = arith.constant 0 : index
    %142 = vector.load %arg15[%c45, %c0_111] : memref<49x1024xbf16, #tpu.memory_space<vmem>>, vector<1x1024xbf16>
    tpu.vector_store %arg15[%c45, %c0_111], %141 {strides = array<i32>} : memref<49x1024xbf16, #tpu.memory_space<vmem>>, vector<1x1024xbf16>,
    %c0_112 = arith.constant 0 : index
    %c196 = arith.constant 196 : index
    %143 = vector.load %arg14[%c0_112, %c196] : memref<1x1280xf32, #tpu.memory_space<vmem>>, vector<1x1024xf32>
    %144 = arith.truncf %143 : vector<1x1024xf32> to vector<1x1024xbf16>
    %c46 = arith.constant 46 : index
    %c0_113 = arith.constant 0 : index
    %145 = vector.load %arg15[%c46, %c0_113] : memref<49x1024xbf16, #tpu.memory_space<vmem>>, vector<1x1024xbf16>
    tpu.vector_store %arg15[%c46, %c0_113], %144 {strides = array<i32>} : memref<49x1024xbf16, #tpu.memory_space<vmem>>, vector<1x1024xbf16>,
    %c0_114 = arith.constant 0 : index
    %c197 = arith.constant 197 : index
    %146 = vector.load %arg14[%c0_114, %c197] : memref<1x1280xf32, #tpu.memory_space<vmem>>, vector<1x1024xf32>
    %147 = arith.truncf %146 : vector<1x1024xf32> to vector<1x1024xbf16>
    %c47 = arith.constant 47 : index
    %c0_115 = arith.constant 0 : index
    %148 = vector.load %arg15[%c47, %c0_115] : memref<49x1024xbf16, #tpu.memory_space<vmem>>, vector<1x1024xbf16>
    tpu.vector_store %arg15[%c47, %c0_115], %147 {strides = array<i32>} : memref<49x1024xbf16, #tpu.memory_space<vmem>>, vector<1x1024xbf16>,
    %c0_116 = arith.constant 0 : index
    %c198 = arith.constant 198 : index
    %149 = vector.load %arg14[%c0_116, %c198] : memref<1x1280xf32, #tpu.memory_space<vmem>>, vector<1x1024xf32>
    %150 = arith.truncf %149 : vector<1x1024xf32> to vector<1x1024xbf16>
    %c48 = arith.constant 48 : index
    %c0_117 = arith.constant 0 : index
    %151 = vector.load %arg15[%c48, %c0_117] : memref<49x1024xbf16, #tpu.memory_space<vmem>>, vector<1x1024xbf16>
    tpu.vector_store %arg15[%c48, %c0_117], %150 {strides = array<i32>} : memref<49x1024xbf16, #tpu.memory_space<vmem>>, vector<1x1024xbf16>,
    %c0_118 = arith.constant 0 : index
    %c0_119 = arith.constant 0 : index
    %152 = vector.load %arg3[%c0_118, %c0_119] : memref<8x49xbf16, #tpu.memory_space<vmem>>, vector<8x49xbf16>
    %c0_120 = arith.constant 0 : index
    %c0_121 = arith.constant 0 : index
    %153 = vector.load %arg15[%c0_120, %c0_121] : memref<49x1024xbf16, #tpu.memory_space<vmem>>, vector<49x1024xbf16>
    %cst_122 = arith.constant dense<0.000000e+00> : vector<8x1024xf32>
    %154 = tpu.matmul %152, %153, %cst_122 {dimension_numbers = #tpu.dot_dimension_numbers<[1], [0], [0], [1], [0, 0, 1, 1], [], []>} : vector<8x49xbf16>, vector<49x1024xbf16>, vector<8x1024xf32> -> vector<8x1024xf32>
    %c0_123 = arith.constant 0 : index
    %c0_124 = arith.constant 0 : index
    %155 = vector.load %arg4[%c0_123, %c0_124] : memref<8x1xf32, #tpu.memory_space<vmem>>, vector<8x1xf32>
    %156 = vector.broadcast %155 : vector<8x1xf32> to vector<8x1024xf32>
    %157 = arith.addf %154, %156 : vector<8x1024xf32>
    %c0_125 = arith.constant 0 : index
    %c0_126 = arith.constant 0 : index
    %158 = vector.load %arg16[%c0_125, %c0_126] : memref<8x1152xf32, #tpu.memory_space<vmem>>, vector<8x1024xf32>
    tpu.vector_store %arg16[%c0_125, %c0_126], %157 {strides = array<i32>} : memref<8x1152xf32, #tpu.memory_space<vmem>>, vector<8x1024xf32>,
    %cst_127 = arith.constant 0.000000e+00 : f32
    %159 = vector.broadcast %cst_127 : f32 to vector<8x128xf32>
    %c0_128 = arith.constant 0 : index
    %c1024_129 = arith.constant 1024 : index
    %160 = vector.load %arg16[%c0_128, %c1024_129] : memref<8x1152xf32, #tpu.memory_space<vmem>>, vector<8x128xf32>
    tpu.vector_store %arg16[%c0_128, %c1024_129], %159 {strides = array<i32>} : memref<8x1152xf32, #tpu.memory_space<vmem>>, vector<8x128xf32>,
    %c0_130 = arith.constant 0 : index
    %c0_131 = arith.constant 0 : index
    %161 = vector.load %arg16[%c0_130, %c0_131] : memref<8x1152xf32, #tpu.memory_space<vmem>>, vector<8x1024xf32>
    %c0_132 = arith.constant 0 : index
    %c1_133 = arith.constant 1 : index
    %162 = vector.load %arg16[%c0_132, %c1_133] : memref<8x1152xf32, #tpu.memory_space<vmem>>, vector<8x1024xf32>
    %163 = arith.maximumf %161, %162 : vector<8x1024xf32>
    %c0_134 = arith.constant 0 : index
    %c32_135 = arith.constant 32 : index
    %164 = vector.load %arg16[%c0_134, %c32_135] : memref<8x1152xf32, #tpu.memory_space<vmem>>, vector<8x1024xf32>
    %c0_136 = arith.constant 0 : index
    %c33_137 = arith.constant 33 : index
    %165 = vector.load %arg16[%c0_136, %c33_137] : memref<8x1152xf32, #tpu.memory_space<vmem>>, vector<8x1024xf32>
    %166 = arith.maximumf %164, %165 : vector<8x1024xf32>
    %167 = arith.maximumf %163, %166 : vector<8x1024xf32>
    %cst_138 = arith.constant 0.000000e+00 : f32
    %168 = vector.broadcast %cst_138 : f32 to vector<8x1024xf32>
    %169 = arith.maximumf %167, %168 : vector<8x1024xf32>
    %c0_139 = arith.constant 0 : index
    %c0_140 = arith.constant 0 : index
    %170 = vector.load %arg17[%c0_139, %c0_140] : memref<8x1408xf32, #tpu.memory_space<vmem>>, vector<8x1024xf32>
    tpu.vector_store %arg17[%c0_139, %c0_140], %169 {strides = array<i32>} : memref<8x1408xf32, #tpu.memory_space<vmem>>, vector<8x1024xf32>,
    %cst_141 = arith.constant 0.000000e+00 : f32
    %171 = vector.broadcast %cst_141 : f32 to vector<8x384xf32>
    %c0_142 = arith.constant 0 : index
    %c1024_143 = arith.constant 1024 : index
    %172 = vector.load %arg17[%c0_142, %c1024_143] : memref<8x1408xf32, #tpu.memory_space<vmem>>, vector<8x384xf32>
    tpu.vector_store %arg17[%c0_142, %c1024_143], %171 {strides = array<i32>} : memref<8x1408xf32, #tpu.memory_space<vmem>>, vector<8x384xf32>,
    %c0_144 = arith.constant 0 : index
    %c0_145 = arith.constant 0 : index
    %173 = vector.load %arg17[%c0_144, %c0_145] : memref<8x1408xf32, #tpu.memory_space<vmem>>, vector<8x1024xf32>
    %174 = arith.truncf %173 : vector<8x1024xf32> to vector<8x1024xbf16>
    %c0_146 = arith.constant 0 : index
    %c0_147 = arith.constant 0 : index
    %175 = vector.load %arg18[%c0_146, %c0_147] : memref<200x1024xbf16, #tpu.memory_space<vmem>>, vector<8x1024xbf16>
    tpu.vector_store %arg18[%c0_146, %c0_147], %174 {strides = array<i32>} : memref<200x1024xbf16, #tpu.memory_space<vmem>>, vector<8x1024xbf16>,
    %c0_148 = arith.constant 0 : index
    %c2_149 = arith.constant 2 : index
    %176 = vector.load %arg17[%c0_148, %c2_149] : memref<8x1408xf32, #tpu.memory_space<vmem>>, vector<8x1024xf32>
    %177 = arith.truncf %176 : vector<8x1024xf32> to vector<8x1024xbf16>
    %c8_150 = arith.constant 8 : index
    %c0_151 = arith.constant 0 : index
    %178 = vector.load %arg18[%c8_150, %c0_151] : memref<200x1024xbf16, #tpu.memory_space<vmem>>, vector<8x1024xbf16>
    tpu.vector_store %arg18[%c8_150, %c0_151], %177 {strides = array<i32>} : memref<200x1024xbf16, #tpu.memory_space<vmem>>, vector<8x1024xbf16>,
    %c0_152 = arith.constant 0 : index
    %c4_153 = arith.constant 4 : index
    %179 = vector.load %arg17[%c0_152, %c4_153] : memref<8x1408xf32, #tpu.memory_space<vmem>>, vector<8x1024xf32>
    %180 = arith.truncf %179 : vector<8x1024xf32> to vector<8x1024xbf16>
    %c16_154 = arith.constant 16 : index
    %c0_155 = arith.constant 0 : index
    %181 = vector.load %arg18[%c16_154, %c0_155] : memref<200x1024xbf16, #tpu.memory_space<vmem>>, vector<8x1024xbf16>
    tpu.vector_store %arg18[%c16_154, %c0_155], %180 {strides = array<i32>} : memref<200x1024xbf16, #tpu.memory_space<vmem>>, vector<8x1024xbf16>,
    %c0_156 = arith.constant 0 : index
    %c6_157 = arith.constant 6 : index
    %182 = vector.load %arg17[%c0_156, %c6_157] : memref<8x1408xf32, #tpu.memory_space<vmem>>, vector<8x1024xf32>
    %183 = arith.truncf %182 : vector<8x1024xf32> to vector<8x1024xbf16>
    %c24_158 = arith.constant 24 : index
    %c0_159 = arith.constant 0 : index
    %184 = vector.load %arg18[%c24_158, %c0_159] : memref<200x1024xbf16, #tpu.memory_space<vmem>>, vector<8x1024xbf16>
    tpu.vector_store %arg18[%c24_158, %c0_159], %183 {strides = array<i32>} : memref<200x1024xbf16, #tpu.memory_space<vmem>>, vector<8x1024xbf16>,
    %c0_160 = arith.constant 0 : index
    %c8_161 = arith.constant 8 : index
    %185 = vector.load %arg17[%c0_160, %c8_161] : memref<8x1408xf32, #tpu.memory_space<vmem>>, vector<8x1024xf32>
    %186 = arith.truncf %185 : vector<8x1024xf32> to vector<8x1024xbf16>
    %c32_162 = arith.constant 32 : index
    %c0_163 = arith.constant 0 : index
    %187 = vector.load %arg18[%c32_162, %c0_163] : memref<200x1024xbf16, #tpu.memory_space<vmem>>, vector<8x1024xbf16>
    tpu.vector_store %arg18[%c32_162, %c0_163], %186 {strides = array<i32>} : memref<200x1024xbf16, #tpu.memory_space<vmem>>, vector<8x1024xbf16>,
    %c0_164 = arith.constant 0 : index
    %c64_165 = arith.constant 64 : index
    %188 = vector.load %arg17[%c0_164, %c64_165] : memref<8x1408xf32, #tpu.memory_space<vmem>>, vector<8x1024xf32>
    %189 = arith.truncf %188 : vector<8x1024xf32> to vector<8x1024xbf16>
    %c40_166 = arith.constant 40 : index
    %c0_167 = arith.constant 0 : index
    %190 = vector.load %arg18[%c40_166, %c0_167] : memref<200x1024xbf16, #tpu.memory_space<vmem>>, vector<8x1024xbf16>
    tpu.vector_store %arg18[%c40_166, %c0_167], %189 {strides = array<i32>} : memref<200x1024xbf16, #tpu.memory_space<vmem>>, vector<8x1024xbf16>,
    %c0_168 = arith.constant 0 : index
    %c66_169 = arith.constant 66 : index
    %191 = vector.load %arg17[%c0_168, %c66_169] : memref<8x1408xf32, #tpu.memory_space<vmem>>, vector<8x1024xf32>
    %192 = arith.truncf %191 : vector<8x1024xf32> to vector<8x1024xbf16>
    %c48_170 = arith.constant 48 : index
    %c0_171 = arith.constant 0 : index
    %193 = vector.load %arg18[%c48_170, %c0_171] : memref<200x1024xbf16, #tpu.memory_space<vmem>>, vector<8x1024xbf16>
    tpu.vector_store %arg18[%c48_170, %c0_171], %192 {strides = array<i32>} : memref<200x1024xbf16, #tpu.memory_space<vmem>>, vector<8x1024xbf16>,
    %c0_172 = arith.constant 0 : index
    %c68_173 = arith.constant 68 : index
    %194 = vector.load %arg17[%c0_172, %c68_173] : memref<8x1408xf32, #tpu.memory_space<vmem>>, vector<8x1024xf32>
    %195 = arith.truncf %194 : vector<8x1024xf32> to vector<8x1024xbf16>
    %c56 = arith.constant 56 : index
    %c0_174 = arith.constant 0 : index
    %196 = vector.load %arg18[%c56, %c0_174] : memref<200x1024xbf16, #tpu.memory_space<vmem>>, vector<8x1024xbf16>
    tpu.vector_store %arg18[%c56, %c0_174], %195 {strides = array<i32>} : memref<200x1024xbf16, #tpu.memory_space<vmem>>, vector<8x1024xbf16>,
    %c0_175 = arith.constant 0 : index
    %c70_176 = arith.constant 70 : index
    %197 = vector.load %arg17[%c0_175, %c70_176] : memref<8x1408xf32, #tpu.memory_space<vmem>>, vector<8x1024xf32>
    %198 = arith.truncf %197 : vector<8x1024xf32> to vector<8x1024xbf16>
    %c64_177 = arith.constant 64 : index
    %c0_178 = arith.constant 0 : index
    %199 = vector.load %arg18[%c64_177, %c0_178] : memref<200x1024xbf16, #tpu.memory_space<vmem>>, vector<8x1024xbf16>
    tpu.vector_store %arg18[%c64_177, %c0_178], %198 {strides = array<i32>} : memref<200x1024xbf16, #tpu.memory_space<vmem>>, vector<8x1024xbf16>,
    %c0_179 = arith.constant 0 : index
    %c72 = arith.constant 72 : index
    %200 = vector.load %arg17[%c0_179, %c72] : memref<8x1408xf32, #tpu.memory_space<vmem>>, vector<8x1024xf32>
    %201 = arith.truncf %200 : vector<8x1024xf32> to vector<8x1024xbf16>
    %c72_180 = arith.constant 72 : index
    %c0_181 = arith.constant 0 : index
    %202 = vector.load %arg18[%c72_180, %c0_181] : memref<200x1024xbf16, #tpu.memory_space<vmem>>, vector<8x1024xbf16>
    tpu.vector_store %arg18[%c72_180, %c0_181], %201 {strides = array<i32>} : memref<200x1024xbf16, #tpu.memory_space<vmem>>, vector<8x1024xbf16>,
    %c0_182 = arith.constant 0 : index
    %c128_183 = arith.constant 128 : index
    %203 = vector.load %arg17[%c0_182, %c128_183] : memref<8x1408xf32, #tpu.memory_space<vmem>>, vector<8x1024xf32>
    %204 = arith.truncf %203 : vector<8x1024xf32> to vector<8x1024xbf16>
    %c80 = arith.constant 80 : index
    %c0_184 = arith.constant 0 : index
    %205 = vector.load %arg18[%c80, %c0_184] : memref<200x1024xbf16, #tpu.memory_space<vmem>>, vector<8x1024xbf16>
    tpu.vector_store %arg18[%c80, %c0_184], %204 {strides = array<i32>} : memref<200x1024xbf16, #tpu.memory_space<vmem>>, vector<8x1024xbf16>,
    %c0_185 = arith.constant 0 : index
    %c130_186 = arith.constant 130 : index
    %206 = vector.load %arg17[%c0_185, %c130_186] : memref<8x1408xf32, #tpu.memory_space<vmem>>, vector<8x1024xf32>
    %207 = arith.truncf %206 : vector<8x1024xf32> to vector<8x1024xbf16>
    %c88 = arith.constant 88 : index
    %c0_187 = arith.constant 0 : index
    %208 = vector.load %arg18[%c88, %c0_187] : memref<200x1024xbf16, #tpu.memory_space<vmem>>, vector<8x1024xbf16>
    tpu.vector_store %arg18[%c88, %c0_187], %207 {strides = array<i32>} : memref<200x1024xbf16, #tpu.memory_space<vmem>>, vector<8x1024xbf16>,
    %c0_188 = arith.constant 0 : index
    %c132_189 = arith.constant 132 : index
    %209 = vector.load %arg17[%c0_188, %c132_189] : memref<8x1408xf32, #tpu.memory_space<vmem>>, vector<8x1024xf32>
    %210 = arith.truncf %209 : vector<8x1024xf32> to vector<8x1024xbf16>
    %c96_190 = arith.constant 96 : index
    %c0_191 = arith.constant 0 : index
    %211 = vector.load %arg18[%c96_190, %c0_191] : memref<200x1024xbf16, #tpu.memory_space<vmem>>, vector<8x1024xbf16>
    tpu.vector_store %arg18[%c96_190, %c0_191], %210 {strides = array<i32>} : memref<200x1024xbf16, #tpu.memory_space<vmem>>, vector<8x1024xbf16>,
    %c0_192 = arith.constant 0 : index
    %c134_193 = arith.constant 134 : index
    %212 = vector.load %arg17[%c0_192, %c134_193] : memref<8x1408xf32, #tpu.memory_space<vmem>>, vector<8x1024xf32>
    %213 = arith.truncf %212 : vector<8x1024xf32> to vector<8x1024xbf16>
    %c104 = arith.constant 104 : index
    %c0_194 = arith.constant 0 : index
    %214 = vector.load %arg18[%c104, %c0_194] : memref<200x1024xbf16, #tpu.memory_space<vmem>>, vector<8x1024xbf16>
    tpu.vector_store %arg18[%c104, %c0_194], %213 {strides = array<i32>} : memref<200x1024xbf16, #tpu.memory_space<vmem>>, vector<8x1024xbf16>,
    %c0_195 = arith.constant 0 : index
    %c136 = arith.constant 136 : index
    %215 = vector.load %arg17[%c0_195, %c136] : memref<8x1408xf32, #tpu.memory_space<vmem>>, vector<8x1024xf32>
    %216 = arith.truncf %215 : vector<8x1024xf32> to vector<8x1024xbf16>
    %c112 = arith.constant 112 : index
    %c0_196 = arith.constant 0 : index
    %217 = vector.load %arg18[%c112, %c0_196] : memref<200x1024xbf16, #tpu.memory_space<vmem>>, vector<8x1024xbf16>
    tpu.vector_store %arg18[%c112, %c0_196], %216 {strides = array<i32>} : memref<200x1024xbf16, #tpu.memory_space<vmem>>, vector<8x1024xbf16>,
    %c0_197 = arith.constant 0 : index
    %c192_198 = arith.constant 192 : index
    %218 = vector.load %arg17[%c0_197, %c192_198] : memref<8x1408xf32, #tpu.memory_space<vmem>>, vector<8x1024xf32>
    %219 = arith.truncf %218 : vector<8x1024xf32> to vector<8x1024xbf16>
    %c120 = arith.constant 120 : index
    %c0_199 = arith.constant 0 : index
    %220 = vector.load %arg18[%c120, %c0_199] : memref<200x1024xbf16, #tpu.memory_space<vmem>>, vector<8x1024xbf16>
    tpu.vector_store %arg18[%c120, %c0_199], %219 {strides = array<i32>} : memref<200x1024xbf16, #tpu.memory_space<vmem>>, vector<8x1024xbf16>,
    %c0_200 = arith.constant 0 : index
    %c194_201 = arith.constant 194 : index
    %221 = vector.load %arg17[%c0_200, %c194_201] : memref<8x1408xf32, #tpu.memory_space<vmem>>, vector<8x1024xf32>
    %222 = arith.truncf %221 : vector<8x1024xf32> to vector<8x1024xbf16>
    %c128_202 = arith.constant 128 : index
    %c0_203 = arith.constant 0 : index
    %223 = vector.load %arg18[%c128_202, %c0_203] : memref<200x1024xbf16, #tpu.memory_space<vmem>>, vector<8x1024xbf16>
    tpu.vector_store %arg18[%c128_202, %c0_203], %222 {strides = array<i32>} : memref<200x1024xbf16, #tpu.memory_space<vmem>>, vector<8x1024xbf16>,
    %c0_204 = arith.constant 0 : index
    %c196_205 = arith.constant 196 : index
    %224 = vector.load %arg17[%c0_204, %c196_205] : memref<8x1408xf32, #tpu.memory_space<vmem>>, vector<8x1024xf32>
    %225 = arith.truncf %224 : vector<8x1024xf32> to vector<8x1024xbf16>
    %c136_206 = arith.constant 136 : index
    %c0_207 = arith.constant 0 : index
    %226 = vector.load %arg18[%c136_206, %c0_207] : memref<200x1024xbf16, #tpu.memory_space<vmem>>, vector<8x1024xbf16>
    tpu.vector_store %arg18[%c136_206, %c0_207], %225 {strides = array<i32>} : memref<200x1024xbf16, #tpu.memory_space<vmem>>, vector<8x1024xbf16>,
    %c0_208 = arith.constant 0 : index
    %c198_209 = arith.constant 198 : index
    %227 = vector.load %arg17[%c0_208, %c198_209] : memref<8x1408xf32, #tpu.memory_space<vmem>>, vector<8x1024xf32>
    %228 = arith.truncf %227 : vector<8x1024xf32> to vector<8x1024xbf16>
    %c144 = arith.constant 144 : index
    %c0_210 = arith.constant 0 : index
    %229 = vector.load %arg18[%c144, %c0_210] : memref<200x1024xbf16, #tpu.memory_space<vmem>>, vector<8x1024xbf16>
    tpu.vector_store %arg18[%c144, %c0_210], %228 {strides = array<i32>} : memref<200x1024xbf16, #tpu.memory_space<vmem>>, vector<8x1024xbf16>,
    %c0_211 = arith.constant 0 : index
    %c200 = arith.constant 200 : index
    %230 = vector.load %arg17[%c0_211, %c200] : memref<8x1408xf32, #tpu.memory_space<vmem>>, vector<8x1024xf32>
    %231 = arith.truncf %230 : vector<8x1024xf32> to vector<8x1024xbf16>
    %c152 = arith.constant 152 : index
    %c0_212 = arith.constant 0 : index
    %232 = vector.load %arg18[%c152, %c0_212] : memref<200x1024xbf16, #tpu.memory_space<vmem>>, vector<8x1024xbf16>
    tpu.vector_store %arg18[%c152, %c0_212], %231 {strides = array<i32>} : memref<200x1024xbf16, #tpu.memory_space<vmem>>, vector<8x1024xbf16>,
    %c0_213 = arith.constant 0 : index
    %c256 = arith.constant 256 : index
    %233 = vector.load %arg17[%c0_213, %c256] : memref<8x1408xf32, #tpu.memory_space<vmem>>, vector<8x1024xf32>
    %234 = arith.truncf %233 : vector<8x1024xf32> to vector<8x1024xbf16>
    %c160_214 = arith.constant 160 : index
    %c0_215 = arith.constant 0 : index
    %235 = vector.load %arg18[%c160_214, %c0_215] : memref<200x1024xbf16, #tpu.memory_space<vmem>>, vector<8x1024xbf16>
    tpu.vector_store %arg18[%c160_214, %c0_215], %234 {strides = array<i32>} : memref<200x1024xbf16, #tpu.memory_space<vmem>>, vector<8x1024xbf16>,
    %c0_216 = arith.constant 0 : index
    %c258 = arith.constant 258 : index
    %236 = vector.load %arg17[%c0_216, %c258] : memref<8x1408xf32, #tpu.memory_space<vmem>>, vector<8x1024xf32>
    %237 = arith.truncf %236 : vector<8x1024xf32> to vector<8x1024xbf16>
    %c168 = arith.constant 168 : index
    %c0_217 = arith.constant 0 : index
    %238 = vector.load %arg18[%c168, %c0_217] : memref<200x1024xbf16, #tpu.memory_space<vmem>>, vector<8x1024xbf16>
    tpu.vector_store %arg18[%c168, %c0_217], %237 {strides = array<i32>} : memref<200x1024xbf16, #tpu.memory_space<vmem>>, vector<8x1024xbf16>,
    %c0_218 = arith.constant 0 : index
    %c260 = arith.constant 260 : index
    %239 = vector.load %arg17[%c0_218, %c260] : memref<8x1408xf32, #tpu.memory_space<vmem>>, vector<8x1024xf32>
    %240 = arith.truncf %239 : vector<8x1024xf32> to vector<8x1024xbf16>
    %c176 = arith.constant 176 : index
    %c0_219 = arith.constant 0 : index
    %241 = vector.load %arg18[%c176, %c0_219] : memref<200x1024xbf16, #tpu.memory_space<vmem>>, vector<8x1024xbf16>
    tpu.vector_store %arg18[%c176, %c0_219], %240 {strides = array<i32>} : memref<200x1024xbf16, #tpu.memory_space<vmem>>, vector<8x1024xbf16>,
    %c0_220 = arith.constant 0 : index
    %c262 = arith.constant 262 : index
    %242 = vector.load %arg17[%c0_220, %c262] : memref<8x1408xf32, #tpu.memory_space<vmem>>, vector<8x1024xf32>
    %243 = arith.truncf %242 : vector<8x1024xf32> to vector<8x1024xbf16>
    %c184 = arith.constant 184 : index
    %c0_221 = arith.constant 0 : index
    %244 = vector.load %arg18[%c184, %c0_221] : memref<200x1024xbf16, #tpu.memory_space<vmem>>, vector<8x1024xbf16>
    tpu.vector_store %arg18[%c184, %c0_221], %243 {strides = array<i32>} : memref<200x1024xbf16, #tpu.memory_space<vmem>>, vector<8x1024xbf16>,
    %c0_222 = arith.constant 0 : index
    %c264 = arith.constant 264 : index
    %245 = vector.load %arg17[%c0_222, %c264] : memref<8x1408xf32, #tpu.memory_space<vmem>>, vector<8x1024xf32>
    %246 = arith.truncf %245 : vector<8x1024xf32> to vector<8x1024xbf16>
    %c192_223 = arith.constant 192 : index
    %c0_224 = arith.constant 0 : index
    %247 = vector.load %arg18[%c192_223, %c0_224] : memref<200x1024xbf16, #tpu.memory_space<vmem>>, vector<8x1024xbf16>
    tpu.vector_store %arg18[%c192_223, %c0_224], %246 {strides = array<i32>} : memref<200x1024xbf16, #tpu.memory_space<vmem>>, vector<8x1024xbf16>,
    %c0_225 = arith.constant 0 : index
    %c0_226 = arith.constant 0 : index
    %248 = vector.load %arg5[%c0_225, %c0_226] : memref<10x200xbf16, #tpu.memory_space<vmem>>, vector<10x200xbf16>
    %c0_227 = arith.constant 0 : index
    %c0_228 = arith.constant 0 : index
    %249 = vector.load %arg18[%c0_227, %c0_228] : memref<200x1024xbf16, #tpu.memory_space<vmem>>, vector<200x1024xbf16>
    %cst_229 = arith.constant dense<0.000000e+00> : vector<10x1024xf32>
    %250 = tpu.matmul %248, %249, %cst_229 {dimension_numbers = #tpu.dot_dimension_numbers<[1], [0], [0], [1], [0, 0, 1, 1], [], []>} : vector<10x200xbf16>, vector<200x1024xbf16>, vector<10x1024xf32> -> vector<10x1024xf32>
    %c0_230 = arith.constant 0 : index
    %c0_231 = arith.constant 0 : index
    %251 = vector.load %arg6[%c0_230, %c0_231] : memref<10x1xf32, #tpu.memory_space<vmem>>, vector<10x1xf32>
    %252 = vector.broadcast %251 : vector<10x1xf32> to vector<10x1024xf32>
    %253 = arith.addf %250, %252 : vector<10x1024xf32>
    %c0_232 = arith.constant 0 : index
    %c0_233 = arith.constant 0 : index
    %254 = vector.load %arg19[%c0_232, %c0_233] : memref<10x1152xf32, #tpu.memory_space<vmem>>, vector<10x1024xf32>
    tpu.vector_store %arg19[%c0_232, %c0_233], %253 {strides = array<i32>} : memref<10x1152xf32, #tpu.memory_space<vmem>>, vector<10x1024xf32>,
    %cst_234 = arith.constant 0.000000e+00 : f32
    %255 = vector.broadcast %cst_234 : f32 to vector<10x128xf32>
    %c0_235 = arith.constant 0 : index
    %c1024_236 = arith.constant 1024 : index
    %256 = vector.load %arg19[%c0_235, %c1024_236] : memref<10x1152xf32, #tpu.memory_space<vmem>>, vector<10x128xf32>
    tpu.vector_store %arg19[%c0_235, %c1024_236], %255 {strides = array<i32>} : memref<10x1152xf32, #tpu.memory_space<vmem>>, vector<10x128xf32>,
    %c0_237 = arith.constant 0 : index
    %c0_238 = arith.constant 0 : index
    %257 = vector.load %arg19[%c0_237, %c0_238] : memref<10x1152xf32, #tpu.memory_space<vmem>>, vector<10x1024xf32>
    %c0_239 = arith.constant 0 : index
    %c2_240 = arith.constant 2 : index
    %258 = vector.load %arg19[%c0_239, %c2_240] : memref<10x1152xf32, #tpu.memory_space<vmem>>, vector<10x1024xf32>
    %259 = arith.maximumf %257, %258 : vector<10x1024xf32>
    %c0_241 = arith.constant 0 : index
    %c64_242 = arith.constant 64 : index
    %260 = vector.load %arg19[%c0_241, %c64_242] : memref<10x1152xf32, #tpu.memory_space<vmem>>, vector<10x1024xf32>
    %c0_243 = arith.constant 0 : index
    %c66_244 = arith.constant 66 : index
    %261 = vector.load %arg19[%c0_243, %c66_244] : memref<10x1152xf32, #tpu.memory_space<vmem>>, vector<10x1024xf32>
    %262 = arith.maximumf %260, %261 : vector<10x1024xf32>
    %263 = arith.maximumf %259, %262 : vector<10x1024xf32>
    %cst_245 = arith.constant 0.000000e+00 : f32
    %264 = vector.broadcast %cst_245 : f32 to vector<10x1024xf32>
    %265 = arith.maximumf %263, %264 : vector<10x1024xf32>
    %266 = arith.truncf %265 : vector<10x1024xf32> to vector<10x1024xbf16>
    %c0_246 = arith.constant 0 : index
    %c0_247 = arith.constant 0 : index
    %267 = vector.load %arg7[%c0_246, %c0_247] : memref<1024x160xbf16, #tpu.memory_space<vmem>>, vector<1024x160xbf16>
    %cst_248 = arith.constant dense<0.000000e+00> : vector<10x160xf32>
    %268 = tpu.matmul %266, %267, %cst_248 {dimension_numbers = #tpu.dot_dimension_numbers<[1], [0], [0], [1], [0, 0, 1, 1], [], []>} : vector<10x1024xbf16>, vector<1024x160xbf16>, vector<10x160xf32> -> vector<10x160xf32>
    %c0_249 = arith.constant 0 : index
    %c0_250 = arith.constant 0 : index
    %269 = vector.load %arg8[%c0_249, %c0_250] : memref<10x160xf32, #tpu.memory_space<vmem>>, vector<10x160xf32>
    %270 = arith.mulf %268, %269 : vector<10x160xf32>
    %cst_251 = arith.constant dense<0.000000e+00> : vector<160xf32>
    %271 = vector.multi_reduction <add>, %270, %cst_251 [0] : vector<10x160xf32> to vector<160xf32>
    %272 = vector.shape_cast %271 : vector<160xf32> to vector<1x160xf32>
    %c0_252 = arith.constant 0 : index
    %c0_253 = arith.constant 0 : index
    %273 = vector.load %arg9[%c0_252, %c0_253] : memref<160x32xf32, #tpu.memory_space<vmem>>, vector<160x32xf32>
    %cst_254 = arith.constant dense<0.000000e+00> : vector<1x32xf32>
    %274 = tpu.matmul %272, %273, %cst_254 {dimension_numbers = #tpu.dot_dimension_numbers<[1], [0], [0], [1], [0, 0, 1, 1], [], []>} : vector<1x160xf32>, vector<160x32xf32>, vector<1x32xf32> -> vector<1x32xf32>
    %c0_255 = arith.constant 0 : index
    %c0_256 = arith.constant 0 : index
    %275 = vector.load %arg10[%c0_255, %c0_256] : memref<1x32xf32, #tpu.memory_space<vmem>>, vector<1x32xf32>
    %276 = arith.addf %274, %275 : vector<1x32xf32>
    %cst_257 = arith.constant 0.000000e+00 : f32
    %277 = vector.broadcast %cst_257 : f32 to vector<1x32xf32>
    %278 = arith.maximumf %276, %277 : vector<1x32xf32>
    %c0_258 = arith.constant 0 : index
    %c0_259 = arith.constant 0 : index
    %279 = vector.load %arg11[%c0_258, %c0_259] : memref<32x6xf32, #tpu.memory_space<vmem>>, vector<32x6xf32>
    %cst_260 = arith.constant dense<0.000000e+00> : vector<1x6xf32>
    %280 = tpu.matmul %278, %279, %cst_260 {dimension_numbers = #tpu.dot_dimension_numbers<[1], [0], [0], [1], [0, 0, 1, 1], [], []>} : vector<1x32xf32>, vector<32x6xf32>, vector<1x6xf32> -> vector<1x6xf32>
    %c0_261 = arith.constant 0 : index
    %c0_262 = arith.constant 0 : index
    %281 = vector.load %arg12[%c0_261, %c0_262] : memref<1x6xf32, #tpu.memory_space<vmem>>, vector<1x6xf32>
    %282 = arith.addf %280, %281 : vector<1x6xf32>
    %283 = vector.extract_strided_slice %282 {offsets = [0, 0], sizes = [1, 1], strides = [1, 1]} : vector<1x6xf32> to vector<1x1xf32>
    %284 = vector.extract_strided_slice %282 {offsets = [0, 1], sizes = [1, 1], strides = [1, 1]} : vector<1x6xf32> to vector<1x1xf32>
    %285 = vector.extract_strided_slice %282 {offsets = [0, 2], sizes = [1, 1], strides = [1, 1]} : vector<1x6xf32> to vector<1x1xf32>
    %286 = vector.extract_strided_slice %282 {offsets = [0, 3], sizes = [1, 1], strides = [1, 1]} : vector<1x6xf32> to vector<1x1xf32>
    %287 = vector.extract_strided_slice %282 {offsets = [0, 4], sizes = [1, 1], strides = [1, 1]} : vector<1x6xf32> to vector<1x1xf32>
    %288 = vector.extract_strided_slice %282 {offsets = [0, 5], sizes = [1, 1], strides = [1, 1]} : vector<1x6xf32> to vector<1x1xf32>
    %289 = tpu.iota {dimensions = array<i32: 1>} : vector<1x256xi32>
    %290 = arith.sitofp %289 : vector<1x256xi32> to vector<1x256xf32>
    %cst_263 = arith.constant 5.000000e-01 : f32
    %291 = vector.broadcast %cst_263 : f32 to vector<1x256xf32>
    %292 = arith.addf %290, %291 : vector<1x256xf32>
    %cst_264 = arith.constant 6.250000e-02 : f32
    %293 = vector.broadcast %cst_264 : f32 to vector<1x256xf32>
    %294 = arith.mulf %292, %293 : vector<1x256xf32>
    %295 = math.floor %294 : vector<1x256xf32>
    %cst_265 = arith.constant 1.600000e+01 : f32
    %296 = vector.broadcast %cst_265 : f32 to vector<1x256xf32>
    %297 = arith.mulf %295, %296 : vector<1x256xf32>
    %298 = arith.subf %290, %297 : vector<1x256xf32>
    %cst_266 = arith.constant 2.000000e+00 : f32
    %299 = vector.broadcast %cst_266 : f32 to vector<1x256xf32>
    %300 = arith.mulf %299, %298 : vector<1x256xf32>
    %cst_267 = arith.constant 1.000000e+00 : f32
    %301 = vector.broadcast %cst_267 : f32 to vector<1x256xf32>
    %302 = arith.addf %300, %301 : vector<1x256xf32>
    %cst_268 = arith.constant 1.600000e+01 : f32
    %303 = vector.broadcast %cst_268 : f32 to vector<1x256xf32>
    %304 = arith.divf %302, %303 : vector<1x256xf32>
    %cst_269 = arith.constant 1.000000e+00 : f32
    %305 = vector.broadcast %cst_269 : f32 to vector<1x256xf32>
    %306 = arith.subf %304, %305 : vector<1x256xf32>
    %cst_270 = arith.constant 2.000000e+00 : f32
    %307 = vector.broadcast %cst_270 : f32 to vector<1x256xf32>
    %308 = arith.mulf %307, %295 : vector<1x256xf32>
    %cst_271 = arith.constant 1.000000e+00 : f32
    %309 = vector.broadcast %cst_271 : f32 to vector<1x256xf32>
    %310 = arith.addf %308, %309 : vector<1x256xf32>
    %cst_272 = arith.constant 1.600000e+01 : f32
    %311 = vector.broadcast %cst_272 : f32 to vector<1x256xf32>
    %312 = arith.divf %310, %311 : vector<1x256xf32>
    %cst_273 = arith.constant 1.000000e+00 : f32
    %313 = vector.broadcast %cst_273 : f32 to vector<1x256xf32>
    %314 = arith.subf %312, %313 : vector<1x256xf32>
    %315 = vector.broadcast %283 : vector<1x1xf32> to vector<1x256xf32>
    %316 = arith.mulf %315, %306 : vector<1x256xf32>
    %317 = vector.broadcast %284 : vector<1x1xf32> to vector<1x256xf32>
    %318 = arith.mulf %317, %314 : vector<1x256xf32>
    %319 = arith.addf %316, %318 : vector<1x256xf32>
    %320 = vector.broadcast %285 : vector<1x1xf32> to vector<1x256xf32>
    %321 = arith.addf %319, %320 : vector<1x256xf32>
    %322 = vector.broadcast %286 : vector<1x1xf32> to vector<1x256xf32>
    %323 = arith.mulf %322, %306 : vector<1x256xf32>
    %324 = vector.broadcast %287 : vector<1x1xf32> to vector<1x256xf32>
    %325 = arith.mulf %324, %314 : vector<1x256xf32>
    %326 = arith.addf %323, %325 : vector<1x256xf32>
    %327 = vector.broadcast %288 : vector<1x1xf32> to vector<1x256xf32>
    %328 = arith.addf %326, %327 : vector<1x256xf32>
    %cst_274 = arith.constant 1.000000e+00 : f32
    %329 = vector.broadcast %cst_274 : f32 to vector<1x256xf32>
    %330 = arith.addf %321, %329 : vector<1x256xf32>
    %cst_275 = arith.constant 3.200000e+01 : f32
    %331 = vector.broadcast %cst_275 : f32 to vector<1x256xf32>
    %332 = arith.mulf %330, %331 : vector<1x256xf32>
    %cst_276 = arith.constant 1.000000e+00 : f32
    %333 = vector.broadcast %cst_276 : f32 to vector<1x256xf32>
    %334 = arith.subf %332, %333 : vector<1x256xf32>
    %cst_277 = arith.constant 5.000000e-01 : f32
    %335 = vector.broadcast %cst_277 : f32 to vector<1x256xf32>
    %336 = arith.mulf %334, %335 : vector<1x256xf32>
    %cst_278 = arith.constant 1.000000e+00 : f32
    %337 = vector.broadcast %cst_278 : f32 to vector<1x256xf32>
    %338 = arith.addf %328, %337 : vector<1x256xf32>
    %cst_279 = arith.constant 3.200000e+01 : f32
    %339 = vector.broadcast %cst_279 : f32 to vector<1x256xf32>
    %340 = arith.mulf %338, %339 : vector<1x256xf32>
    %cst_280 = arith.constant 1.000000e+00 : f32
    %341 = vector.broadcast %cst_280 : f32 to vector<1x256xf32>
    %342 = arith.subf %340, %341 : vector<1x256xf32>
    %cst_281 = arith.constant 5.000000e-01 : f32
    %343 = vector.broadcast %cst_281 : f32 to vector<1x256xf32>
    %344 = arith.mulf %342, %343 : vector<1x256xf32>
    %345 = math.floor %336 : vector<1x256xf32>
    %346 = math.floor %344 : vector<1x256xf32>
    %347 = arith.subf %336, %345 : vector<1x256xf32>
    %348 = arith.subf %344, %346 : vector<1x256xf32>
    %349 = tpu.iota {dimensions = array<i32: 0>} : vector<32x256xi32>
    %350 = arith.sitofp %349 : vector<32x256xi32> to vector<32x256xf32>
    %351 = vector.broadcast %345 : vector<1x256xf32> to vector<32x256xf32>
    %352 = arith.cmpf oeq, %350, %351 : vector<32x256xf32>
    %cst_282 = arith.constant 1.000000e+00 : f32
    %353 = vector.broadcast %cst_282 : f32 to vector<1x256xf32>
    %354 = arith.subf %353, %347 : vector<1x256xf32>
    %cst_283 = arith.constant 0.000000e+00 : f32
    %355 = vector.shape_cast %354 : vector<1x256xf32> to vector<1x256xf32>
    %356 = vector.broadcast %355 : vector<1x256xf32> to vector<32x256xf32>
    %357 = vector.broadcast %cst_283 : f32 to vector<32x256xf32>
    %358 = arith.select %352, %356, %357 : vector<32x256xi1>, vector<32x256xf32>
    %cst_284 = arith.constant 1.000000e+00 : f32
    %359 = vector.broadcast %cst_284 : f32 to vector<1x256xf32>
    %360 = arith.addf %345, %359 : vector<1x256xf32>
    %361 = vector.broadcast %360 : vector<1x256xf32> to vector<32x256xf32>
    %362 = arith.cmpf oeq, %350, %361 : vector<32x256xf32>
    %cst_285 = arith.constant 0.000000e+00 : f32
    %363 = vector.shape_cast %347 : vector<1x256xf32> to vector<1x256xf32>
    %364 = vector.broadcast %363 : vector<1x256xf32> to vector<32x256xf32>
    %365 = vector.broadcast %cst_285 : f32 to vector<32x256xf32>
    %366 = arith.select %362, %364, %365 : vector<32x256xi1>, vector<32x256xf32>
    %367 = arith.addf %358, %366 : vector<32x256xf32>
    %368 = tpu.iota {dimensions = array<i32: 0>} : vector<32x256xi32>
    %369 = arith.sitofp %368 : vector<32x256xi32> to vector<32x256xf32>
    %370 = vector.broadcast %346 : vector<1x256xf32> to vector<32x256xf32>
    %371 = arith.cmpf oeq, %369, %370 : vector<32x256xf32>
    %cst_286 = arith.constant 1.000000e+00 : f32
    %372 = vector.broadcast %cst_286 : f32 to vector<1x256xf32>
    %373 = arith.subf %372, %348 : vector<1x256xf32>
    %cst_287 = arith.constant 0.000000e+00 : f32
    %374 = vector.shape_cast %373 : vector<1x256xf32> to vector<1x256xf32>
    %375 = vector.broadcast %374 : vector<1x256xf32> to vector<32x256xf32>
    %376 = vector.broadcast %cst_287 : f32 to vector<32x256xf32>
    %377 = arith.select %371, %375, %376 : vector<32x256xi1>, vector<32x256xf32>
    %cst_288 = arith.constant 1.000000e+00 : f32
    %378 = vector.broadcast %cst_288 : f32 to vector<1x256xf32>
    %379 = arith.addf %346, %378 : vector<1x256xf32>
    %380 = vector.broadcast %379 : vector<1x256xf32> to vector<32x256xf32>
    %381 = arith.cmpf oeq, %369, %380 : vector<32x256xf32>
    %cst_289 = arith.constant 0.000000e+00 : f32
    %382 = vector.shape_cast %348 : vector<1x256xf32> to vector<1x256xf32>
    %383 = vector.broadcast %382 : vector<1x256xf32> to vector<32x256xf32>
    %384 = vector.broadcast %cst_289 : f32 to vector<32x256xf32>
    %385 = arith.select %381, %383, %384 : vector<32x256xi1>, vector<32x256xf32>
    %386 = arith.addf %377, %385 : vector<32x256xf32>
    %c0_290 = arith.constant 0 : index
    %c0_291 = arith.constant 0 : index
    %c0_292 = arith.constant 0 : index
    %387 = vector.load %arg2[%c0_290, %c0_291, %c0_292] : memref<1x32x32xf32, #tpu.memory_space<vmem>>, vector<1x32x32xf32>
    %388 = vector.shape_cast %387 : vector<1x32x32xf32> to vector<32x32xf32>
    %cst_293 = arith.constant dense<0.000000e+00> : vector<32x256xf32>
    %389 = tpu.matmul %388, %367, %cst_293 {dimension_numbers = #tpu.dot_dimension_numbers<[1], [0], [0], [1], [0, 0, 1, 1], [], []>} : vector<32x32xf32>, vector<32x256xf32>, vector<32x256xf32> -> vector<32x256xf32>
    %390 = arith.mulf %389, %386 : vector<32x256xf32>
    %cst_294 = arith.constant dense<0.000000e+00> : vector<256xf32>
    %391 = vector.multi_reduction <add>, %390, %cst_294 [0] : vector<32x256xf32> to vector<256xf32>
    %392 = vector.shape_cast %391 : vector<256xf32> to vector<1x256xf32>
    %c0_295 = arith.constant 0 : index
    %c0_296 = arith.constant 0 : index
    %c0_297 = arith.constant 0 : index
    %393 = vector.load %arg13[%c0_295, %c0_296, %c0_297] : memref<1x1x256xf32, #tpu.memory_space<vmem>>, vector<1x1x256xf32>
    %394 = vector.shape_cast %393 : vector<1x1x256xf32> to vector<1x256xf32>
    %395 = vector.shape_cast %392 : vector<1x256xf32> to vector<1x1x256xf32>
    tpu.vector_store %arg13[%c0_295, %c0_296, %c0_297], %395 {strides = array<i32>} : memref<1x1x256xf32, #tpu.memory_space<vmem>>, vector<1x1x256xf32>,
    return
  }
  func.func @transform_0(%arg0: i32) -> (i32, i32, i32) {
    %c0_i32 = arith.constant 0 : i32
    %c0_i32_0 = arith.constant 0 : i32
    %c0_i32_1 = arith.constant 0 : i32
    return %arg0, %c0_i32, %c0_i32_0 : i32, i32, i32
  }
  func.func @transform_1(%arg0: i32) -> (i32, i32, i32) {
    %c0_i32 = arith.constant 0 : i32
    %c0_i32_0 = arith.constant 0 : i32
    %c0_i32_1 = arith.constant 0 : i32
    return %arg0, %c0_i32, %c0_i32_0 : i32, i32, i32
  }
  func.func @transform_2(%arg0: i32) -> (i32, i32) {
    %c0_i32 = arith.constant 0 : i32
    %c0_i32_0 = arith.constant 0 : i32
    %c0_i32_1 = arith.constant 0 : i32
    return %c0_i32, %c0_i32_0 : i32, i32
  }
  func.func @transform_3(%arg0: i32) -> (i32, i32) {
    %c0_i32 = arith.constant 0 : i32
    %c0_i32_0 = arith.constant 0 : i32
    %c0_i32_1 = arith.constant 0 : i32
    return %c0_i32, %c0_i32_0 : i32, i32
  }
  func.func @transform_4(%arg0: i32) -> (i32, i32) {
    %c0_i32 = arith.constant 0 : i32
    %c0_i32_0 = arith.constant 0 : i32
    %c0_i32_1 = arith.constant 0 : i32
    return %c0_i32, %c0_i32_0 : i32, i32
  }
  func.func @transform_5(%arg0: i32) -> (i32, i32) {
    %c0_i32 = arith.constant 0 : i32
    %c0_i32_0 = arith.constant 0 : i32
    %c0_i32_1 = arith.constant 0 : i32
    return %c0_i32, %c0_i32_0 : i32, i32
  }
  func.func @transform_6(%arg0: i32) -> (i32, i32) {
    %c0_i32 = arith.constant 0 : i32
    %c0_i32_0 = arith.constant 0 : i32
    %c0_i32_1 = arith.constant 0 : i32
    return %c0_i32, %c0_i32_0 : i32, i32
  }
  func.func @transform_7(%arg0: i32) -> (i32, i32) {
    %c0_i32 = arith.constant 0 : i32
    %c0_i32_0 = arith.constant 0 : i32
    %c0_i32_1 = arith.constant 0 : i32
    return %c0_i32, %c0_i32_0 : i32, i32
  }
  func.func @transform_8(%arg0: i32) -> (i32, i32) {
    %c0_i32 = arith.constant 0 : i32
    %c0_i32_0 = arith.constant 0 : i32
    %c0_i32_1 = arith.constant 0 : i32
    return %c0_i32, %c0_i32_0 : i32, i32
  }
  func.func @transform_9(%arg0: i32) -> (i32, i32) {
    %c0_i32 = arith.constant 0 : i32
    %c0_i32_0 = arith.constant 0 : i32
    %c0_i32_1 = arith.constant 0 : i32
    return %c0_i32, %c0_i32_0 : i32, i32
  }
  func.func @transform_10(%arg0: i32) -> (i32, i32) {
    %c0_i32 = arith.constant 0 : i32
    %c0_i32_0 = arith.constant 0 : i32
    %c0_i32_1 = arith.constant 0 : i32
    return %c0_i32, %c0_i32_0 : i32, i32
  }
  func.func @transform_11(%arg0: i32) -> (i32, i32) {
    %c0_i32 = arith.constant 0 : i32
    %c0_i32_0 = arith.constant 0 : i32
    %c0_i32_1 = arith.constant 0 : i32
    return %c0_i32, %c0_i32_0 : i32, i32
  }
  func.func @transform_12(%arg0: i32) -> (i32, i32, i32) {
    %c0_i32 = arith.constant 0 : i32
    %c0_i32_0 = arith.constant 0 : i32
    %c0_i32_1 = arith.constant 0 : i32
    return %arg0, %c0_i32, %c0_i32_0 : i32, i32, i32
  }
}

</mosaic_0001>

<llo_original>
// kernel: forward.1
$region0: #{forward.1}
  #allocation0 [shape = 'u32[]', space=smem, size = 0x4, offset = 0x4, fixed_abs, tag = 'smem constant byte address 0x4 - core index']
  #allocation1 [shape = 'u32[72,128]{1,0:T(1,128)}', space=vmem, size = 0x9000, scoped, tag = 'internal scratch']
  #allocation2 [shape = 'f32[1,1280]{1,0:T(1,128)}', space=vmem, size = 0x1400, scoped, tag = 'scratch operand']
  #allocation3 [shape = 'bf16[49,1024]{1,0:T(8,128)(2,1)}', space=vmem, size = 0x1c000, scoped, tag = 'scratch operand']
  #allocation4 [shape = 'f32[8,1152]{1,0:T(8,128)}', space=vmem, size = 0x9000, scoped, tag = 'scratch operand']
  #allocation5 [shape = 'f32[8,1408]{1,0:T(8,128)}', space=vmem, size = 0xb000, scoped, tag = 'scratch operand']
  #allocation6 [shape = 'bf16[200,1024]{1,0:T(8,128)(2,1)}', space=vmem, size = 0x64000, scoped, tag = 'scratch operand']
  #allocation7 [shape = 'f32[10,1152]{1,0:T(8,128)}', space=vmem, size = 0x12000, scoped, tag = 'scratch operand']
  %s0 = inlined_call_operand.vmem [shape: f32[2,1,1024], index: 0, kind: input, shape index: {}]
  %s1 = inlined_call_operand.vmem [shape: f32[2,32,32], index: 1, kind: input, shape index: {}]
  %s2 = inlined_call_operand.hbm [shape: bf16[8,49], index: 2, kind: input, shape index: {}]
  %s3 = inlined_call_operand.vmem [shape: f32[8,1], index: 3, kind: input, shape index: {}]
  %s4 = inlined_call_operand.vmem [shape: bf16[10,200], index: 4, kind: input, shape index: {}]
  %s5 = inlined_call_operand.hbm [shape: f32[10,1], index: 5, kind: input, shape index: {}]
  %s6 = inlined_call_operand.hbm [shape: bf16[1024,160], index: 6, kind: input, shape index: {}]
  %s7 = inlined_call_operand.hbm [shape: f32[10,160], index: 7, kind: input, shape index: {}]
  %s8 = inlined_call_operand.hbm [shape: f32[160,32], index: 8, kind: input, shape index: {}]
  %s9 = inlined_call_operand.hbm [shape: f32[1,32], index: 9, kind: input, shape index: {}]
  %s10 = inlined_call_operand.hbm [shape: f32[32,6], index: 10, kind: input, shape index: {}]
  %s11 = inlined_call_operand.hbm [shape: f32[1,6], index: 11, kind: input, shape index: {}]
  %s12 = inlined_call_operand.vmem [shape: f32[2,1,256], index: 12, kind: output, shape index: {}]
  %s13 = sld [smem:[#allocation0]]
  $region113: #{forward.1} parent=0
    _
  %s15 = ssub.s32 1, %s13
  %s16 = scalar_select 0, %s15, %s13
  $region1: #{forward.1} parent=0
    #allocation8 [shape = 'u8[2048]{0}', space=vmem, size = 0x800, scoped, tag = 'input window, operand 2, single buffered']
    #allocation9 [shape = 's32[2]{0}', space=sflag, size = 0x8, scoped, tag = 'scoped memory for forward.1']
    #allocation10 [shape = 'u8[8192]{0}', space=vmem, size = 0x2000, scoped, tag = 'input window, operand 5, single buffered']
    #allocation11 [shape = 's32[1]{0}', space=sflag, size = 0x4, scoped, tag = 'scoped memory for forward.1']
    #allocation12 [shape = 'u8[524288]{0}', space=vmem, size = 0x80000, scoped, tag = 'input window, operand 6, single buffered']
    #allocation13 [shape = 'u8[16384]{0}', space=vmem, size = 0x4000, scoped, tag = 'input window, operand 7, single buffered']
    #allocation14 [shape = 's32[1]{0}', space=sflag, size = 0x4, scoped, tag = 'scoped memory for forward.1']
    #allocation15 [shape = 'u8[81920]{0}', space=vmem, size = 0x14000, scoped, tag = 'input window, operand 8, single buffered']
    #allocation16 [shape = 'u8[512]{0}', space=vmem, size = 0x400, scoped, tag = 'input window, operand 9, single buffered']
    #allocation17 [shape = 's32[1]{0}', space=sflag, size = 0x4, scoped, tag = 'scoped memory for forward.1']
    #allocation18 [shape = 'u8[16384]{0}', space=vmem, size = 0x4000, scoped, tag = 'input window, operand 10, single buffered']
    #allocation19 [shape = 'u8[512]{0}', space=vmem, size = 0x400, scoped, tag = 'input window, operand 11, single buffered']
    #allocation20 [shape = 's32[1]{0}', space=sflag, size = 0x4, scoped, tag = 'scoped memory for forward.1']
    %17 = vsyncpa [#allocation9], 0
    %18 = vsyncpa [#allocation11], 0
    %19 = vsyncpa [#allocation14], 0
    %20 = vsyncpa [#allocation17], 0
    %21 = vsyncpa [#allocation20], 0
    loop: start=0, step=1, limit=4
    $region2: #{forward.1} parent=1 // loop_pre_header
      _
    $region3: #{forward.1} parent=1 // loop_header
      %s23 = sphi 0, %s27
      %p24 = scmp.ge.s32.totalorder %s23, 4
      %s33 = sphi 0, %s35
      %s36 = sphi 0, %s33
      %s37 = sphi 0, %s36
      %s53 = sphi 0, %s37
      %s59 = sphi 0, %s61
      %s62 = sphi 0, %s59
      %s63 = sphi 0, %s62
      %s79 = sphi 0, %s63
      %s83 = sphi 0, %s83
      %s85 = sphi 0, %s83
      %s86 = sphi 0, %s85
      %s100 = sphi 0, %s86
      %s104 = sphi 0, %s104
      %s106 = sphi 0, %s104
      %s107 = sphi 0, %s106
      %s121 = sphi 0, %s107
      %s125 = sphi 0, %s125
      %s127 = sphi 0, %s125
      %s128 = sphi 0, %s127
      %s142 = sphi 0, %s128
      %s146 = sphi 0, %s146
      %s148 = sphi 0, %s146
      %s149 = sphi 0, %s148
      %s163 = sphi 0, %s149
      %s167 = sphi 0, %s167
      %s169 = sphi 0, %s167
      %s170 = sphi 0, %s169
      %s184 = sphi 0, %s170
      %s188 = sphi 0, %s188
      %s190 = sphi 0, %s188
      %s191 = sphi 0, %s190
      %s205 = sphi 0, %s191
      %s209 = sphi 0, %s209
      %s211 = sphi 0, %s209
      %s212 = sphi 0, %s211
      %s226 = sphi 0, %s212
      %s230 = sphi 0, %s230
      %s232 = sphi 0, %s230
      %s233 = sphi 0, %s232
      %s247 = sphi 0, %s233
      %s251 = sphi 0, %s251
      %s253 = sphi 0, %s251
      %s254 = sphi 0, %s253
      %s268 = sphi 0, %s254
      %s272 = sphi 0, %s272
      %s274 = sphi 0, %s272
      %s275 = sphi 0, %s274
      %s289 = sphi 0, %s275
      %s295 = sphi 0, %s297
      %s298 = sphi 0, %s295
      %s299 = sphi 0, %s298
      %s315 = sphi 0, %s299
    $region4: #{forward.1} parent=1 // loop_header_branch
      %26 = sbr.rel (%p24) target = $region8
    $region5: #{forward.1} parent=1 // loop_body
      %s28 = ssub.s32 %s23, 1
      %s29 = ssub.s32 %s23, 2
      %s30 = sadd.s32 %s23, 1
      %s31 = ssub.s32 %s23, %s30
      %p32 = scmp.eq.s32.totalorder %s31, 0
      %s34 = sadd.s32 %s33, 1
      %s35 = scalar_select %p32, %s33, %s34
      %p38 = pneg %p32
      %p39 = scmp.eq.s32.totalorder %s23, 1
      %p40 = por %p38, %p39
      %p41 = scmp.ne.s32.totalorder %s33, %s36
      %p42 = scmp.eq.s32.totalorder %s23, 0
      %p43 = por %p41, %p42
      %p44 = scmp.ne.s32.totalorder %s33, %s36
      %p45 = scmp.eq.s32.totalorder %s28, 1
      %p46 = por %p44, %p45
      %p47 = scmp.ne.s32.totalorder %s36, %s37
      %p48 = scmp.eq.s32.totalorder %s28, 0
      %p49 = por %p47, %p48
      %p50 = scmp.ne.s32.totalorder %s36, %s37
      %p51 = scmp.eq.s32.totalorder %s29, 1
      %p52 = por %p50, %p51
      %p54 = scmp.ne.s32.totalorder %s37, %s53
      %p55 = scmp.eq.s32.totalorder %s29, 0
      %p56 = por %p54, %p55
      %s57 = ssub.s32 %s23, %s30
      %p58 = scmp.eq.s32.totalorder %s57, 0
      %s60 = sadd.s32 %s59, 1
      %s61 = scalar_select %p58, %s59, %s60
      %p64 = pneg %p58
      %p65 = scmp.eq.s32.totalorder %s23, 1
      %p66 = por %p64, %p65
      %p67 = scmp.ne.s32.totalorder %s59, %s62
      %p68 = scmp.eq.s32.totalorder %s23, 0
      %p69 = por %p67, %p68
      %p70 = scmp.ne.s32.totalorder %s59, %s62
      %p71 = scmp.eq.s32.totalorder %s28, 1
      %p72 = por %p70, %p71
      %p73 = scmp.ne.s32.totalorder %s62, %s63
      %p74 = scmp.eq.s32.totalorder %s28, 0
      %p75 = por %p73, %p74
      %p76 = scmp.ne.s32.totalorder %s62, %s63
      %p77 = scmp.eq.s32.totalorder %s29, 1
      %p78 = por %p76, %p77
      %p80 = scmp.ne.s32.totalorder %s63, %s79
      %p81 = scmp.eq.s32.totalorder %s29, 0
      %p82 = por %p80, %p81
      %s84 = sadd.s32 %s83, 1
      %p87 = scmp.eq.s32.totalorder %s23, 1
      %p88 = scmp.ne.s32.totalorder %s83, %s85
      %p89 = scmp.eq.s32.totalorder %s23, 0
      %p90 = por %p88, %p89
      %p91 = scmp.ne.s32.totalorder %s83, %s85
      %p92 = scmp.eq.s32.totalorder %s28, 1
      %p93 = por %p91, %p92
      %p94 = scmp.ne.s32.totalorder %s85, %s86
      %p95 = scmp.eq.s32.totalorder %s28, 0
      %p96 = por %p94, %p95
      %p97 = scmp.ne.s32.totalorder %s85, %s86
      %p98 = scmp.eq.s32.totalorder %s29, 1
      %p99 = por %p97, %p98
      %p101 = scmp.ne.s32.totalorder %s86, %s100
      %p102 = scmp.eq.s32.totalorder %s29, 0
      %p103 = por %p101, %p102
      %s105 = sadd.s32 %s104, 1
      %p108 = scmp.eq.s32.totalorder %s23, 1
      %p109 = scmp.ne.s32.totalorder %s104, %s106
      %p110 = scmp.eq.s32.totalorder %s23, 0
      %p111 = por %p109, %p110
      %p112 = scmp.ne.s32.totalorder %s104, %s106
      %p113 = scmp.eq.s32.totalorder %s28, 1
      %p114 = por %p112, %p113
      %p115 = scmp.ne.s32.totalorder %s106, %s107
      %p116 = scmp.eq.s32.totalorder %s28, 0
      %p117 = por %p115, %p116
      %p118 = scmp.ne.s32.totalorder %s106, %s107
      %p119 = scmp.eq.s32.totalorder %s29, 1
      %p120 = por %p118, %p119
      %p122 = scmp.ne.s32.totalorder %s107, %s121
      %p123 = scmp.eq.s32.totalorder %s29, 0
      %p124 = por %p122, %p123
      %s126 = sadd.s32 %s125, 1
      %p129 = scmp.eq.s32.totalorder %s23, 1
      %p130 = scmp.ne.s32.totalorder %s125, %s127
      %p131 = scmp.eq.s32.totalorder %s23, 0
      %p132 = por %p130, %p131
      %p133 = scmp.ne.s32.totalorder %s125, %s127
      %p134 = scmp.eq.s32.totalorder %s28, 1
      %p135 = por %p133, %p134
      %p136 = scmp.ne.s32.totalorder %s127, %s128
      %p137 = scmp.eq.s32.totalorder %s28, 0
      %p138 = por %p136, %p137
      %p139 = scmp.ne.s32.totalorder %s127, %s128
      %p140 = scmp.eq.s32.totalorder %s29, 1
      %p141 = por %p139, %p140
      %p143 = scmp.ne.s32.totalorder %s128, %s142
      %p144 = scmp.eq.s32.totalorder %s29, 0
      %p145 = por %p143, %p144
      %s147 = sadd.s32 %s146, 1
      %p150 = scmp.eq.s32.totalorder %s23, 1
      %p151 = scmp.ne.s32.totalorder %s146, %s148
      %p152 = scmp.eq.s32.totalorder %s23, 0
      %p153 = por %p151, %p152
      %p154 = scmp.ne.s32.totalorder %s146, %s148
      %p155 = scmp.eq.s32.totalorder %s28, 1
      %p156 = por %p154, %p155
      %p157 = scmp.ne.s32.totalorder %s148, %s149
      %p158 = scmp.eq.s32.totalorder %s28, 0
      %p159 = por %p157, %p158
      %p160 = scmp.ne.s32.totalorder %s148, %s149
      %p161 = scmp.eq.s32.totalorder %s29, 1
      %p162 = por %p160, %p161
      %p164 = scmp.ne.s32.totalorder %s149, %s163
      %p165 = scmp.eq.s32.totalorder %s29, 0
      %p166 = por %p164, %p165
      %s168 = sadd.s32 %s167, 1
      %p171 = scmp.eq.s32.totalorder %s23, 1
      %p172 = scmp.ne.s32.totalorder %s167, %s169
      %p173 = scmp.eq.s32.totalorder %s23, 0
      %p174 = por %p172, %p173
      %p175 = scmp.ne.s32.totalorder %s167, %s169
      %p176 = scmp.eq.s32.totalorder %s28, 1
      %p177 = por %p175, %p176
      %p178 = scmp.ne.s32.totalorder %s169, %s170
      %p179 = scmp.eq.s32.totalorder %s28, 0
      %p180 = por %p178, %p179
      %p181 = scmp.ne.s32.totalorder %s169, %s170
      %p182 = scmp.eq.s32.totalorder %s29, 1
      %p183 = por %p181, %p182
      %p185 = scmp.ne.s32.totalorder %s170, %s184
      %p186 = scmp.eq.s32.totalorder %s29, 0
      %p187 = por %p185, %p186
      %s189 = sadd.s32 %s188, 1
      %p192 = scmp.eq.s32.totalorder %s23, 1
      %p193 = scmp.ne.s32.totalorder %s188, %s190
      %p194 = scmp.eq.s32.totalorder %s23, 0
      %p195 = por %p193, %p194
      %p196 = scmp.ne.s32.totalorder %s188, %s190
      %p197 = scmp.eq.s32.totalorder %s28, 1
      %p198 = por %p196, %p197
      %p199 = scmp.ne.s32.totalorder %s190, %s191
      %p200 = scmp.eq.s32.totalorder %s28, 0
      %p201 = por %p199, %p200
      %p202 = scmp.ne.s32.totalorder %s190, %s191
      %p203 = scmp.eq.s32.totalorder %s29, 1
      %p204 = por %p202, %p203
      %p206 = scmp.ne.s32.totalorder %s191, %s205
      %p207 = scmp.eq.s32.totalorder %s29, 0
      %p208 = por %p206, %p207
      %s210 = sadd.s32 %s209, 1
      %p213 = scmp.eq.s32.totalorder %s23, 1
      %p214 = scmp.ne.s32.totalorder %s209, %s211
      %p215 = scmp.eq.s32.totalorder %s23, 0
      %p216 = por %p214, %p215
      %p217 = scmp.ne.s32.totalorder %s209, %s211
      %p218 = scmp.eq.s32.totalorder %s28, 1
      %p219 = por %p217, %p218
      %p220 = scmp.ne.s32.totalorder %s211, %s212
      %p221 = scmp.eq.s32.totalorder %s28, 0
      %p222 = por %p220, %p221
      %p223 = scmp.ne.s32.totalorder %s211, %s212
      %p224 = scmp.eq.s32.totalorder %s29, 1
      %p225 = por %p223, %p224
      %p227 = scmp.ne.s32.totalorder %s212, %s226
      %p228 = scmp.eq.s32.totalorder %s29, 0
      %p229 = por %p227, %p228
      %s231 = sadd.s32 %s230, 1
      %p234 = scmp.eq.s32.totalorder %s23, 1
      %p235 = scmp.ne.s32.totalorder %s230, %s232
      %p236 = scmp.eq.s32.totalorder %s23, 0
      %p237 = por %p235, %p236
      %p238 = scmp.ne.s32.totalorder %s230, %s232
      %p239 = scmp.eq.s32.totalorder %s28, 1
      %p240 = por %p238, %p239
      %p241 = scmp.ne.s32.totalorder %s232, %s233
      %p242 = scmp.eq.s32.totalorder %s28, 0
      %p243 = por %p241, %p242
      %p244 = scmp.ne.s32.totalorder %s232, %s233
      %p245 = scmp.eq.s32.totalorder %s29, 1
      %p246 = por %p244, %p245
      %p248 = scmp.ne.s32.totalorder %s233, %s247
      %p249 = scmp.eq.s32.totalorder %s29, 0
      %p250 = por %p248, %p249
      %s252 = sadd.s32 %s251, 1
      %p255 = scmp.eq.s32.totalorder %s23, 1
      %p256 = scmp.ne.s32.totalorder %s251, %s253
      %p257 = scmp.eq.s32.totalorder %s23, 0
      %p258 = por %p256, %p257
      %p259 = scmp.ne.s32.totalorder %s251, %s253
      %p260 = scmp.eq.s32.totalorder %s28, 1
      %p261 = por %p259, %p260
      %p262 = scmp.ne.s32.totalorder %s253, %s254
      %p263 = scmp.eq.s32.totalorder %s28, 0
      %p264 = por %p262, %p263
      %p265 = scmp.ne.s32.totalorder %s253, %s254
      %p266 = scmp.eq.s32.totalorder %s29, 1
      %p267 = por %p265, %p266
      %p269 = scmp.ne.s32.totalorder %s254, %s268
      %p270 = scmp.eq.s32.totalorder %s29, 0
      %p271 = por %p269, %p270
      %s273 = sadd.s32 %s272, 1
      %p276 = scmp.eq.s32.totalorder %s23, 1
      %p277 = scmp.ne.s32.totalorder %s272, %s274
      %p278 = scmp.eq.s32.totalorder %s23, 0
      %p279 = por %p277, %p278
      %p280 = scmp.ne.s32.totalorder %s272, %s274
      %p281 = scmp.eq.s32.totalorder %s28, 1
      %p282 = por %p280, %p281
      %p283 = scmp.ne.s32.totalorder %s274, %s275
      %p284 = scmp.eq.s32.totalorder %s28, 0
      %p285 = por %p283, %p284
      %p286 = scmp.ne.s32.totalorder %s274, %s275
      %p287 = scmp.eq.s32.totalorder %s29, 1
      %p288 = por %p286, %p287
      %p290 = scmp.ne.s32.totalorder %s275, %s289
      %p291 = scmp.eq.s32.totalorder %s29, 0
      %p292 = por %p290, %p291
      %s293 = ssub.s32 %s23, %s30
      %p294 = scmp.eq.s32.totalorder %s293, 0
      %s296 = sadd.s32 %s295, 1
      %s297 = scalar_select %p294, %s295, %s296
      %p300 = pneg %p294
      %p301 = scmp.eq.s32.totalorder %s23, 1
      %p302 = por %p300, %p301
      %p303 = scmp.ne.s32.totalorder %s295, %s298
      %p304 = scmp.eq.s32.totalorder %s23, 0
      %p305 = por %p303, %p304
      %p306 = scmp.ne.s32.totalorder %s295, %s298
      %p307 = scmp.eq.s32.totalorder %s28, 1
      %p308 = por %p306, %p307
      %p309 = scmp.ne.s32.totalorder %s298, %s299
      %p310 = scmp.eq.s32.totalorder %s28, 0
      %p311 = por %p309, %p310
      %p312 = scmp.ne.s32.totalorder %s298, %s299
      %p313 = scmp.eq.s32.totalorder %s29, 1
      %p314 = por %p312, %p313
      %p316 = scmp.ne.s32.totalorder %s299, %s315
      %p317 = scmp.eq.s32.totalorder %s29, 0
      %p318 = por %p316, %p317
      %p319 = scmp.le.s32.totalorder 1, %s23
      %p320 = scmp.lt.s32.totalorder %s23, 3
      %p321 = pnand %p319, %p320
      %p322 = pneg %p321
      // Predicated region
      $region9: #{forward.1} parent=5 // pred_check
        _
      $region10: #{forward.1} parent=5 // pred_check_branch
        %324 = sbr.rel (%p321) target = $region12
      $region11: #{forward.1} parent=5 // pred_region
        %s325 = ssub.s32 %s23, 1
        // Predicated region
        $region13: #{forward.1} parent=11 // pred_check
          %p326 = pneg %p96
        $region14: #{forward.1} parent=11 // pred_check_branch
          %328 = sbr.rel (%p326) target = $region16
        $region15: #{forward.1} parent=11 // pred_region
          %330 = vsyncadd [#allocation9], 0
          %s332 = sshll.u32 %s2, 4
          %s333 = int_to_ptr.hbm [resolvable:$true] %s332
          %s334 = sshll.u32 [#allocation8], 4
          %s335 = int_to_ptr.vmem [resolvable:$true] %s334
          %337 = dma.hbm_to_vmem [thread:$0]  %s333, 64, %s335, [#allocation9]
        $region16: #{forward.1} parent=11 // pred_fallthru
          _
        // Predicated region
        $region17: #{forward.1} parent=11 // pred_check
          %p338 = pneg %p117
        $region18: #{forward.1} parent=11 // pred_check_branch
          %340 = sbr.rel (%p338) target = $region20
        $region19: #{forward.1} parent=11 // pred_region
          _
        $region20: #{forward.1} parent=11 // pred_fallthru
          _
        // Predicated region
        $region21: #{forward.1} parent=11 // pred_check
          %p341 = pneg %p138
        $region22: #{forward.1} parent=11 // pred_check_branch
          %343 = sbr.rel (%p341) target = $region24
        $region23: #{forward.1} parent=11 // pred_region
          _
        $region24: #{forward.1} parent=11 // pred_fallthru
          _
        // Predicated region
        $region25: #{forward.1} parent=11 // pred_check
          %p344 = pneg %p159
        $region26: #{forward.1} parent=11 // pred_check_branch
          %346 = sbr.rel (%p344) target = $region28
        $region27: #{forward.1} parent=11 // pred_region
          %348 = vsyncadd [#allocation11], 0
          %s349 = sshll.u32 %s5, 4
          %s350 = int_to_ptr.hbm [resolvable:$true] %s349
          %s351 = sshll.u32 [#allocation10], 4
          %s352 = int_to_ptr.vmem [resolvable:$true] %s351
          %357 = dma.hbm_to_vmem [thread:$0]  %s350, 256, %s352, [#allocation11], 128, 128, 8
        $region28: #{forward.1} parent=11 // pred_fallthru
          _
        // Predicated region
        $region29: #{forward.1} parent=11 // pred_check
          %p358 = pneg %p180
        $region30: #{forward.1} parent=11 // pred_check_branch
          %360 = sbr.rel (%p358) target = $region32
        $region31: #{forward.1} parent=11 // pred_region
          %362 = vsyncadd [#allocation11], 0
          %s363 = sshll.u32 %s6, 4
          %s364 = int_to_ptr.hbm [resolvable:$true] %s363
          %s365 = sshll.u32 [#allocation12], 4
          %s366 = int_to_ptr.vmem [resolvable:$true] %s365
          %371 = dma.hbm_to_vmem [thread:$0]  %s364, 16384, %s366, [#allocation11], 128, 128, 8
        $region32: #{forward.1} parent=11 // pred_fallthru
          _
        // Predicated region
        $region33: #{forward.1} parent=11 // pred_check
          %p372 = pneg %p201
        $region34: #{forward.1} parent=11 // pred_check_branch
          %374 = sbr.rel (%p372) target = $region36
        $region35: #{forward.1} parent=11 // pred_region
          %376 = vsyncadd [#allocation14], 0
          %s377 = sshll.u32 %s7, 4
          %s378 = int_to_ptr.hbm [resolvable:$true] %s377
          %s379 = sshll.u32 [#allocation13], 4
          %s380 = int_to_ptr.vmem [resolvable:$true] %s379
          %385 = dma.hbm_to_vmem [thread:$0]  %s378, 512, %s380, [#allocation14], 256, 256, 16
        $region36: #{forward.1} parent=11 // pred_fallthru
          _
        // Predicated region
        $region37: #{forward.1} parent=11 // pred_check
          %p386 = pneg %p222
        $region38: #{forward.1} parent=11 // pred_check_branch
          %388 = sbr.rel (%p386) target = $region40
        $region39: #{forward.1} parent=11 // pred_region
          %390 = vsyncadd [#allocation14], 0
          %s391 = sshll.u32 %s8, 4
          %s392 = int_to_ptr.hbm [resolvable:$true] %s391
          %s393 = sshll.u32 [#allocation15], 4
          %s394 = int_to_ptr.vmem [resolvable:$true] %s393
          %399 = dma.hbm_to_vmem [thread:$0]  %s392, 2560, %s394, [#allocation14], 128, 128, 8
        $region40: #{forward.1} parent=11 // pred_fallthru
          _
        // Predicated region
        $region41: #{forward.1} parent=11 // pred_check
          %p400 = pneg %p243
        $region42: #{forward.1} parent=11 // pred_check_branch
          %402 = sbr.rel (%p400) target = $region44
        $region43: #{forward.1} parent=11 // pred_region
          %404 = vsyncadd [#allocation17], 0
          %s406 = sshll.u32 %s9, 4
          %s407 = int_to_ptr.hbm [resolvable:$true] %s406
          %s408 = sshll.u32 [#allocation16], 4
          %s409 = int_to_ptr.vmem [resolvable:$true] %s408
          %411 = dma.hbm_to_vmem [thread:$0]  %s407, 16, %s409, [#allocation17]
        $region44: #{forward.1} parent=11 // pred_fallthru
          _
        // Predicated region
        $region45: #{forward.1} parent=11 // pred_check
          %p412 = pneg %p264
        $region46: #{forward.1} parent=11 // pred_check_branch
          %414 = sbr.rel (%p412) target = $region48
        $region47: #{forward.1} parent=11 // pred_region
          %416 = vsyncadd [#allocation17], 0
          %s417 = sshll.u32 %s10, 4
          %s418 = int_to_ptr.hbm [resolvable:$true] %s417
          %s419 = sshll.u32 [#allocation18], 4
          %s420 = int_to_ptr.vmem [resolvable:$true] %s419
          %425 = dma.hbm_to_vmem [thread:$0]  %s418, 512, %s420, [#allocation17], 128, 128, 8
        $region48: #{forward.1} parent=11 // pred_fallthru
          _
        // Predicated region
        $region49: #{forward.1} parent=11 // pred_check
          %p426 = pneg %p285
        $region50: #{forward.1} parent=11 // pred_check_branch
          %428 = sbr.rel (%p426) target = $region52
        $region51: #{forward.1} parent=11 // pred_region
          %430 = vsyncadd [#allocation20], 0
          %s432 = sshll.u32 %s11, 4
          %s433 = int_to_ptr.hbm [resolvable:$true] %s432
          %s434 = sshll.u32 [#allocation19], 4
          %s435 = int_to_ptr.vmem [resolvable:$true] %s434
          %437 = dma.hbm_to_vmem [thread:$0]  %s433, 16, %s435, [#allocation20]
        $region52: #{forward.1} parent=11 // pred_fallthru
          _
      $region12: #{forward.1} parent=5 // pred_fallthru
        _
      %p438 = scmp.lt.s32.totalorder %s23, 2
      // Predicated region
      $region53: #{forward.1} parent=5 // pred_check
        %p439 = pneg %p438
      $region54: #{forward.1} parent=5 // pred_check_branch
        %441 = sbr.rel (%p439) target = $region56
      $region55: #{forward.1} parent=5 // pred_region
        // Predicated region
        $region57: #{forward.1} parent=55 // pred_check
          %p442 = pneg %p43
        $region58: #{forward.1} parent=55 // pred_check_branch
          %444 = sbr.rel (%p442) target = $region60
        $region59: #{forward.1} parent=55 // pred_region
          %p445 = scmp.lt.s32.totalorder %s23, 1
          %s446 = scalar_select %p445, %s23, 1
          %s447 = smul.addr %s446, 8
          %s448 = scalar_lea.vmem %s0, %s447
        $region60: #{forward.1} parent=55 // pred_fallthru
          _
        // Predicated region
        $region61: #{forward.1} parent=55 // pred_check
          %p449 = pneg %p69
        $region62: #{forward.1} parent=55 // pred_check_branch
          %451 = sbr.rel (%p449) target = $region64
        $region63: #{forward.1} parent=55 // pred_region
          %p452 = scmp.lt.s32.totalorder %s23, 1
          %s453 = scalar_select %p452, %s23, 1
          %s454 = smul.addr %s453, 4
          %s455 = smul.addr %s454, 8
          %s456 = scalar_lea.vmem %s1, %s455
        $region64: #{forward.1} parent=55 // pred_fallthru
          _
      $region56: #{forward.1} parent=5 // pred_fallthru
        _
      %p457 = scmp.le.s32.totalorder 1, %s23
      %p458 = scmp.lt.s32.totalorder %s23, 3
      %p459 = pnand %p457, %p458
      %p460 = pneg %p459
      // Predicated region
      $region65: #{forward.1} parent=5 // pred_check
        _
      $region66: #{forward.1} parent=5 // pred_check_branch
        %462 = sbr.rel (%p459) target = $region68
      $region67: #{forward.1} parent=5 // pred_region
        %s463 = ssub.s32 %s23, 1
        // Predicated region
        $region69: #{forward.1} parent=67 // pred_check
          %p464 = pneg %p96
        $region70: #{forward.1} parent=67 // pred_check_branch
          %466 = sbr.rel (%p464) target = $region72
        $region71: #{forward.1} parent=67 // pred_region
          %468 = dma.done [#allocation9], 64
        $region72: #{forward.1} parent=67 // pred_fallthru
          _
        // Predicated region
        $region73: #{forward.1} parent=67 // pred_check
          %p469 = pneg %p159
        $region74: #{forward.1} parent=67 // pred_check_branch
          %471 = sbr.rel (%p469) target = $region76
        $region75: #{forward.1} parent=67 // pred_region
          %473 = dma.done [#allocation11], 256
        $region76: #{forward.1} parent=67 // pred_fallthru
          _
        // Predicated region
        $region77: #{forward.1} parent=67 // pred_check
          %p474 = pneg %p180
        $region78: #{forward.1} parent=67 // pred_check_branch
          %476 = sbr.rel (%p474) target = $region80
        $region79: #{forward.1} parent=67 // pred_region
          %478 = dma.done [#allocation11], 16384
        $region80: #{forward.1} parent=67 // pred_fallthru
          _
        // Predicated region
        $region81: #{forward.1} parent=67 // pred_check
          %p479 = pneg %p201
        $region82: #{forward.1} parent=67 // pred_check_branch
          %481 = sbr.rel (%p479) target = $region84
        $region83: #{forward.1} parent=67 // pred_region
          %483 = dma.done [#allocation14], 512
        $region84: #{forward.1} parent=67 // pred_fallthru
          _
        // Predicated region
        $region85: #{forward.1} parent=67 // pred_check
          %p484 = pneg %p222
        $region86: #{forward.1} parent=67 // pred_check_branch
          %486 = sbr.rel (%p484) target = $region88
        $region87: #{forward.1} parent=67 // pred_region
          %488 = dma.done [#allocation14], 2560
        $region88: #{forward.1} parent=67 // pred_fallthru
          _
        // Predicated region
        $region89: #{forward.1} parent=67 // pred_check
          %p489 = pneg %p243
        $region90: #{forward.1} parent=67 // pred_check_branch
          %491 = sbr.rel (%p489) target = $region92
        $region91: #{forward.1} parent=67 // pred_region
          %493 = dma.done [#allocation17], 16
        $region92: #{forward.1} parent=67 // pred_fallthru
          _
        // Predicated region
        $region93: #{forward.1} parent=67 // pred_check
          %p494 = pneg %p264
        $region94: #{forward.1} parent=67 // pred_check_branch
          %496 = sbr.rel (%p494) target = $region96
        $region95: #{forward.1} parent=67 // pred_region
          %498 = dma.done [#allocation17], 512
        $region96: #{forward.1} parent=67 // pred_fallthru
          _
        // Predicated region
        $region97: #{forward.1} parent=67 // pred_check
          %p499 = pneg %p285
        $region98: #{forward.1} parent=67 // pred_check_branch
          %501 = sbr.rel (%p499) target = $region100
        $region99: #{forward.1} parent=67 // pred_region
          %503 = dma.done [#allocation20], 16
        $region100: #{forward.1} parent=67 // pred_fallthru
          _
        %p504 = scmp.lt.s32.totalorder %s28, 1
        %s505 = scalar_select %p504, %s28, 1
        %s506 = smul.addr %s505, 8
        %s507 = scalar_lea.vmem %s0, %s506
        %p508 = pneg %p49
        %p509 = pneg %p46
        %p510 = scmp.lt.s32.totalorder %s28, 1
        %s511 = scalar_select %p510, %s28, 1
        %s512 = smul.addr %s511, 4
        %s513 = smul.addr %s512, 8
        %s514 = scalar_lea.vmem %s1, %s513
        %p515 = pneg %p75
        %p516 = pneg %p72
        %p517 = pneg %p96
        %p518 = pneg %p93
        %p519 = pneg %p117
        %p520 = pneg %p114
        %p521 = pneg %p138
        %p522 = pneg %p135
        %p523 = pneg %p159
        %p524 = pneg %p156
        %p525 = pneg %p180
        %p526 = pneg %p177
        %p527 = pneg %p201
        %p528 = pneg %p198
        %p529 = pneg %p222
        %p530 = pneg %p219
        %p531 = pneg %p243
        %p532 = pneg %p240
        %p533 = pneg %p264
        %p534 = pneg %p261
        %p535 = pneg %p285
        %p536 = pneg %p282
        %p537 = pneg %p311
        %p538 = pneg %p308
        %p539 = scmp.lt.s32.totalorder %s28, 1
        %s540 = scalar_select %p539, %s28, 1
        %s541 = smul.addr %s540, 2
        %s542 = scalar_lea.vmem %s12, %s541
        %p543 = scmp.lt.s32.totalorder %s28, 1
        %s544 = scalar_select %p543, %s28, 1
        %s545 = smul.addr %s544, 8
        %s546 = scalar_lea.vmem %s0, %s545
        %p547 = scmp.lt.s32.totalorder %s28, 1
        %s548 = scalar_select %p547, %s28, 1
        %s549 = smul.addr %s548, 4
        %s550 = smul.addr %s549, 8
        %s551 = scalar_lea.vmem %s1, %s550
        %p552 = scmp.lt.s32.totalorder %s28, 1
        %s553 = scalar_select %p552, %s28, 1
        %s554 = smul.addr %s553, 2
        %s555 = scalar_lea.vmem %s12, %s554
        %v557 = vld [vmem:[%s546] sm:$0xff]
        %558 = vst [vmem:[#allocation2] sm:$0xff] %v557
        %v559 = vlaneseq
        %vm560 = vcmp.ge.s32.totalorder %v559, 0
        %vm561 = vcmp.lt.s32.totalorder %v559, 256
        %vm562 = vmand %vm560, %vm561
        %563 = vst.msk [vmem:[#allocation2 + $0x8] sm:$0x3] %vm562, 0.0
        %v564 = vld [vmem:[#allocation2] sm:$0xff]
        %v566 = vperm.slane %v564, 0
        %v567 = vperm.slane %v564, 1
        %v568 = vperm.slane %v564, 2
        %v569 = vperm.slane %v564, 3
        %v570 = vperm.slane %v564, 4
        %v571 = vperm.slane %v564, 5
        %v572 = vperm.slane %v564, 6
        %v573 = vperm.slane %v564, 7
        %v582 = vpack.c.bf16 %v567, %v566
        %v583 = vpack.c.bf16 %v569, %v568
        %v584 = vpack.c.bf16 %v571, %v570
        %v585 = vpack.c.bf16 %v573, %v572
        %vm586 = vcmask 1040384
        %vm587 = vsmask.f32 256
        %vm588 = vmand %vm586, %vm587
        %vm589 = vcmask 1044484
        %vm590 = vsmask.f32 4352
        %vm591 = vmand %vm589, %vm590
        %vm592 = vmor %vm591, %vm588
        %v593 = vld [vmem:[#allocation3] sm:$0x11]
        %v594 = vsel %vm592, %v582, %v593
        %595 = vst [vmem:[#allocation3] sm:$0x11] %v594
        %v596 = vld [vmem:[#allocation3 + $0x8] sm:$0x11]
        %v597 = vsel %vm592, %v583, %v596
        %598 = vst [vmem:[#allocation3 + $0x8] sm:$0x11] %v597
        %v599 = vld [vmem:[#allocation3 + $0x10] sm:$0x11]
        %v600 = vsel %vm592, %v584, %v599
        %601 = vst [vmem:[#allocation3 + $0x10] sm:$0x11] %v600
        %v602 = vld [vmem:[#allocation3 + $0x18] sm:$0x11]
        %v603 = vsel %vm592, %v585, %v602
        %604 = vst [vmem:[#allocation3 + $0x18] sm:$0x11] %v603
        %v605 = vld [vmem:[#allocation2] sm:$0xff]
        %v606 = vld [vmem:[#allocation2 + $0x8] sm:$0x1]
        %v609 = vperm.slane %v605, 0
        %v610 = vperm.slane %v605, 1
        %v611 = vperm.slane %v605, 2
        %v612 = vperm.slane %v605, 3
        %v613 = vperm.slane %v605, 4
        %v614 = vperm.slane %v605, 5
        %v615 = vperm.slane %v605, 6
        %v616 = vperm.slane %v605, 7
        %v617 = vperm.slane %v606, 0
        %v627 = vpack.c.bf16 %v610, %v609
        %v628 = vpack.c.bf16 %v612, %v611
        %v629 = vpack.c.bf16 %v614, %v613
        %v630 = vpack.c.bf16 %v616, %v615
        %v631 = vpack.c.bf16 %v617, %v617
        %v633 = vshll.u32 %v627, 16
        %v636 = vshll.u32 %v628, 16
        %v639 = vshll.u32 %v629, 16
        %v642 = vshll.u32 %v630, 16
        %v645 = vshll.u32 %v631, 16
        %647 = vrot.lane.b32.xlu0 %v633, 127
        %v648 = vpop.permute.xlu0 %647
        %649 = vrot.lane.b32.xlu0 %v636, 127
        %v650 = vpop.permute.xlu0 %649
        %651 = vrot.lane.b32.xlu0 %v639, 127
        %v652 = vpop.permute.xlu0 %651
        %653 = vrot.lane.b32.xlu0 %v642, 127
        %v654 = vpop.permute.xlu0 %653
        %655 = vrot.lane.b32.xlu0 %v645, 127
        %v656 = vpop.permute.xlu0 %655
        %v657 = vrot.slane %v648, 4
        %v658 = vrot.slane %v650, 4
        %v659 = vrot.slane %v652, 4
        %v660 = vrot.slane %v654, 4
        %v661 = vrot.slane %v656, 4
        %vm662 = vcmask 1043456
        %v663 = vsel %vm662, %v657, %v658
        %vm664 = vcmask 1039360
        %v665 = vsel %vm664, %v648, %v663
        %v666 = vsel %vm662, %v658, %v659
        %v667 = vsel %vm664, %v650, %v666
        %v668 = vsel %vm662, %v659, %v660
        %v669 = vsel %vm664, %v652, %v668
        %v670 = vsel %vm662, %v660, %v661
        %v671 = vsel %vm664, %v654, %v670
        %vm676 = vsmask.f32 7938
        %vm677 = vmand %vm586, %vm676
        %vm678 = vsmask.f32 7954
        %vm679 = vmand %vm589, %vm678
        %vm680 = vmor %vm679, %vm677
        %v681 = vld [vmem:[#allocation3] sm:$0x11]
        %v682 = vsel %vm680, %v665, %v681
        %683 = vst [vmem:[#allocation3] sm:$0x11] %v682
        %v684 = vld [vmem:[#allocation3 + $0x8] sm:$0x11]
        %v685 = vsel %vm680, %v667, %v684
        %686 = vst [vmem:[#allocation3 + $0x8] sm:$0x11] %v685
        %v687 = vld [vmem:[#allocation3 + $0x10] sm:$0x11]
        %v688 = vsel %vm680, %v669, %v687
        %689 = vst [vmem:[#allocation3 + $0x10] sm:$0x11] %v688
        %v690 = vld [vmem:[#allocation3 + $0x18] sm:$0x11]
        %v691 = vsel %vm680, %v671, %v690
        %692 = vst [vmem:[#allocation3 + $0x18] sm:$0x11] %v691
        %v693 = vld [vmem:[#allocation2] sm:$0xff]
        %v694 = vld [vmem:[#allocation2 + $0x8] sm:$0x1]
        %v697 = vperm.slane %v693, 0
        %v698 = vperm.slane %v693, 1
        %v699 = vperm.slane %v693, 2
        %v700 = vperm.slane %v693, 3
        %v701 = vperm.slane %v693, 4
        %v702 = vperm.slane %v693, 5
        %v703 = vperm.slane %v693, 6
        %v704 = vperm.slane %v693, 7
        %v705 = vperm.slane %v694, 0
        %v715 = vpack.c.bf16 %v698, %v697
        %v716 = vpack.c.bf16 %v700, %v699
        %v717 = vpack.c.bf16 %v702, %v701
        %v718 = vpack.c.bf16 %v704, %v703
        %v719 = vpack.c.bf16 %v705, %v705
        %v725 = vrot.slane %v715, 7
        %v726 = vrot.slane %v716, 7
        %v727 = vrot.slane %v717, 7
        %v728 = vrot.slane %v718, 7
        %v729 = vrot.slane %v719, 7
        %730 = vrot.lane.b32.xlu0 %v725, 126
        %v731 = vpop.permute.xlu0 %730
        %732 = vrot.lane.b32.xlu0 %v726, 126
        %v733 = vpop.permute.xlu0 %732
        %734 = vrot.lane.b32.xlu0 %v727, 126
        %v735 = vpop.permute.xlu0 %734
        %736 = vrot.lane.b32.xlu0 %v728, 126
        %v737 = vpop.permute.xlu0 %736
        %738 = vrot.lane.b32.xlu0 %v729, 126
        %v739 = vpop.permute.xlu0 %738
        %v740 = vrot.slane %v731, 4
        %v741 = vrot.slane %v733, 4
        %v742 = vrot.slane %v735, 4
        %v743 = vrot.slane %v737, 4
        %v744 = vrot.slane %v739, 4
        %v745 = vsel %vm662, %v740, %v741
        %vm746 = vcmask 1031168
        %v747 = vsel %vm746, %v731, %v745
        %v748 = vsel %vm662, %v741, %v742
        %v749 = vsel %vm746, %v733, %v748
        %v750 = vsel %vm662, %v742, %v743
        %v751 = vsel %vm746, %v735, %v750
        %v752 = vsel %vm662, %v743, %v744
        %v753 = vsel %vm746, %v737, %v752
        %vm758 = vcmask 1041409
        %vm759 = vsmask.f32 1280
        %vm760 = vmand %vm758, %vm759
        %vm761 = vcmask 1045509
        %vm762 = vsmask.f32 5376
        %vm763 = vmand %vm761, %vm762
        %vm764 = vmor %vm763, %vm760
        %v765 = vld [vmem:[#allocation3] sm:$0x22]
        %v766 = vsel %vm764, %v747, %v765
        %767 = vst [vmem:[#allocation3] sm:$0x22] %v766
        %v768 = vld [vmem:[#allocation3 + $0x8] sm:$0x22]
        %v769 = vsel %vm764, %v749, %v768
        %770 = vst [vmem:[#allocation3 + $0x8] sm:$0x22] %v769
        %v771 = vld [vmem:[#allocation3 + $0x10] sm:$0x22]
        %v772 = vsel %vm764, %v751, %v771
        %773 = vst [vmem:[#allocation3 + $0x10] sm:$0x22] %v772
        %v774 = vld [vmem:[#allocation3 + $0x18] sm:$0x22]
        %v775 = vsel %vm764, %v753, %v774
        %776 = vst [vmem:[#allocation3 + $0x18] sm:$0x22] %v775
        %v777 = vld [vmem:[#allocation2] sm:$0xff]
        %v778 = vld [vmem:[#allocation2 + $0x8] sm:$0x1]
        %v781 = vperm.slane %v777, 0
        %v782 = vperm.slane %v777, 1
        %v783 = vperm.slane %v777, 2
        %v784 = vperm.slane %v777, 3
        %v785 = vperm.slane %v777, 4
        %v786 = vperm.slane %v777, 5
        %v787 = vperm.slane %v777, 6
        %v788 = vperm.slane %v777, 7
        %v789 = vperm.slane %v778, 0
        %v799 = vpack.c.bf16 %v782, %v781
        %v800 = vpack.c.bf16 %v784, %v783
        %v801 = vpack.c.bf16 %v786, %v785
        %v802 = vpack.c.bf16 %v788, %v787
        %v803 = vpack.c.bf16 %v789, %v789
        %v805 = vshll.u32 %v799, 16
        %v807 = vrot.slane %v805, 7
        %v809 = vshll.u32 %v800, 16
        %v811 = vrot.slane %v809, 7
        %v813 = vshll.u32 %v801, 16
        %v815 = vrot.slane %v813, 7
        %v817 = vshll.u32 %v802, 16
        %v819 = vrot.slane %v817, 7
        %v821 = vshll.u32 %v803, 16
        %v823 = vrot.slane %v821, 7
        %824 = vrot.lane.b32.xlu0 %v807, 125
        %v825 = vpop.permute.xlu0 %824
        %826 = vrot.lane.b32.xlu0 %v811, 125
        %v827 = vpop.permute.xlu0 %826
        %828 = vrot.lane.b32.xlu0 %v815, 125
        %v829 = vpop.permute.xlu0 %828
        %830 = vrot.lane.b32.xlu0 %v819, 125
        %v831 = vpop.permute.xlu0 %830
        %832 = vrot.lane.b32.xlu0 %v823, 125
        %v833 = vpop.permute.xlu0 %832
        %v834 = vrot.slane %v825, 4
        %v835 = vrot.slane %v827, 4
        %v836 = vrot.slane %v829, 4
        %v837 = vrot.slane %v831, 4
        %v838 = vrot.slane %v833, 4
        %v839 = vsel %vm662, %v834, %v835
        %vm840 = vcmask 1022976
        %v841 = vsel %vm840, %v825, %v839
        %v842 = vsel %vm662, %v835, %v836
        %v843 = vsel %vm840, %v827, %v842
        %v844 = vsel %vm662, %v836, %v837
        %v845 = vsel %vm840, %v829, %v844
        %v846 = vsel %vm662, %v837, %v838
        %v847 = vsel %vm840, %v831, %v846
        %vm852 = vsmask.f32 7942
        %vm853 = vmand %vm758, %vm852
        %vm854 = vsmask.f32 7958
        %vm855 = vmand %vm761, %vm854
        %vm856 = vmor %vm855, %vm853
        %v857 = vld [vmem:[#allocation3] sm:$0x22]
        %v858 = vsel %vm856, %v841, %v857
        %859 = vst [vmem:[#allocation3] sm:$0x22] %v858
        %v860 = vld [vmem:[#allocation3 + $0x8] sm:$0x22]
        %v861 = vsel %vm856, %v843, %v860
        %862 = vst [vmem:[#allocation3 + $0x8] sm:$0x22] %v861
        %v863 = vld [vmem:[#allocation3 + $0x10] sm:$0x22]
        %v864 = vsel %vm856, %v845, %v863
        %865 = vst [vmem:[#allocation3 + $0x10] sm:$0x22] %v864
        %v866 = vld [vmem:[#allocation3 + $0x18] sm:$0x22]
        %v867 = vsel %vm856, %v847, %v866
        %868 = vst [vmem:[#allocation3 + $0x18] sm:$0x22] %v867
        %v869 = vld [vmem:[#allocation2] sm:$0xff]
        %v870 = vld [vmem:[#allocation2 + $0x8] sm:$0x1]
        %v873 = vperm.slane %v869, 0
        %v874 = vperm.slane %v869, 1
        %v875 = vperm.slane %v869, 2
        %v876 = vperm.slane %v869, 3
        %v877 = vperm.slane %v869, 4
        %v878 = vperm.slane %v869, 5
        %v879 = vperm.slane %v869, 6
        %v880 = vperm.slane %v869, 7
        %v881 = vperm.slane %v870, 0
        %v891 = vpack.c.bf16 %v874, %v873
        %v892 = vpack.c.bf16 %v876, %v875
        %v893 = vpack.c.bf16 %v878, %v877
        %v894 = vpack.c.bf16 %v880, %v879
        %v895 = vpack.c.bf16 %v881, %v881
        %v901 = vrot.slane %v891, 6
        %v902 = vrot.slane %v892, 6
        %v903 = vrot.slane %v893, 6
        %v904 = vrot.slane %v894, 6
        %v905 = vrot.slane %v895, 6
        %906 = vrot.lane.b32.xlu0 %v901, 124
        %v907 = vpop.permute.xlu0 %906
        %908 = vrot.lane.b32.xlu0 %v902, 124
        %v909 = vpop.permute.xlu0 %908
        %910 = vrot.lane.b32.xlu0 %v903, 124
        %v911 = vpop.permute.xlu0 %910
        %912 = vrot.lane.b32.xlu0 %v904, 124
        %v913 = vpop.permute.xlu0 %912
        %914 = vrot.lane.b32.xlu0 %v905, 124
        %v915 = vpop.permute.xlu0 %914
        %v916 = vrot.slane %v907, 4
        %v917 = vrot.slane %v909, 4
        %v918 = vrot.slane %v911, 4
        %v919 = vrot.slane %v913, 4
        %v920 = vrot.slane %v915, 4
        %v921 = vsel %vm662, %v916, %v917
        %vm922 = vcmask 1014784
        %v923 = vsel %vm922, %v907, %v921
        %v924 = vsel %vm662, %v917, %v918
        %v925 = vsel %vm922, %v909, %v924
        %v926 = vsel %vm662, %v918, %v919
        %v927 = vsel %vm922, %v911, %v926
        %v928 = vsel %vm662, %v919, %v920
        %v929 = vsel %vm922, %v913, %v928
        %vm934 = vcmask 1042434
        %vm935 = vsmask.f32 2304
        %vm936 = vmand %vm934, %vm935
        %vm937 = vcmask 1046534
        %vm938 = vsmask.f32 6400
        %vm939 = vmand %vm937, %vm938
        %vm940 = vmor %vm939, %vm936
        %v941 = vld [vmem:[#allocation3] sm:$0x44]
        %v942 = vsel %vm940, %v923, %v941
        %943 = vst [vmem:[#allocation3] sm:$0x44] %v942
        %v944 = vld [vmem:[#allocation3 + $0x8] sm:$0x44]
        %v945 = vsel %vm940, %v925, %v944
        %946 = vst [vmem:[#allocation3 + $0x8] sm:$0x44] %v945
        %v947 = vld [vmem:[#allocation3 + $0x10] sm:$0x44]
        %v948 = vsel %vm940, %v927, %v947
        %949 = vst [vmem:[#allocation3 + $0x10] sm:$0x44] %v948
        %v950 = vld [vmem:[#allocation3 + $0x18] sm:$0x44]
        %v951 = vsel %vm940, %v929, %v950
        %952 = vst [vmem:[#allocation3 + $0x18] sm:$0x44] %v951
        %v953 = vld [vmem:[#allocation2] sm:$0xff]
        %v954 = vld [vmem:[#allocation2 + $0x8] sm:$0x1]
        %v957 = vperm.slane %v953, 0
        %v958 = vperm.slane %v953, 1
        %v959 = vperm.slane %v953, 2
        %v960 = vperm.slane %v953, 3
        %v961 = vperm.slane %v953, 4
        %v962 = vperm.slane %v953, 5
        %v963 = vperm.slane %v953, 6
        %v964 = vperm.slane %v953, 7
        %v965 = vperm.slane %v954, 0
        %v975 = vpack.c.bf16 %v958, %v957
        %v976 = vpack.c.bf16 %v960, %v959
        %v977 = vpack.c.bf16 %v962, %v961
        %v978 = vpack.c.bf16 %v964, %v963
        %v979 = vpack.c.bf16 %v965, %v965
        %v981 = vshll.u32 %v975, 16
        %v983 = vrot.slane %v981, 6
        %v985 = vshll.u32 %v976, 16
        %v987 = vrot.slane %v985, 6
        %v989 = vshll.u32 %v977, 16
        %v991 = vrot.slane %v989, 6
        %v993 = vshll.u32 %v978, 16
        %v995 = vrot.slane %v993, 6
        %v997 = vshll.u32 %v979, 16
        %v999 = vrot.slane %v997, 6
        %1000 = vrot.lane.b32.xlu0 %v983, 123
        %v1001 = vpop.permute.xlu0 %1000
        %1002 = vrot.lane.b32.xlu0 %v987, 123
        %v1003 = vpop.permute.xlu0 %1002
        %1004 = vrot.lane.b32.xlu0 %v991, 123
        %v1005 = vpop.permute.xlu0 %1004
        %1006 = vrot.lane.b32.xlu0 %v995, 123
        %v1007 = vpop.permute.xlu0 %1006
        %1008 = vrot.lane.b32.xlu0 %v999, 123
        %v1009 = vpop.permute.xlu0 %1008
        %v1010 = vrot.slane %v1001, 4
        %v1011 = vrot.slane %v1003, 4
        %v1012 = vrot.slane %v1005, 4
        %v1013 = vrot.slane %v1007, 4
        %v1014 = vrot.slane %v1009, 4
        %v1015 = vsel %vm662, %v1010, %v1011
        %vm1016 = vcmask 1006592
        %v1017 = vsel %vm1016, %v1001, %v1015
        %v1018 = vsel %vm662, %v1011, %v1012
        %v1019 = vsel %vm1016, %v1003, %v1018
        %v1020 = vsel %vm662, %v1012, %v1013
        %v1021 = vsel %vm1016, %v1005, %v1020
        %v1022 = vsel %vm662, %v1013, %v1014
        %v1023 = vsel %vm1016, %v1007, %v1022
        %vm1028 = vsmask.f32 7946
        %vm1029 = vmand %vm934, %vm1028
        %vm1030 = vsmask.f32 7962
        %vm1031 = vmand %vm937, %vm1030
        %vm1032 = vmor %vm1031, %vm1029
        %v1033 = vld [vmem:[#allocation3] sm:$0x44]
        %v1034 = vsel %vm1032, %v1017, %v1033
        %1035 = vst [vmem:[#allocation3] sm:$0x44] %v1034
        %v1036 = vld [vmem:[#allocation3 + $0x8] sm:$0x44]
        %v1037 = vsel %vm1032, %v1019, %v1036
        %1038 = vst [vmem:[#allocation3 + $0x8] sm:$0x44] %v1037
        %v1039 = vld [vmem:[#allocation3 + $0x10] sm:$0x44]
        %v1040 = vsel %vm1032, %v1021, %v1039
        %1041 = vst [vmem:[#allocation3 + $0x10] sm:$0x44] %v1040
        %v1042 = vld [vmem:[#allocation3 + $0x18] sm:$0x44]
        %v1043 = vsel %vm1032, %v1023, %v1042
        %1044 = vst [vmem:[#allocation3 + $0x18] sm:$0x44] %v1043
        %v1045 = vld [vmem:[#allocation2] sm:$0xff]
        %v1046 = vld [vmem:[#allocation2 + $0x8] sm:$0x1]
        %v1049 = vperm.slane %v1045, 0
        %v1050 = vperm.slane %v1045, 1
        %v1051 = vperm.slane %v1045, 2
        %v1052 = vperm.slane %v1045, 3
        %v1053 = vperm.slane %v1045, 4
        %v1054 = vperm.slane %v1045, 5
        %v1055 = vperm.slane %v1045, 6
        %v1056 = vperm.slane %v1045, 7
        %v1057 = vperm.slane %v1046, 0
        %v1067 = vpack.c.bf16 %v1050, %v1049
        %v1068 = vpack.c.bf16 %v1052, %v1051
        %v1069 = vpack.c.bf16 %v1054, %v1053
        %v1070 = vpack.c.bf16 %v1056, %v1055
        %v1071 = vpack.c.bf16 %v1057, %v1057
        %v1077 = vrot.slane %v1067, 5
        %v1078 = vrot.slane %v1068, 5
        %v1079 = vrot.slane %v1069, 5
        %v1080 = vrot.slane %v1070, 5
        %v1081 = vrot.slane %v1071, 5
        %1082 = vrot.lane.b32.xlu0 %v1077, 122
        %v1083 = vpop.permute.xlu0 %1082
        %1084 = vrot.lane.b32.xlu0 %v1078, 122
        %v1085 = vpop.permute.xlu0 %1084
        %1086 = vrot.lane.b32.xlu0 %v1079, 122
        %v1087 = vpop.permute.xlu0 %1086
        %1088 = vrot.lane.b32.xlu0 %v1080, 122
        %v1089 = vpop.permute.xlu0 %1088
        %1090 = vrot.lane.b32.xlu0 %v1081, 122
        %v1091 = vpop.permute.xlu0 %1090
        %v1092 = vrot.slane %v1083, 4
        %v1093 = vrot.slane %v1085, 4
        %v1094 = vrot.slane %v1087, 4
        %v1095 = vrot.slane %v1089, 4
        %v1096 = vrot.slane %v1091, 4
        %v1097 = vsel %vm662, %v1092, %v1093
        %vm1098 = vcmask 998400
        %v1099 = vsel %vm1098, %v1083, %v1097
        %v1100 = vsel %vm662, %v1093, %v1094
        %v1101 = vsel %vm1098, %v1085, %v1100
        %v1102 = vsel %vm662, %v1094, %v1095
        %v1103 = vsel %vm1098, %v1087, %v1102
        %v1104 = vsel %vm662, %v1095, %v1096
        %v1105 = vsel %vm1098, %v1089, %v1104
        %vm1110 = vcmask 1043459
        %vm1111 = vsmask.f32 3328
        %vm1112 = vmand %vm1110, %vm1111
        %vm1113 = vcmask 1047559
        %vm1114 = vsmask.f32 7424
        %vm1115 = vmand %vm1113, %vm1114
        %vm1116 = vmor %vm1115, %vm1112
        %v1117 = vld [vmem:[#allocation3] sm:$0x88]
        %v1118 = vsel %vm1116, %v1099, %v1117
        %1119 = vst [vmem:[#allocation3] sm:$0x88] %v1118
        %v1120 = vld [vmem:[#allocation3 + $0x8] sm:$0x88]
        %v1121 = vsel %vm1116, %v1101, %v1120
        %1122 = vst [vmem:[#allocation3 + $0x8] sm:$0x88] %v1121
        %v1123 = vld [vmem:[#allocation3 + $0x10] sm:$0x88]
        %v1124 = vsel %vm1116, %v1103, %v1123
        %1125 = vst [vmem:[#allocation3 + $0x10] sm:$0x88] %v1124
        %v1126 = vld [vmem:[#allocation3 + $0x18] sm:$0x88]
        %v1127 = vsel %vm1116, %v1105, %v1126
        %1128 = vst [vmem:[#allocation3 + $0x18] sm:$0x88] %v1127
        %v1129 = vld [vmem:[#allocation2] sm:$0xff]
        %v1130 = vld [vmem:[#allocation2 + $0x8] sm:$0x1]
        %v1133 = vperm.slane %v1129, 0
        %v1134 = vperm.slane %v1129, 1
        %v1135 = vperm.slane %v1129, 2
        %v1136 = vperm.slane %v1129, 3
        %v1137 = vperm.slane %v1129, 4
        %v1138 = vperm.slane %v1129, 5
        %v1139 = vperm.slane %v1129, 6
        %v1140 = vperm.slane %v1129, 7
        %v1141 = vperm.slane %v1130, 0
        %v1151 = vpack.c.bf16 %v1134, %v1133
        %v1152 = vpack.c.bf16 %v1136, %v1135
        %v1153 = vpack.c.bf16 %v1138, %v1137
        %v1154 = vpack.c.bf16 %v1140, %v1139
        %v1155 = vpack.c.bf16 %v1141, %v1141
        %v1157 = vshll.u32 %v1151, 16
        %v1159 = vrot.slane %v1157, 5
        %v1161 = vshll.u32 %v1152, 16
        %v1163 = vrot.slane %v1161, 5
        %v1165 = vshll.u32 %v1153, 16
        %v1167 = vrot.slane %v1165, 5
        %v1169 = vshll.u32 %v1154, 16
        %v1171 = vrot.slane %v1169, 5
        %v1173 = vshll.u32 %v1155, 16
        %v1175 = vrot.slane %v1173, 5
        %1176 = vrot.lane.b32.xlu0 %v1159, 96
        %v1177 = vpop.permute.xlu0 %1176
        %1178 = vrot.lane.b32.xlu0 %v1163, 96
        %v1179 = vpop.permute.xlu0 %1178
        %1180 = vrot.lane.b32.xlu0 %v1167, 96
        %v1181 = vpop.permute.xlu0 %1180
        %1182 = vrot.lane.b32.xlu0 %v1171, 96
        %v1183 = vpop.permute.xlu0 %1182
        %1184 = vrot.lane.b32.xlu0 %v1175, 96
        %v1185 = vpop.permute.xlu0 %1184
        %v1186 = vrot.slane %v1177, 4
        %v1187 = vrot.slane %v1179, 4
        %v1188 = vrot.slane %v1181, 4
        %v1189 = vrot.slane %v1183, 4
        %v1190 = vrot.slane %v1185, 4
        %v1191 = vsel %vm662, %v1186, %v1187
        %vm1192 = vcmask 785408
        %v1193 = vsel %vm1192, %v1177, %v1191
        %v1194 = vsel %vm662, %v1187, %v1188
        %v1195 = vsel %vm1192, %v1179, %v1194
        %v1196 = vsel %vm662, %v1188, %v1189
        %v1197 = vsel %vm1192, %v1181, %v1196
        %v1198 = vsel %vm662, %v1189, %v1190
        %v1199 = vsel %vm1192, %v1183, %v1198
        %vm1204 = vsmask.f32 7950
        %vm1205 = vmand %vm1110, %vm1204
        %vm1206 = vsmask.f32 7966
        %vm1207 = vmand %vm1113, %vm1206
        %vm1208 = vmor %vm1207, %vm1205
        %v1209 = vld [vmem:[#allocation3] sm:$0x88]
        %v1210 = vsel %vm1208, %v1193, %v1209
        %1211 = vst [vmem:[#allocation3] sm:$0x88] %v1210
        %v1212 = vld [vmem:[#allocation3 + $0x8] sm:$0x88]
        %v1213 = vsel %vm1208, %v1195, %v1212
        %1214 = vst [vmem:[#allocation3 + $0x8] sm:$0x88] %v1213
        %v1215 = vld [vmem:[#allocation3 + $0x10] sm:$0x88]
        %v1216 = vsel %vm1208, %v1197, %v1215
        %1217 = vst [vmem:[#allocation3 + $0x10] sm:$0x88] %v1216
        %v1218 = vld [vmem:[#allocation3 + $0x18] sm:$0x88]
        %v1219 = vsel %vm1208, %v1199, %v1218
        %1220 = vst [vmem:[#allocation3 + $0x18] sm:$0x88] %v1219
        %v1221 = vld [vmem:[#allocation2] sm:$0xff]
        %v1222 = vld [vmem:[#allocation2 + $0x8] sm:$0x1]
        %v1225 = vperm.slane %v1221, 0
        %v1226 = vperm.slane %v1221, 1
        %v1227 = vperm.slane %v1221, 2
        %v1228 = vperm.slane %v1221, 3
        %v1229 = vperm.slane %v1221, 4
        %v1230 = vperm.slane %v1221, 5
        %v1231 = vperm.slane %v1221, 6
        %v1232 = vperm.slane %v1221, 7
        %v1233 = vperm.slane %v1222, 0
        %v1243 = vpack.c.bf16 %v1226, %v1225
        %v1244 = vpack.c.bf16 %v1228, %v1227
        %v1245 = vpack.c.bf16 %v1230, %v1229
        %v1246 = vpack.c.bf16 %v1232, %v1231
        %v1247 = vpack.c.bf16 %v1233, %v1233
        %1253 = vrot.lane.b32.xlu0 %v1243, 95
        %v1254 = vpop.permute.xlu0 %1253
        %1255 = vrot.lane.b32.xlu0 %v1244, 95
        %v1256 = vpop.permute.xlu0 %1255
        %1257 = vrot.lane.b32.xlu0 %v1245, 95
        %v1258 = vpop.permute.xlu0 %1257
        %1259 = vrot.lane.b32.xlu0 %v1246, 95
        %v1260 = vpop.permute.xlu0 %1259
        %1261 = vrot.lane.b32.xlu0 %v1247, 95
        %v1262 = vpop.permute.xlu0 %1261
        %v1263 = vrot.slane %v1254, 4
        %v1264 = vrot.slane %v1256, 4
        %v1265 = vrot.slane %v1258, 4
        %v1266 = vrot.slane %v1260, 4
        %v1267 = vrot.slane %v1262, 4
        %v1268 = vsel %vm662, %v1263, %v1264
        %vm1269 = vcmask 777216
        %v1270 = vsel %vm1269, %v1254, %v1268
        %v1271 = vsel %vm662, %v1264, %v1265
        %v1272 = vsel %vm1269, %v1256, %v1271
        %v1273 = vsel %vm662, %v1265, %v1266
        %v1274 = vsel %vm1269, %v1258, %v1273
        %v1275 = vsel %vm662, %v1266, %v1267
        %v1276 = vsel %vm1269, %v1260, %v1275
        %v1281 = vld [vmem:[#allocation3 + $0x20] sm:$0x11]
        %v1282 = vsel %vm592, %v1270, %v1281
        %1283 = vst [vmem:[#allocation3 + $0x20] sm:$0x11] %v1282
        %v1284 = vld [vmem:[#allocation3 + $0x28] sm:$0x11]
        %v1285 = vsel %vm592, %v1272, %v1284
        %1286 = vst [vmem:[#allocation3 + $0x28] sm:$0x11] %v1285
        %v1287 = vld [vmem:[#allocation3 + $0x30] sm:$0x11]
        %v1288 = vsel %vm592, %v1274, %v1287
        %1289 = vst [vmem:[#allocation3 + $0x30] sm:$0x11] %v1288
        %v1290 = vld [vmem:[#allocation3 + $0x38] sm:$0x11]
        %v1291 = vsel %vm592, %v1276, %v1290
        %1292 = vst [vmem:[#allocation3 + $0x38] sm:$0x11] %v1291
        %v1293 = vld [vmem:[#allocation2] sm:$0xff]
        %v1294 = vld [vmem:[#allocation2 + $0x8] sm:$0x1]
        %v1297 = vperm.slane %v1293, 0
        %v1298 = vperm.slane %v1293, 1
        %v1299 = vperm.slane %v1293, 2
        %v1300 = vperm.slane %v1293, 3
        %v1301 = vperm.slane %v1293, 4
        %v1302 = vperm.slane %v1293, 5
        %v1303 = vperm.slane %v1293, 6
        %v1304 = vperm.slane %v1293, 7
        %v1305 = vperm.slane %v1294, 0
        %v1315 = vpack.c.bf16 %v1298, %v1297
        %v1316 = vpack.c.bf16 %v1300, %v1299
        %v1317 = vpack.c.bf16 %v1302, %v1301
        %v1318 = vpack.c.bf16 %v1304, %v1303
        %v1319 = vpack.c.bf16 %v1305, %v1305
        %v1321 = vshll.u32 %v1315, 16
        %v1324 = vshll.u32 %v1316, 16
        %v1327 = vshll.u32 %v1317, 16
        %v1330 = vshll.u32 %v1318, 16
        %v1333 = vshll.u32 %v1319, 16
        %1335 = vrot.lane.b32.xlu0 %v1321, 94
        %v1336 = vpop.permute.xlu0 %1335
        %1337 = vrot.lane.b32.xlu0 %v1324, 94
        %v1338 = vpop.permute.xlu0 %1337
        %1339 = vrot.lane.b32.xlu0 %v1327, 94
        %v1340 = vpop.permute.xlu0 %1339
        %1341 = vrot.lane.b32.xlu0 %v1330, 94
        %v1342 = vpop.permute.xlu0 %1341
        %1343 = vrot.lane.b32.xlu0 %v1333, 94
        %v1344 = vpop.permute.xlu0 %1343
        %v1345 = vrot.slane %v1336, 4
        %v1346 = vrot.slane %v1338, 4
        %v1347 = vrot.slane %v1340, 4
        %v1348 = vrot.slane %v1342, 4
        %v1349 = vrot.slane %v1344, 4
        %v1350 = vsel %vm662, %v1345, %v1346
        %vm1351 = vcmask 769024
        %v1352 = vsel %vm1351, %v1336, %v1350
        %v1353 = vsel %vm662, %v1346, %v1347
        %v1354 = vsel %vm1351, %v1338, %v1353
        %v1355 = vsel %vm662, %v1347, %v1348
        %v1356 = vsel %vm1351, %v1340, %v1355
        %v1357 = vsel %vm662, %v1348, %v1349
        %v1358 = vsel %vm1351, %v1342, %v1357
        %v1363 = vld [vmem:[#allocation3 + $0x20] sm:$0x11]
        %v1364 = vsel %vm680, %v1352, %v1363
        %1365 = vst [vmem:[#allocation3 + $0x20] sm:$0x11] %v1364
        %v1366 = vld [vmem:[#allocation3 + $0x28] sm:$0x11]
        %v1367 = vsel %vm680, %v1354, %v1366
        %1368 = vst [vmem:[#allocation3 + $0x28] sm:$0x11] %v1367
        %v1369 = vld [vmem:[#allocation3 + $0x30] sm:$0x11]
        %v1370 = vsel %vm680, %v1356, %v1369
        %1371 = vst [vmem:[#allocation3 + $0x30] sm:$0x11] %v1370
        %v1372 = vld [vmem:[#allocation3 + $0x38] sm:$0x11]
        %v1373 = vsel %vm680, %v1358, %v1372
        %1374 = vst [vmem:[#allocation3 + $0x38] sm:$0x11] %v1373
        %v1375 = vld [vmem:[#allocation2] sm:$0xff]
        %v1376 = vld [vmem:[#allocation2 + $0x8] sm:$0x1]
        %v1379 = vperm.slane %v1375, 0
        %v1380 = vperm.slane %v1375, 1
        %v1381 = vperm.slane %v1375, 2
        %v1382 = vperm.slane %v1375, 3
        %v1383 = vperm.slane %v1375, 4
        %v1384 = vperm.slane %v1375, 5
        %v1385 = vperm.slane %v1375, 6
        %v1386 = vperm.slane %v1375, 7
        %v1387 = vperm.slane %v1376, 0
        %v1397 = vpack.c.bf16 %v1380, %v1379
        %v1398 = vpack.c.bf16 %v1382, %v1381
        %v1399 = vpack.c.bf16 %v1384, %v1383
        %v1400 = vpack.c.bf16 %v1386, %v1385
        %v1401 = vpack.c.bf16 %v1387, %v1387
        %v1407 = vrot.slane %v1397, 7
        %v1408 = vrot.slane %v1398, 7
        %v1409 = vrot.slane %v1399, 7
        %v1410 = vrot.slane %v1400, 7
        %v1411 = vrot.slane %v1401, 7
        %1412 = vrot.lane.b32.xlu0 %v1407, 93
        %v1413 = vpop.permute.xlu0 %1412
        %1414 = vrot.lane.b32.xlu0 %v1408, 93
        %v1415 = vpop.permute.xlu0 %1414
        %1416 = vrot.lane.b32.xlu0 %v1409, 93
        %v1417 = vpop.permute.xlu0 %1416
        %1418 = vrot.lane.b32.xlu0 %v1410, 93
        %v1419 = vpop.permute.xlu0 %1418
        %1420 = vrot.lane.b32.xlu0 %v1411, 93
        %v1421 = vpop.permute.xlu0 %1420
        %v1422 = vrot.slane %v1413, 4
        %v1423 = vrot.slane %v1415, 4
        %v1424 = vrot.slane %v1417, 4
        %v1425 = vrot.slane %v1419, 4
        %v1426 = vrot.slane %v1421, 4
        %v1427 = vsel %vm662, %v1422, %v1423
        %vm1428 = vcmask 760832
        %v1429 = vsel %vm1428, %v1413, %v1427
        %v1430 = vsel %vm662, %v1423, %v1424
        %v1431 = vsel %vm1428, %v1415, %v1430
        %v1432 = vsel %vm662, %v1424, %v1425
        %v1433 = vsel %vm1428, %v1417, %v1432
        %v1434 = vsel %vm662, %v1425, %v1426
        %v1435 = vsel %vm1428, %v1419, %v1434
        %v1440 = vld [vmem:[#allocation3 + $0x20] sm:$0x22]
        %v1441 = vsel %vm764, %v1429, %v1440
        %1442 = vst [vmem:[#allocation3 + $0x20] sm:$0x22] %v1441
        %v1443 = vld [vmem:[#allocation3 + $0x28] sm:$0x22]
        %v1444 = vsel %vm764, %v1431, %v1443
        %1445 = vst [vmem:[#allocation3 + $0x28] sm:$0x22] %v1444
        %v1446 = vld [vmem:[#allocation3 + $0x30] sm:$0x22]
        %v1447 = vsel %vm764, %v1433, %v1446
        %1448 = vst [vmem:[#allocation3 + $0x30] sm:$0x22] %v1447
        %v1449 = vld [vmem:[#allocation3 + $0x38] sm:$0x22]
        %v1450 = vsel %vm764, %v1435, %v1449
        %1451 = vst [vmem:[#allocation3 + $0x38] sm:$0x22] %v1450
        %v1452 = vld [vmem:[#allocation2] sm:$0xff]
        %v1453 = vld [vmem:[#allocation2 + $0x8] sm:$0x1]
        %v1456 = vperm.slane %v1452, 0
        %v1457 = vperm.slane %v1452, 1
        %v1458 = vperm.slane %v1452, 2
        %v1459 = vperm.slane %v1452, 3
        %v1460 = vperm.slane %v1452, 4
        %v1461 = vperm.slane %v1452, 5
        %v1462 = vperm.slane %v1452, 6
        %v1463 = vperm.slane %v1452, 7
        %v1464 = vperm.slane %v1453, 0
        %v1474 = vpack.c.bf16 %v1457, %v1456
        %v1475 = vpack.c.bf16 %v1459, %v1458
        %v1476 = vpack.c.bf16 %v1461, %v1460
        %v1477 = vpack.c.bf16 %v1463, %v1462
        %v1478 = vpack.c.bf16 %v1464, %v1464
        %v1480 = vshll.u32 %v1474, 16
        %v1482 = vrot.slane %v1480, 7
        %v1484 = vshll.u32 %v1475, 16
        %v1486 = vrot.slane %v1484, 7
        %v1488 = vshll.u32 %v1476, 16
        %v1490 = vrot.slane %v1488, 7
        %v1492 = vshll.u32 %v1477, 16
        %v1494 = vrot.slane %v1492, 7
        %v1496 = vshll.u32 %v1478, 16
        %v1498 = vrot.slane %v1496, 7
        %1499 = vrot.lane.b32.xlu0 %v1482, 92
        %v1500 = vpop.permute.xlu0 %1499
        %1501 = vrot.lane.b32.xlu0 %v1486, 92
        %v1502 = vpop.permute.xlu0 %1501
        %1503 = vrot.lane.b32.xlu0 %v1490, 92
        %v1504 = vpop.permute.xlu0 %1503
        %1505 = vrot.lane.b32.xlu0 %v1494, 92
        %v1506 = vpop.permute.xlu0 %1505
        %1507 = vrot.lane.b32.xlu0 %v1498, 92
        %v1508 = vpop.permute.xlu0 %1507
        %v1509 = vrot.slane %v1500, 4
        %v1510 = vrot.slane %v1502, 4
        %v1511 = vrot.slane %v1504, 4
        %v1512 = vrot.slane %v1506, 4
        %v1513 = vrot.slane %v1508, 4
        %v1514 = vsel %vm662, %v1509, %v1510
        %vm1515 = vcmask 752640
        %v1516 = vsel %vm1515, %v1500, %v1514
        %v1517 = vsel %vm662, %v1510, %v1511
        %v1518 = vsel %vm1515, %v1502, %v1517
        %v1519 = vsel %vm662, %v1511, %v1512
        %v1520 = vsel %vm1515, %v1504, %v1519
        %v1521 = vsel %vm662, %v1512, %v1513
        %v1522 = vsel %vm1515, %v1506, %v1521
        %v1527 = vld [vmem:[#allocation3 + $0x20] sm:$0x22]
        %v1528 = vsel %vm856, %v1516, %v1527
        %1529 = vst [vmem:[#allocation3 + $0x20] sm:$0x22] %v1528
        %v1530 = vld [vmem:[#allocation3 + $0x28] sm:$0x22]
        %v1531 = vsel %vm856, %v1518, %v1530
        %1532 = vst [vmem:[#allocation3 + $0x28] sm:$0x22] %v1531
        %v1533 = vld [vmem:[#allocation3 + $0x30] sm:$0x22]
        %v1534 = vsel %vm856, %v1520, %v1533
        %1535 = vst [vmem:[#allocation3 + $0x30] sm:$0x22] %v1534
        %v1536 = vld [vmem:[#allocation3 + $0x38] sm:$0x22]
        %v1537 = vsel %vm856, %v1522, %v1536
        %1538 = vst [vmem:[#allocation3 + $0x38] sm:$0x22] %v1537
        %v1539 = vld [vmem:[#allocation2] sm:$0xff]
        %v1540 = vld [vmem:[#allocation2 + $0x8] sm:$0x1]
        %v1543 = vperm.slane %v1539, 0
        %v1544 = vperm.slane %v1539, 1
        %v1545 = vperm.slane %v1539, 2
        %v1546 = vperm.slane %v1539, 3
        %v1547 = vperm.slane %v1539, 4
        %v1548 = vperm.slane %v1539, 5
        %v1549 = vperm.slane %v1539, 6
        %v1550 = vperm.slane %v1539, 7
        %v1551 = vperm.slane %v1540, 0
        %v1561 = vpack.c.bf16 %v1544, %v1543
        %v1562 = vpack.c.bf16 %v1546, %v1545
        %v1563 = vpack.c.bf16 %v1548, %v1547
        %v1564 = vpack.c.bf16 %v1550, %v1549
        %v1565 = vpack.c.bf16 %v1551, %v1551
        %v1571 = vrot.slane %v1561, 6
        %v1572 = vrot.slane %v1562, 6
        %v1573 = vrot.slane %v1563, 6
        %v1574 = vrot.slane %v1564, 6
        %v1575 = vrot.slane %v1565, 6
        %1576 = vrot.lane.b32.xlu0 %v1571, 91
        %v1577 = vpop.permute.xlu0 %1576
        %1578 = vrot.lane.b32.xlu0 %v1572, 91
        %v1579 = vpop.permute.xlu0 %1578
        %1580 = vrot.lane.b32.xlu0 %v1573, 91
        %v1581 = vpop.permute.xlu0 %1580
        %1582 = vrot.lane.b32.xlu0 %v1574, 91
        %v1583 = vpop.permute.xlu0 %1582
        %1584 = vrot.lane.b32.xlu0 %v1575, 91
        %v1585 = vpop.permute.xlu0 %1584
        %v1586 = vrot.slane %v1577, 4
        %v1587 = vrot.slane %v1579, 4
        %v1588 = vrot.slane %v1581, 4
        %v1589 = vrot.slane %v1583, 4
        %v1590 = vrot.slane %v1585, 4
        %v1591 = vsel %vm662, %v1586, %v1587
        %vm1592 = vcmask 744448
        %v1593 = vsel %vm1592, %v1577, %v1591
        %v1594 = vsel %vm662, %v1587, %v1588
        %v1595 = vsel %vm1592, %v1579, %v1594
        %v1596 = vsel %vm662, %v1588, %v1589
        %v1597 = vsel %vm1592, %v1581, %v1596
        %v1598 = vsel %vm662, %v1589, %v1590
        %v1599 = vsel %vm1592, %v1583, %v1598
        %v1604 = vld [vmem:[#allocation3 + $0x20] sm:$0x44]
        %v1605 = vsel %vm940, %v1593, %v1604
        %1606 = vst [vmem:[#allocation3 + $0x20] sm:$0x44] %v1605
        %v1607 = vld [vmem:[#allocation3 + $0x28] sm:$0x44]
        %v1608 = vsel %vm940, %v1595, %v1607
        %1609 = vst [vmem:[#allocation3 + $0x28] sm:$0x44] %v1608
        %v1610 = vld [vmem:[#allocation3 + $0x30] sm:$0x44]
        %v1611 = vsel %vm940, %v1597, %v1610
        %1612 = vst [vmem:[#allocation3 + $0x30] sm:$0x44] %v1611
        %v1613 = vld [vmem:[#allocation3 + $0x38] sm:$0x44]
        %v1614 = vsel %vm940, %v1599, %v1613
        %1615 = vst [vmem:[#allocation3 + $0x38] sm:$0x44] %v1614
        %v1616 = vld [vmem:[#allocation2] sm:$0xff]
        %v1617 = vld [vmem:[#allocation2 + $0x8] sm:$0x1]
        %v1620 = vperm.slane %v1616, 0
        %v1621 = vperm.slane %v1616, 1
        %v1622 = vperm.slane %v1616, 2
        %v1623 = vperm.slane %v1616, 3
        %v1624 = vperm.slane %v1616, 4
        %v1625 = vperm.slane %v1616, 5
        %v1626 = vperm.slane %v1616, 6
        %v1627 = vperm.slane %v1616, 7
        %v1628 = vperm.slane %v1617, 0
        %v1638 = vpack.c.bf16 %v1621, %v1620
        %v1639 = vpack.c.bf16 %v1623, %v1622
        %v1640 = vpack.c.bf16 %v1625, %v1624
        %v1641 = vpack.c.bf16 %v1627, %v1626
        %v1642 = vpack.c.bf16 %v1628, %v1628
        %v1644 = vshll.u32 %v1638, 16
        %v1646 = vrot.slane %v1644, 6
        %v1648 = vshll.u32 %v1639, 16
        %v1650 = vrot.slane %v1648, 6
        %v1652 = vshll.u32 %v1640, 16
        %v1654 = vrot.slane %v1652, 6
        %v1656 = vshll.u32 %v1641, 16
        %v1658 = vrot.slane %v1656, 6
        %v1660 = vshll.u32 %v1642, 16
        %v1662 = vrot.slane %v1660, 6
        %1663 = vrot.lane.b32.xlu0 %v1646, 90
        %v1664 = vpop.permute.xlu0 %1663
        %1665 = vrot.lane.b32.xlu0 %v1650, 90
        %v1666 = vpop.permute.xlu0 %1665
        %1667 = vrot.lane.b32.xlu0 %v1654, 90
        %v1668 = vpop.permute.xlu0 %1667
        %1669 = vrot.lane.b32.xlu0 %v1658, 90
        %v1670 = vpop.permute.xlu0 %1669
        %1671 = vrot.lane.b32.xlu0 %v1662, 90
        %v1672 = vpop.permute.xlu0 %1671
        %v1673 = vrot.slane %v1664, 4
        %v1674 = vrot.slane %v1666, 4
        %v1675 = vrot.slane %v1668, 4
        %v1676 = vrot.slane %v1670, 4
        %v1677 = vrot.slane %v1672, 4
        %v1678 = vsel %vm662, %v1673, %v1674
        %vm1679 = vcmask 736256
        %v1680 = vsel %vm1679, %v1664, %v1678
        %v1681 = vsel %vm662, %v1674, %v1675
        %v1682 = vsel %vm1679, %v1666, %v1681
        %v1683 = vsel %vm662, %v1675, %v1676
        %v1684 = vsel %vm1679, %v1668, %v1683
        %v1685 = vsel %vm662, %v1676, %v1677
        %v1686 = vsel %vm1679, %v1670, %v1685
        %v1691 = vld [vmem:[#allocation3 + $0x20] sm:$0x44]
        %v1692 = vsel %vm1032, %v1680, %v1691
        %1693 = vst [vmem:[#allocation3 + $0x20] sm:$0x44] %v1692
        %v1694 = vld [vmem:[#allocation3 + $0x28] sm:$0x44]
        %v1695 = vsel %vm1032, %v1682, %v1694
        %1696 = vst [vmem:[#allocation3 + $0x28] sm:$0x44] %v1695
        %v1697 = vld [vmem:[#allocation3 + $0x30] sm:$0x44]
        %v1698 = vsel %vm1032, %v1684, %v1697
        %1699 = vst [vmem:[#allocation3 + $0x30] sm:$0x44] %v1698
        %v1700 = vld [vmem:[#allocation3 + $0x38] sm:$0x44]
        %v1701 = vsel %vm1032, %v1686, %v1700
        %1702 = vst [vmem:[#allocation3 + $0x38] sm:$0x44] %v1701
        %v1703 = vld [vmem:[#allocation2] sm:$0xff]
        %v1704 = vld [vmem:[#allocation2 + $0x8] sm:$0x1]
        %v1707 = vperm.slane %v1703, 0
        %v1708 = vperm.slane %v1703, 1
        %v1709 = vperm.slane %v1703, 2
        %v1710 = vperm.slane %v1703, 3
        %v1711 = vperm.slane %v1703, 4
        %v1712 = vperm.slane %v1703, 5
        %v1713 = vperm.slane %v1703, 6
        %v1714 = vperm.slane %v1703, 7
        %v1715 = vperm.slane %v1704, 0
        %v1725 = vpack.c.bf16 %v1708, %v1707
        %v1726 = vpack.c.bf16 %v1710, %v1709
        %v1727 = vpack.c.bf16 %v1712, %v1711
        %v1728 = vpack.c.bf16 %v1714, %v1713
        %v1729 = vpack.c.bf16 %v1715, %v1715
        %v1735 = vrot.slane %v1725, 5
        %v1736 = vrot.slane %v1726, 5
        %v1737 = vrot.slane %v1727, 5
        %v1738 = vrot.slane %v1728, 5
        %v1739 = vrot.slane %v1729, 5
        %1740 = vrot.lane.b32.xlu0 %v1735, 64
        %v1741 = vpop.permute.xlu0 %1740
        %1742 = vrot.lane.b32.xlu0 %v1736, 64
        %v1743 = vpop.permute.xlu0 %1742
        %1744 = vrot.lane.b32.xlu0 %v1737, 64
        %v1745 = vpop.permute.xlu0 %1744
        %1746 = vrot.lane.b32.xlu0 %v1738, 64
        %v1747 = vpop.permute.xlu0 %1746
        %1748 = vrot.lane.b32.xlu0 %v1739, 64
        %v1749 = vpop.permute.xlu0 %1748
        %v1750 = vrot.slane %v1741, 4
        %v1751 = vrot.slane %v1743, 4
        %v1752 = vrot.slane %v1745, 4
        %v1753 = vrot.slane %v1747, 4
        %v1754 = vrot.slane %v1749, 4
        %v1755 = vsel %vm662, %v1750, %v1751
        %vm1756 = vcmask 523264
        %v1757 = vsel %vm1756, %v1741, %v1755
        %v1758 = vsel %vm662, %v1751, %v1752
        %v1759 = vsel %vm1756, %v1743, %v1758
        %v1760 = vsel %vm662, %v1752, %v1753
        %v1761 = vsel %vm1756, %v1745, %v1760
        %v1762 = vsel %vm662, %v1753, %v1754
        %v1763 = vsel %vm1756, %v1747, %v1762
        %v1768 = vld [vmem:[#allocation3 + $0x20] sm:$0x88]
        %v1769 = vsel %vm1116, %v1757, %v1768
        %1770 = vst [vmem:[#allocation3 + $0x20] sm:$0x88] %v1769
        %v1771 = vld [vmem:[#allocation3 + $0x28] sm:$0x88]
        %v1772 = vsel %vm1116, %v1759, %v1771
        %1773 = vst [vmem:[#allocation3 + $0x28] sm:$0x88] %v1772
        %v1774 = vld [vmem:[#allocation3 + $0x30] sm:$0x88]
        %v1775 = vsel %vm1116, %v1761, %v1774
        %1776 = vst [vmem:[#allocation3 + $0x30] sm:$0x88] %v1775
        %v1777 = vld [vmem:[#allocation3 + $0x38] sm:$0x88]
        %v1778 = vsel %vm1116, %v1763, %v1777
        %1779 = vst [vmem:[#allocation3 + $0x38] sm:$0x88] %v1778
        %v1780 = vld [vmem:[#allocation2] sm:$0xff]
        %v1781 = vld [vmem:[#allocation2 + $0x8] sm:$0x1]
        %v1784 = vperm.slane %v1780, 0
        %v1785 = vperm.slane %v1780, 1
        %v1786 = vperm.slane %v1780, 2
        %v1787 = vperm.slane %v1780, 3
        %v1788 = vperm.slane %v1780, 4
        %v1789 = vperm.slane %v1780, 5
        %v1790 = vperm.slane %v1780, 6
        %v1791 = vperm.slane %v1780, 7
        %v1792 = vperm.slane %v1781, 0
        %v1802 = vpack.c.bf16 %v1785, %v1784
        %v1803 = vpack.c.bf16 %v1787, %v1786
        %v1804 = vpack.c.bf16 %v1789, %v1788
        %v1805 = vpack.c.bf16 %v1791, %v1790
        %v1806 = vpack.c.bf16 %v1792, %v1792
        %v1808 = vshll.u32 %v1802, 16
        %v1810 = vrot.slane %v1808, 5
        %v1812 = vshll.u32 %v1803, 16
        %v1814 = vrot.slane %v1812, 5
        %v1816 = vshll.u32 %v1804, 16
        %v1818 = vrot.slane %v1816, 5
        %v1820 = vshll.u32 %v1805, 16
        %v1822 = vrot.slane %v1820, 5
        %v1824 = vshll.u32 %v1806, 16
        %v1826 = vrot.slane %v1824, 5
        %1827 = vrot.lane.b32.xlu0 %v1810, 63
        %v1828 = vpop.permute.xlu0 %1827
        %1829 = vrot.lane.b32.xlu0 %v1814, 63
        %v1830 = vpop.permute.xlu0 %1829
        %1831 = vrot.lane.b32.xlu0 %v1818, 63
        %v1832 = vpop.permute.xlu0 %1831
        %1833 = vrot.lane.b32.xlu0 %v1822, 63
        %v1834 = vpop.permute.xlu0 %1833
        %1835 = vrot.lane.b32.xlu0 %v1826, 63
        %v1836 = vpop.permute.xlu0 %1835
        %v1837 = vrot.slane %v1828, 4
        %v1838 = vrot.slane %v1830, 4
        %v1839 = vrot.slane %v1832, 4
        %v1840 = vrot.slane %v1834, 4
        %v1841 = vrot.slane %v1836, 4
        %v1842 = vsel %vm662, %v1837, %v1838
        %vm1843 = vcmask 515072
        %v1844 = vsel %vm1843, %v1828, %v1842
        %v1845 = vsel %vm662, %v1838, %v1839
        %v1846 = vsel %vm1843, %v1830, %v1845
        %v1847 = vsel %vm662, %v1839, %v1840
        %v1848 = vsel %vm1843, %v1832, %v1847
        %v1849 = vsel %vm662, %v1840, %v1841
        %v1850 = vsel %vm1843, %v1834, %v1849
        %v1855 = vld [vmem:[#allocation3 + $0x20] sm:$0x88]
        %v1856 = vsel %vm1208, %v1844, %v1855
        %1857 = vst [vmem:[#allocation3 + $0x20] sm:$0x88] %v1856
        %v1858 = vld [vmem:[#allocation3 + $0x28] sm:$0x88]
        %v1859 = vsel %vm1208, %v1846, %v1858
        %1860 = vst [vmem:[#allocation3 + $0x28] sm:$0x88] %v1859
        %v1861 = vld [vmem:[#allocation3 + $0x30] sm:$0x88]
        %v1862 = vsel %vm1208, %v1848, %v1861
        %1863 = vst [vmem:[#allocation3 + $0x30] sm:$0x88] %v1862
        %v1864 = vld [vmem:[#allocation3 + $0x38] sm:$0x88]
        %v1865 = vsel %vm1208, %v1850, %v1864
        %1866 = vst [vmem:[#allocation3 + $0x38] sm:$0x88] %v1865
        %v1867 = vld [vmem:[#allocation2] sm:$0xff]
        %v1868 = vld [vmem:[#allocation2 + $0x8] sm:$0x1]
        %v1871 = vperm.slane %v1867, 0
        %v1872 = vperm.slane %v1867, 1
        %v1873 = vperm.slane %v1867, 2
        %v1874 = vperm.slane %v1867, 3
        %v1875 = vperm.slane %v1867, 4
        %v1876 = vperm.slane %v1867, 5
        %v1877 = vperm.slane %v1867, 6
        %v1878 = vperm.slane %v1867, 7
        %v1879 = vperm.slane %v1868, 0
        %v1889 = vpack.c.bf16 %v1872, %v1871
        %v1890 = vpack.c.bf16 %v1874, %v1873
        %v1891 = vpack.c.bf16 %v1876, %v1875
        %v1892 = vpack.c.bf16 %v1878, %v1877
        %v1893 = vpack.c.bf16 %v1879, %v1879
        %1899 = vrot.lane.b32.xlu0 %v1889, 62
        %v1900 = vpop.permute.xlu0 %1899
        %1901 = vrot.lane.b32.xlu0 %v1890, 62
        %v1902 = vpop.permute.xlu0 %1901
        %1903 = vrot.lane.b32.xlu0 %v1891, 62
        %v1904 = vpop.permute.xlu0 %1903
        %1905 = vrot.lane.b32.xlu0 %v1892, 62
        %v1906 = vpop.permute.xlu0 %1905
        %1907 = vrot.lane.b32.xlu0 %v1893, 62
        %v1908 = vpop.permute.xlu0 %1907
        %v1909 = vrot.slane %v1900, 4
        %v1910 = vrot.slane %v1902, 4
        %v1911 = vrot.slane %v1904, 4
        %v1912 = vrot.slane %v1906, 4
        %v1913 = vrot.slane %v1908, 4
        %v1914 = vsel %vm662, %v1909, %v1910
        %vm1915 = vcmask 506880
        %v1916 = vsel %vm1915, %v1900, %v1914
        %v1917 = vsel %vm662, %v1910, %v1911
        %v1918 = vsel %vm1915, %v1902, %v1917
        %v1919 = vsel %vm662, %v1911, %v1912
        %v1920 = vsel %vm1915, %v1904, %v1919
        %v1921 = vsel %vm662, %v1912, %v1913
        %v1922 = vsel %vm1915, %v1906, %v1921
        %v1927 = vld [vmem:[#allocation3 + $0x40] sm:$0x11]
        %v1928 = vsel %vm592, %v1916, %v1927
        %1929 = vst [vmem:[#allocation3 + $0x40] sm:$0x11] %v1928
        %v1930 = vld [vmem:[#allocation3 + $0x48] sm:$0x11]
        %v1931 = vsel %vm592, %v1918, %v1930
        %1932 = vst [vmem:[#allocation3 + $0x48] sm:$0x11] %v1931
        %v1933 = vld [vmem:[#allocation3 + $0x50] sm:$0x11]
        %v1934 = vsel %vm592, %v1920, %v1933
        %1935 = vst [vmem:[#allocation3 + $0x50] sm:$0x11] %v1934
        %v1936 = vld [vmem:[#allocation3 + $0x58] sm:$0x11]
        %v1937 = vsel %vm592, %v1922, %v1936
        %1938 = vst [vmem:[#allocation3 + $0x58] sm:$0x11] %v1937
        %v1939 = vld [vmem:[#allocation2] sm:$0xff]
        %v1940 = vld [vmem:[#allocation2 + $0x8] sm:$0x1]
        %v1943 = vperm.slane %v1939, 0
        %v1944 = vperm.slane %v1939, 1
        %v1945 = vperm.slane %v1939, 2
        %v1946 = vperm.slane %v1939, 3
        %v1947 = vperm.slane %v1939, 4
        %v1948 = vperm.slane %v1939, 5
        %v1949 = vperm.slane %v1939, 6
        %v1950 = vperm.slane %v1939, 7
        %v1951 = vperm.slane %v1940, 0
        %v1961 = vpack.c.bf16 %v1944, %v1943
        %v1962 = vpack.c.bf16 %v1946, %v1945
        %v1963 = vpack.c.bf16 %v1948, %v1947
        %v1964 = vpack.c.bf16 %v1950, %v1949
        %v1965 = vpack.c.bf16 %v1951, %v1951
        %v1967 = vshll.u32 %v1961, 16
        %v1970 = vshll.u32 %v1962, 16
        %v1973 = vshll.u32 %v1963, 16
        %v1976 = vshll.u32 %v1964, 16
        %v1979 = vshll.u32 %v1965, 16
        %1981 = vrot.lane.b32.xlu0 %v1967, 61
        %v1982 = vpop.permute.xlu0 %1981
        %1983 = vrot.lane.b32.xlu0 %v1970, 61
        %v1984 = vpop.permute.xlu0 %1983
        %1985 = vrot.lane.b32.xlu0 %v1973, 61
        %v1986 = vpop.permute.xlu0 %1985
        %1987 = vrot.lane.b32.xlu0 %v1976, 61
        %v1988 = vpop.permute.xlu0 %1987
        %1989 = vrot.lane.b32.xlu0 %v1979, 61
        %v1990 = vpop.permute.xlu0 %1989
        %v1991 = vrot.slane %v1982, 4
        %v1992 = vrot.slane %v1984, 4
        %v1993 = vrot.slane %v1986, 4
        %v1994 = vrot.slane %v1988, 4
        %v1995 = vrot.slane %v1990, 4
        %v1996 = vsel %vm662, %v1991, %v1992
        %vm1997 = vcmask 498688
        %v1998 = vsel %vm1997, %v1982, %v1996
        %v1999 = vsel %vm662, %v1992, %v1993
        %v2000 = vsel %vm1997, %v1984, %v1999
        %v2001 = vsel %vm662, %v1993, %v1994
        %v2002 = vsel %vm1997, %v1986, %v2001
        %v2003 = vsel %vm662, %v1994, %v1995
        %v2004 = vsel %vm1997, %v1988, %v2003
        %v2009 = vld [vmem:[#allocation3 + $0x40] sm:$0x11]
        %v2010 = vsel %vm680, %v1998, %v2009
        %2011 = vst [vmem:[#allocation3 + $0x40] sm:$0x11] %v2010
        %v2012 = vld [vmem:[#allocation3 + $0x48] sm:$0x11]
        %v2013 = vsel %vm680, %v2000, %v2012
        %2014 = vst [vmem:[#allocation3 + $0x48] sm:$0x11] %v2013
        %v2015 = vld [vmem:[#allocation3 + $0x50] sm:$0x11]
        %v2016 = vsel %vm680, %v2002, %v2015
        %2017 = vst [vmem:[#allocation3 + $0x50] sm:$0x11] %v2016
        %v2018 = vld [vmem:[#allocation3 + $0x58] sm:$0x11]
        %v2019 = vsel %vm680, %v2004, %v2018
        %2020 = vst [vmem:[#allocation3 + $0x58] sm:$0x11] %v2019
        %v2021 = vld [vmem:[#allocation2] sm:$0xff]
        %v2022 = vld [vmem:[#allocation2 + $0x8] sm:$0x1]
        %v2025 = vperm.slane %v2021, 0
        %v2026 = vperm.slane %v2021, 1
        %v2027 = vperm.slane %v2021, 2
        %v2028 = vperm.slane %v2021, 3
        %v2029 = vperm.slane %v2021, 4
        %v2030 = vperm.slane %v2021, 5
        %v2031 = vperm.slane %v2021, 6
        %v2032 = vperm.slane %v2021, 7
        %v2033 = vperm.slane %v2022, 0
        %v2043 = vpack.c.bf16 %v2026, %v2025
        %v2044 = vpack.c.bf16 %v2028, %v2027
        %v2045 = vpack.c.bf16 %v2030, %v2029
        %v2046 = vpack.c.bf16 %v2032, %v2031
        %v2047 = vpack.c.bf16 %v2033, %v2033
        %v2053 = vrot.slane %v2043, 7
        %v2054 = vrot.slane %v2044, 7
        %v2055 = vrot.slane %v2045, 7
        %v2056 = vrot.slane %v2046, 7
        %v2057 = vrot.slane %v2047, 7
        %2058 = vrot.lane.b32.xlu0 %v2053, 60
        %v2059 = vpop.permute.xlu0 %2058
        %2060 = vrot.lane.b32.xlu0 %v2054, 60
        %v2061 = vpop.permute.xlu0 %2060
        %2062 = vrot.lane.b32.xlu0 %v2055, 60
        %v2063 = vpop.permute.xlu0 %2062
        %2064 = vrot.lane.b32.xlu0 %v2056, 60
        %v2065 = vpop.permute.xlu0 %2064
        %2066 = vrot.lane.b32.xlu0 %v2057, 60
        %v2067 = vpop.permute.xlu0 %2066
        %v2068 = vrot.slane %v2059, 4
        %v2069 = vrot.slane %v2061, 4
        %v2070 = vrot.slane %v2063, 4
        %v2071 = vrot.slane %v2065, 4
        %v2072 = vrot.slane %v2067, 4
        %v2073 = vsel %vm662, %v2068, %v2069
        %vm2074 = vcmask 490496
        %v2075 = vsel %vm2074, %v2059, %v2073
        %v2076 = vsel %vm662, %v2069, %v2070
        %v2077 = vsel %vm2074, %v2061, %v2076
        %v2078 = vsel %vm662, %v2070, %v2071
        %v2079 = vsel %vm2074, %v2063, %v2078
        %v2080 = vsel %vm662, %v2071, %v2072
        %v2081 = vsel %vm2074, %v2065, %v2080
        %v2086 = vld [vmem:[#allocation3 + $0x40] sm:$0x22]
        %v2087 = vsel %vm764, %v2075, %v2086
        %2088 = vst [vmem:[#allocation3 + $0x40] sm:$0x22] %v2087
        %v2089 = vld [vmem:[#allocation3 + $0x48] sm:$0x22]
        %v2090 = vsel %vm764, %v2077, %v2089
        %2091 = vst [vmem:[#allocation3 + $0x48] sm:$0x22] %v2090
        %v2092 = vld [vmem:[#allocation3 + $0x50] sm:$0x22]
        %v2093 = vsel %vm764, %v2079, %v2092
        %2094 = vst [vmem:[#allocation3 + $0x50] sm:$0x22] %v2093
        %v2095 = vld [vmem:[#allocation3 + $0x58] sm:$0x22]
        %v2096 = vsel %vm764, %v2081, %v2095
        %2097 = vst [vmem:[#allocation3 + $0x58] sm:$0x22] %v2096
        %v2098 = vld [vmem:[#allocation2] sm:$0xff]
        %v2099 = vld [vmem:[#allocation2 + $0x8] sm:$0x1]
        %v2102 = vperm.slane %v2098, 0
        %v2103 = vperm.slane %v2098, 1
        %v2104 = vperm.slane %v2098, 2
        %v2105 = vperm.slane %v2098, 3
        %v2106 = vperm.slane %v2098, 4
        %v2107 = vperm.slane %v2098, 5
        %v2108 = vperm.slane %v2098, 6
        %v2109 = vperm.slane %v2098, 7
        %v2110 = vperm.slane %v2099, 0
        %v2120 = vpack.c.bf16 %v2103, %v2102
        %v2121 = vpack.c.bf16 %v2105, %v2104
        %v2122 = vpack.c.bf16 %v2107, %v2106
        %v2123 = vpack.c.bf16 %v2109, %v2108
        %v2124 = vpack.c.bf16 %v2110, %v2110
        %v2126 = vshll.u32 %v2120, 16
        %v2128 = vrot.slane %v2126, 7
        %v2130 = vshll.u32 %v2121, 16
        %v2132 = vrot.slane %v2130, 7
        %v2134 = vshll.u32 %v2122, 16
        %v2136 = vrot.slane %v2134, 7
        %v2138 = vshll.u32 %v2123, 16
        %v2140 = vrot.slane %v2138, 7
        %v2142 = vshll.u32 %v2124, 16
        %v2144 = vrot.slane %v2142, 7
        %2145 = vrot.lane.b32.xlu0 %v2128, 59
        %v2146 = vpop.permute.xlu0 %2145
        %2147 = vrot.lane.b32.xlu0 %v2132, 59
        %v2148 = vpop.permute.xlu0 %2147
        %2149 = vrot.lane.b32.xlu0 %v2136, 59
        %v2150 = vpop.permute.xlu0 %2149
        %2151 = vrot.lane.b32.xlu0 %v2140, 59
        %v2152 = vpop.permute.xlu0 %2151
        %2153 = vrot.lane.b32.xlu0 %v2144, 59
        %v2154 = vpop.permute.xlu0 %2153
        %v2155 = vrot.slane %v2146, 4
        %v2156 = vrot.slane %v2148, 4
        %v2157 = vrot.slane %v2150, 4
        %v2158 = vrot.slane %v2152, 4
        %v2159 = vrot.slane %v2154, 4
        %v2160 = vsel %vm662, %v2155, %v2156
        %vm2161 = vcmask 482304
        %v2162 = vsel %vm2161, %v2146, %v2160
        %v2163 = vsel %vm662, %v2156, %v2157
        %v2164 = vsel %vm2161, %v2148, %v2163
        %v2165 = vsel %vm662, %v2157, %v2158
        %v2166 = vsel %vm2161, %v2150, %v2165
        %v2167 = vsel %vm662, %v2158, %v2159
        %v2168 = vsel %vm2161, %v2152, %v2167
        %v2173 = vld [vmem:[#allocation3 + $0x40] sm:$0x22]
        %v2174 = vsel %vm856, %v2162, %v2173
        %2175 = vst [vmem:[#allocation3 + $0x40] sm:$0x22] %v2174
        %v2176 = vld [vmem:[#allocation3 + $0x48] sm:$0x22]
        %v2177 = vsel %vm856, %v2164, %v2176
        %2178 = vst [vmem:[#allocation3 + $0x48] sm:$0x22] %v2177
        %v2179 = vld [vmem:[#allocation3 + $0x50] sm:$0x22]
        %v2180 = vsel %vm856, %v2166, %v2179
        %2181 = vst [vmem:[#allocation3 + $0x50] sm:$0x22] %v2180
        %v2182 = vld [vmem:[#allocation3 + $0x58] sm:$0x22]
        %v2183 = vsel %vm856, %v2168, %v2182
        %2184 = vst [vmem:[#allocation3 + $0x58] sm:$0x22] %v2183
        %v2185 = vld [vmem:[#allocation2] sm:$0xff]
        %v2186 = vld [vmem:[#allocation2 + $0x8] sm:$0x1]
        %v2189 = vperm.slane %v2185, 0
        %v2190 = vperm.slane %v2185, 1
        %v2191 = vperm.slane %v2185, 2
        %v2192 = vperm.slane %v2185, 3
        %v2193 = vperm.slane %v2185, 4
        %v2194 = vperm.slane %v2185, 5
        %v2195 = vperm.slane %v2185, 6
        %v2196 = vperm.slane %v2185, 7
        %v2197 = vperm.slane %v2186, 0
        %v2207 = vpack.c.bf16 %v2190, %v2189
        %v2208 = vpack.c.bf16 %v2192, %v2191
        %v2209 = vpack.c.bf16 %v2194, %v2193
        %v2210 = vpack.c.bf16 %v2196, %v2195
        %v2211 = vpack.c.bf16 %v2197, %v2197
        %v2217 = vrot.slane %v2207, 6
        %v2218 = vrot.slane %v2208, 6
        %v2219 = vrot.slane %v2209, 6
        %v2220 = vrot.slane %v2210, 6
        %v2221 = vrot.slane %v2211, 6
        %2222 = vrot.lane.b32.xlu0 %v2217, 58
        %v2223 = vpop.permute.xlu0 %2222
        %2224 = vrot.lane.b32.xlu0 %v2218, 58
        %v2225 = vpop.permute.xlu0 %2224
        %2226 = vrot.lane.b32.xlu0 %v2219, 58
        %v2227 = vpop.permute.xlu0 %2226
        %2228 = vrot.lane.b32.xlu0 %v2220, 58
        %v2229 = vpop.permute.xlu0 %2228
        %2230 = vrot.lane.b32.xlu0 %v2221, 58
        %v2231 = vpop.permute.xlu0 %2230
        %v2232 = vrot.slane %v2223, 4
        %v2233 = vrot.slane %v2225, 4
        %v2234 = vrot.slane %v2227, 4
        %v2235 = vrot.slane %v2229, 4
        %v2236 = vrot.slane %v2231, 4
        %v2237 = vsel %vm662, %v2232, %v2233
        %vm2238 = vcmask 474112
        %v2239 = vsel %vm2238, %v2223, %v2237
        %v2240 = vsel %vm662, %v2233, %v2234
        %v2241 = vsel %vm2238, %v2225, %v2240
        %v2242 = vsel %vm662, %v2234, %v2235
        %v2243 = vsel %vm2238, %v2227, %v2242
        %v2244 = vsel %vm662, %v2235, %v2236
        %v2245 = vsel %vm2238, %v2229, %v2244
        %v2250 = vld [vmem:[#allocation3 + $0x40] sm:$0x44]
        %v2251 = vsel %vm940, %v2239, %v2250
        %2252 = vst [vmem:[#allocation3 + $0x40] sm:$0x44] %v2251
        %v2253 = vld [vmem:[#allocation3 + $0x48] sm:$0x44]
        %v2254 = vsel %vm940, %v2241, %v2253
        %2255 = vst [vmem:[#allocation3 + $0x48] sm:$0x44] %v2254
        %v2256 = vld [vmem:[#allocation3 + $0x50] sm:$0x44]
        %v2257 = vsel %vm940, %v2243, %v2256
        %2258 = vst [vmem:[#allocation3 + $0x50] sm:$0x44] %v2257
        %v2259 = vld [vmem:[#allocation3 + $0x58] sm:$0x44]
        %v2260 = vsel %vm940, %v2245, %v2259
        %2261 = vst [vmem:[#allocation3 + $0x58] sm:$0x44] %v2260
        %v2262 = vld [vmem:[#allocation2] sm:$0xff]
        %v2263 = vld [vmem:[#allocation2 + $0x8] sm:$0x1]
        %v2266 = vperm.slane %v2262, 0
        %v2267 = vperm.slane %v2262, 1
        %v2268 = vperm.slane %v2262, 2
        %v2269 = vperm.slane %v2262, 3
        %v2270 = vperm.slane %v2262, 4
        %v2271 = vperm.slane %v2262, 5
        %v2272 = vperm.slane %v2262, 6
        %v2273 = vperm.slane %v2262, 7
        %v2274 = vperm.slane %v2263, 0
        %v2284 = vpack.c.bf16 %v2267, %v2266
        %v2285 = vpack.c.bf16 %v2269, %v2268
        %v2286 = vpack.c.bf16 %v2271, %v2270
        %v2287 = vpack.c.bf16 %v2273, %v2272
        %v2288 = vpack.c.bf16 %v2274, %v2274
        %v2290 = vshll.u32 %v2284, 16
        %v2292 = vrot.slane %v2290, 6
        %v2294 = vshll.u32 %v2285, 16
        %v2296 = vrot.slane %v2294, 6
        %v2298 = vshll.u32 %v2286, 16
        %v2300 = vrot.slane %v2298, 6
        %v2302 = vshll.u32 %v2287, 16
        %v2304 = vrot.slane %v2302, 6
        %v2306 = vshll.u32 %v2288, 16
        %v2308 = vrot.slane %v2306, 6
        %2309 = vrot.lane.b32.xlu0 %v2292, 32
        %v2310 = vpop.permute.xlu0 %2309
        %2311 = vrot.lane.b32.xlu0 %v2296, 32
        %v2312 = vpop.permute.xlu0 %2311
        %2313 = vrot.lane.b32.xlu0 %v2300, 32
        %v2314 = vpop.permute.xlu0 %2313
        %2315 = vrot.lane.b32.xlu0 %v2304, 32
        %v2316 = vpop.permute.xlu0 %2315
        %2317 = vrot.lane.b32.xlu0 %v2308, 32
        %v2318 = vpop.permute.xlu0 %2317
        %v2319 = vrot.slane %v2310, 4
        %v2320 = vrot.slane %v2312, 4
        %v2321 = vrot.slane %v2314, 4
        %v2322 = vrot.slane %v2316, 4
        %v2323 = vrot.slane %v2318, 4
        %v2324 = vsel %vm662, %v2319, %v2320
        %vm2325 = vcmask 261120
        %v2326 = vsel %vm2325, %v2310, %v2324
        %v2327 = vsel %vm662, %v2320, %v2321
        %v2328 = vsel %vm2325, %v2312, %v2327
        %v2329 = vsel %vm662, %v2321, %v2322
        %v2330 = vsel %vm2325, %v2314, %v2329
        %v2331 = vsel %vm662, %v2322, %v2323
        %v2332 = vsel %vm2325, %v2316, %v2331
        %v2337 = vld [vmem:[#allocation3 + $0x40] sm:$0x44]
        %v2338 = vsel %vm1032, %v2326, %v2337
        %2339 = vst [vmem:[#allocation3 + $0x40] sm:$0x44] %v2338
        %v2340 = vld [vmem:[#allocation3 + $0x48] sm:$0x44]
        %v2341 = vsel %vm1032, %v2328, %v2340
        %2342 = vst [vmem:[#allocation3 + $0x48] sm:$0x44] %v2341
        %v2343 = vld [vmem:[#allocation3 + $0x50] sm:$0x44]
        %v2344 = vsel %vm1032, %v2330, %v2343
        %2345 = vst [vmem:[#allocation3 + $0x50] sm:$0x44] %v2344
        %v2346 = vld [vmem:[#allocation3 + $0x58] sm:$0x44]
        %v2347 = vsel %vm1032, %v2332, %v2346
        %2348 = vst [vmem:[#allocation3 + $0x58] sm:$0x44] %v2347
        %v2349 = vld [vmem:[#allocation2] sm:$0xff]
        %v2350 = vld [vmem:[#allocation2 + $0x8] sm:$0x1]
        %v2353 = vperm.slane %v2349, 0
        %v2354 = vperm.slane %v2349, 1
        %v2355 = vperm.slane %v2349, 2
        %v2356 = vperm.slane %v2349, 3
        %v2357 = vperm.slane %v2349, 4
        %v2358 = vperm.slane %v2349, 5
        %v2359 = vperm.slane %v2349, 6
        %v2360 = vperm.slane %v2349, 7
        %v2361 = vperm.slane %v2350, 0
        %v2371 = vpack.c.bf16 %v2354, %v2353
        %v2372 = vpack.c.bf16 %v2356, %v2355
        %v2373 = vpack.c.bf16 %v2358, %v2357
        %v2374 = vpack.c.bf16 %v2360, %v2359
        %v2375 = vpack.c.bf16 %v2361, %v2361
        %v2381 = vrot.slane %v2371, 5
        %v2382 = vrot.slane %v2372, 5
        %v2383 = vrot.slane %v2373, 5
        %v2384 = vrot.slane %v2374, 5
        %v2385 = vrot.slane %v2375, 5
        %2386 = vrot.lane.b32.xlu0 %v2381, 31
        %v2387 = vpop.permute.xlu0 %2386
        %2388 = vrot.lane.b32.xlu0 %v2382, 31
        %v2389 = vpop.permute.xlu0 %2388
        %2390 = vrot.lane.b32.xlu0 %v2383, 31
        %v2391 = vpop.permute.xlu0 %2390
        %2392 = vrot.lane.b32.xlu0 %v2384, 31
        %v2393 = vpop.permute.xlu0 %2392
        %2394 = vrot.lane.b32.xlu0 %v2385, 31
        %v2395 = vpop.permute.xlu0 %2394
        %v2396 = vrot.slane %v2387, 4
        %v2397 = vrot.slane %v2389, 4
        %v2398 = vrot.slane %v2391, 4
        %v2399 = vrot.slane %v2393, 4
        %v2400 = vrot.slane %v2395, 4
        %v2401 = vsel %vm662, %v2396, %v2397
        %vm2402 = vcmask 252928
        %v2403 = vsel %vm2402, %v2387, %v2401
        %v2404 = vsel %vm662, %v2397, %v2398
        %v2405 = vsel %vm2402, %v2389, %v2404
        %v2406 = vsel %vm662, %v2398, %v2399
        %v2407 = vsel %vm2402, %v2391, %v2406
        %v2408 = vsel %vm662, %v2399, %v2400
        %v2409 = vsel %vm2402, %v2393, %v2408
        %v2414 = vld [vmem:[#allocation3 + $0x40] sm:$0x88]
        %v2415 = vsel %vm1116, %v2403, %v2414
        %2416 = vst [vmem:[#allocation3 + $0x40] sm:$0x88] %v2415
        %v2417 = vld [vmem:[#allocation3 + $0x48] sm:$0x88]
        %v2418 = vsel %vm1116, %v2405, %v2417
        %2419 = vst [vmem:[#allocation3 + $0x48] sm:$0x88] %v2418
        %v2420 = vld [vmem:[#allocation3 + $0x50] sm:$0x88]
        %v2421 = vsel %vm1116, %v2407, %v2420
        %2422 = vst [vmem:[#allocation3 + $0x50] sm:$0x88] %v2421
        %v2423 = vld [vmem:[#allocation3 + $0x58] sm:$0x88]
        %v2424 = vsel %vm1116, %v2409, %v2423
        %2425 = vst [vmem:[#allocation3 + $0x58] sm:$0x88] %v2424
        %v2426 = vld [vmem:[#allocation2] sm:$0xff]
        %v2427 = vld [vmem:[#allocation2 + $0x8] sm:$0x1]
        %v2430 = vperm.slane %v2426, 0
        %v2431 = vperm.slane %v2426, 1
        %v2432 = vperm.slane %v2426, 2
        %v2433 = vperm.slane %v2426, 3
        %v2434 = vperm.slane %v2426, 4
        %v2435 = vperm.slane %v2426, 5
        %v2436 = vperm.slane %v2426, 6
        %v2437 = vperm.slane %v2426, 7
        %v2438 = vperm.slane %v2427, 0
        %v2448 = vpack.c.bf16 %v2431, %v2430
        %v2449 = vpack.c.bf16 %v2433, %v2432
        %v2450 = vpack.c.bf16 %v2435, %v2434
        %v2451 = vpack.c.bf16 %v2437, %v2436
        %v2452 = vpack.c.bf16 %v2438, %v2438
        %v2454 = vshll.u32 %v2448, 16
        %v2456 = vrot.slane %v2454, 5
        %v2458 = vshll.u32 %v2449, 16
        %v2460 = vrot.slane %v2458, 5
        %v2462 = vshll.u32 %v2450, 16
        %v2464 = vrot.slane %v2462, 5
        %v2466 = vshll.u32 %v2451, 16
        %v2468 = vrot.slane %v2466, 5
        %v2470 = vshll.u32 %v2452, 16
        %v2472 = vrot.slane %v2470, 5
        %2473 = vrot.lane.b32.xlu0 %v2456, 30
        %v2474 = vpop.permute.xlu0 %2473
        %2475 = vrot.lane.b32.xlu0 %v2460, 30
        %v2476 = vpop.permute.xlu0 %2475
        %2477 = vrot.lane.b32.xlu0 %v2464, 30
        %v2478 = vpop.permute.xlu0 %2477
        %2479 = vrot.lane.b32.xlu0 %v2468, 30
        %v2480 = vpop.permute.xlu0 %2479
        %2481 = vrot.lane.b32.xlu0 %v2472, 30
        %v2482 = vpop.permute.xlu0 %2481
        %v2483 = vrot.slane %v2474, 4
        %v2484 = vrot.slane %v2476, 4
        %v2485 = vrot.slane %v2478, 4
        %v2486 = vrot.slane %v2480, 4
        %v2487 = vrot.slane %v2482, 4
        %v2488 = vsel %vm662, %v2483, %v2484
        %vm2489 = vcmask 244736
        %v2490 = vsel %vm2489, %v2474, %v2488
        %v2491 = vsel %vm662, %v2484, %v2485
        %v2492 = vsel %vm2489, %v2476, %v2491
        %v2493 = vsel %vm662, %v2485, %v2486
        %v2494 = vsel %vm2489, %v2478, %v2493
        %v2495 = vsel %vm662, %v2486, %v2487
        %v2496 = vsel %vm2489, %v2480, %v2495
        %v2501 = vld [vmem:[#allocation3 + $0x40] sm:$0x88]
        %v2502 = vsel %vm1208, %v2490, %v2501
        %2503 = vst [vmem:[#allocation3 + $0x40] sm:$0x88] %v2502
        %v2504 = vld [vmem:[#allocation3 + $0x48] sm:$0x88]
        %v2505 = vsel %vm1208, %v2492, %v2504
        %2506 = vst [vmem:[#allocation3 + $0x48] sm:$0x88] %v2505
        %v2507 = vld [vmem:[#allocation3 + $0x50] sm:$0x88]
        %v2508 = vsel %vm1208, %v2494, %v2507
        %2509 = vst [vmem:[#allocation3 + $0x50] sm:$0x88] %v2508
        %v2510 = vld [vmem:[#allocation3 + $0x58] sm:$0x88]
        %v2511 = vsel %vm1208, %v2496, %v2510
        %2512 = vst [vmem:[#allocation3 + $0x58] sm:$0x88] %v2511
        %v2513 = vld [vmem:[#allocation2] sm:$0xff]
        %v2514 = vld [vmem:[#allocation2 + $0x8] sm:$0x1]
        %v2517 = vperm.slane %v2513, 0
        %v2518 = vperm.slane %v2513, 1
        %v2519 = vperm.slane %v2513, 2
        %v2520 = vperm.slane %v2513, 3
        %v2521 = vperm.slane %v2513, 4
        %v2522 = vperm.slane %v2513, 5
        %v2523 = vperm.slane %v2513, 6
        %v2524 = vperm.slane %v2513, 7
        %v2525 = vperm.slane %v2514, 0
        %v2535 = vpack.c.bf16 %v2518, %v2517
        %v2536 = vpack.c.bf16 %v2520, %v2519
        %v2537 = vpack.c.bf16 %v2522, %v2521
        %v2538 = vpack.c.bf16 %v2524, %v2523
        %v2539 = vpack.c.bf16 %v2525, %v2525
        %2545 = vrot.lane.b32.xlu0 %v2535, 29
        %v2546 = vpop.permute.xlu0 %2545
        %2547 = vrot.lane.b32.xlu0 %v2536, 29
        %v2548 = vpop.permute.xlu0 %2547
        %2549 = vrot.lane.b32.xlu0 %v2537, 29
        %v2550 = vpop.permute.xlu0 %2549
        %2551 = vrot.lane.b32.xlu0 %v2538, 29
        %v2552 = vpop.permute.xlu0 %2551
        %2553 = vrot.lane.b32.xlu0 %v2539, 29
        %v2554 = vpop.permute.xlu0 %2553
        %v2555 = vrot.slane %v2546, 4
        %v2556 = vrot.slane %v2548, 4
        %v2557 = vrot.slane %v2550, 4
        %v2558 = vrot.slane %v2552, 4
        %v2559 = vrot.slane %v2554, 4
        %v2560 = vsel %vm662, %v2555, %v2556
        %vm2561 = vcmask 236544
        %v2562 = vsel %vm2561, %v2546, %v2560
        %v2563 = vsel %vm662, %v2556, %v2557
        %v2564 = vsel %vm2561, %v2548, %v2563
        %v2565 = vsel %vm662, %v2557, %v2558
        %v2566 = vsel %vm2561, %v2550, %v2565
        %v2567 = vsel %vm662, %v2558, %v2559
        %v2568 = vsel %vm2561, %v2552, %v2567
        %v2573 = vld [vmem:[#allocation3 + $0x60] sm:$0x11]
        %v2574 = vsel %vm592, %v2562, %v2573
        %2575 = vst [vmem:[#allocation3 + $0x60] sm:$0x11] %v2574
        %v2576 = vld [vmem:[#allocation3 + $0x68] sm:$0x11]
        %v2577 = vsel %vm592, %v2564, %v2576
        %2578 = vst [vmem:[#allocation3 + $0x68] sm:$0x11] %v2577
        %v2579 = vld [vmem:[#allocation3 + $0x70] sm:$0x11]
        %v2580 = vsel %vm592, %v2566, %v2579
        %2581 = vst [vmem:[#allocation3 + $0x70] sm:$0x11] %v2580
        %v2582 = vld [vmem:[#allocation3 + $0x78] sm:$0x11]
        %v2583 = vsel %vm592, %v2568, %v2582
        %2584 = vst [vmem:[#allocation3 + $0x78] sm:$0x11] %v2583
        %v2585 = vld [vmem:[#allocation2] sm:$0xff]
        %v2586 = vld [vmem:[#allocation2 + $0x8] sm:$0x1]
        %v2589 = vperm.slane %v2585, 0
        %v2590 = vperm.slane %v2585, 1
        %v2591 = vperm.slane %v2585, 2
        %v2592 = vperm.slane %v2585, 3
        %v2593 = vperm.slane %v2585, 4
        %v2594 = vperm.slane %v2585, 5
        %v2595 = vperm.slane %v2585, 6
        %v2596 = vperm.slane %v2585, 7
        %v2597 = vperm.slane %v2586, 0
        %v2607 = vpack.c.bf16 %v2590, %v2589
        %v2608 = vpack.c.bf16 %v2592, %v2591
        %v2609 = vpack.c.bf16 %v2594, %v2593
        %v2610 = vpack.c.bf16 %v2596, %v2595
        %v2611 = vpack.c.bf16 %v2597, %v2597
        %v2613 = vshll.u32 %v2607, 16
        %v2616 = vshll.u32 %v2608, 16
        %v2619 = vshll.u32 %v2609, 16
        %v2622 = vshll.u32 %v2610, 16
        %v2625 = vshll.u32 %v2611, 16
        %2627 = vrot.lane.b32.xlu0 %v2613, 28
        %v2628 = vpop.permute.xlu0 %2627
        %2629 = vrot.lane.b32.xlu0 %v2616, 28
        %v2630 = vpop.permute.xlu0 %2629
        %2631 = vrot.lane.b32.xlu0 %v2619, 28
        %v2632 = vpop.permute.xlu0 %2631
        %2633 = vrot.lane.b32.xlu0 %v2622, 28
        %v2634 = vpop.permute.xlu0 %2633
        %2635 = vrot.lane.b32.xlu0 %v2625, 28
        %v2636 = vpop.permute.xlu0 %2635
        %v2637 = vrot.slane %v2628, 4
        %v2638 = vrot.slane %v2630, 4
        %v2639 = vrot.slane %v2632, 4
        %v2640 = vrot.slane %v2634, 4
        %v2641 = vrot.slane %v2636, 4
        %v2642 = vsel %vm662, %v2637, %v2638
        %vm2643 = vcmask 228352
        %v2644 = vsel %vm2643, %v2628, %v2642
        %v2645 = vsel %vm662, %v2638, %v2639
        %v2646 = vsel %vm2643, %v2630, %v2645
        %v2647 = vsel %vm662, %v2639, %v2640
        %v2648 = vsel %vm2643, %v2632, %v2647
        %v2649 = vsel %vm662, %v2640, %v2641
        %v2650 = vsel %vm2643, %v2634, %v2649
        %v2655 = vld [vmem:[#allocation3 + $0x60] sm:$0x11]
        %v2656 = vsel %vm680, %v2644, %v2655
        %2657 = vst [vmem:[#allocation3 + $0x60] sm:$0x11] %v2656
        %v2658 = vld [vmem:[#allocation3 + $0x68] sm:$0x11]
        %v2659 = vsel %vm680, %v2646, %v2658
        %2660 = vst [vmem:[#allocation3 + $0x68] sm:$0x11] %v2659
        %v2661 = vld [vmem:[#allocation3 + $0x70] sm:$0x11]
        %v2662 = vsel %vm680, %v2648, %v2661
        %2663 = vst [vmem:[#allocation3 + $0x70] sm:$0x11] %v2662
        %v2664 = vld [vmem:[#allocation3 + $0x78] sm:$0x11]
        %v2665 = vsel %vm680, %v2650, %v2664
        %2666 = vst [vmem:[#allocation3 + $0x78] sm:$0x11] %v2665
        %v2667 = vld [vmem:[#allocation2] sm:$0xff]
        %v2668 = vld [vmem:[#allocation2 + $0x8] sm:$0x1]
        %v2671 = vperm.slane %v2667, 0
        %v2672 = vperm.slane %v2667, 1
        %v2673 = vperm.slane %v2667, 2
        %v2674 = vperm.slane %v2667, 3
        %v2675 = vperm.slane %v2667, 4
        %v2676 = vperm.slane %v2667, 5
        %v2677 = vperm.slane %v2667, 6
        %v2678 = vperm.slane %v2667, 7
        %v2679 = vperm.slane %v2668, 0
        %v2689 = vpack.c.bf16 %v2672, %v2671
        %v2690 = vpack.c.bf16 %v2674, %v2673
        %v2691 = vpack.c.bf16 %v2676, %v2675
        %v2692 = vpack.c.bf16 %v2678, %v2677
        %v2693 = vpack.c.bf16 %v2679, %v2679
        %v2699 = vrot.slane %v2689, 7
        %v2700 = vrot.slane %v2690, 7
        %v2701 = vrot.slane %v2691, 7
        %v2702 = vrot.slane %v2692, 7
        %v2703 = vrot.slane %v2693, 7
        %2704 = vrot.lane.b32.xlu0 %v2699, 27
        %v2705 = vpop.permute.xlu0 %2704
        %2706 = vrot.lane.b32.xlu0 %v2700, 27
        %v2707 = vpop.permute.xlu0 %2706
        %2708 = vrot.lane.b32.xlu0 %v2701, 27
        %v2709 = vpop.permute.xlu0 %2708
        %2710 = vrot.lane.b32.xlu0 %v2702, 27
        %v2711 = vpop.permute.xlu0 %2710
        %2712 = vrot.lane.b32.xlu0 %v2703, 27
        %v2713 = vpop.permute.xlu0 %2712
        %v2714 = vrot.slane %v2705, 4
        %v2715 = vrot.slane %v2707, 4
        %v2716 = vrot.slane %v2709, 4
        %v2717 = vrot.slane %v2711, 4
        %v2718 = vrot.slane %v2713, 4
        %v2719 = vsel %vm662, %v2714, %v2715
        %vm2720 = vcmask 220160
        %v2721 = vsel %vm2720, %v2705, %v2719
        %v2722 = vsel %vm662, %v2715, %v2716
        %v2723 = vsel %vm2720, %v2707, %v2722
        %v2724 = vsel %vm662, %v2716, %v2717
        %v2725 = vsel %vm2720, %v2709, %v2724
        %v2726 = vsel %vm662, %v2717, %v2718
        %v2727 = vsel %vm2720, %v2711, %v2726
        %v2732 = vld [vmem:[#allocation3 + $0x60] sm:$0x22]
        %v2733 = vsel %vm764, %v2721, %v2732
        %2734 = vst [vmem:[#allocation3 + $0x60] sm:$0x22] %v2733
        %v2735 = vld [vmem:[#allocation3 + $0x68] sm:$0x22]
        %v2736 = vsel %vm764, %v2723, %v2735
        %2737 = vst [vmem:[#allocation3 + $0x68] sm:$0x22] %v2736
        %v2738 = vld [vmem:[#allocation3 + $0x70] sm:$0x22]
        %v2739 = vsel %vm764, %v2725, %v2738
        %2740 = vst [vmem:[#allocation3 + $0x70] sm:$0x22] %v2739
        %v2741 = vld [vmem:[#allocation3 + $0x78] sm:$0x22]
        %v2742 = vsel %vm764, %v2727, %v2741
        %2743 = vst [vmem:[#allocation3 + $0x78] sm:$0x22] %v2742
        %v2744 = vld [vmem:[#allocation2] sm:$0xff]
        %v2745 = vld [vmem:[#allocation2 + $0x8] sm:$0x1]
        %v2748 = vperm.slane %v2744, 0
        %v2749 = vperm.slane %v2744, 1
        %v2750 = vperm.slane %v2744, 2
        %v2751 = vperm.slane %v2744, 3
        %v2752 = vperm.slane %v2744, 4
        %v2753 = vperm.slane %v2744, 5
        %v2754 = vperm.slane %v2744, 6
        %v2755 = vperm.slane %v2744, 7
        %v2756 = vperm.slane %v2745, 0
        %v2766 = vpack.c.bf16 %v2749, %v2748
        %v2767 = vpack.c.bf16 %v2751, %v2750
        %v2768 = vpack.c.bf16 %v2753, %v2752
        %v2769 = vpack.c.bf16 %v2755, %v2754
        %v2770 = vpack.c.bf16 %v2756, %v2756
        %v2772 = vshll.u32 %v2766, 16
        %v2774 = vrot.slane %v2772, 7
        %v2776 = vshll.u32 %v2767, 16
        %v2778 = vrot.slane %v2776, 7
        %v2780 = vshll.u32 %v2768, 16
        %v2782 = vrot.slane %v2780, 7
        %v2784 = vshll.u32 %v2769, 16
        %v2786 = vrot.slane %v2784, 7
        %v2788 = vshll.u32 %v2770, 16
        %v2790 = vrot.slane %v2788, 7
        %2791 = vrot.lane.b32.xlu0 %v2774, 26
        %v2792 = vpop.permute.xlu0 %2791
        %2793 = vrot.lane.b32.xlu0 %v2778, 26
        %v2794 = vpop.permute.xlu0 %2793
        %2795 = vrot.lane.b32.xlu0 %v2782, 26
        %v2796 = vpop.permute.xlu0 %2795
        %2797 = vrot.lane.b32.xlu0 %v2786, 26
        %v2798 = vpop.permute.xlu0 %2797
        %2799 = vrot.lane.b32.xlu0 %v2790, 26
        %v2800 = vpop.permute.xlu0 %2799
        %v2801 = vrot.slane %v2792, 4
        %v2802 = vrot.slane %v2794, 4
        %v2803 = vrot.slane %v2796, 4
        %v2804 = vrot.slane %v2798, 4
        %v2805 = vrot.slane %v2800, 4
        %v2806 = vsel %vm662, %v2801, %v2802
        %vm2807 = vcmask 211968
        %v2808 = vsel %vm2807, %v2792, %v2806
        %v2809 = vsel %vm662, %v2802, %v2803
        %v2810 = vsel %vm2807, %v2794, %v2809
        %v2811 = vsel %vm662, %v2803, %v2804
        %v2812 = vsel %vm2807, %v2796, %v2811
        %v2813 = vsel %vm662, %v2804, %v2805
        %v2814 = vsel %vm2807, %v2798, %v2813
        %v2819 = vld [vmem:[#allocation3 + $0x60] sm:$0x22]
        %v2820 = vsel %vm856, %v2808, %v2819
        %2821 = vst [vmem:[#allocation3 + $0x60] sm:$0x22] %v2820
        %v2822 = vld [vmem:[#allocation3 + $0x68] sm:$0x22]
        %v2823 = vsel %vm856, %v2810, %v2822
        %2824 = vst [vmem:[#allocation3 + $0x68] sm:$0x22] %v2823
        %v2825 = vld [vmem:[#allocation3 + $0x70] sm:$0x22]
        %v2826 = vsel %vm856, %v2812, %v2825
        %2827 = vst [vmem:[#allocation3 + $0x70] sm:$0x22] %v2826
        %v2828 = vld [vmem:[#allocation3 + $0x78] sm:$0x22]
        %v2829 = vsel %vm856, %v2814, %v2828
        %2830 = vst [vmem:[#allocation3 + $0x78] sm:$0x22] %v2829
        %v2831 = vld [vmem:[#allocation2 + $0x1] sm:$0xff]
        %v2833 = vperm.slane %v2831, 0
        %v2834 = vperm.slane %v2831, 1
        %v2835 = vperm.slane %v2831, 2
        %v2836 = vperm.slane %v2831, 3
        %v2837 = vperm.slane %v2831, 4
        %v2838 = vperm.slane %v2831, 5
        %v2839 = vperm.slane %v2831, 6
        %v2840 = vperm.slane %v2831, 7
        %v2849 = vpack.c.bf16 %v2834, %v2833
        %v2850 = vpack.c.bf16 %v2836, %v2835
        %v2851 = vpack.c.bf16 %v2838, %v2837
        %v2852 = vpack.c.bf16 %v2840, %v2839
        %v2857 = vrot.slane %v2849, 6
        %v2858 = vrot.slane %v2850, 6
        %v2859 = vrot.slane %v2851, 6
        %v2860 = vrot.slane %v2852, 6
        %v2865 = vld [vmem:[#allocation3 + $0x60] sm:$0x44]
        %v2866 = vsel %vm940, %v2857, %v2865
        %2867 = vst [vmem:[#allocation3 + $0x60] sm:$0x44] %v2866
        %v2868 = vld [vmem:[#allocation3 + $0x68] sm:$0x44]
        %v2869 = vsel %vm940, %v2858, %v2868
        %2870 = vst [vmem:[#allocation3 + $0x68] sm:$0x44] %v2869
        %v2871 = vld [vmem:[#allocation3 + $0x70] sm:$0x44]
        %v2872 = vsel %vm940, %v2859, %v2871
        %2873 = vst [vmem:[#allocation3 + $0x70] sm:$0x44] %v2872
        %v2874 = vld [vmem:[#allocation3 + $0x78] sm:$0x44]
        %v2875 = vsel %vm940, %v2860, %v2874
        %2876 = vst [vmem:[#allocation3 + $0x78] sm:$0x44] %v2875
        %v2877 = vld [vmem:[#allocation2 + $0x1] sm:$0xff]
        %v2878 = vld [vmem:[#allocation2 + $0x9] sm:$0x1]
        %v2881 = vperm.slane %v2877, 0
        %v2882 = vperm.slane %v2877, 1
        %v2883 = vperm.slane %v2877, 2
        %v2884 = vperm.slane %v2877, 3
        %v2885 = vperm.slane %v2877, 4
        %v2886 = vperm.slane %v2877, 5
        %v2887 = vperm.slane %v2877, 6
        %v2888 = vperm.slane %v2877, 7
        %v2889 = vperm.slane %v2878, 0
        %v2899 = vpack.c.bf16 %v2882, %v2881
        %v2900 = vpack.c.bf16 %v2884, %v2883
        %v2901 = vpack.c.bf16 %v2886, %v2885
        %v2902 = vpack.c.bf16 %v2888, %v2887
        %v2903 = vpack.c.bf16 %v2889, %v2889
        %v2905 = vshll.u32 %v2899, 16
        %v2907 = vrot.slane %v2905, 6
        %v2909 = vshll.u32 %v2900, 16
        %v2911 = vrot.slane %v2909, 6
        %v2913 = vshll.u32 %v2901, 16
        %v2915 = vrot.slane %v2913, 6
        %v2917 = vshll.u32 %v2902, 16
        %v2919 = vrot.slane %v2917, 6
        %v2921 = vshll.u32 %v2903, 16
        %v2923 = vrot.slane %v2921, 6
        %2924 = vrot.lane.b32.xlu0 %v2907, 127
        %v2925 = vpop.permute.xlu0 %2924
        %2926 = vrot.lane.b32.xlu0 %v2911, 127
        %v2927 = vpop.permute.xlu0 %2926
        %2928 = vrot.lane.b32.xlu0 %v2915, 127
        %v2929 = vpop.permute.xlu0 %2928
        %2930 = vrot.lane.b32.xlu0 %v2919, 127
        %v2931 = vpop.permute.xlu0 %2930
        %2932 = vrot.lane.b32.xlu0 %v2923, 127
        %v2933 = vpop.permute.xlu0 %2932
        %v2934 = vrot.slane %v2925, 4
        %v2935 = vrot.slane %v2927, 4
        %v2936 = vrot.slane %v2929, 4
        %v2937 = vrot.slane %v2931, 4
        %v2938 = vrot.slane %v2933, 4
        %v2939 = vsel %vm662, %v2934, %v2935
        %v2940 = vsel %vm664, %v2925, %v2939
        %v2941 = vsel %vm662, %v2935, %v2936
        %v2942 = vsel %vm664, %v2927, %v2941
        %v2943 = vsel %vm662, %v2936, %v2937
        %v2944 = vsel %vm664, %v2929, %v2943
        %v2945 = vsel %vm662, %v2937, %v2938
        %v2946 = vsel %vm664, %v2931, %v2945
        %v2951 = vld [vmem:[#allocation3 + $0x60] sm:$0x44]
        %v2952 = vsel %vm1032, %v2940, %v2951
        %2953 = vst [vmem:[#allocation3 + $0x60] sm:$0x44] %v2952
        %v2954 = vld [vmem:[#allocation3 + $0x68] sm:$0x44]
        %v2955 = vsel %vm1032, %v2942, %v2954
        %2956 = vst [vmem:[#allocation3 + $0x68] sm:$0x44] %v2955
        %v2957 = vld [vmem:[#allocation3 + $0x70] sm:$0x44]
        %v2958 = vsel %vm1032, %v2944, %v2957
        %2959 = vst [vmem:[#allocation3 + $0x70] sm:$0x44] %v2958
        %v2960 = vld [vmem:[#allocation3 + $0x78] sm:$0x44]
        %v2961 = vsel %vm1032, %v2946, %v2960
        %2962 = vst [vmem:[#allocation3 + $0x78] sm:$0x44] %v2961
        %v2963 = vld [vmem:[#allocation2 + $0x1] sm:$0xff]
        %v2964 = vld [vmem:[#allocation2 + $0x9] sm:$0x1]
        %v2967 = vperm.slane %v2963, 0
        %v2968 = vperm.slane %v2963, 1
        %v2969 = vperm.slane %v2963, 2
        %v2970 = vperm.slane %v2963, 3
        %v2971 = vperm.slane %v2963, 4
        %v2972 = vperm.slane %v2963, 5
        %v2973 = vperm.slane %v2963, 6
        %v2974 = vperm.slane %v2963, 7
        %v2975 = vperm.slane %v2964, 0
        %v2985 = vpack.c.bf16 %v2968, %v2967
        %v2986 = vpack.c.bf16 %v2970, %v2969
        %v2987 = vpack.c.bf16 %v2972, %v2971
        %v2988 = vpack.c.bf16 %v2974, %v2973
        %v2989 = vpack.c.bf16 %v2975, %v2975
        %v2995 = vrot.slane %v2985, 5
        %v2996 = vrot.slane %v2986, 5
        %v2997 = vrot.slane %v2987, 5
        %v2998 = vrot.slane %v2988, 5
        %v2999 = vrot.slane %v2989, 5
        %3000 = vrot.lane.b32.xlu0 %v2995, 126
        %v3001 = vpop.permute.xlu0 %3000
        %3002 = vrot.lane.b32.xlu0 %v2996, 126
        %v3003 = vpop.permute.xlu0 %3002
        %3004 = vrot.lane.b32.xlu0 %v2997, 126
        %v3005 = vpop.permute.xlu0 %3004
        %3006 = vrot.lane.b32.xlu0 %v2998, 126
        %v3007 = vpop.permute.xlu0 %3006
        %3008 = vrot.lane.b32.xlu0 %v2999, 126
        %v3009 = vpop.permute.xlu0 %3008
        %v3010 = vrot.slane %v3001, 4
        %v3011 = vrot.slane %v3003, 4
        %v3012 = vrot.slane %v3005, 4
        %v3013 = vrot.slane %v3007, 4
        %v3014 = vrot.slane %v3009, 4
        %v3015 = vsel %vm662, %v3010, %v3011
        %v3016 = vsel %vm746, %v3001, %v3015
        %v3017 = vsel %vm662, %v3011, %v3012
        %v3018 = vsel %vm746, %v3003, %v3017
        %v3019 = vsel %vm662, %v3012, %v3013
        %v3020 = vsel %vm746, %v3005, %v3019
        %v3021 = vsel %vm662, %v3013, %v3014
        %v3022 = vsel %vm746, %v3007, %v3021
        %v3027 = vld [vmem:[#allocation3 + $0x60] sm:$0x88]
        %v3028 = vsel %vm1116, %v3016, %v3027
        %3029 = vst [vmem:[#allocation3 + $0x60] sm:$0x88] %v3028
        %v3030 = vld [vmem:[#allocation3 + $0x68] sm:$0x88]
        %v3031 = vsel %vm1116, %v3018, %v3030
        %3032 = vst [vmem:[#allocation3 + $0x68] sm:$0x88] %v3031
        %v3033 = vld [vmem:[#allocation3 + $0x70] sm:$0x88]
        %v3034 = vsel %vm1116, %v3020, %v3033
        %3035 = vst [vmem:[#allocation3 + $0x70] sm:$0x88] %v3034
        %v3036 = vld [vmem:[#allocation3 + $0x78] sm:$0x88]
        %v3037 = vsel %vm1116, %v3022, %v3036
        %3038 = vst [vmem:[#allocation3 + $0x78] sm:$0x88] %v3037
        %v3039 = vld [vmem:[#allocation2 + $0x1] sm:$0xff]
        %v3040 = vld [vmem:[#allocation2 + $0x9] sm:$0x1]
        %v3043 = vperm.slane %v3039, 0
        %v3044 = vperm.slane %v3039, 1
        %v3045 = vperm.slane %v3039, 2
        %v3046 = vperm.slane %v3039, 3
        %v3047 = vperm.slane %v3039, 4
        %v3048 = vperm.slane %v3039, 5
        %v3049 = vperm.slane %v3039, 6
        %v3050 = vperm.slane %v3039, 7
        %v3051 = vperm.slane %v3040, 0
        %v3061 = vpack.c.bf16 %v3044, %v3043
        %v3062 = vpack.c.bf16 %v3046, %v3045
        %v3063 = vpack.c.bf16 %v3048, %v3047
        %v3064 = vpack.c.bf16 %v3050, %v3049
        %v3065 = vpack.c.bf16 %v3051, %v3051
        %v3067 = vshll.u32 %v3061, 16
        %v3069 = vrot.slane %v3067, 5
        %v3071 = vshll.u32 %v3062, 16
        %v3073 = vrot.slane %v3071, 5
        %v3075 = vshll.u32 %v3063, 16
        %v3077 = vrot.slane %v3075, 5
        %v3079 = vshll.u32 %v3064, 16
        %v3081 = vrot.slane %v3079, 5
        %v3083 = vshll.u32 %v3065, 16
        %v3085 = vrot.slane %v3083, 5
        %3086 = vrot.lane.b32.xlu0 %v3069, 125
        %v3087 = vpop.permute.xlu0 %3086
        %3088 = vrot.lane.b32.xlu0 %v3073, 125
        %v3089 = vpop.permute.xlu0 %3088
        %3090 = vrot.lane.b32.xlu0 %v3077, 125
        %v3091 = vpop.permute.xlu0 %3090
        %3092 = vrot.lane.b32.xlu0 %v3081, 125
        %v3093 = vpop.permute.xlu0 %3092
        %3094 = vrot.lane.b32.xlu0 %v3085, 125
        %v3095 = vpop.permute.xlu0 %3094
        %v3096 = vrot.slane %v3087, 4
        %v3097 = vrot.slane %v3089, 4
        %v3098 = vrot.slane %v3091, 4
        %v3099 = vrot.slane %v3093, 4
        %v3100 = vrot.slane %v3095, 4
        %v3101 = vsel %vm662, %v3096, %v3097
        %v3102 = vsel %vm840, %v3087, %v3101
        %v3103 = vsel %vm662, %v3097, %v3098
        %v3104 = vsel %vm840, %v3089, %v3103
        %v3105 = vsel %vm662, %v3098, %v3099
        %v3106 = vsel %vm840, %v3091, %v3105
        %v3107 = vsel %vm662, %v3099, %v3100
        %v3108 = vsel %vm840, %v3093, %v3107
        %v3113 = vld [vmem:[#allocation3 + $0x60] sm:$0x88]
        %v3114 = vsel %vm1208, %v3102, %v3113
        %3115 = vst [vmem:[#allocation3 + $0x60] sm:$0x88] %v3114
        %v3116 = vld [vmem:[#allocation3 + $0x68] sm:$0x88]
        %v3117 = vsel %vm1208, %v3104, %v3116
        %3118 = vst [vmem:[#allocation3 + $0x68] sm:$0x88] %v3117
        %v3119 = vld [vmem:[#allocation3 + $0x70] sm:$0x88]
        %v3120 = vsel %vm1208, %v3106, %v3119
        %3121 = vst [vmem:[#allocation3 + $0x70] sm:$0x88] %v3120
        %v3122 = vld [vmem:[#allocation3 + $0x78] sm:$0x88]
        %v3123 = vsel %vm1208, %v3108, %v3122
        %3124 = vst [vmem:[#allocation3 + $0x78] sm:$0x88] %v3123
        %v3125 = vld [vmem:[#allocation2 + $0x1] sm:$0xff]
        %v3126 = vld [vmem:[#allocation2 + $0x9] sm:$0x1]
        %v3129 = vperm.slane %v3125, 0
        %v3130 = vperm.slane %v3125, 1
        %v3131 = vperm.slane %v3125, 2
        %v3132 = vperm.slane %v3125, 3
        %v3133 = vperm.slane %v3125, 4
        %v3134 = vperm.slane %v3125, 5
        %v3135 = vperm.slane %v3125, 6
        %v3136 = vperm.slane %v3125, 7
        %v3137 = vperm.slane %v3126, 0
        %v3147 = vpack.c.bf16 %v3130, %v3129
        %v3148 = vpack.c.bf16 %v3132, %v3131
        %v3149 = vpack.c.bf16 %v3134, %v3133
        %v3150 = vpack.c.bf16 %v3136, %v3135
        %v3151 = vpack.c.bf16 %v3137, %v3137
        %3157 = vrot.lane.b32.xlu0 %v3147, 124
        %v3158 = vpop.permute.xlu0 %3157
        %3159 = vrot.lane.b32.xlu0 %v3148, 124
        %v3160 = vpop.permute.xlu0 %3159
        %3161 = vrot.lane.b32.xlu0 %v3149, 124
        %v3162 = vpop.permute.xlu0 %3161
        %3163 = vrot.lane.b32.xlu0 %v3150, 124
        %v3164 = vpop.permute.xlu0 %3163
        %3165 = vrot.lane.b32.xlu0 %v3151, 124
        %v3166 = vpop.permute.xlu0 %3165
        %v3167 = vrot.slane %v3158, 4
        %v3168 = vrot.slane %v3160, 4
        %v3169 = vrot.slane %v3162, 4
        %v3170 = vrot.slane %v3164, 4
        %v3171 = vrot.slane %v3166, 4
        %v3172 = vsel %vm662, %v3167, %v3168
        %v3173 = vsel %vm922, %v3158, %v3172
        %v3174 = vsel %vm662, %v3168, %v3169
        %v3175 = vsel %vm922, %v3160, %v3174
        %v3176 = vsel %vm662, %v3169, %v3170
        %v3177 = vsel %vm922, %v3162, %v3176
        %v3178 = vsel %vm662, %v3170, %v3171
        %v3179 = vsel %vm922, %v3164, %v3178
        %v3184 = vld [vmem:[#allocation3 + $0x80] sm:$0x11]
        %v3185 = vsel %vm592, %v3173, %v3184
        %3186 = vst [vmem:[#allocation3 + $0x80] sm:$0x11] %v3185
        %v3187 = vld [vmem:[#allocation3 + $0x88] sm:$0x11]
        %v3188 = vsel %vm592, %v3175, %v3187
        %3189 = vst [vmem:[#allocation3 + $0x88] sm:$0x11] %v3188
        %v3190 = vld [vmem:[#allocation3 + $0x90] sm:$0x11]
        %v3191 = vsel %vm592, %v3177, %v3190
        %3192 = vst [vmem:[#allocation3 + $0x90] sm:$0x11] %v3191
        %v3193 = vld [vmem:[#allocation3 + $0x98] sm:$0x11]
        %v3194 = vsel %vm592, %v3179, %v3193
        %3195 = vst [vmem:[#allocation3 + $0x98] sm:$0x11] %v3194
        %v3196 = vld [vmem:[#allocation2 + $0x1] sm:$0xff]
        %v3197 = vld [vmem:[#allocation2 + $0x9] sm:$0x1]
        %v3200 = vperm.slane %v3196, 0
        %v3201 = vperm.slane %v3196, 1
        %v3202 = vperm.slane %v3196, 2
        %v3203 = vperm.slane %v3196, 3
        %v3204 = vperm.slane %v3196, 4
        %v3205 = vperm.slane %v3196, 5
        %v3206 = vperm.slane %v3196, 6
        %v3207 = vperm.slane %v3196, 7
        %v3208 = vperm.slane %v3197, 0
        %v3218 = vpack.c.bf16 %v3201, %v3200
        %v3219 = vpack.c.bf16 %v3203, %v3202
        %v3220 = vpack.c.bf16 %v3205, %v3204
        %v3221 = vpack.c.bf16 %v3207, %v3206
        %v3222 = vpack.c.bf16 %v3208, %v3208
        %v3224 = vshll.u32 %v3218, 16
        %v3227 = vshll.u32 %v3219, 16
        %v3230 = vshll.u32 %v3220, 16
        %v3233 = vshll.u32 %v3221, 16
        %v3236 = vshll.u32 %v3222, 16
        %3238 = vrot.lane.b32.xlu0 %v3224, 123
        %v3239 = vpop.permute.xlu0 %3238
        %3240 = vrot.lane.b32.xlu0 %v3227, 123
        %v3241 = vpop.permute.xlu0 %3240
        %3242 = vrot.lane.b32.xlu0 %v3230, 123
        %v3243 = vpop.permute.xlu0 %3242
        %3244 = vrot.lane.b32.xlu0 %v3233, 123
        %v3245 = vpop.permute.xlu0 %3244
        %3246 = vrot.lane.b32.xlu0 %v3236, 123
        %v3247 = vpop.permute.xlu0 %3246
        %v3248 = vrot.slane %v3239, 4
        %v3249 = vrot.slane %v3241, 4
        %v3250 = vrot.slane %v3243, 4
        %v3251 = vrot.slane %v3245, 4
        %v3252 = vrot.slane %v3247, 4
        %v3253 = vsel %vm662, %v3248, %v3249
        %v3254 = vsel %vm1016, %v3239, %v3253
        %v3255 = vsel %vm662, %v3249, %v3250
        %v3256 = vsel %vm1016, %v3241, %v3255
        %v3257 = vsel %vm662, %v3250, %v3251
        %v3258 = vsel %vm1016, %v3243, %v3257
        %v3259 = vsel %vm662, %v3251, %v3252
        %v3260 = vsel %vm1016, %v3245, %v3259
        %v3265 = vld [vmem:[#allocation3 + $0x80] sm:$0x11]
        %v3266 = vsel %vm680, %v3254, %v3265
        %3267 = vst [vmem:[#allocation3 + $0x80] sm:$0x11] %v3266
        %v3268 = vld [vmem:[#allocation3 + $0x88] sm:$0x11]
        %v3269 = vsel %vm680, %v3256, %v3268
        %3270 = vst [vmem:[#allocation3 + $0x88] sm:$0x11] %v3269
        %v3271 = vld [vmem:[#allocation3 + $0x90] sm:$0x11]
        %v3272 = vsel %vm680, %v3258, %v3271
        %3273 = vst [vmem:[#allocation3 + $0x90] sm:$0x11] %v3272
        %v3274 = vld [vmem:[#allocation3 + $0x98] sm:$0x11]
        %v3275 = vsel %vm680, %v3260, %v3274
        %3276 = vst [vmem:[#allocation3 + $0x98] sm:$0x11] %v3275
        %v3277 = vld [vmem:[#allocation2 + $0x1] sm:$0xff]
        %v3278 = vld [vmem:[#allocation2 + $0x9] sm:$0x1]
        %v3281 = vperm.slane %v3277, 0
        %v3282 = vperm.slane %v3277, 1
        %v3283 = vperm.slane %v3277, 2
        %v3284 = vperm.slane %v3277, 3
        %v3285 = vperm.slane %v3277, 4
        %v3286 = vperm.slane %v3277, 5
        %v3287 = vperm.slane %v3277, 6
        %v3288 = vperm.slane %v3277, 7
        %v3289 = vperm.slane %v3278, 0
        %v3299 = vpack.c.bf16 %v3282, %v3281
        %v3300 = vpack.c.bf16 %v3284, %v3283
        %v3301 = vpack.c.bf16 %v3286, %v3285
        %v3302 = vpack.c.bf16 %v3288, %v3287
        %v3303 = vpack.c.bf16 %v3289, %v3289
        %v3309 = vrot.slane %v3299, 7
        %v3310 = vrot.slane %v3300, 7
        %v3311 = vrot.slane %v3301, 7
        %v3312 = vrot.slane %v3302, 7
        %v3313 = vrot.slane %v3303, 7
        %3314 = vrot.lane.b32.xlu0 %v3309, 122
        %v3315 = vpop.permute.xlu0 %3314
        %3316 = vrot.lane.b32.xlu0 %v3310, 122
        %v3317 = vpop.permute.xlu0 %3316
        %3318 = vrot.lane.b32.xlu0 %v3311, 122
        %v3319 = vpop.permute.xlu0 %3318
        %3320 = vrot.lane.b32.xlu0 %v3312, 122
        %v3321 = vpop.permute.xlu0 %3320
        %3322 = vrot.lane.b32.xlu0 %v3313, 122
        %v3323 = vpop.permute.xlu0 %3322
        %v3324 = vrot.slane %v3315, 4
        %v3325 = vrot.slane %v3317, 4
        %v3326 = vrot.slane %v3319, 4
        %v3327 = vrot.slane %v3321, 4
        %v3328 = vrot.slane %v3323, 4
        %v3329 = vsel %vm662, %v3324, %v3325
        %v3330 = vsel %vm1098, %v3315, %v3329
        %v3331 = vsel %vm662, %v3325, %v3326
        %v3332 = vsel %vm1098, %v3317, %v3331
        %v3333 = vsel %vm662, %v3326, %v3327
        %v3334 = vsel %vm1098, %v3319, %v3333
        %v3335 = vsel %vm662, %v3327, %v3328
        %v3336 = vsel %vm1098, %v3321, %v3335
        %v3341 = vld [vmem:[#allocation3 + $0x80] sm:$0x22]
        %v3342 = vsel %vm764, %v3330, %v3341
        %3343 = vst [vmem:[#allocation3 + $0x80] sm:$0x22] %v3342
        %v3344 = vld [vmem:[#allocation3 + $0x88] sm:$0x22]
        %v3345 = vsel %vm764, %v3332, %v3344
        %3346 = vst [vmem:[#allocation3 + $0x88] sm:$0x22] %v3345
        %v3347 = vld [vmem:[#allocation3 + $0x90] sm:$0x22]
        %v3348 = vsel %vm764, %v3334, %v3347
        %3349 = vst [vmem:[#allocation3 + $0x90] sm:$0x22] %v3348
        %v3350 = vld [vmem:[#allocation3 + $0x98] sm:$0x22]
        %v3351 = vsel %vm764, %v3336, %v3350
        %3352 = vst [vmem:[#allocation3 + $0x98] sm:$0x22] %v3351
        %v3353 = vld [vmem:[#allocation2 + $0x1] sm:$0xff]
        %v3354 = vld [vmem:[#allocation2 + $0x9] sm:$0x1]
        %v3357 = vperm.slane %v3353, 0
        %v3358 = vperm.slane %v3353, 1
        %v3359 = vperm.slane %v3353, 2
        %v3360 = vperm.slane %v3353, 3
        %v3361 = vperm.slane %v3353, 4
        %v3362 = vperm.slane %v3353, 5
        %v3363 = vperm.slane %v3353, 6
        %v3364 = vperm.slane %v3353, 7
        %v3365 = vperm.slane %v3354, 0
        %v3375 = vpack.c.bf16 %v3358, %v3357
        %v3376 = vpack.c.bf16 %v3360, %v3359
        %v3377 = vpack.c.bf16 %v3362, %v3361
        %v3378 = vpack.c.bf16 %v3364, %v3363
        %v3379 = vpack.c.bf16 %v3365, %v3365
        %v3381 = vshll.u32 %v3375, 16
        %v3383 = vrot.slane %v3381, 7
        %v3385 = vshll.u32 %v3376, 16
        %v3387 = vrot.slane %v3385, 7
        %v3389 = vshll.u32 %v3377, 16
        %v3391 = vrot.slane %v3389, 7
        %v3393 = vshll.u32 %v3378, 16
        %v3395 = vrot.slane %v3393, 7
        %v3397 = vshll.u32 %v3379, 16
        %v3399 = vrot.slane %v3397, 7
        %3400 = vrot.lane.b32.xlu0 %v3383, 96
        %v3401 = vpop.permute.xlu0 %3400
        %3402 = vrot.lane.b32.xlu0 %v3387, 96
        %v3403 = vpop.permute.xlu0 %3402
        %3404 = vrot.lane.b32.xlu0 %v3391, 96
        %v3405 = vpop.permute.xlu0 %3404
        %3406 = vrot.lane.b32.xlu0 %v3395, 96
        %v3407 = vpop.permute.xlu0 %3406
        %3408 = vrot.lane.b32.xlu0 %v3399, 96
        %v3409 = vpop.permute.xlu0 %3408
        %v3410 = vrot.slane %v3401, 4
        %v3411 = vrot.slane %v3403, 4
        %v3412 = vrot.slane %v3405, 4
        %v3413 = vrot.slane %v3407, 4
        %v3414 = vrot.slane %v3409, 4
        %v3415 = vsel %vm662, %v3410, %v3411
        %v3416 = vsel %vm1192, %v3401, %v3415
        %v3417 = vsel %vm662, %v3411, %v3412
        %v3418 = vsel %vm1192, %v3403, %v3417
        %v3419 = vsel %vm662, %v3412, %v3413
        %v3420 = vsel %vm1192, %v3405, %v3419
        %v3421 = vsel %vm662, %v3413, %v3414
        %v3422 = vsel %vm1192, %v3407, %v3421
        %v3427 = vld [vmem:[#allocation3 + $0x80] sm:$0x22]
        %v3428 = vsel %vm856, %v3416, %v3427
        %3429 = vst [vmem:[#allocation3 + $0x80] sm:$0x22] %v3428
        %v3430 = vld [vmem:[#allocation3 + $0x88] sm:$0x22]
        %v3431 = vsel %vm856, %v3418, %v3430
        %3432 = vst [vmem:[#allocation3 + $0x88] sm:$0x22] %v3431
        %v3433 = vld [vmem:[#allocation3 + $0x90] sm:$0x22]
        %v3434 = vsel %vm856, %v3420, %v3433
        %3435 = vst [vmem:[#allocation3 + $0x90] sm:$0x22] %v3434
        %v3436 = vld [vmem:[#allocation3 + $0x98] sm:$0x22]
        %v3437 = vsel %vm856, %v3422, %v3436
        %3438 = vst [vmem:[#allocation3 + $0x98] sm:$0x22] %v3437
        %v3439 = vld [vmem:[#allocation2 + $0x1] sm:$0xff]
        %v3440 = vld [vmem:[#allocation2 + $0x9] sm:$0x1]
        %v3443 = vperm.slane %v3439, 0
        %v3444 = vperm.slane %v3439, 1
        %v3445 = vperm.slane %v3439, 2
        %v3446 = vperm.slane %v3439, 3
        %v3447 = vperm.slane %v3439, 4
        %v3448 = vperm.slane %v3439, 5
        %v3449 = vperm.slane %v3439, 6
        %v3450 = vperm.slane %v3439, 7
        %v3451 = vperm.slane %v3440, 0
        %v3461 = vpack.c.bf16 %v3444, %v3443
        %v3462 = vpack.c.bf16 %v3446, %v3445
        %v3463 = vpack.c.bf16 %v3448, %v3447
        %v3464 = vpack.c.bf16 %v3450, %v3449
        %v3465 = vpack.c.bf16 %v3451, %v3451
        %v3471 = vrot.slane %v3461, 6
        %v3472 = vrot.slane %v3462, 6
        %v3473 = vrot.slane %v3463, 6
        %v3474 = vrot.slane %v3464, 6
        %v3475 = vrot.slane %v3465, 6
        %3476 = vrot.lane.b32.xlu0 %v3471, 95
        %v3477 = vpop.permute.xlu0 %3476
        %3478 = vrot.lane.b32.xlu0 %v3472, 95
        %v3479 = vpop.permute.xlu0 %3478
        %3480 = vrot.lane.b32.xlu0 %v3473, 95
        %v3481 = vpop.permute.xlu0 %3480
        %3482 = vrot.lane.b32.xlu0 %v3474, 95
        %v3483 = vpop.permute.xlu0 %3482
        %3484 = vrot.lane.b32.xlu0 %v3475, 95
        %v3485 = vpop.permute.xlu0 %3484
        %v3486 = vrot.slane %v3477, 4
        %v3487 = vrot.slane %v3479, 4
        %v3488 = vrot.slane %v3481, 4
        %v3489 = vrot.slane %v3483, 4
        %v3490 = vrot.slane %v3485, 4
        %v3491 = vsel %vm662, %v3486, %v3487
        %v3492 = vsel %vm1269, %v3477, %v3491
        %v3493 = vsel %vm662, %v3487, %v3488
        %v3494 = vsel %vm1269, %v3479, %v3493
        %v3495 = vsel %vm662, %v3488, %v3489
        %v3496 = vsel %vm1269, %v3481, %v3495
        %v3497 = vsel %vm662, %v3489, %v3490
        %v3498 = vsel %vm1269, %v3483, %v3497
        %v3503 = vld [vmem:[#allocation3 + $0x80] sm:$0x44]
        %v3504 = vsel %vm940, %v3492, %v3503
        %3505 = vst [vmem:[#allocation3 + $0x80] sm:$0x44] %v3504
        %v3506 = vld [vmem:[#allocation3 + $0x88] sm:$0x44]
        %v3507 = vsel %vm940, %v3494, %v3506
        %3508 = vst [vmem:[#allocation3 + $0x88] sm:$0x44] %v3507
        %v3509 = vld [vmem:[#allocation3 + $0x90] sm:$0x44]
        %v3510 = vsel %vm940, %v3496, %v3509
        %3511 = vst [vmem:[#allocation3 + $0x90] sm:$0x44] %v3510
        %v3512 = vld [vmem:[#allocation3 + $0x98] sm:$0x44]
        %v3513 = vsel %vm940, %v3498, %v3512
        %3514 = vst [vmem:[#allocation3 + $0x98] sm:$0x44] %v3513
        %v3515 = vld [vmem:[#allocation2 + $0x1] sm:$0xff]
        %v3516 = vld [vmem:[#allocation2 + $0x9] sm:$0x1]
        %v3519 = vperm.slane %v3515, 0
        %v3520 = vperm.slane %v3515, 1
        %v3521 = vperm.slane %v3515, 2
        %v3522 = vperm.slane %v3515, 3
        %v3523 = vperm.slane %v3515, 4
        %v3524 = vperm.slane %v3515, 5
        %v3525 = vperm.slane %v3515, 6
        %v3526 = vperm.slane %v3515, 7
        %v3527 = vperm.slane %v3516, 0
        %v3537 = vpack.c.bf16 %v3520, %v3519
        %v3538 = vpack.c.bf16 %v3522, %v3521
        %v3539 = vpack.c.bf16 %v3524, %v3523
        %v3540 = vpack.c.bf16 %v3526, %v3525
        %v3541 = vpack.c.bf16 %v3527, %v3527
        %v3543 = vshll.u32 %v3537, 16
        %v3545 = vrot.slane %v3543, 6
        %v3547 = vshll.u32 %v3538, 16
        %v3549 = vrot.slane %v3547, 6
        %v3551 = vshll.u32 %v3539, 16
        %v3553 = vrot.slane %v3551, 6
        %v3555 = vshll.u32 %v3540, 16
        %v3557 = vrot.slane %v3555, 6
        %v3559 = vshll.u32 %v3541, 16
        %v3561 = vrot.slane %v3559, 6
        %3562 = vrot.lane.b32.xlu0 %v3545, 94
        %v3563 = vpop.permute.xlu0 %3562
        %3564 = vrot.lane.b32.xlu0 %v3549, 94
        %v3565 = vpop.permute.xlu0 %3564
        %3566 = vrot.lane.b32.xlu0 %v3553, 94
        %v3567 = vpop.permute.xlu0 %3566
        %3568 = vrot.lane.b32.xlu0 %v3557, 94
        %v3569 = vpop.permute.xlu0 %3568
        %3570 = vrot.lane.b32.xlu0 %v3561, 94
        %v3571 = vpop.permute.xlu0 %3570
        %v3572 = vrot.slane %v3563, 4
        %v3573 = vrot.slane %v3565, 4
        %v3574 = vrot.slane %v3567, 4
        %v3575 = vrot.slane %v3569, 4
        %v3576 = vrot.slane %v3571, 4
        %v3577 = vsel %vm662, %v3572, %v3573
        %v3578 = vsel %vm1351, %v3563, %v3577
        %v3579 = vsel %vm662, %v3573, %v3574
        %v3580 = vsel %vm1351, %v3565, %v3579
        %v3581 = vsel %vm662, %v3574, %v3575
        %v3582 = vsel %vm1351, %v3567, %v3581
        %v3583 = vsel %vm662, %v3575, %v3576
        %v3584 = vsel %vm1351, %v3569, %v3583
        %v3589 = vld [vmem:[#allocation3 + $0x80] sm:$0x44]
        %v3590 = vsel %vm1032, %v3578, %v3589
        %3591 = vst [vmem:[#allocation3 + $0x80] sm:$0x44] %v3590
        %v3592 = vld [vmem:[#allocation3 + $0x88] sm:$0x44]
        %v3593 = vsel %vm1032, %v3580, %v3592
        %3594 = vst [vmem:[#allocation3 + $0x88] sm:$0x44] %v3593
        %v3595 = vld [vmem:[#allocation3 + $0x90] sm:$0x44]
        %v3596 = vsel %vm1032, %v3582, %v3595
        %3597 = vst [vmem:[#allocation3 + $0x90] sm:$0x44] %v3596
        %v3598 = vld [vmem:[#allocation3 + $0x98] sm:$0x44]
        %v3599 = vsel %vm1032, %v3584, %v3598
        %3600 = vst [vmem:[#allocation3 + $0x98] sm:$0x44] %v3599
        %v3601 = vld [vmem:[#allocation2 + $0x1] sm:$0xff]
        %v3602 = vld [vmem:[#allocation2 + $0x9] sm:$0x1]
        %v3605 = vperm.slane %v3601, 0
        %v3606 = vperm.slane %v3601, 1
        %v3607 = vperm.slane %v3601, 2
        %v3608 = vperm.slane %v3601, 3
        %v3609 = vperm.slane %v3601, 4
        %v3610 = vperm.slane %v3601, 5
        %v3611 = vperm.slane %v3601, 6
        %v3612 = vperm.slane %v3601, 7
        %v3613 = vperm.slane %v3602, 0
        %v3623 = vpack.c.bf16 %v3606, %v3605
        %v3624 = vpack.c.bf16 %v3608, %v3607
        %v3625 = vpack.c.bf16 %v3610, %v3609
        %v3626 = vpack.c.bf16 %v3612, %v3611
        %v3627 = vpack.c.bf16 %v3613, %v3613
        %v3633 = vrot.slane %v3623, 5
        %v3634 = vrot.slane %v3624, 5
        %v3635 = vrot.slane %v3625, 5
        %v3636 = vrot.slane %v3626, 5
        %v3637 = vrot.slane %v3627, 5
        %3638 = vrot.lane.b32.xlu0 %v3633, 93
        %v3639 = vpop.permute.xlu0 %3638
        %3640 = vrot.lane.b32.xlu0 %v3634, 93
        %v3641 = vpop.permute.xlu0 %3640
        %3642 = vrot.lane.b32.xlu0 %v3635, 93
        %v3643 = vpop.permute.xlu0 %3642
        %3644 = vrot.lane.b32.xlu0 %v3636, 93
        %v3645 = vpop.permute.xlu0 %3644
        %3646 = vrot.lane.b32.xlu0 %v3637, 93
        %v3647 = vpop.permute.xlu0 %3646
        %v3648 = vrot.slane %v3639, 4
        %v3649 = vrot.slane %v3641, 4
        %v3650 = vrot.slane %v3643, 4
        %v3651 = vrot.slane %v3645, 4
        %v3652 = vrot.slane %v3647, 4
        %v3653 = vsel %vm662, %v3648, %v3649
        %v3654 = vsel %vm1428, %v3639, %v3653
        %v3655 = vsel %vm662, %v3649, %v3650
        %v3656 = vsel %vm1428, %v3641, %v3655
        %v3657 = vsel %vm662, %v3650, %v3651
        %v3658 = vsel %vm1428, %v3643, %v3657
        %v3659 = vsel %vm662, %v3651, %v3652
        %v3660 = vsel %vm1428, %v3645, %v3659
        %v3665 = vld [vmem:[#allocation3 + $0x80] sm:$0x88]
        %v3666 = vsel %vm1116, %v3654, %v3665
        %3667 = vst [vmem:[#allocation3 + $0x80] sm:$0x88] %v3666
        %v3668 = vld [vmem:[#allocation3 + $0x88] sm:$0x88]
        %v3669 = vsel %vm1116, %v3656, %v3668
        %3670 = vst [vmem:[#allocation3 + $0x88] sm:$0x88] %v3669
        %v3671 = vld [vmem:[#allocation3 + $0x90] sm:$0x88]
        %v3672 = vsel %vm1116, %v3658, %v3671
        %3673 = vst [vmem:[#allocation3 + $0x90] sm:$0x88] %v3672
        %v3674 = vld [vmem:[#allocation3 + $0x98] sm:$0x88]
        %v3675 = vsel %vm1116, %v3660, %v3674
        %3676 = vst [vmem:[#allocation3 + $0x98] sm:$0x88] %v3675
        %v3677 = vld [vmem:[#allocation2 + $0x1] sm:$0xff]
        %v3678 = vld [vmem:[#allocation2 + $0x9] sm:$0x1]
        %v3681 = vperm.slane %v3677, 0
        %v3682 = vperm.slane %v3677, 1
        %v3683 = vperm.slane %v3677, 2
        %v3684 = vperm.slane %v3677, 3
        %v3685 = vperm.slane %v3677, 4
        %v3686 = vperm.slane %v3677, 5
        %v3687 = vperm.slane %v3677, 6
        %v3688 = vperm.slane %v3677, 7
        %v3689 = vperm.slane %v3678, 0
        %v3699 = vpack.c.bf16 %v3682, %v3681
        %v3700 = vpack.c.bf16 %v3684, %v3683
        %v3701 = vpack.c.bf16 %v3686, %v3685
        %v3702 = vpack.c.bf16 %v3688, %v3687
        %v3703 = vpack.c.bf16 %v3689, %v3689
        %v3705 = vshll.u32 %v3699, 16
        %v3707 = vrot.slane %v3705, 5
        %v3709 = vshll.u32 %v3700, 16
        %v3711 = vrot.slane %v3709, 5
        %v3713 = vshll.u32 %v3701, 16
        %v3715 = vrot.slane %v3713, 5
        %v3717 = vshll.u32 %v3702, 16
        %v3719 = vrot.slane %v3717, 5
        %v3721 = vshll.u32 %v3703, 16
        %v3723 = vrot.slane %v3721, 5
        %3724 = vrot.lane.b32.xlu0 %v3707, 92
        %v3725 = vpop.permute.xlu0 %3724
        %3726 = vrot.lane.b32.xlu0 %v3711, 92
        %v3727 = vpop.permute.xlu0 %3726
        %3728 = vrot.lane.b32.xlu0 %v3715, 92
        %v3729 = vpop.permute.xlu0 %3728
        %3730 = vrot.lane.b32.xlu0 %v3719, 92
        %v3731 = vpop.permute.xlu0 %3730
        %3732 = vrot.lane.b32.xlu0 %v3723, 92
        %v3733 = vpop.permute.xlu0 %3732
        %v3734 = vrot.slane %v3725, 4
        %v3735 = vrot.slane %v3727, 4
        %v3736 = vrot.slane %v3729, 4
        %v3737 = vrot.slane %v3731, 4
        %v3738 = vrot.slane %v3733, 4
        %v3739 = vsel %vm662, %v3734, %v3735
        %v3740 = vsel %vm1515, %v3725, %v3739
        %v3741 = vsel %vm662, %v3735, %v3736
        %v3742 = vsel %vm1515, %v3727, %v3741
        %v3743 = vsel %vm662, %v3736, %v3737
        %v3744 = vsel %vm1515, %v3729, %v3743
        %v3745 = vsel %vm662, %v3737, %v3738
        %v3746 = vsel %vm1515, %v3731, %v3745
        %v3751 = vld [vmem:[#allocation3 + $0x80] sm:$0x88]
        %v3752 = vsel %vm1208, %v3740, %v3751
        %3753 = vst [vmem:[#allocation3 + $0x80] sm:$0x88] %v3752
        %v3754 = vld [vmem:[#allocation3 + $0x88] sm:$0x88]
        %v3755 = vsel %vm1208, %v3742, %v3754
        %3756 = vst [vmem:[#allocation3 + $0x88] sm:$0x88] %v3755
        %v3757 = vld [vmem:[#allocation3 + $0x90] sm:$0x88]
        %v3758 = vsel %vm1208, %v3744, %v3757
        %3759 = vst [vmem:[#allocation3 + $0x90] sm:$0x88] %v3758
        %v3760 = vld [vmem:[#allocation3 + $0x98] sm:$0x88]
        %v3761 = vsel %vm1208, %v3746, %v3760
        %3762 = vst [vmem:[#allocation3 + $0x98] sm:$0x88] %v3761
        %v3763 = vld [vmem:[#allocation2 + $0x1] sm:$0xff]
        %v3764 = vld [vmem:[#allocation2 + $0x9] sm:$0x1]
        %v3767 = vperm.slane %v3763, 0
        %v3768 = vperm.slane %v3763, 1
        %v3769 = vperm.slane %v3763, 2
        %v3770 = vperm.slane %v3763, 3
        %v3771 = vperm.slane %v3763, 4
        %v3772 = vperm.slane %v3763, 5
        %v3773 = vperm.slane %v3763, 6
        %v3774 = vperm.slane %v3763, 7
        %v3775 = vperm.slane %v3764, 0
        %v3785 = vpack.c.bf16 %v3768, %v3767
        %v3786 = vpack.c.bf16 %v3770, %v3769
        %v3787 = vpack.c.bf16 %v3772, %v3771
        %v3788 = vpack.c.bf16 %v3774, %v3773
        %v3789 = vpack.c.bf16 %v3775, %v3775
        %3795 = vrot.lane.b32.xlu0 %v3785, 91
        %v3796 = vpop.permute.xlu0 %3795
        %3797 = vrot.lane.b32.xlu0 %v3786, 91
        %v3798 = vpop.permute.xlu0 %3797
        %3799 = vrot.lane.b32.xlu0 %v3787, 91
        %v3800 = vpop.permute.xlu0 %3799
        %3801 = vrot.lane.b32.xlu0 %v3788, 91
        %v3802 = vpop.permute.xlu0 %3801
        %3803 = vrot.lane.b32.xlu0 %v3789, 91
        %v3804 = vpop.permute.xlu0 %3803
        %v3805 = vrot.slane %v3796, 4
        %v3806 = vrot.slane %v3798, 4
        %v3807 = vrot.slane %v3800, 4
        %v3808 = vrot.slane %v3802, 4
        %v3809 = vrot.slane %v3804, 4
        %v3810 = vsel %vm662, %v3805, %v3806
        %v3811 = vsel %vm1592, %v3796, %v3810
        %v3812 = vsel %vm662, %v3806, %v3807
        %v3813 = vsel %vm1592, %v3798, %v3812
        %v3814 = vsel %vm662, %v3807, %v3808
        %v3815 = vsel %vm1592, %v3800, %v3814
        %v3816 = vsel %vm662, %v3808, %v3809
        %v3817 = vsel %vm1592, %v3802, %v3816
        %v3822 = vld [vmem:[#allocation3 + $0xa0] sm:$0x11]
        %v3823 = vsel %vm592, %v3811, %v3822
        %3824 = vst [vmem:[#allocation3 + $0xa0] sm:$0x11] %v3823
        %v3825 = vld [vmem:[#allocation3 + $0xa8] sm:$0x11]
        %v3826 = vsel %vm592, %v3813, %v3825
        %3827 = vst [vmem:[#allocation3 + $0xa8] sm:$0x11] %v3826
        %v3828 = vld [vmem:[#allocation3 + $0xb0] sm:$0x11]
        %v3829 = vsel %vm592, %v3815, %v3828
        %3830 = vst [vmem:[#allocation3 + $0xb0] sm:$0x11] %v3829
        %v3831 = vld [vmem:[#allocation3 + $0xb8] sm:$0x11]
        %v3832 = vsel %vm592, %v3817, %v3831
        %3833 = vst [vmem:[#allocation3 + $0xb8] sm:$0x11] %v3832
        %v3834 = vld [vmem:[#allocation2 + $0x1] sm:$0xff]
        %v3835 = vld [vmem:[#allocation2 + $0x9] sm:$0x1]
        %v3838 = vperm.slane %v3834, 0
        %v3839 = vperm.slane %v3834, 1
        %v3840 = vperm.slane %v3834, 2
        %v3841 = vperm.slane %v3834, 3
        %v3842 = vperm.slane %v3834, 4
        %v3843 = vperm.slane %v3834, 5
        %v3844 = vperm.slane %v3834, 6
        %v3845 = vperm.slane %v3834, 7
        %v3846 = vperm.slane %v3835, 0
        %v3856 = vpack.c.bf16 %v3839, %v3838
        %v3857 = vpack.c.bf16 %v3841, %v3840
        %v3858 = vpack.c.bf16 %v3843, %v3842
        %v3859 = vpack.c.bf16 %v3845, %v3844
        %v3860 = vpack.c.bf16 %v3846, %v3846
        %v3862 = vshll.u32 %v3856, 16
        %v3865 = vshll.u32 %v3857, 16
        %v3868 = vshll.u32 %v3858, 16
        %v3871 = vshll.u32 %v3859, 16
        %v3874 = vshll.u32 %v3860, 16
        %3876 = vrot.lane.b32.xlu0 %v3862, 90
        %v3877 = vpop.permute.xlu0 %3876
        %3878 = vrot.lane.b32.xlu0 %v3865, 90
        %v3879 = vpop.permute.xlu0 %3878
        %3880 = vrot.lane.b32.xlu0 %v3868, 90
        %v3881 = vpop.permute.xlu0 %3880
        %3882 = vrot.lane.b32.xlu0 %v3871, 90
        %v3883 = vpop.permute.xlu0 %3882
        %3884 = vrot.lane.b32.xlu0 %v3874, 90
        %v3885 = vpop.permute.xlu0 %3884
        %v3886 = vrot.slane %v3877, 4
        %v3887 = vrot.slane %v3879, 4
        %v3888 = vrot.slane %v3881, 4
        %v3889 = vrot.slane %v3883, 4
        %v3890 = vrot.slane %v3885, 4
        %v3891 = vsel %vm662, %v3886, %v3887
        %v3892 = vsel %vm1679, %v3877, %v3891
        %v3893 = vsel %vm662, %v3887, %v3888
        %v3894 = vsel %vm1679, %v3879, %v3893
        %v3895 = vsel %vm662, %v3888, %v3889
        %v3896 = vsel %vm1679, %v3881, %v3895
        %v3897 = vsel %vm662, %v3889, %v3890
        %v3898 = vsel %vm1679, %v3883, %v3897
        %v3903 = vld [vmem:[#allocation3 + $0xa0] sm:$0x11]
        %v3904 = vsel %vm680, %v3892, %v3903
        %3905 = vst [vmem:[#allocation3 + $0xa0] sm:$0x11] %v3904
        %v3906 = vld [vmem:[#allocation3 + $0xa8] sm:$0x11]
        %v3907 = vsel %vm680, %v3894, %v3906
        %3908 = vst [vmem:[#allocation3 + $0xa8] sm:$0x11] %v3907
        %v3909 = vld [vmem:[#allocation3 + $0xb0] sm:$0x11]
        %v3910 = vsel %vm680, %v3896, %v3909
        %3911 = vst [vmem:[#allocation3 + $0xb0] sm:$0x11] %v3910
        %v3912 = vld [vmem:[#allocation3 + $0xb8] sm:$0x11]
        %v3913 = vsel %vm680, %v3898, %v3912
        %3914 = vst [vmem:[#allocation3 + $0xb8] sm:$0x11] %v3913
        %v3915 = vld [vmem:[#allocation2 + $0x1] sm:$0xff]
        %v3916 = vld [vmem:[#allocation2 + $0x9] sm:$0x1]
        %v3919 = vperm.slane %v3915, 0
        %v3920 = vperm.slane %v3915, 1
        %v3921 = vperm.slane %v3915, 2
        %v3922 = vperm.slane %v3915, 3
        %v3923 = vperm.slane %v3915, 4
        %v3924 = vperm.slane %v3915, 5
        %v3925 = vperm.slane %v3915, 6
        %v3926 = vperm.slane %v3915, 7
        %v3927 = vperm.slane %v3916, 0
        %v3937 = vpack.c.bf16 %v3920, %v3919
        %v3938 = vpack.c.bf16 %v3922, %v3921
        %v3939 = vpack.c.bf16 %v3924, %v3923
        %v3940 = vpack.c.bf16 %v3926, %v3925
        %v3941 = vpack.c.bf16 %v3927, %v3927
        %v3947 = vrot.slane %v3937, 7
        %v3948 = vrot.slane %v3938, 7
        %v3949 = vrot.slane %v3939, 7
        %v3950 = vrot.slane %v3940, 7
        %v3951 = vrot.slane %v3941, 7
        %3952 = vrot.lane.b32.xlu0 %v3947, 64
        %v3953 = vpop.permute.xlu0 %3952
        %3954 = vrot.lane.b32.xlu0 %v3948, 64
        %v3955 = vpop.permute.xlu0 %3954
        %3956 = vrot.lane.b32.xlu0 %v3949, 64
        %v3957 = vpop.permute.xlu0 %3956
        %3958 = vrot.lane.b32.xlu0 %v3950, 64
        %v3959 = vpop.permute.xlu0 %3958
        %3960 = vrot.lane.b32.xlu0 %v3951, 64
        %v3961 = vpop.permute.xlu0 %3960
        %v3962 = vrot.slane %v3953, 4
        %v3963 = vrot.slane %v3955, 4
        %v3964 = vrot.slane %v3957, 4
        %v3965 = vrot.slane %v3959, 4
        %v3966 = vrot.slane %v3961, 4
        %v3967 = vsel %vm662, %v3962, %v3963
        %v3968 = vsel %vm1756, %v3953, %v3967
        %v3969 = vsel %vm662, %v3963, %v3964
        %v3970 = vsel %vm1756, %v3955, %v3969
        %v3971 = vsel %vm662, %v3964, %v3965
        %v3972 = vsel %vm1756, %v3957, %v3971
        %v3973 = vsel %vm662, %v3965, %v3966
        %v3974 = vsel %vm1756, %v3959, %v3973
        %v3979 = vld [vmem:[#allocation3 + $0xa0] sm:$0x22]
        %v3980 = vsel %vm764, %v3968, %v3979
        %3981 = vst [vmem:[#allocation3 + $0xa0] sm:$0x22] %v3980
        %v3982 = vld [vmem:[#allocation3 + $0xa8] sm:$0x22]
        %v3983 = vsel %vm764, %v3970, %v3982
        %3984 = vst [vmem:[#allocation3 + $0xa8] sm:$0x22] %v3983
        %v3985 = vld [vmem:[#allocation3 + $0xb0] sm:$0x22]
        %v3986 = vsel %vm764, %v3972, %v3985
        %3987 = vst [vmem:[#allocation3 + $0xb0] sm:$0x22] %v3986
        %v3988 = vld [vmem:[#allocation3 + $0xb8] sm:$0x22]
        %v3989 = vsel %vm764, %v3974, %v3988
        %3990 = vst [vmem:[#allocation3 + $0xb8] sm:$0x22] %v3989
        %v3991 = vld [vmem:[#allocation2 + $0x1] sm:$0xff]
        %v3992 = vld [vmem:[#allocation2 + $0x9] sm:$0x1]
        %v3995 = vperm.slane %v3991, 0
        %v3996 = vperm.slane %v3991, 1
        %v3997 = vperm.slane %v3991, 2
        %v3998 = vperm.slane %v3991, 3
        %v3999 = vperm.slane %v3991, 4
        %v4000 = vperm.slane %v3991, 5
        %v4001 = vperm.slane %v3991, 6
        %v4002 = vperm.slane %v3991, 7
        %v4003 = vperm.slane %v3992, 0
        %v4013 = vpack.c.bf16 %v3996, %v3995
        %v4014 = vpack.c.bf16 %v3998, %v3997
        %v4015 = vpack.c.bf16 %v4000, %v3999
        %v4016 = vpack.c.bf16 %v4002, %v4001
        %v4017 = vpack.c.bf16 %v4003, %v4003
        %v4019 = vshll.u32 %v4013, 16
        %v4021 = vrot.slane %v4019, 7
        %v4023 = vshll.u32 %v4014, 16
        %v4025 = vrot.slane %v4023, 7
        %v4027 = vshll.u32 %v4015, 16
        %v4029 = vrot.slane %v4027, 7
        %v4031 = vshll.u32 %v4016, 16
        %v4033 = vrot.slane %v4031, 7
        %v4035 = vshll.u32 %v4017, 16
        %v4037 = vrot.slane %v4035, 7
        %4038 = vrot.lane.b32.xlu0 %v4021, 63
        %v4039 = vpop.permute.xlu0 %4038
        %4040 = vrot.lane.b32.xlu0 %v4025, 63
        %v4041 = vpop.permute.xlu0 %4040
        %4042 = vrot.lane.b32.xlu0 %v4029, 63
        %v4043 = vpop.permute.xlu0 %4042
        %4044 = vrot.lane.b32.xlu0 %v4033, 63
        %v4045 = vpop.permute.xlu0 %4044
        %4046 = vrot.lane.b32.xlu0 %v4037, 63
        %v4047 = vpop.permute.xlu0 %4046
        %v4048 = vrot.slane %v4039, 4
        %v4049 = vrot.slane %v4041, 4
        %v4050 = vrot.slane %v4043, 4
        %v4051 = vrot.slane %v4045, 4
        %v4052 = vrot.slane %v4047, 4
        %v4053 = vsel %vm662, %v4048, %v4049
        %v4054 = vsel %vm1843, %v4039, %v4053
        %v4055 = vsel %vm662, %v4049, %v4050
        %v4056 = vsel %vm1843, %v4041, %v4055
        %v4057 = vsel %vm662, %v4050, %v4051
        %v4058 = vsel %vm1843, %v4043, %v4057
        %v4059 = vsel %vm662, %v4051, %v4052
        %v4060 = vsel %vm1843, %v4045, %v4059
        %v4065 = vld [vmem:[#allocation3 + $0xa0] sm:$0x22]
        %v4066 = vsel %vm856, %v4054, %v4065
        %4067 = vst [vmem:[#allocation3 + $0xa0] sm:$0x22] %v4066
        %v4068 = vld [vmem:[#allocation3 + $0xa8] sm:$0x22]
        %v4069 = vsel %vm856, %v4056, %v4068
        %4070 = vst [vmem:[#allocation3 + $0xa8] sm:$0x22] %v4069
        %v4071 = vld [vmem:[#allocation3 + $0xb0] sm:$0x22]
        %v4072 = vsel %vm856, %v4058, %v4071
        %4073 = vst [vmem:[#allocation3 + $0xb0] sm:$0x22] %v4072
        %v4074 = vld [vmem:[#allocation3 + $0xb8] sm:$0x22]
        %v4075 = vsel %vm856, %v4060, %v4074
        %4076 = vst [vmem:[#allocation3 + $0xb8] sm:$0x22] %v4075
        %v4077 = vld [vmem:[#allocation2 + $0x1] sm:$0xff]
        %v4078 = vld [vmem:[#allocation2 + $0x9] sm:$0x1]
        %v4081 = vperm.slane %v4077, 0
        %v4082 = vperm.slane %v4077, 1
        %v4083 = vperm.slane %v4077, 2
        %v4084 = vperm.slane %v4077, 3
        %v4085 = vperm.slane %v4077, 4
        %v4086 = vperm.slane %v4077, 5
        %v4087 = vperm.slane %v4077, 6
        %v4088 = vperm.slane %v4077, 7
        %v4089 = vperm.slane %v4078, 0
        %v4099 = vpack.c.bf16 %v4082, %v4081
        %v4100 = vpack.c.bf16 %v4084, %v4083
        %v4101 = vpack.c.bf16 %v4086, %v4085
        %v4102 = vpack.c.bf16 %v4088, %v4087
        %v4103 = vpack.c.bf16 %v4089, %v4089
        %v4109 = vrot.slane %v4099, 6
        %v4110 = vrot.slane %v4100, 6
        %v4111 = vrot.slane %v4101, 6
        %v4112 = vrot.slane %v4102, 6
        %v4113 = vrot.slane %v4103, 6
        %4114 = vrot.lane.b32.xlu0 %v4109, 62
        %v4115 = vpop.permute.xlu0 %4114
        %4116 = vrot.lane.b32.xlu0 %v4110, 62
        %v4117 = vpop.permute.xlu0 %4116
        %4118 = vrot.lane.b32.xlu0 %v4111, 62
        %v4119 = vpop.permute.xlu0 %4118
        %4120 = vrot.lane.b32.xlu0 %v4112, 62
        %v4121 = vpop.permute.xlu0 %4120
        %4122 = vrot.lane.b32.xlu0 %v4113, 62
        %v4123 = vpop.permute.xlu0 %4122
        %v4124 = vrot.slane %v4115, 4
        %v4125 = vrot.slane %v4117, 4
        %v4126 = vrot.slane %v4119, 4
        %v4127 = vrot.slane %v4121, 4
        %v4128 = vrot.slane %v4123, 4
        %v4129 = vsel %vm662, %v4124, %v4125
        %v4130 = vsel %vm1915, %v4115, %v4129
        %v4131 = vsel %vm662, %v4125, %v4126
        %v4132 = vsel %vm1915, %v4117, %v4131
        %v4133 = vsel %vm662, %v4126, %v4127
        %v4134 = vsel %vm1915, %v4119, %v4133
        %v4135 = vsel %vm662, %v4127, %v4128
        %v4136 = vsel %vm1915, %v4121, %v4135
        %v4141 = vld [vmem:[#allocation3 + $0xa0] sm:$0x44]
        %v4142 = vsel %vm940, %v4130, %v4141
        %4143 = vst [vmem:[#allocation3 + $0xa0] sm:$0x44] %v4142
        %v4144 = vld [vmem:[#allocation3 + $0xa8] sm:$0x44]
        %v4145 = vsel %vm940, %v4132, %v4144
        %4146 = vst [vmem:[#allocation3 + $0xa8] sm:$0x44] %v4145
        %v4147 = vld [vmem:[#allocation3 + $0xb0] sm:$0x44]
        %v4148 = vsel %vm940, %v4134, %v4147
        %4149 = vst [vmem:[#allocation3 + $0xb0] sm:$0x44] %v4148
        %v4150 = vld [vmem:[#allocation3 + $0xb8] sm:$0x44]
        %v4151 = vsel %vm940, %v4136, %v4150
        %4152 = vst [vmem:[#allocation3 + $0xb8] sm:$0x44] %v4151
        %v4153 = vld [vmem:[#allocation2 + $0x1] sm:$0xff]
        %v4154 = vld [vmem:[#allocation2 + $0x9] sm:$0x1]
        %v4157 = vperm.slane %v4153, 0
        %v4158 = vperm.slane %v4153, 1
        %v4159 = vperm.slane %v4153, 2
        %v4160 = vperm.slane %v4153, 3
        %v4161 = vperm.slane %v4153, 4
        %v4162 = vperm.slane %v4153, 5
        %v4163 = vperm.slane %v4153, 6
        %v4164 = vperm.slane %v4153, 7
        %v4165 = vperm.slane %v4154, 0
        %v4175 = vpack.c.bf16 %v4158, %v4157
        %v4176 = vpack.c.bf16 %v4160, %v4159
        %v4177 = vpack.c.bf16 %v4162, %v4161
        %v4178 = vpack.c.bf16 %v4164, %v4163
        %v4179 = vpack.c.bf16 %v4165, %v4165
        %v4181 = vshll.u32 %v4175, 16
        %v4183 = vrot.slane %v4181, 6
        %v4185 = vshll.u32 %v4176, 16
        %v4187 = vrot.slane %v4185, 6
        %v4189 = vshll.u32 %v4177, 16
        %v4191 = vrot.slane %v4189, 6
        %v4193 = vshll.u32 %v4178, 16
        %v4195 = vrot.slane %v4193, 6
        %v4197 = vshll.u32 %v4179, 16
        %v4199 = vrot.slane %v4197, 6
        %4200 = vrot.lane.b32.xlu0 %v4183, 61
        %v4201 = vpop.permute.xlu0 %4200
        %4202 = vrot.lane.b32.xlu0 %v4187, 61
        %v4203 = vpop.permute.xlu0 %4202
        %4204 = vrot.lane.b32.xlu0 %v4191, 61
        %v4205 = vpop.permute.xlu0 %4204
        %4206 = vrot.lane.b32.xlu0 %v4195, 61
        %v4207 = vpop.permute.xlu0 %4206
        %4208 = vrot.lane.b32.xlu0 %v4199, 61
        %v4209 = vpop.permute.xlu0 %4208
        %v4210 = vrot.slane %v4201, 4
        %v4211 = vrot.slane %v4203, 4
        %v4212 = vrot.slane %v4205, 4
        %v4213 = vrot.slane %v4207, 4
        %v4214 = vrot.slane %v4209, 4
        %v4215 = vsel %vm662, %v4210, %v4211
        %v4216 = vsel %vm1997, %v4201, %v4215
        %v4217 = vsel %vm662, %v4211, %v4212
        %v4218 = vsel %vm1997, %v4203, %v4217
        %v4219 = vsel %vm662, %v4212, %v4213
        %v4220 = vsel %vm1997, %v4205, %v4219
        %v4221 = vsel %vm662, %v4213, %v4214
        %v4222 = vsel %vm1997, %v4207, %v4221
        %v4227 = vld [vmem:[#allocation3 + $0xa0] sm:$0x44]
        %v4228 = vsel %vm1032, %v4216, %v4227
        %4229 = vst [vmem:[#allocation3 + $0xa0] sm:$0x44] %v4228
        %v4230 = vld [vmem:[#allocation3 + $0xa8] sm:$0x44]
        %v4231 = vsel %vm1032, %v4218, %v4230
        %4232 = vst [vmem:[#allocation3 + $0xa8] sm:$0x44] %v4231
        %v4233 = vld [vmem:[#allocation3 + $0xb0] sm:$0x44]
        %v4234 = vsel %vm1032, %v4220, %v4233
        %4235 = vst [vmem:[#allocation3 + $0xb0] sm:$0x44] %v4234
        %v4236 = vld [vmem:[#allocation3 + $0xb8] sm:$0x44]
        %v4237 = vsel %vm1032, %v4222, %v4236
        %4238 = vst [vmem:[#allocation3 + $0xb8] sm:$0x44] %v4237
        %v4239 = vld [vmem:[#allocation2 + $0x1] sm:$0xff]
        %v4240 = vld [vmem:[#allocation2 + $0x9] sm:$0x1]
        %v4243 = vperm.slane %v4239, 0
        %v4244 = vperm.slane %v4239, 1
        %v4245 = vperm.slane %v4239, 2
        %v4246 = vperm.slane %v4239, 3
        %v4247 = vperm.slane %v4239, 4
        %v4248 = vperm.slane %v4239, 5
        %v4249 = vperm.slane %v4239, 6
        %v4250 = vperm.slane %v4239, 7
        %v4251 = vperm.slane %v4240, 0
        %v4261 = vpack.c.bf16 %v4244, %v4243
        %v4262 = vpack.c.bf16 %v4246, %v4245
        %v4263 = vpack.c.bf16 %v4248, %v4247
        %v4264 = vpack.c.bf16 %v4250, %v4249
        %v4265 = vpack.c.bf16 %v4251, %v4251
        %v4271 = vrot.slane %v4261, 5
        %v4272 = vrot.slane %v4262, 5
        %v4273 = vrot.slane %v4263, 5
        %v4274 = vrot.slane %v4264, 5
        %v4275 = vrot.slane %v4265, 5
        %4276 = vrot.lane.b32.xlu0 %v4271, 60
        %v4277 = vpop.permute.xlu0 %4276
        %4278 = vrot.lane.b32.xlu0 %v4272, 60
        %v4279 = vpop.permute.xlu0 %4278
        %4280 = vrot.lane.b32.xlu0 %v4273, 60
        %v4281 = vpop.permute.xlu0 %4280
        %4282 = vrot.lane.b32.xlu0 %v4274, 60
        %v4283 = vpop.permute.xlu0 %4282
        %4284 = vrot.lane.b32.xlu0 %v4275, 60
        %v4285 = vpop.permute.xlu0 %4284
        %v4286 = vrot.slane %v4277, 4
        %v4287 = vrot.slane %v4279, 4
        %v4288 = vrot.slane %v4281, 4
        %v4289 = vrot.slane %v4283, 4
        %v4290 = vrot.slane %v4285, 4
        %v4291 = vsel %vm662, %v4286, %v4287
        %v4292 = vsel %vm2074, %v4277, %v4291
        %v4293 = vsel %vm662, %v4287, %v4288
        %v4294 = vsel %vm2074, %v4279, %v4293
        %v4295 = vsel %vm662, %v4288, %v4289
        %v4296 = vsel %vm2074, %v4281, %v4295
        %v4297 = vsel %vm662, %v4289, %v4290
        %v4298 = vsel %vm2074, %v4283, %v4297
        %v4303 = vld [vmem:[#allocation3 + $0xa0] sm:$0x88]
        %v4304 = vsel %vm1116, %v4292, %v4303
        %4305 = vst [vmem:[#allocation3 + $0xa0] sm:$0x88] %v4304
        %v4306 = vld [vmem:[#allocation3 + $0xa8] sm:$0x88]
        %v4307 = vsel %vm1116, %v4294, %v4306
        %4308 = vst [vmem:[#allocation3 + $0xa8] sm:$0x88] %v4307
        %v4309 = vld [vmem:[#allocation3 + $0xb0] sm:$0x88]
        %v4310 = vsel %vm1116, %v4296, %v4309
        %4311 = vst [vmem:[#allocation3 + $0xb0] sm:$0x88] %v4310
        %v4312 = vld [vmem:[#allocation3 + $0xb8] sm:$0x88]
        %v4313 = vsel %vm1116, %v4298, %v4312
        %4314 = vst [vmem:[#allocation3 + $0xb8] sm:$0x88] %v4313
        %v4315 = vld [vmem:[#allocation2 + $0x1] sm:$0xff]
        %v4316 = vld [vmem:[#allocation2 + $0x9] sm:$0x1]
        %v4319 = vperm.slane %v4315, 0
        %v4320 = vperm.slane %v4315, 1
        %v4321 = vperm.slane %v4315, 2
        %v4322 = vperm.slane %v4315, 3
        %v4323 = vperm.slane %v4315, 4
        %v4324 = vperm.slane %v4315, 5
        %v4325 = vperm.slane %v4315, 6
        %v4326 = vperm.slane %v4315, 7
        %v4327 = vperm.slane %v4316, 0
        %v4337 = vpack.c.bf16 %v4320, %v4319
        %v4338 = vpack.c.bf16 %v4322, %v4321
        %v4339 = vpack.c.bf16 %v4324, %v4323
        %v4340 = vpack.c.bf16 %v4326, %v4325
        %v4341 = vpack.c.bf16 %v4327, %v4327
        %v4343 = vshll.u32 %v4337, 16
        %v4345 = vrot.slane %v4343, 5
        %v4347 = vshll.u32 %v4338, 16
        %v4349 = vrot.slane %v4347, 5
        %v4351 = vshll.u32 %v4339, 16
        %v4353 = vrot.slane %v4351, 5
        %v4355 = vshll.u32 %v4340, 16
        %v4357 = vrot.slane %v4355, 5
        %v4359 = vshll.u32 %v4341, 16
        %v4361 = vrot.slane %v4359, 5
        %4362 = vrot.lane.b32.xlu0 %v4345, 59
        %v4363 = vpop.permute.xlu0 %4362
        %4364 = vrot.lane.b32.xlu0 %v4349, 59
        %v4365 = vpop.permute.xlu0 %4364
        %4366 = vrot.lane.b32.xlu0 %v4353, 59
        %v4367 = vpop.permute.xlu0 %4366
        %4368 = vrot.lane.b32.xlu0 %v4357, 59
        %v4369 = vpop.permute.xlu0 %4368
        %4370 = vrot.lane.b32.xlu0 %v4361, 59
        %v4371 = vpop.permute.xlu0 %4370
        %v4372 = vrot.slane %v4363, 4
        %v4373 = vrot.slane %v4365, 4
        %v4374 = vrot.slane %v4367, 4
        %v4375 = vrot.slane %v4369, 4
        %v4376 = vrot.slane %v4371, 4
        %v4377 = vsel %vm662, %v4372, %v4373
        %v4378 = vsel %vm2161, %v4363, %v4377
        %v4379 = vsel %vm662, %v4373, %v4374
        %v4380 = vsel %vm2161, %v4365, %v4379
        %v4381 = vsel %vm662, %v4374, %v4375
        %v4382 = vsel %vm2161, %v4367, %v4381
        %v4383 = vsel %vm662, %v4375, %v4376
        %v4384 = vsel %vm2161, %v4369, %v4383
        %v4389 = vld [vmem:[#allocation3 + $0xa0] sm:$0x88]
        %v4390 = vsel %vm1208, %v4378, %v4389
        %4391 = vst [vmem:[#allocation3 + $0xa0] sm:$0x88] %v4390
        %v4392 = vld [vmem:[#allocation3 + $0xa8] sm:$0x88]
        %v4393 = vsel %vm1208, %v4380, %v4392
        %4394 = vst [vmem:[#allocation3 + $0xa8] sm:$0x88] %v4393
        %v4395 = vld [vmem:[#allocation3 + $0xb0] sm:$0x88]
        %v4396 = vsel %vm1208, %v4382, %v4395
        %4397 = vst [vmem:[#allocation3 + $0xb0] sm:$0x88] %v4396
        %v4398 = vld [vmem:[#allocation3 + $0xb8] sm:$0x88]
        %v4399 = vsel %vm1208, %v4384, %v4398
        %4400 = vst [vmem:[#allocation3 + $0xb8] sm:$0x88] %v4399
        %v4401 = vld [vmem:[#allocation2 + $0x1] sm:$0xff]
        %v4402 = vld [vmem:[#allocation2 + $0x9] sm:$0x1]
        %v4405 = vperm.slane %v4401, 0
        %v4406 = vperm.slane %v4401, 1
        %v4407 = vperm.slane %v4401, 2
        %v4408 = vperm.slane %v4401, 3
        %v4409 = vperm.slane %v4401, 4
        %v4410 = vperm.slane %v4401, 5
        %v4411 = vperm.slane %v4401, 6
        %v4412 = vperm.slane %v4401, 7
        %v4413 = vperm.slane %v4402, 0
        %v4423 = vpack.c.bf16 %v4406, %v4405
        %v4424 = vpack.c.bf16 %v4408, %v4407
        %v4425 = vpack.c.bf16 %v4410, %v4409
        %v4426 = vpack.c.bf16 %v4412, %v4411
        %v4427 = vpack.c.bf16 %v4413, %v4413
        %4433 = vrot.lane.b32.xlu0 %v4423, 58
        %v4434 = vpop.permute.xlu0 %4433
        %4435 = vrot.lane.b32.xlu0 %v4424, 58
        %v4436 = vpop.permute.xlu0 %4435
        %4437 = vrot.lane.b32.xlu0 %v4425, 58
        %v4438 = vpop.permute.xlu0 %4437
        %4439 = vrot.lane.b32.xlu0 %v4426, 58
        %v4440 = vpop.permute.xlu0 %4439
        %4441 = vrot.lane.b32.xlu0 %v4427, 58
        %v4442 = vpop.permute.xlu0 %4441
        %v4443 = vrot.slane %v4434, 4
        %v4444 = vrot.slane %v4436, 4
        %v4445 = vrot.slane %v4438, 4
        %v4446 = vrot.slane %v4440, 4
        %v4447 = vrot.slane %v4442, 4
        %v4448 = vsel %vm662, %v4443, %v4444
        %v4449 = vsel %vm2238, %v4434, %v4448
        %v4450 = vsel %vm662, %v4444, %v4445
        %v4451 = vsel %vm2238, %v4436, %v4450
        %v4452 = vsel %vm662, %v4445, %v4446
        %v4453 = vsel %vm2238, %v4438, %v4452
        %v4454 = vsel %vm662, %v4446, %v4447
        %v4455 = vsel %vm2238, %v4440, %v4454
        %v4460 = vld [vmem:[#allocation3 + $0xc0] sm:$0x11]
        %v4461 = vsel %vm592, %v4449, %v4460
        %4462 = vst [vmem:[#allocation3 + $0xc0] sm:$0x11] %v4461
        %v4463 = vld [vmem:[#allocation3 + $0xc8] sm:$0x11]
        %v4464 = vsel %vm592, %v4451, %v4463
        %4465 = vst [vmem:[#allocation3 + $0xc8] sm:$0x11] %v4464
        %v4466 = vld [vmem:[#allocation3 + $0xd0] sm:$0x11]
        %v4467 = vsel %vm592, %v4453, %v4466
        %4468 = vst [vmem:[#allocation3 + $0xd0] sm:$0x11] %v4467
        %v4469 = vld [vmem:[#allocation3 + $0xd8] sm:$0x11]
        %v4470 = vsel %vm592, %v4455, %v4469
        %4471 = vst [vmem:[#allocation3 + $0xd8] sm:$0x11] %v4470
        %v4472 = vld [vmem:[#allocation8] sm:$0xf]
        %v4473 = vld [vmem:[#allocation3] sm:$0xff]
        %v4474 = vld [vmem:[#allocation3 + $0x8] sm:$0xff]
        %v4475 = vld [vmem:[#allocation3 + $0x10] sm:$0xff]
        %v4476 = vld [vmem:[#allocation3 + $0x18] sm:$0xff]
        %v4477 = vld [vmem:[#allocation3 + $0x20] sm:$0xff]
        %v4478 = vld [vmem:[#allocation3 + $0x28] sm:$0xff]
        %v4479 = vld [vmem:[#allocation3 + $0x30] sm:$0xff]
        %v4480 = vld [vmem:[#allocation3 + $0x38] sm:$0xff]
        %v4481 = vld [vmem:[#allocation3 + $0x40] sm:$0xff]
        %v4482 = vld [vmem:[#allocation3 + $0x48] sm:$0xff]
        %v4483 = vld [vmem:[#allocation3 + $0x50] sm:$0xff]
        %v4484 = vld [vmem:[#allocation3 + $0x58] sm:$0xff]
        %v4485 = vld [vmem:[#allocation3 + $0x60] sm:$0xff]
        %v4486 = vld [vmem:[#allocation3 + $0x68] sm:$0xff]
        %v4487 = vld [vmem:[#allocation3 + $0x70] sm:$0xff]
        %v4488 = vld [vmem:[#allocation3 + $0x78] sm:$0xff]
        %v4489 = vld [vmem:[#allocation3 + $0x80] sm:$0xff]
        %v4490 = vld [vmem:[#allocation3 + $0x88] sm:$0xff]
        %v4491 = vld [vmem:[#allocation3 + $0x90] sm:$0xff]
        %v4492 = vld [vmem:[#allocation3 + $0x98] sm:$0xff]
        %v4493 = vld [vmem:[#allocation3 + $0xa0] sm:$0xff]
        %v4494 = vld [vmem:[#allocation3 + $0xa8] sm:$0xff]
        %v4495 = vld [vmem:[#allocation3 + $0xb0] sm:$0xff]
        %v4496 = vld [vmem:[#allocation3 + $0xb8] sm:$0xff]
        %v4497 = vld [vmem:[#allocation3 + $0xc0] sm:$0x11]
        %v4498 = vld [vmem:[#allocation3 + $0xc8] sm:$0x11]
        %v4499 = vld [vmem:[#allocation3 + $0xd0] sm:$0x11]
        %v4500 = vld [vmem:[#allocation3 + $0xd8] sm:$0x11]
        %v4501 = vld [vmem:[%s3] sm:$0xff]
        %4503 = vset.pattern.permute.xlu0 0
        %4504 = vperm.xlu0 %4503, %v4501
        %v4505 = vpop.permute.xlu0 %4504
        %v4535 = vunpack.c.l.b16 %v4473
        %v4536 = vunpack.c.h.b16 %v4473
        %v4537 = vunpack.c.l.b16 %v4474
        %v4538 = vunpack.c.h.b16 %v4474
        %v4539 = vunpack.c.l.b16 %v4475
        %v4540 = vunpack.c.h.b16 %v4475
        %v4541 = vunpack.c.l.b16 %v4476
        %v4542 = vunpack.c.h.b16 %v4476
        %v4543 = vunpack.c.l.b16 %v4477
        %v4544 = vunpack.c.h.b16 %v4477
        %v4545 = vunpack.c.l.b16 %v4478
        %v4546 = vunpack.c.h.b16 %v4478
        %v4547 = vunpack.c.l.b16 %v4479
        %v4548 = vunpack.c.h.b16 %v4479
        %v4549 = vunpack.c.l.b16 %v4480
        %v4550 = vunpack.c.h.b16 %v4480
        %v4551 = vunpack.c.l.b16 %v4481
        %v4552 = vunpack.c.h.b16 %v4481
        %v4553 = vunpack.c.l.b16 %v4482
        %v4554 = vunpack.c.h.b16 %v4482
        %v4555 = vunpack.c.l.b16 %v4483
        %v4556 = vunpack.c.h.b16 %v4483
        %v4557 = vunpack.c.l.b16 %v4484
        %v4558 = vunpack.c.h.b16 %v4484
        %v4559 = vunpack.c.l.b16 %v4485
        %v4560 = vunpack.c.h.b16 %v4485
        %v4561 = vunpack.c.l.b16 %v4486
        %v4562 = vunpack.c.h.b16 %v4486
        %v4563 = vunpack.c.l.b16 %v4487
        %v4564 = vunpack.c.h.b16 %v4487
        %v4565 = vunpack.c.l.b16 %v4488
        %v4566 = vunpack.c.h.b16 %v4488
        %v4567 = vunpack.c.l.b16 %v4489
        %v4568 = vunpack.c.h.b16 %v4489
        %v4569 = vunpack.c.l.b16 %v4490
        %v4570 = vunpack.c.h.b16 %v4490
        %v4571 = vunpack.c.l.b16 %v4491
        %v4572 = vunpack.c.h.b16 %v4491
        %v4573 = vunpack.c.l.b16 %v4492
        %v4574 = vunpack.c.h.b16 %v4492
        %v4575 = vunpack.c.l.b16 %v4493
        %v4576 = vunpack.c.h.b16 %v4493
        %v4577 = vunpack.c.l.b16 %v4494
        %v4578 = vunpack.c.h.b16 %v4494
        %v4579 = vunpack.c.l.b16 %v4495
        %v4580 = vunpack.c.h.b16 %v4495
        %v4581 = vunpack.c.l.b16 %v4496
        %v4582 = vunpack.c.h.b16 %v4496
        %v4583 = vunpack.c.l.b16 %v4497
        %v4584 = vunpack.c.h.b16 %v4497
        %v4585 = vunpack.c.l.b16 %v4498
        %v4586 = vunpack.c.h.b16 %v4498
        %v4587 = vunpack.c.l.b16 %v4499
        %v4588 = vunpack.c.h.b16 %v4499
        %v4589 = vunpack.c.l.b16 %v4500
        %v4590 = vunpack.c.h.b16 %v4500
        %v4591 = vpack.c.b16 %v4543, %v4535
        %v4592 = vpack.c.b16 %v4544, %v4536
        %v4593 = vpack.c.b16 %v4545, %v4537
        %v4594 = vpack.c.b16 %v4546, %v4538
        %v4595 = vpack.c.b16 %v4547, %v4539
        %v4596 = vpack.c.b16 %v4548, %v4540
        %v4597 = vpack.c.b16 %v4549, %v4541
        %v4598 = vpack.c.b16 %v4550, %v4542
        %v4599 = vpack.c.b16 %v4559, %v4551
        %v4600 = vpack.c.b16 %v4560, %v4552
        %v4601 = vpack.c.b16 %v4561, %v4553
        %v4602 = vpack.c.b16 %v4562, %v4554
        %v4603 = vpack.c.b16 %v4563, %v4555
        %v4604 = vpack.c.b16 %v4564, %v4556
        %v4605 = vpack.c.b16 %v4565, %v4557
        %v4606 = vpack.c.b16 %v4566, %v4558
        %v4607 = vpack.c.b16 %v4575, %v4567
        %v4608 = vpack.c.b16 %v4576, %v4568
        %v4609 = vpack.c.b16 %v4577, %v4569
        %v4610 = vpack.c.b16 %v4578, %v4570
        %v4611 = vpack.c.b16 %v4579, %v4571
        %v4612 = vpack.c.b16 %v4580, %v4572
        %v4613 = vpack.c.b16 %v4581, %v4573
        %v4614 = vpack.c.b16 %v4582, %v4574
        %v4615 = vpack.c.b16 %v4583, %v4583
        %v4616 = vpack.c.b16 %v4584, %v4584
        %v4617 = vpack.c.b16 %v4585, %v4585
        %v4618 = vpack.c.b16 %v4586, %v4586
        %v4619 = vpack.c.b16 %v4587, %v4587
        %v4620 = vpack.c.b16 %v4588, %v4588
        %v4621 = vpack.c.b16 %v4589, %v4589
        %v4622 = vpack.c.b16 %v4590, %v4590
        %vm4647 = vcmask 400384
        %v4649 = vsel %vm4647, %v4472, 0
        %vm4651 = vcmask 1040384
        %v4652 = vsel 0, 4294967295, 65535
        %v4653 = vsel %vm4651, %v4652, 0
        %v4655 = vand.u32 %v4615, %v4653
        %v4658 = vand.u32 %v4616, %v4653
        %v4661 = vand.u32 %v4617, %v4653
        %v4664 = vand.u32 %v4618, %v4653
        %v4667 = vand.u32 %v4619, %v4653
        %v4670 = vand.u32 %v4620, %v4653
        %v4673 = vand.u32 %v4621, %v4653
        %v4676 = vand.u32 %v4622, %v4653
        %4678 = vmatpush.bf16.msra.mxu0 0
        %4679 = vmatpush.bf16.msra.mxu0 0
        %4680 = vmatpush.bf16.msra.mxu0 0
        %4681 = vmatpush.bf16.msra.mxu0 0
        %4682 = vmatpush.bf16.msra.mxu0 %v4655
        %4683 = vmatpush.bf16.msra.mxu0 %v4607
        %4684 = vmatpush.bf16.msra.mxu0 %v4599
        %4685 = vmatpush.bf16.msra.mxu0 %v4591
        %4686 = vmatmul.bf16.gmra.mxu0 %v4649
        %v4687 = vpop.f32.mrf.mxu0
        %v4688 = vadd.f32 %v4505, %v4687
        %v4689 = vpop.f32.mrf.mxu0
        %4690 = vdwg.mxu0
        %4691 = vmatpush.bf16.msra.mxu0 0
        %4692 = vmatpush.bf16.msra.mxu0 0
        %4693 = vmatpush.bf16.msra.mxu0 0
        %4694 = vmatpush.bf16.msra.mxu0 0
        %4695 = vmatpush.bf16.msra.mxu0 %v4658
        %4696 = vmatpush.bf16.msra.mxu0 %v4608
        %4697 = vmatpush.bf16.msra.mxu0 %v4600
        %4698 = vmatpush.bf16.msra.mxu0 %v4592
        %4699 = vmatmul.bf16.gmra.mxu0 %v4649
        %v4700 = vpop.f32.mrf.mxu0
        %v4701 = vadd.f32 %v4505, %v4700
        %v4702 = vpop.f32.mrf.mxu0
        %4703 = vdwg.mxu0
        %4704 = vmatpush.bf16.msra.mxu0 0
        %4705 = vmatpush.bf16.msra.mxu0 0
        %4706 = vmatpush.bf16.msra.mxu0 0
        %4707 = vmatpush.bf16.msra.mxu0 0
        %4708 = vmatpush.bf16.msra.mxu0 %v4661
        %4709 = vmatpush.bf16.msra.mxu0 %v4609
        %4710 = vmatpush.bf16.msra.mxu0 %v4601
        %4711 = vmatpush.bf16.msra.mxu0 %v4593
        %4712 = vmatmul.bf16.gmra.mxu0 %v4649
        %v4713 = vpop.f32.mrf.mxu0
        %v4714 = vadd.f32 %v4505, %v4713
        %v4715 = vpop.f32.mrf.mxu0
        %4716 = vdwg.mxu0
        %4717 = vmatpush.bf16.msra.mxu0 0
        %4718 = vmatpush.bf16.msra.mxu0 0
        %4719 = vmatpush.bf16.msra.mxu0 0
        %4720 = vmatpush.bf16.msra.mxu0 0
        %4721 = vmatpush.bf16.msra.mxu0 %v4664
        %4722 = vmatpush.bf16.msra.mxu0 %v4610
        %4723 = vmatpush.bf16.msra.mxu0 %v4602
        %4724 = vmatpush.bf16.msra.mxu0 %v4594
        %4725 = vmatmul.bf16.gmra.mxu0 %v4649
        %v4726 = vpop.f32.mrf.mxu0
        %v4727 = vadd.f32 %v4505, %v4726
        %v4728 = vpop.f32.mrf.mxu0
        %4729 = vdwg.mxu0
        %4730 = vmatpush.bf16.msra.mxu0 0
        %4731 = vmatpush.bf16.msra.mxu0 0
        %4732 = vmatpush.bf16.msra.mxu0 0
        %4733 = vmatpush.bf16.msra.mxu0 0
        %4734 = vmatpush.bf16.msra.mxu0 %v4667
        %4735 = vmatpush.bf16.msra.mxu0 %v4611
        %4736 = vmatpush.bf16.msra.mxu0 %v4603
        %4737 = vmatpush.bf16.msra.mxu0 %v4595
        %4738 = vmatmul.bf16.gmra.mxu0 %v4649
        %v4739 = vpop.f32.mrf.mxu0
        %v4740 = vadd.f32 %v4505, %v4739
        %v4741 = vpop.f32.mrf.mxu0
        %4742 = vdwg.mxu0
        %4743 = vmatpush.bf16.msra.mxu0 0
        %4744 = vmatpush.bf16.msra.mxu0 0
        %4745 = vmatpush.bf16.msra.mxu0 0
        %4746 = vmatpush.bf16.msra.mxu0 0
        %4747 = vmatpush.bf16.msra.mxu0 %v4670
        %4748 = vmatpush.bf16.msra.mxu0 %v4612
        %4749 = vmatpush.bf16.msra.mxu0 %v4604
        %4750 = vmatpush.bf16.msra.mxu0 %v4596
        %4751 = vmatmul.bf16.gmra.mxu0 %v4649
        %v4752 = vpop.f32.mrf.mxu0
        %v4753 = vadd.f32 %v4505, %v4752
        %v4754 = vpop.f32.mrf.mxu0
        %4755 = vdwg.mxu0
        %4756 = vmatpush.bf16.msra.mxu0 0
        %4757 = vmatpush.bf16.msra.mxu0 0
        %4758 = vmatpush.bf16.msra.mxu0 0
        %4759 = vmatpush.bf16.msra.mxu0 0
        %4760 = vmatpush.bf16.msra.mxu0 %v4673
        %4761 = vmatpush.bf16.msra.mxu0 %v4613
        %4762 = vmatpush.bf16.msra.mxu0 %v4605
        %4763 = vmatpush.bf16.msra.mxu0 %v4597
        %4764 = vmatmul.bf16.gmra.mxu0 %v4649
        %v4765 = vpop.f32.mrf.mxu0
        %v4766 = vadd.f32 %v4505, %v4765
        %v4767 = vpop.f32.mrf.mxu0
        %4768 = vdwg.mxu0
        %4769 = vmatpush.bf16.msra.mxu0 0
        %4770 = vmatpush.bf16.msra.mxu0 0
        %4771 = vmatpush.bf16.msra.mxu0 0
        %4772 = vmatpush.bf16.msra.mxu0 0
        %4773 = vmatpush.bf16.msra.mxu0 %v4676
        %4774 = vmatpush.bf16.msra.mxu0 %v4614
        %4775 = vmatpush.bf16.msra.mxu0 %v4606
        %4776 = vmatpush.bf16.msra.mxu0 %v4598
        %4777 = vmatmul.bf16.gmra.mxu0 %v4649
        %v4778 = vpop.f32.mrf.mxu0
        %v4779 = vadd.f32 %v4505, %v4778
        %v4780 = vpop.f32.mrf.mxu0
        %4781 = vdwg.mxu0
        %4782 = vst [vmem:[#allocation4] sm:$0xff] %v4688
        %4783 = vst [vmem:[#allocation4 + $0x8] sm:$0xff] %v4701
        %4784 = vst [vmem:[#allocation4 + $0x10] sm:$0xff] %v4714
        %4785 = vst [vmem:[#allocation4 + $0x18] sm:$0xff] %v4727
        %4786 = vst [vmem:[#allocation4 + $0x20] sm:$0xff] %v4740
        %4787 = vst [vmem:[#allocation4 + $0x28] sm:$0xff] %v4753
        %4788 = vst [vmem:[#allocation4 + $0x30] sm:$0xff] %v4766
        %4789 = vst [vmem:[#allocation4 + $0x38] sm:$0xff] %v4779
        %4790 = vst [vmem:[#allocation4 + $0x40] sm:$0xff] 0.0
        %v4791 = vld [vmem:[#allocation4] sm:$0xff]
        %v4792 = vld [vmem:[#allocation4 + $0x8] sm:$0xff]
        %v4793 = vld [vmem:[#allocation4 + $0x10] sm:$0xff]
        %v4794 = vld [vmem:[#allocation4 + $0x18] sm:$0xff]
        %v4795 = vld [vmem:[#allocation4 + $0x20] sm:$0xff]
        %v4796 = vld [vmem:[#allocation4 + $0x28] sm:$0xff]
        %v4797 = vld [vmem:[#allocation4 + $0x30] sm:$0xff]
        %v4798 = vld [vmem:[#allocation4 + $0x38] sm:$0xff]
        %v4799 = vld [vmem:[#allocation4] sm:$0xff]
        %v4800 = vld [vmem:[#allocation4 + $0x8] sm:$0xff]
        %v4801 = vld [vmem:[#allocation4 + $0x10] sm:$0xff]
        %v4802 = vld [vmem:[#allocation4 + $0x18] sm:$0xff]
        %v4803 = vld [vmem:[#allocation4 + $0x20] sm:$0xff]
        %v4804 = vld [vmem:[#allocation4 + $0x28] sm:$0xff]
        %v4805 = vld [vmem:[#allocation4 + $0x30] sm:$0xff]
        %v4806 = vld [vmem:[#allocation4 + $0x38] sm:$0xff]
        %v4807 = vld [vmem:[#allocation4 + $0x40] sm:$0xff]
        %4817 = vrot.lane.b32.xlu0 %v4799, 127
        %v4818 = vpop.permute.xlu0 %4817
        %4819 = vrot.lane.b32.xlu0 %v4800, 127
        %v4820 = vpop.permute.xlu0 %4819
        %4821 = vrot.lane.b32.xlu0 %v4801, 127
        %v4822 = vpop.permute.xlu0 %4821
        %4823 = vrot.lane.b32.xlu0 %v4802, 127
        %v4824 = vpop.permute.xlu0 %4823
        %4825 = vrot.lane.b32.xlu0 %v4803, 127
        %v4826 = vpop.permute.xlu0 %4825
        %4827 = vrot.lane.b32.xlu0 %v4804, 127
        %v4828 = vpop.permute.xlu0 %4827
        %4829 = vrot.lane.b32.xlu0 %v4805, 127
        %v4830 = vpop.permute.xlu0 %4829
        %4831 = vrot.lane.b32.xlu0 %v4806, 127
        %v4832 = vpop.permute.xlu0 %4831
        %4833 = vrot.lane.b32.xlu0 %v4807, 127
        %v4834 = vpop.permute.xlu0 %4833
        %vm4835 = vcmask 1039360
        %v4836 = vsel %vm4835, %v4818, %v4820
        %v4837 = vsel %vm4835, %v4820, %v4822
        %v4838 = vsel %vm4835, %v4822, %v4824
        %v4839 = vsel %vm4835, %v4824, %v4826
        %v4840 = vsel %vm4835, %v4826, %v4828
        %v4841 = vsel %vm4835, %v4828, %v4830
        %v4842 = vsel %vm4835, %v4830, %v4832
        %v4843 = vsel %vm4835, %v4832, %v4834
        %v4852 = vmax.f32 %v4791, %v4836
        %v4853 = vmax.f32 %v4792, %v4837
        %v4854 = vmax.f32 %v4793, %v4838
        %v4855 = vmax.f32 %v4794, %v4839
        %v4856 = vmax.f32 %v4795, %v4840
        %v4857 = vmax.f32 %v4796, %v4841
        %v4858 = vmax.f32 %v4797, %v4842
        %v4859 = vmax.f32 %v4798, %v4843
        %v4861 = vmax.f32 %v4799, %v4836
        %v4862 = vmax.f32 %v4800, %v4837
        %v4863 = vmax.f32 %v4801, %v4838
        %v4864 = vmax.f32 %v4802, %v4839
        %v4865 = vmax.f32 %v4803, %v4840
        %v4866 = vmax.f32 %v4804, %v4841
        %v4867 = vmax.f32 %v4805, %v4842
        %v4868 = vmax.f32 %v4806, %v4843
        %v4869 = vmax.f32 %v4807, %v4834
        %4879 = vrot.lane.b32.xlu0 %v4861, 96
        %v4880 = vpop.permute.xlu0 %4879
        %4881 = vrot.lane.b32.xlu0 %v4862, 96
        %v4882 = vpop.permute.xlu0 %4881
        %4883 = vrot.lane.b32.xlu0 %v4863, 96
        %v4884 = vpop.permute.xlu0 %4883
        %4885 = vrot.lane.b32.xlu0 %v4864, 96
        %v4886 = vpop.permute.xlu0 %4885
        %4887 = vrot.lane.b32.xlu0 %v4865, 96
        %v4888 = vpop.permute.xlu0 %4887
        %4889 = vrot.lane.b32.xlu0 %v4866, 96
        %v4890 = vpop.permute.xlu0 %4889
        %4891 = vrot.lane.b32.xlu0 %v4867, 96
        %v4892 = vpop.permute.xlu0 %4891
        %4893 = vrot.lane.b32.xlu0 %v4868, 96
        %v4894 = vpop.permute.xlu0 %4893
        %4895 = vrot.lane.b32.xlu0 %v4869, 96
        %v4896 = vpop.permute.xlu0 %4895
        %vm4897 = vcmask 785408
        %v4898 = vsel %vm4897, %v4880, %v4882
        %v4899 = vsel %vm4897, %v4882, %v4884
        %v4900 = vsel %vm4897, %v4884, %v4886
        %v4901 = vsel %vm4897, %v4886, %v4888
        %v4902 = vsel %vm4897, %v4888, %v4890
        %v4903 = vsel %vm4897, %v4890, %v4892
        %v4904 = vsel %vm4897, %v4892, %v4894
        %v4905 = vsel %vm4897, %v4894, %v4896
        %v4914 = vmax.f32 %v4852, %v4898
        %v4915 = vmax.f32 %v4853, %v4899
        %v4916 = vmax.f32 %v4854, %v4900
        %v4917 = vmax.f32 %v4855, %v4901
        %v4918 = vmax.f32 %v4856, %v4902
        %v4919 = vmax.f32 %v4857, %v4903
        %v4920 = vmax.f32 %v4858, %v4904
        %v4921 = vmax.f32 %v4859, %v4905
        %v4922 = vmax.f32 %v4914, 0.0
        %v4923 = vmax.f32 %v4915, 0.0
        %v4924 = vmax.f32 %v4916, 0.0
        %v4925 = vmax.f32 %v4917, 0.0
        %v4926 = vmax.f32 %v4918, 0.0
        %v4927 = vmax.f32 %v4919, 0.0
        %v4928 = vmax.f32 %v4920, 0.0
        %v4929 = vmax.f32 %v4921, 0.0
        %4930 = vst [vmem:[#allocation5] sm:$0xff] %v4922
        %4931 = vst [vmem:[#allocation5 + $0x8] sm:$0xff] %v4923
        %4932 = vst [vmem:[#allocation5 + $0x10] sm:$0xff] %v4924
        %4933 = vst [vmem:[#allocation5 + $0x18] sm:$0xff] %v4925
        %4934 = vst [vmem:[#allocation5 + $0x20] sm:$0xff] %v4926
        %4935 = vst [vmem:[#allocation5 + $0x28] sm:$0xff] %v4927
        %4936 = vst [vmem:[#allocation5 + $0x30] sm:$0xff] %v4928
        %4937 = vst [vmem:[#allocation5 + $0x38] sm:$0xff] %v4929
        %4938 = vst [vmem:[#allocation5 + $0x40] sm:$0xff] 0.0
        %4939 = vst [vmem:[#allocation5 + $0x48] sm:$0xff] 0.0
        %4940 = vst [vmem:[#allocation5 + $0x50] sm:$0xff] 0.0
        %v4941 = vld [vmem:[#allocation5] sm:$0xff]
        %v4942 = vld [vmem:[#allocation5 + $0x8] sm:$0xff]
        %v4943 = vld [vmem:[#allocation5 + $0x10] sm:$0xff]
        %v4944 = vld [vmem:[#allocation5 + $0x18] sm:$0xff]
        %v4945 = vld [vmem:[#allocation5 + $0x20] sm:$0xff]
        %v4946 = vld [vmem:[#allocation5 + $0x28] sm:$0xff]
        %v4947 = vld [vmem:[#allocation5 + $0x30] sm:$0xff]
        %v4948 = vld [vmem:[#allocation5 + $0x38] sm:$0xff]
        %v4949 = vpack.c.bf16 %v4942, %v4941
        %v4950 = vpack.c.bf16 %v4944, %v4943
        %v4951 = vpack.c.bf16 %v4946, %v4945
        %v4952 = vpack.c.bf16 %v4948, %v4947
        %4953 = vst [vmem:[#allocation6] sm:$0xff] %v4949
        %4954 = vst [vmem:[#allocation6 + $0x8] sm:$0xff] %v4950
        %4955 = vst [vmem:[#allocation6 + $0x10] sm:$0xff] %v4951
        %4956 = vst [vmem:[#allocation6 + $0x18] sm:$0xff] %v4952
        %v4957 = vld [vmem:[#allocation5] sm:$0xff]
        %v4958 = vld [vmem:[#allocation5 + $0x8] sm:$0xff]
        %v4959 = vld [vmem:[#allocation5 + $0x10] sm:$0xff]
        %v4960 = vld [vmem:[#allocation5 + $0x18] sm:$0xff]
        %v4961 = vld [vmem:[#allocation5 + $0x20] sm:$0xff]
        %v4962 = vld [vmem:[#allocation5 + $0x28] sm:$0xff]
        %v4963 = vld [vmem:[#allocation5 + $0x30] sm:$0xff]
        %v4964 = vld [vmem:[#allocation5 + $0x38] sm:$0xff]
        %v4965 = vld [vmem:[#allocation5 + $0x40] sm:$0xff]
        %v4966 = vpack.c.bf16 %v4958, %v4957
        %v4967 = vpack.c.bf16 %v4960, %v4959
        %v4968 = vpack.c.bf16 %v4962, %v4961
        %v4969 = vpack.c.bf16 %v4964, %v4963
        %v4970 = vpack.c.bf16 %v4965, %v4965
        %4976 = vrot.lane.b32.xlu0 %v4966, 126
        %v4977 = vpop.permute.xlu0 %4976
        %4978 = vrot.lane.b32.xlu0 %v4967, 126
        %v4979 = vpop.permute.xlu0 %4978
        %4980 = vrot.lane.b32.xlu0 %v4968, 126
        %v4981 = vpop.permute.xlu0 %4980
        %4982 = vrot.lane.b32.xlu0 %v4969, 126
        %v4983 = vpop.permute.xlu0 %4982
        %4984 = vrot.lane.b32.xlu0 %v4970, 126
        %v4985 = vpop.permute.xlu0 %4984
        %v4986 = vrot.slane %v4977, 4
        %v4987 = vrot.slane %v4979, 4
        %v4988 = vrot.slane %v4981, 4
        %v4989 = vrot.slane %v4983, 4
        %v4990 = vrot.slane %v4985, 4
        %v4991 = vsel %vm662, %v4986, %v4987
        %v4992 = vsel %vm746, %v4977, %v4991
        %v4993 = vsel %vm662, %v4987, %v4988
        %v4994 = vsel %vm746, %v4979, %v4993
        %v4995 = vsel %vm662, %v4988, %v4989
        %v4996 = vsel %vm746, %v4981, %v4995
        %v4997 = vsel %vm662, %v4989, %v4990
        %v4998 = vsel %vm746, %v4983, %v4997
        %5003 = vst [vmem:[#allocation6 + $0x20] sm:$0xff] %v4992
        %5004 = vst [vmem:[#allocation6 + $0x28] sm:$0xff] %v4994
        %5005 = vst [vmem:[#allocation6 + $0x30] sm:$0xff] %v4996
        %5006 = vst [vmem:[#allocation6 + $0x38] sm:$0xff] %v4998
        %v5007 = vld [vmem:[#allocation5] sm:$0xff]
        %v5008 = vld [vmem:[#allocation5 + $0x8] sm:$0xff]
        %v5009 = vld [vmem:[#allocation5 + $0x10] sm:$0xff]
        %v5010 = vld [vmem:[#allocation5 + $0x18] sm:$0xff]
        %v5011 = vld [vmem:[#allocation5 + $0x20] sm:$0xff]
        %v5012 = vld [vmem:[#allocation5 + $0x28] sm:$0xff]
        %v5013 = vld [vmem:[#allocation5 + $0x30] sm:$0xff]
        %v5014 = vld [vmem:[#allocation5 + $0x38] sm:$0xff]
        %v5015 = vld [vmem:[#allocation5 + $0x40] sm:$0xff]
        %v5016 = vpack.c.bf16 %v5008, %v5007
        %v5017 = vpack.c.bf16 %v5010, %v5009
        %v5018 = vpack.c.bf16 %v5012, %v5011
        %v5019 = vpack.c.bf16 %v5014, %v5013
        %v5020 = vpack.c.bf16 %v5015, %v5015
        %5026 = vrot.lane.b32.xlu0 %v5016, 124
        %v5027 = vpop.permute.xlu0 %5026
        %5028 = vrot.lane.b32.xlu0 %v5017, 124
        %v5029 = vpop.permute.xlu0 %5028
        %5030 = vrot.lane.b32.xlu0 %v5018, 124
        %v5031 = vpop.permute.xlu0 %5030
        %5032 = vrot.lane.b32.xlu0 %v5019, 124
        %v5033 = vpop.permute.xlu0 %5032
        %5034 = vrot.lane.b32.xlu0 %v5020, 124
        %v5035 = vpop.permute.xlu0 %5034
        %v5036 = vrot.slane %v5027, 4
        %v5037 = vrot.slane %v5029, 4
        %v5038 = vrot.slane %v5031, 4
        %v5039 = vrot.slane %v5033, 4
        %v5040 = vrot.slane %v5035, 4
        %v5041 = vsel %vm662, %v5036, %v5037
        %v5042 = vsel %vm922, %v5027, %v5041
        %v5043 = vsel %vm662, %v5037, %v5038
        %v5044 = vsel %vm922, %v5029, %v5043
        %v5045 = vsel %vm662, %v5038, %v5039
        %v5046 = vsel %vm922, %v5031, %v5045
        %v5047 = vsel %vm662, %v5039, %v5040
        %v5048 = vsel %vm922, %v5033, %v5047
        %5053 = vst [vmem:[#allocation6 + $0x40] sm:$0xff] %v5042
        %5054 = vst [vmem:[#allocation6 + $0x48] sm:$0xff] %v5044
        %5055 = vst [vmem:[#allocation6 + $0x50] sm:$0xff] %v5046
        %5056 = vst [vmem:[#allocation6 + $0x58] sm:$0xff] %v5048
        %v5057 = vld [vmem:[#allocation5] sm:$0xff]
        %v5058 = vld [vmem:[#allocation5 + $0x8] sm:$0xff]
        %v5059 = vld [vmem:[#allocation5 + $0x10] sm:$0xff]
        %v5060 = vld [vmem:[#allocation5 + $0x18] sm:$0xff]
        %v5061 = vld [vmem:[#allocation5 + $0x20] sm:$0xff]
        %v5062 = vld [vmem:[#allocation5 + $0x28] sm:$0xff]
        %v5063 = vld [vmem:[#allocation5 + $0x30] sm:$0xff]
        %v5064 = vld [vmem:[#allocation5 + $0x38] sm:$0xff]
        %v5065 = vld [vmem:[#allocation5 + $0x40] sm:$0xff]
        %v5066 = vpack.c.bf16 %v5058, %v5057
        %v5067 = vpack.c.bf16 %v5060, %v5059
        %v5068 = vpack.c.bf16 %v5062, %v5061
        %v5069 = vpack.c.bf16 %v5064, %v5063
        %v5070 = vpack.c.bf16 %v5065, %v5065
        %5076 = vrot.lane.b32.xlu0 %v5066, 122
        %v5077 = vpop.permute.xlu0 %5076
        %5078 = vrot.lane.b32.xlu0 %v5067, 122
        %v5079 = vpop.permute.xlu0 %5078
        %5080 = vrot.lane.b32.xlu0 %v5068, 122
        %v5081 = vpop.permute.xlu0 %5080
        %5082 = vrot.lane.b32.xlu0 %v5069, 122
        %v5083 = vpop.permute.xlu0 %5082
        %5084 = vrot.lane.b32.xlu0 %v5070, 122
        %v5085 = vpop.permute.xlu0 %5084
        %v5086 = vrot.slane %v5077, 4
        %v5087 = vrot.slane %v5079, 4
        %v5088 = vrot.slane %v5081, 4
        %v5089 = vrot.slane %v5083, 4
        %v5090 = vrot.slane %v5085, 4
        %v5091 = vsel %vm662, %v5086, %v5087
        %v5092 = vsel %vm1098, %v5077, %v5091
        %v5093 = vsel %vm662, %v5087, %v5088
        %v5094 = vsel %vm1098, %v5079, %v5093
        %v5095 = vsel %vm662, %v5088, %v5089
        %v5096 = vsel %vm1098, %v5081, %v5095
        %v5097 = vsel %vm662, %v5089, %v5090
        %v5098 = vsel %vm1098, %v5083, %v5097
        %5103 = vst [vmem:[#allocation6 + $0x60] sm:$0xff] %v5092
        %5104 = vst [vmem:[#allocation6 + $0x68] sm:$0xff] %v5094
        %5105 = vst [vmem:[#allocation6 + $0x70] sm:$0xff] %v5096
        %5106 = vst [vmem:[#allocation6 + $0x78] sm:$0xff] %v5098
        %v5107 = vld [vmem:[#allocation5] sm:$0xff]
        %v5108 = vld [vmem:[#allocation5 + $0x8] sm:$0xff]
        %v5109 = vld [vmem:[#allocation5 + $0x10] sm:$0xff]
        %v5110 = vld [vmem:[#allocation5 + $0x18] sm:$0xff]
        %v5111 = vld [vmem:[#allocation5 + $0x20] sm:$0xff]
        %v5112 = vld [vmem:[#allocation5 + $0x28] sm:$0xff]
        %v5113 = vld [vmem:[#allocation5 + $0x30] sm:$0xff]
        %v5114 = vld [vmem:[#allocation5 + $0x38] sm:$0xff]
        %v5115 = vld [vmem:[#allocation5 + $0x40] sm:$0xff]
        %v5116 = vpack.c.bf16 %v5108, %v5107
        %v5117 = vpack.c.bf16 %v5110, %v5109
        %v5118 = vpack.c.bf16 %v5112, %v5111
        %v5119 = vpack.c.bf16 %v5114, %v5113
        %v5120 = vpack.c.bf16 %v5115, %v5115
        %5126 = vrot.lane.b32.xlu0 %v5116, 120
        %v5127 = vpop.permute.xlu0 %5126
        %5128 = vrot.lane.b32.xlu0 %v5117, 120
        %v5129 = vpop.permute.xlu0 %5128
        %5130 = vrot.lane.b32.xlu0 %v5118, 120
        %v5131 = vpop.permute.xlu0 %5130
        %5132 = vrot.lane.b32.xlu0 %v5119, 120
        %v5133 = vpop.permute.xlu0 %5132
        %5134 = vrot.lane.b32.xlu0 %v5120, 120
        %v5135 = vpop.permute.xlu0 %5134
        %v5136 = vrot.slane %v5127, 4
        %v5137 = vrot.slane %v5129, 4
        %v5138 = vrot.slane %v5131, 4
        %v5139 = vrot.slane %v5133, 4
        %v5140 = vrot.slane %v5135, 4
        %v5141 = vsel %vm662, %v5136, %v5137
        %vm5142 = vcmask 982016
        %v5143 = vsel %vm5142, %v5127, %v5141
        %v5144 = vsel %vm662, %v5137, %v5138
        %v5145 = vsel %vm5142, %v5129, %v5144
        %v5146 = vsel %vm662, %v5138, %v5139
        %v5147 = vsel %vm5142, %v5131, %v5146
        %v5148 = vsel %vm662, %v5139, %v5140
        %v5149 = vsel %vm5142, %v5133, %v5148
        %5154 = vst [vmem:[#allocation6 + $0x80] sm:$0xff] %v5143
        %5155 = vst [vmem:[#allocation6 + $0x88] sm:$0xff] %v5145
        %5156 = vst [vmem:[#allocation6 + $0x90] sm:$0xff] %v5147
        %5157 = vst [vmem:[#allocation6 + $0x98] sm:$0xff] %v5149
        %v5158 = vld [vmem:[#allocation5] sm:$0xff]
        %v5159 = vld [vmem:[#allocation5 + $0x8] sm:$0xff]
        %v5160 = vld [vmem:[#allocation5 + $0x10] sm:$0xff]
        %v5161 = vld [vmem:[#allocation5 + $0x18] sm:$0xff]
        %v5162 = vld [vmem:[#allocation5 + $0x20] sm:$0xff]
        %v5163 = vld [vmem:[#allocation5 + $0x28] sm:$0xff]
        %v5164 = vld [vmem:[#allocation5 + $0x30] sm:$0xff]
        %v5165 = vld [vmem:[#allocation5 + $0x38] sm:$0xff]
        %v5166 = vld [vmem:[#allocation5 + $0x40] sm:$0xff]
        %v5167 = vpack.c.bf16 %v5159, %v5158
        %v5168 = vpack.c.bf16 %v5161, %v5160
        %v5169 = vpack.c.bf16 %v5163, %v5162
        %v5170 = vpack.c.bf16 %v5165, %v5164
        %v5171 = vpack.c.bf16 %v5166, %v5166
        %5177 = vrot.lane.b32.xlu0 %v5167, 64
        %v5178 = vpop.permute.xlu0 %5177
        %5179 = vrot.lane.b32.xlu0 %v5168, 64
        %v5180 = vpop.permute.xlu0 %5179
        %5181 = vrot.lane.b32.xlu0 %v5169, 64
        %v5182 = vpop.permute.xlu0 %5181
        %5183 = vrot.lane.b32.xlu0 %v5170, 64
        %v5184 = vpop.permute.xlu0 %5183
        %5185 = vrot.lane.b32.xlu0 %v5171, 64
        %v5186 = vpop.permute.xlu0 %5185
        %v5187 = vrot.slane %v5178, 4
        %v5188 = vrot.slane %v5180, 4
        %v5189 = vrot.slane %v5182, 4
        %v5190 = vrot.slane %v5184, 4
        %v5191 = vrot.slane %v5186, 4
        %v5192 = vsel %vm662, %v5187, %v5188
        %v5193 = vsel %vm1756, %v5178, %v5192
        %v5194 = vsel %vm662, %v5188, %v5189
        %v5195 = vsel %vm1756, %v5180, %v5194
        %v5196 = vsel %vm662, %v5189, %v5190
        %v5197 = vsel %vm1756, %v5182, %v5196
        %v5198 = vsel %vm662, %v5190, %v5191
        %v5199 = vsel %vm1756, %v5184, %v5198
        %5204 = vst [vmem:[#allocation6 + $0xa0] sm:$0xff] %v5193
        %5205 = vst [vmem:[#allocation6 + $0xa8] sm:$0xff] %v5195
        %5206 = vst [vmem:[#allocation6 + $0xb0] sm:$0xff] %v5197
        %5207 = vst [vmem:[#allocation6 + $0xb8] sm:$0xff] %v5199
        %v5208 = vld [vmem:[#allocation5] sm:$0xff]
        %v5209 = vld [vmem:[#allocation5 + $0x8] sm:$0xff]
        %v5210 = vld [vmem:[#allocation5 + $0x10] sm:$0xff]
        %v5211 = vld [vmem:[#allocation5 + $0x18] sm:$0xff]
        %v5212 = vld [vmem:[#allocation5 + $0x20] sm:$0xff]
        %v5213 = vld [vmem:[#allocation5 + $0x28] sm:$0xff]
        %v5214 = vld [vmem:[#allocation5 + $0x30] sm:$0xff]
        %v5215 = vld [vmem:[#allocation5 + $0x38] sm:$0xff]
        %v5216 = vld [vmem:[#allocation5 + $0x40] sm:$0xff]
        %v5217 = vpack.c.bf16 %v5209, %v5208
        %v5218 = vpack.c.bf16 %v5211, %v5210
        %v5219 = vpack.c.bf16 %v5213, %v5212
        %v5220 = vpack.c.bf16 %v5215, %v5214
        %v5221 = vpack.c.bf16 %v5216, %v5216
        %5227 = vrot.lane.b32.xlu0 %v5217, 62
        %v5228 = vpop.permute.xlu0 %5227
        %5229 = vrot.lane.b32.xlu0 %v5218, 62
        %v5230 = vpop.permute.xlu0 %5229
        %5231 = vrot.lane.b32.xlu0 %v5219, 62
        %v5232 = vpop.permute.xlu0 %5231
        %5233 = vrot.lane.b32.xlu0 %v5220, 62
        %v5234 = vpop.permute.xlu0 %5233
        %5235 = vrot.lane.b32.xlu0 %v5221, 62
        %v5236 = vpop.permute.xlu0 %5235
        %v5237 = vrot.slane %v5228, 4
        %v5238 = vrot.slane %v5230, 4
        %v5239 = vrot.slane %v5232, 4
        %v5240 = vrot.slane %v5234, 4
        %v5241 = vrot.slane %v5236, 4
        %v5242 = vsel %vm662, %v5237, %v5238
        %v5243 = vsel %vm1915, %v5228, %v5242
        %v5244 = vsel %vm662, %v5238, %v5239
        %v5245 = vsel %vm1915, %v5230, %v5244
        %v5246 = vsel %vm662, %v5239, %v5240
        %v5247 = vsel %vm1915, %v5232, %v5246
        %v5248 = vsel %vm662, %v5240, %v5241
        %v5249 = vsel %vm1915, %v5234, %v5248
        %5254 = vst [vmem:[#allocation6 + $0xc0] sm:$0xff] %v5243
        %5255 = vst [vmem:[#allocation6 + $0xc8] sm:$0xff] %v5245
        %5256 = vst [vmem:[#allocation6 + $0xd0] sm:$0xff] %v5247
        %5257 = vst [vmem:[#allocation6 + $0xd8] sm:$0xff] %v5249
        %v5258 = vld [vmem:[#allocation5] sm:$0xff]
        %v5259 = vld [vmem:[#allocation5 + $0x8] sm:$0xff]
        %v5260 = vld [vmem:[#allocation5 + $0x10] sm:$0xff]
        %v5261 = vld [vmem:[#allocation5 + $0x18] sm:$0xff]
        %v5262 = vld [vmem:[#allocation5 + $0x20] sm:$0xff]
        %v5263 = vld [vmem:[#allocation5 + $0x28] sm:$0xff]
        %v5264 = vld [vmem:[#allocation5 + $0x30] sm:$0xff]
        %v5265 = vld [vmem:[#allocation5 + $0x38] sm:$0xff]
        %v5266 = vld [vmem:[#allocation5 + $0x40] sm:$0xff]
        %v5267 = vpack.c.bf16 %v5259, %v5258
        %v5268 = vpack.c.bf16 %v5261, %v5260
        %v5269 = vpack.c.bf16 %v5263, %v5262
        %v5270 = vpack.c.bf16 %v5265, %v5264
        %v5271 = vpack.c.bf16 %v5266, %v5266
        %5277 = vrot.lane.b32.xlu0 %v5267, 60
        %v5278 = vpop.permute.xlu0 %5277
        %5279 = vrot.lane.b32.xlu0 %v5268, 60
        %v5280 = vpop.permute.xlu0 %5279
        %5281 = vrot.lane.b32.xlu0 %v5269, 60
        %v5282 = vpop.permute.xlu0 %5281
        %5283 = vrot.lane.b32.xlu0 %v5270, 60
        %v5284 = vpop.permute.xlu0 %5283
        %5285 = vrot.lane.b32.xlu0 %v5271, 60
        %v5286 = vpop.permute.xlu0 %5285
        %v5287 = vrot.slane %v5278, 4
        %v5288 = vrot.slane %v5280, 4
        %v5289 = vrot.slane %v5282, 4
        %v5290 = vrot.slane %v5284, 4
        %v5291 = vrot.slane %v5286, 4
        %v5292 = vsel %vm662, %v5287, %v5288
        %v5293 = vsel %vm2074, %v5278, %v5292
        %v5294 = vsel %vm662, %v5288, %v5289
        %v5295 = vsel %vm2074, %v5280, %v5294
        %v5296 = vsel %vm662, %v5289, %v5290
        %v5297 = vsel %vm2074, %v5282, %v5296
        %v5298 = vsel %vm662, %v5290, %v5291
        %v5299 = vsel %vm2074, %v5284, %v5298
        %5304 = vst [vmem:[#allocation6 + $0xe0] sm:$0xff] %v5293
        %5305 = vst [vmem:[#allocation6 + $0xe8] sm:$0xff] %v5295
        %5306 = vst [vmem:[#allocation6 + $0xf0] sm:$0xff] %v5297
        %5307 = vst [vmem:[#allocation6 + $0xf8] sm:$0xff] %v5299
        %v5308 = vld [vmem:[#allocation5] sm:$0xff]
        %v5309 = vld [vmem:[#allocation5 + $0x8] sm:$0xff]
        %v5310 = vld [vmem:[#allocation5 + $0x10] sm:$0xff]
        %v5311 = vld [vmem:[#allocation5 + $0x18] sm:$0xff]
        %v5312 = vld [vmem:[#allocation5 + $0x20] sm:$0xff]
        %v5313 = vld [vmem:[#allocation5 + $0x28] sm:$0xff]
        %v5314 = vld [vmem:[#allocation5 + $0x30] sm:$0xff]
        %v5315 = vld [vmem:[#allocation5 + $0x38] sm:$0xff]
        %v5316 = vld [vmem:[#allocation5 + $0x40] sm:$0xff]
        %v5317 = vpack.c.bf16 %v5309, %v5308
        %v5318 = vpack.c.bf16 %v5311, %v5310
        %v5319 = vpack.c.bf16 %v5313, %v5312
        %v5320 = vpack.c.bf16 %v5315, %v5314
        %v5321 = vpack.c.bf16 %v5316, %v5316
        %5327 = vrot.lane.b32.xlu0 %v5317, 58
        %v5328 = vpop.permute.xlu0 %5327
        %5329 = vrot.lane.b32.xlu0 %v5318, 58
        %v5330 = vpop.permute.xlu0 %5329
        %5331 = vrot.lane.b32.xlu0 %v5319, 58
        %v5332 = vpop.permute.xlu0 %5331
        %5333 = vrot.lane.b32.xlu0 %v5320, 58
        %v5334 = vpop.permute.xlu0 %5333
        %5335 = vrot.lane.b32.xlu0 %v5321, 58
        %v5336 = vpop.permute.xlu0 %5335
        %v5337 = vrot.slane %v5328, 4
        %v5338 = vrot.slane %v5330, 4
        %v5339 = vrot.slane %v5332, 4
        %v5340 = vrot.slane %v5334, 4
        %v5341 = vrot.slane %v5336, 4
        %v5342 = vsel %vm662, %v5337, %v5338
        %v5343 = vsel %vm2238, %v5328, %v5342
        %v5344 = vsel %vm662, %v5338, %v5339
        %v5345 = vsel %vm2238, %v5330, %v5344
        %v5346 = vsel %vm662, %v5339, %v5340
        %v5347 = vsel %vm2238, %v5332, %v5346
        %v5348 = vsel %vm662, %v5340, %v5341
        %v5349 = vsel %vm2238, %v5334, %v5348
        %5354 = vst [vmem:[#allocation6 + $0x100] sm:$0xff] %v5343
        %5355 = vst [vmem:[#allocation6 + $0x108] sm:$0xff] %v5345
        %5356 = vst [vmem:[#allocation6 + $0x110] sm:$0xff] %v5347
        %5357 = vst [vmem:[#allocation6 + $0x118] sm:$0xff] %v5349
        %v5358 = vld [vmem:[#allocation5] sm:$0xff]
        %v5359 = vld [vmem:[#allocation5 + $0x8] sm:$0xff]
        %v5360 = vld [vmem:[#allocation5 + $0x10] sm:$0xff]
        %v5361 = vld [vmem:[#allocation5 + $0x18] sm:$0xff]
        %v5362 = vld [vmem:[#allocation5 + $0x20] sm:$0xff]
        %v5363 = vld [vmem:[#allocation5 + $0x28] sm:$0xff]
        %v5364 = vld [vmem:[#allocation5 + $0x30] sm:$0xff]
        %v5365 = vld [vmem:[#allocation5 + $0x38] sm:$0xff]
        %v5366 = vld [vmem:[#allocation5 + $0x40] sm:$0xff]
        %v5367 = vpack.c.bf16 %v5359, %v5358
        %v5368 = vpack.c.bf16 %v5361, %v5360
        %v5369 = vpack.c.bf16 %v5363, %v5362
        %v5370 = vpack.c.bf16 %v5365, %v5364
        %v5371 = vpack.c.bf16 %v5366, %v5366
        %5377 = vrot.lane.b32.xlu0 %v5367, 56
        %v5378 = vpop.permute.xlu0 %5377
        %5379 = vrot.lane.b32.xlu0 %v5368, 56
        %v5380 = vpop.permute.xlu0 %5379
        %5381 = vrot.lane.b32.xlu0 %v5369, 56
        %v5382 = vpop.permute.xlu0 %5381
        %5383 = vrot.lane.b32.xlu0 %v5370, 56
        %v5384 = vpop.permute.xlu0 %5383
        %5385 = vrot.lane.b32.xlu0 %v5371, 56
        %v5386 = vpop.permute.xlu0 %5385
        %v5387 = vrot.slane %v5378, 4
        %v5388 = vrot.slane %v5380, 4
        %v5389 = vrot.slane %v5382, 4
        %v5390 = vrot.slane %v5384, 4
        %v5391 = vrot.slane %v5386, 4
        %v5392 = vsel %vm662, %v5387, %v5388
        %vm5393 = vcmask 457728
        %v5394 = vsel %vm5393, %v5378, %v5392
        %v5395 = vsel %vm662, %v5388, %v5389
        %v5396 = vsel %vm5393, %v5380, %v5395
        %v5397 = vsel %vm662, %v5389, %v5390
        %v5398 = vsel %vm5393, %v5382, %v5397
        %v5399 = vsel %vm662, %v5390, %v5391
        %v5400 = vsel %vm5393, %v5384, %v5399
        %5405 = vst [vmem:[#allocation6 + $0x120] sm:$0xff] %v5394
        %5406 = vst [vmem:[#allocation6 + $0x128] sm:$0xff] %v5396
        %5407 = vst [vmem:[#allocation6 + $0x130] sm:$0xff] %v5398
        %5408 = vst [vmem:[#allocation6 + $0x138] sm:$0xff] %v5400
        %v5409 = vld [vmem:[#allocation5 + $0x8] sm:$0xff]
        %v5410 = vld [vmem:[#allocation5 + $0x10] sm:$0xff]
        %v5411 = vld [vmem:[#allocation5 + $0x18] sm:$0xff]
        %v5412 = vld [vmem:[#allocation5 + $0x20] sm:$0xff]
        %v5413 = vld [vmem:[#allocation5 + $0x28] sm:$0xff]
        %v5414 = vld [vmem:[#allocation5 + $0x30] sm:$0xff]
        %v5415 = vld [vmem:[#allocation5 + $0x38] sm:$0xff]
        %v5416 = vld [vmem:[#allocation5 + $0x40] sm:$0xff]
        %v5417 = vpack.c.bf16 %v5410, %v5409
        %v5418 = vpack.c.bf16 %v5412, %v5411
        %v5419 = vpack.c.bf16 %v5414, %v5413
        %v5420 = vpack.c.bf16 %v5416, %v5415
        %5421 = vst [vmem:[#allocation6 + $0x140] sm:$0xff] %v5417
        %5422 = vst [vmem:[#allocation6 + $0x148] sm:$0xff] %v5418
        %5423 = vst [vmem:[#allocation6 + $0x150] sm:$0xff] %v5419
        %5424 = vst [vmem:[#allocation6 + $0x158] sm:$0xff] %v5420
        %v5425 = vld [vmem:[#allocation5 + $0x8] sm:$0xff]
        %v5426 = vld [vmem:[#allocation5 + $0x10] sm:$0xff]
        %v5427 = vld [vmem:[#allocation5 + $0x18] sm:$0xff]
        %v5428 = vld [vmem:[#allocation5 + $0x20] sm:$0xff]
        %v5429 = vld [vmem:[#allocation5 + $0x28] sm:$0xff]
        %v5430 = vld [vmem:[#allocation5 + $0x30] sm:$0xff]
        %v5431 = vld [vmem:[#allocation5 + $0x38] sm:$0xff]
        %v5432 = vld [vmem:[#allocation5 + $0x40] sm:$0xff]
        %v5433 = vld [vmem:[#allocation5 + $0x48] sm:$0xff]
        %v5434 = vpack.c.bf16 %v5426, %v5425
        %v5435 = vpack.c.bf16 %v5428, %v5427
        %v5436 = vpack.c.bf16 %v5430, %v5429
        %v5437 = vpack.c.bf16 %v5432, %v5431
        %v5438 = vpack.c.bf16 %v5433, %v5433
        %5444 = vrot.lane.b32.xlu0 %v5434, 126
        %v5445 = vpop.permute.xlu0 %5444
        %5446 = vrot.lane.b32.xlu0 %v5435, 126
        %v5447 = vpop.permute.xlu0 %5446
        %5448 = vrot.lane.b32.xlu0 %v5436, 126
        %v5449 = vpop.permute.xlu0 %5448
        %5450 = vrot.lane.b32.xlu0 %v5437, 126
        %v5451 = vpop.permute.xlu0 %5450
        %5452 = vrot.lane.b32.xlu0 %v5438, 126
        %v5453 = vpop.permute.xlu0 %5452
        %v5454 = vrot.slane %v5445, 4
        %v5455 = vrot.slane %v5447, 4
        %v5456 = vrot.slane %v5449, 4
        %v5457 = vrot.slane %v5451, 4
        %v5458 = vrot.slane %v5453, 4
        %v5459 = vsel %vm662, %v5454, %v5455
        %v5460 = vsel %vm746, %v5445, %v5459
        %v5461 = vsel %vm662, %v5455, %v5456
        %v5462 = vsel %vm746, %v5447, %v5461
        %v5463 = vsel %vm662, %v5456, %v5457
        %v5464 = vsel %vm746, %v5449, %v5463
        %v5465 = vsel %vm662, %v5457, %v5458
        %v5466 = vsel %vm746, %v5451, %v5465
        %5471 = vst [vmem:[#allocation6 + $0x160] sm:$0xff] %v5460
        %5472 = vst [vmem:[#allocation6 + $0x168] sm:$0xff] %v5462
        %5473 = vst [vmem:[#allocation6 + $0x170] sm:$0xff] %v5464
        %5474 = vst [vmem:[#allocation6 + $0x178] sm:$0xff] %v5466
        %v5475 = vld [vmem:[#allocation5 + $0x8] sm:$0xff]
        %v5476 = vld [vmem:[#allocation5 + $0x10] sm:$0xff]
        %v5477 = vld [vmem:[#allocation5 + $0x18] sm:$0xff]
        %v5478 = vld [vmem:[#allocation5 + $0x20] sm:$0xff]
        %v5479 = vld [vmem:[#allocation5 + $0x28] sm:$0xff]
        %v5480 = vld [vmem:[#allocation5 + $0x30] sm:$0xff]
        %v5481 = vld [vmem:[#allocation5 + $0x38] sm:$0xff]
        %v5482 = vld [vmem:[#allocation5 + $0x40] sm:$0xff]
        %v5483 = vld [vmem:[#allocation5 + $0x48] sm:$0xff]
        %v5484 = vpack.c.bf16 %v5476, %v5475
        %v5485 = vpack.c.bf16 %v5478, %v5477
        %v5486 = vpack.c.bf16 %v5480, %v5479
        %v5487 = vpack.c.bf16 %v5482, %v5481
        %v5488 = vpack.c.bf16 %v5483, %v5483
        %5494 = vrot.lane.b32.xlu0 %v5484, 124
        %v5495 = vpop.permute.xlu0 %5494
        %5496 = vrot.lane.b32.xlu0 %v5485, 124
        %v5497 = vpop.permute.xlu0 %5496
        %5498 = vrot.lane.b32.xlu0 %v5486, 124
        %v5499 = vpop.permute.xlu0 %5498
        %5500 = vrot.lane.b32.xlu0 %v5487, 124
        %v5501 = vpop.permute.xlu0 %5500
        %5502 = vrot.lane.b32.xlu0 %v5488, 124
        %v5503 = vpop.permute.xlu0 %5502
        %v5504 = vrot.slane %v5495, 4
        %v5505 = vrot.slane %v5497, 4
        %v5506 = vrot.slane %v5499, 4
        %v5507 = vrot.slane %v5501, 4
        %v5508 = vrot.slane %v5503, 4
        %v5509 = vsel %vm662, %v5504, %v5505
        %v5510 = vsel %vm922, %v5495, %v5509
        %v5511 = vsel %vm662, %v5505, %v5506
        %v5512 = vsel %vm922, %v5497, %v5511
        %v5513 = vsel %vm662, %v5506, %v5507
        %v5514 = vsel %vm922, %v5499, %v5513
        %v5515 = vsel %vm662, %v5507, %v5508
        %v5516 = vsel %vm922, %v5501, %v5515
        %5521 = vst [vmem:[#allocation6 + $0x180] sm:$0xff] %v5510
        %5522 = vst [vmem:[#allocation6 + $0x188] sm:$0xff] %v5512
        %5523 = vst [vmem:[#allocation6 + $0x190] sm:$0xff] %v5514
        %5524 = vst [vmem:[#allocation6 + $0x198] sm:$0xff] %v5516
        %v5525 = vld [vmem:[#allocation5 + $0x8] sm:$0xff]
        %v5526 = vld [vmem:[#allocation5 + $0x10] sm:$0xff]
        %v5527 = vld [vmem:[#allocation5 + $0x18] sm:$0xff]
        %v5528 = vld [vmem:[#allocation5 + $0x20] sm:$0xff]
        %v5529 = vld [vmem:[#allocation5 + $0x28] sm:$0xff]
        %v5530 = vld [vmem:[#allocation5 + $0x30] sm:$0xff]
        %v5531 = vld [vmem:[#allocation5 + $0x38] sm:$0xff]
        %v5532 = vld [vmem:[#allocation5 + $0x40] sm:$0xff]
        %v5533 = vld [vmem:[#allocation5 + $0x48] sm:$0xff]
        %v5534 = vpack.c.bf16 %v5526, %v5525
        %v5535 = vpack.c.bf16 %v5528, %v5527
        %v5536 = vpack.c.bf16 %v5530, %v5529
        %v5537 = vpack.c.bf16 %v5532, %v5531
        %v5538 = vpack.c.bf16 %v5533, %v5533
        %5544 = vrot.lane.b32.xlu0 %v5534, 122
        %v5545 = vpop.permute.xlu0 %5544
        %5546 = vrot.lane.b32.xlu0 %v5535, 122
        %v5547 = vpop.permute.xlu0 %5546
        %5548 = vrot.lane.b32.xlu0 %v5536, 122
        %v5549 = vpop.permute.xlu0 %5548
        %5550 = vrot.lane.b32.xlu0 %v5537, 122
        %v5551 = vpop.permute.xlu0 %5550
        %5552 = vrot.lane.b32.xlu0 %v5538, 122
        %v5553 = vpop.permute.xlu0 %5552
        %v5554 = vrot.slane %v5545, 4
        %v5555 = vrot.slane %v5547, 4
        %v5556 = vrot.slane %v5549, 4
        %v5557 = vrot.slane %v5551, 4
        %v5558 = vrot.slane %v5553, 4
        %v5559 = vsel %vm662, %v5554, %v5555
        %v5560 = vsel %vm1098, %v5545, %v5559
        %v5561 = vsel %vm662, %v5555, %v5556
        %v5562 = vsel %vm1098, %v5547, %v5561
        %v5563 = vsel %vm662, %v5556, %v5557
        %v5564 = vsel %vm1098, %v5549, %v5563
        %v5565 = vsel %vm662, %v5557, %v5558
        %v5566 = vsel %vm1098, %v5551, %v5565
        %5571 = vst [vmem:[#allocation6 + $0x1a0] sm:$0xff] %v5560
        %5572 = vst [vmem:[#allocation6 + $0x1a8] sm:$0xff] %v5562
        %5573 = vst [vmem:[#allocation6 + $0x1b0] sm:$0xff] %v5564
        %5574 = vst [vmem:[#allocation6 + $0x1b8] sm:$0xff] %v5566
        %v5575 = vld [vmem:[#allocation5 + $0x8] sm:$0xff]
        %v5576 = vld [vmem:[#allocation5 + $0x10] sm:$0xff]
        %v5577 = vld [vmem:[#allocation5 + $0x18] sm:$0xff]
        %v5578 = vld [vmem:[#allocation5 + $0x20] sm:$0xff]
        %v5579 = vld [vmem:[#allocation5 + $0x28] sm:$0xff]
        %v5580 = vld [vmem:[#allocation5 + $0x30] sm:$0xff]
        %v5581 = vld [vmem:[#allocation5 + $0x38] sm:$0xff]
        %v5582 = vld [vmem:[#allocation5 + $0x40] sm:$0xff]
        %v5583 = vld [vmem:[#allocation5 + $0x48] sm:$0xff]
        %v5584 = vpack.c.bf16 %v5576, %v5575
        %v5585 = vpack.c.bf16 %v5578, %v5577
        %v5586 = vpack.c.bf16 %v5580, %v5579
        %v5587 = vpack.c.bf16 %v5582, %v5581
        %v5588 = vpack.c.bf16 %v5583, %v5583
        %5594 = vrot.lane.b32.xlu0 %v5584, 120
        %v5595 = vpop.permute.xlu0 %5594
        %5596 = vrot.lane.b32.xlu0 %v5585, 120
        %v5597 = vpop.permute.xlu0 %5596
        %5598 = vrot.lane.b32.xlu0 %v5586, 120
        %v5599 = vpop.permute.xlu0 %5598
        %5600 = vrot.lane.b32.xlu0 %v5587, 120
        %v5601 = vpop.permute.xlu0 %5600
        %5602 = vrot.lane.b32.xlu0 %v5588, 120
        %v5603 = vpop.permute.xlu0 %5602
        %v5604 = vrot.slane %v5595, 4
        %v5605 = vrot.slane %v5597, 4
        %v5606 = vrot.slane %v5599, 4
        %v5607 = vrot.slane %v5601, 4
        %v5608 = vrot.slane %v5603, 4
        %v5609 = vsel %vm662, %v5604, %v5605
        %v5610 = vsel %vm5142, %v5595, %v5609
        %v5611 = vsel %vm662, %v5605, %v5606
        %v5612 = vsel %vm5142, %v5597, %v5611
        %v5613 = vsel %vm662, %v5606, %v5607
        %v5614 = vsel %vm5142, %v5599, %v5613
        %v5615 = vsel %vm662, %v5607, %v5608
        %v5616 = vsel %vm5142, %v5601, %v5615
        %5621 = vst [vmem:[#allocation6 + $0x1c0] sm:$0xff] %v5610
        %5622 = vst [vmem:[#allocation6 + $0x1c8] sm:$0xff] %v5612
        %5623 = vst [vmem:[#allocation6 + $0x1d0] sm:$0xff] %v5614
        %5624 = vst [vmem:[#allocation6 + $0x1d8] sm:$0xff] %v5616
        %v5625 = vld [vmem:[#allocation5 + $0x8] sm:$0xff]
        %v5626 = vld [vmem:[#allocation5 + $0x10] sm:$0xff]
        %v5627 = vld [vmem:[#allocation5 + $0x18] sm:$0xff]
        %v5628 = vld [vmem:[#allocation5 + $0x20] sm:$0xff]
        %v5629 = vld [vmem:[#allocation5 + $0x28] sm:$0xff]
        %v5630 = vld [vmem:[#allocation5 + $0x30] sm:$0xff]
        %v5631 = vld [vmem:[#allocation5 + $0x38] sm:$0xff]
        %v5632 = vld [vmem:[#allocation5 + $0x40] sm:$0xff]
        %v5633 = vld [vmem:[#allocation5 + $0x48] sm:$0xff]
        %v5634 = vpack.c.bf16 %v5626, %v5625
        %v5635 = vpack.c.bf16 %v5628, %v5627
        %v5636 = vpack.c.bf16 %v5630, %v5629
        %v5637 = vpack.c.bf16 %v5632, %v5631
        %v5638 = vpack.c.bf16 %v5633, %v5633
        %5644 = vrot.lane.b32.xlu0 %v5634, 64
        %v5645 = vpop.permute.xlu0 %5644
        %5646 = vrot.lane.b32.xlu0 %v5635, 64
        %v5647 = vpop.permute.xlu0 %5646
        %5648 = vrot.lane.b32.xlu0 %v5636, 64
        %v5649 = vpop.permute.xlu0 %5648
        %5650 = vrot.lane.b32.xlu0 %v5637, 64
        %v5651 = vpop.permute.xlu0 %5650
        %5652 = vrot.lane.b32.xlu0 %v5638, 64
        %v5653 = vpop.permute.xlu0 %5652
        %v5654 = vrot.slane %v5645, 4
        %v5655 = vrot.slane %v5647, 4
        %v5656 = vrot.slane %v5649, 4
        %v5657 = vrot.slane %v5651, 4
        %v5658 = vrot.slane %v5653, 4
        %v5659 = vsel %vm662, %v5654, %v5655
        %v5660 = vsel %vm1756, %v5645, %v5659
        %v5661 = vsel %vm662, %v5655, %v5656
        %v5662 = vsel %vm1756, %v5647, %v5661
        %v5663 = vsel %vm662, %v5656, %v5657
        %v5664 = vsel %vm1756, %v5649, %v5663
        %v5665 = vsel %vm662, %v5657, %v5658
        %v5666 = vsel %vm1756, %v5651, %v5665
        %5671 = vst [vmem:[#allocation6 + $0x1e0] sm:$0xff] %v5660
        %5672 = vst [vmem:[#allocation6 + $0x1e8] sm:$0xff] %v5662
        %5673 = vst [vmem:[#allocation6 + $0x1f0] sm:$0xff] %v5664
        %5674 = vst [vmem:[#allocation6 + $0x1f8] sm:$0xff] %v5666
        %v5675 = vld [vmem:[#allocation5 + $0x8] sm:$0xff]
        %v5676 = vld [vmem:[#allocation5 + $0x10] sm:$0xff]
        %v5677 = vld [vmem:[#allocation5 + $0x18] sm:$0xff]
        %v5678 = vld [vmem:[#allocation5 + $0x20] sm:$0xff]
        %v5679 = vld [vmem:[#allocation5 + $0x28] sm:$0xff]
        %v5680 = vld [vmem:[#allocation5 + $0x30] sm:$0xff]
        %v5681 = vld [vmem:[#allocation5 + $0x38] sm:$0xff]
        %v5682 = vld [vmem:[#allocation5 + $0x40] sm:$0xff]
        %v5683 = vld [vmem:[#allocation5 + $0x48] sm:$0xff]
        %v5684 = vpack.c.bf16 %v5676, %v5675
        %v5685 = vpack.c.bf16 %v5678, %v5677
        %v5686 = vpack.c.bf16 %v5680, %v5679
        %v5687 = vpack.c.bf16 %v5682, %v5681
        %v5688 = vpack.c.bf16 %v5683, %v5683
        %5694 = vrot.lane.b32.xlu0 %v5684, 62
        %v5695 = vpop.permute.xlu0 %5694
        %5696 = vrot.lane.b32.xlu0 %v5685, 62
        %v5697 = vpop.permute.xlu0 %5696
        %5698 = vrot.lane.b32.xlu0 %v5686, 62
        %v5699 = vpop.permute.xlu0 %5698
        %5700 = vrot.lane.b32.xlu0 %v5687, 62
        %v5701 = vpop.permute.xlu0 %5700
        %5702 = vrot.lane.b32.xlu0 %v5688, 62
        %v5703 = vpop.permute.xlu0 %5702
        %v5704 = vrot.slane %v5695, 4
        %v5705 = vrot.slane %v5697, 4
        %v5706 = vrot.slane %v5699, 4
        %v5707 = vrot.slane %v5701, 4
        %v5708 = vrot.slane %v5703, 4
        %v5709 = vsel %vm662, %v5704, %v5705
        %v5710 = vsel %vm1915, %v5695, %v5709
        %v5711 = vsel %vm662, %v5705, %v5706
        %v5712 = vsel %vm1915, %v5697, %v5711
        %v5713 = vsel %vm662, %v5706, %v5707
        %v5714 = vsel %vm1915, %v5699, %v5713
        %v5715 = vsel %vm662, %v5707, %v5708
        %v5716 = vsel %vm1915, %v5701, %v5715
        %5721 = vst [vmem:[#allocation6 + $0x200] sm:$0xff] %v5710
        %5722 = vst [vmem:[#allocation6 + $0x208] sm:$0xff] %v5712
        %5723 = vst [vmem:[#allocation6 + $0x210] sm:$0xff] %v5714
        %5724 = vst [vmem:[#allocation6 + $0x218] sm:$0xff] %v5716
        %v5725 = vld [vmem:[#allocation5 + $0x8] sm:$0xff]
        %v5726 = vld [vmem:[#allocation5 + $0x10] sm:$0xff]
        %v5727 = vld [vmem:[#allocation5 + $0x18] sm:$0xff]
        %v5728 = vld [vmem:[#allocation5 + $0x20] sm:$0xff]
        %v5729 = vld [vmem:[#allocation5 + $0x28] sm:$0xff]
        %v5730 = vld [vmem:[#allocation5 + $0x30] sm:$0xff]
        %v5731 = vld [vmem:[#allocation5 + $0x38] sm:$0xff]
        %v5732 = vld [vmem:[#allocation5 + $0x40] sm:$0xff]
        %v5733 = vld [vmem:[#allocation5 + $0x48] sm:$0xff]
        %v5734 = vpack.c.bf16 %v5726, %v5725
        %v5735 = vpack.c.bf16 %v5728, %v5727
        %v5736 = vpack.c.bf16 %v5730, %v5729
        %v5737 = vpack.c.bf16 %v5732, %v5731
        %v5738 = vpack.c.bf16 %v5733, %v5733
        %5744 = vrot.lane.b32.xlu0 %v5734, 60
        %v5745 = vpop.permute.xlu0 %5744
        %5746 = vrot.lane.b32.xlu0 %v5735, 60
        %v5747 = vpop.permute.xlu0 %5746
        %5748 = vrot.lane.b32.xlu0 %v5736, 60
        %v5749 = vpop.permute.xlu0 %5748
        %5750 = vrot.lane.b32.xlu0 %v5737, 60
        %v5751 = vpop.permute.xlu0 %5750
        %5752 = vrot.lane.b32.xlu0 %v5738, 60
        %v5753 = vpop.permute.xlu0 %5752
        %v5754 = vrot.slane %v5745, 4
        %v5755 = vrot.slane %v5747, 4
        %v5756 = vrot.slane %v5749, 4
        %v5757 = vrot.slane %v5751, 4
        %v5758 = vrot.slane %v5753, 4
        %v5759 = vsel %vm662, %v5754, %v5755
        %v5760 = vsel %vm2074, %v5745, %v5759
        %v5761 = vsel %vm662, %v5755, %v5756
        %v5762 = vsel %vm2074, %v5747, %v5761
        %v5763 = vsel %vm662, %v5756, %v5757
        %v5764 = vsel %vm2074, %v5749, %v5763
        %v5765 = vsel %vm662, %v5757, %v5758
        %v5766 = vsel %vm2074, %v5751, %v5765
        %5771 = vst [vmem:[#allocation6 + $0x220] sm:$0xff] %v5760
        %5772 = vst [vmem:[#allocation6 + $0x228] sm:$0xff] %v5762
        %5773 = vst [vmem:[#allocation6 + $0x230] sm:$0xff] %v5764
        %5774 = vst [vmem:[#allocation6 + $0x238] sm:$0xff] %v5766
        %v5775 = vld [vmem:[#allocation5 + $0x8] sm:$0xff]
        %v5776 = vld [vmem:[#allocation5 + $0x10] sm:$0xff]
        %v5777 = vld [vmem:[#allocation5 + $0x18] sm:$0xff]
        %v5778 = vld [vmem:[#allocation5 + $0x20] sm:$0xff]
        %v5779 = vld [vmem:[#allocation5 + $0x28] sm:$0xff]
        %v5780 = vld [vmem:[#allocation5 + $0x30] sm:$0xff]
        %v5781 = vld [vmem:[#allocation5 + $0x38] sm:$0xff]
        %v5782 = vld [vmem:[#allocation5 + $0x40] sm:$0xff]
        %v5783 = vld [vmem:[#allocation5 + $0x48] sm:$0xff]
        %v5784 = vpack.c.bf16 %v5776, %v5775
        %v5785 = vpack.c.bf16 %v5778, %v5777
        %v5786 = vpack.c.bf16 %v5780, %v5779
        %v5787 = vpack.c.bf16 %v5782, %v5781
        %v5788 = vpack.c.bf16 %v5783, %v5783
        %5794 = vrot.lane.b32.xlu0 %v5784, 58
        %v5795 = vpop.permute.xlu0 %5794
        %5796 = vrot.lane.b32.xlu0 %v5785, 58
        %v5797 = vpop.permute.xlu0 %5796
        %5798 = vrot.lane.b32.xlu0 %v5786, 58
        %v5799 = vpop.permute.xlu0 %5798
        %5800 = vrot.lane.b32.xlu0 %v5787, 58
        %v5801 = vpop.permute.xlu0 %5800
        %5802 = vrot.lane.b32.xlu0 %v5788, 58
        %v5803 = vpop.permute.xlu0 %5802
        %v5804 = vrot.slane %v5795, 4
        %v5805 = vrot.slane %v5797, 4
        %v5806 = vrot.slane %v5799, 4
        %v5807 = vrot.slane %v5801, 4
        %v5808 = vrot.slane %v5803, 4
        %v5809 = vsel %vm662, %v5804, %v5805
        %v5810 = vsel %vm2238, %v5795, %v5809
        %v5811 = vsel %vm662, %v5805, %v5806
        %v5812 = vsel %vm2238, %v5797, %v5811
        %v5813 = vsel %vm662, %v5806, %v5807
        %v5814 = vsel %vm2238, %v5799, %v5813
        %v5815 = vsel %vm662, %v5807, %v5808
        %v5816 = vsel %vm2238, %v5801, %v5815
        %5821 = vst [vmem:[#allocation6 + $0x240] sm:$0xff] %v5810
        %5822 = vst [vmem:[#allocation6 + $0x248] sm:$0xff] %v5812
        %5823 = vst [vmem:[#allocation6 + $0x250] sm:$0xff] %v5814
        %5824 = vst [vmem:[#allocation6 + $0x258] sm:$0xff] %v5816
        %v5825 = vld [vmem:[#allocation5 + $0x8] sm:$0xff]
        %v5826 = vld [vmem:[#allocation5 + $0x10] sm:$0xff]
        %v5827 = vld [vmem:[#allocation5 + $0x18] sm:$0xff]
        %v5828 = vld [vmem:[#allocation5 + $0x20] sm:$0xff]
        %v5829 = vld [vmem:[#allocation5 + $0x28] sm:$0xff]
        %v5830 = vld [vmem:[#allocation5 + $0x30] sm:$0xff]
        %v5831 = vld [vmem:[#allocation5 + $0x38] sm:$0xff]
        %v5832 = vld [vmem:[#allocation5 + $0x40] sm:$0xff]
        %v5833 = vld [vmem:[#allocation5 + $0x48] sm:$0xff]
        %v5834 = vpack.c.bf16 %v5826, %v5825
        %v5835 = vpack.c.bf16 %v5828, %v5827
        %v5836 = vpack.c.bf16 %v5830, %v5829
        %v5837 = vpack.c.bf16 %v5832, %v5831
        %v5838 = vpack.c.bf16 %v5833, %v5833
        %5844 = vrot.lane.b32.xlu0 %v5834, 56
        %v5845 = vpop.permute.xlu0 %5844
        %5846 = vrot.lane.b32.xlu0 %v5835, 56
        %v5847 = vpop.permute.xlu0 %5846
        %5848 = vrot.lane.b32.xlu0 %v5836, 56
        %v5849 = vpop.permute.xlu0 %5848
        %5850 = vrot.lane.b32.xlu0 %v5837, 56
        %v5851 = vpop.permute.xlu0 %5850
        %5852 = vrot.lane.b32.xlu0 %v5838, 56
        %v5853 = vpop.permute.xlu0 %5852
        %v5854 = vrot.slane %v5845, 4
        %v5855 = vrot.slane %v5847, 4
        %v5856 = vrot.slane %v5849, 4
        %v5857 = vrot.slane %v5851, 4
        %v5858 = vrot.slane %v5853, 4
        %v5859 = vsel %vm662, %v5854, %v5855
        %v5860 = vsel %vm5393, %v5845, %v5859
        %v5861 = vsel %vm662, %v5855, %v5856
        %v5862 = vsel %vm5393, %v5847, %v5861
        %v5863 = vsel %vm662, %v5856, %v5857
        %v5864 = vsel %vm5393, %v5849, %v5863
        %v5865 = vsel %vm662, %v5857, %v5858
        %v5866 = vsel %vm5393, %v5851, %v5865
        %5871 = vst [vmem:[#allocation6 + $0x260] sm:$0xff] %v5860
        %5872 = vst [vmem:[#allocation6 + $0x268] sm:$0xff] %v5862
        %5873 = vst [vmem:[#allocation6 + $0x270] sm:$0xff] %v5864
        %5874 = vst [vmem:[#allocation6 + $0x278] sm:$0xff] %v5866
        %v5875 = vld [vmem:[#allocation5 + $0x10] sm:$0xff]
        %v5876 = vld [vmem:[#allocation5 + $0x18] sm:$0xff]
        %v5877 = vld [vmem:[#allocation5 + $0x20] sm:$0xff]
        %v5878 = vld [vmem:[#allocation5 + $0x28] sm:$0xff]
        %v5879 = vld [vmem:[#allocation5 + $0x30] sm:$0xff]
        %v5880 = vld [vmem:[#allocation5 + $0x38] sm:$0xff]
        %v5881 = vld [vmem:[#allocation5 + $0x40] sm:$0xff]
        %v5882 = vld [vmem:[#allocation5 + $0x48] sm:$0xff]
        %v5883 = vpack.c.bf16 %v5876, %v5875
        %v5884 = vpack.c.bf16 %v5878, %v5877
        %v5885 = vpack.c.bf16 %v5880, %v5879
        %v5886 = vpack.c.bf16 %v5882, %v5881
        %5887 = vst [vmem:[#allocation6 + $0x280] sm:$0xff] %v5883
        %5888 = vst [vmem:[#allocation6 + $0x288] sm:$0xff] %v5884
        %5889 = vst [vmem:[#allocation6 + $0x290] sm:$0xff] %v5885
        %5890 = vst [vmem:[#allocation6 + $0x298] sm:$0xff] %v5886
        %v5891 = vld [vmem:[#allocation5 + $0x10] sm:$0xff]
        %v5892 = vld [vmem:[#allocation5 + $0x18] sm:$0xff]
        %v5893 = vld [vmem:[#allocation5 + $0x20] sm:$0xff]
        %v5894 = vld [vmem:[#allocation5 + $0x28] sm:$0xff]
        %v5895 = vld [vmem:[#allocation5 + $0x30] sm:$0xff]
        %v5896 = vld [vmem:[#allocation5 + $0x38] sm:$0xff]
        %v5897 = vld [vmem:[#allocation5 + $0x40] sm:$0xff]
        %v5898 = vld [vmem:[#allocation5 + $0x48] sm:$0xff]
        %v5899 = vld [vmem:[#allocation5 + $0x50] sm:$0xff]
        %v5900 = vpack.c.bf16 %v5892, %v5891
        %v5901 = vpack.c.bf16 %v5894, %v5893
        %v5902 = vpack.c.bf16 %v5896, %v5895
        %v5903 = vpack.c.bf16 %v5898, %v5897
        %v5904 = vpack.c.bf16 %v5899, %v5899
        %5910 = vrot.lane.b32.xlu0 %v5900, 126
        %v5911 = vpop.permute.xlu0 %5910
        %5912 = vrot.lane.b32.xlu0 %v5901, 126
        %v5913 = vpop.permute.xlu0 %5912
        %5914 = vrot.lane.b32.xlu0 %v5902, 126
        %v5915 = vpop.permute.xlu0 %5914
        %5916 = vrot.lane.b32.xlu0 %v5903, 126
        %v5917 = vpop.permute.xlu0 %5916
        %5918 = vrot.lane.b32.xlu0 %v5904, 126
        %v5919 = vpop.permute.xlu0 %5918
        %v5920 = vrot.slane %v5911, 4
        %v5921 = vrot.slane %v5913, 4
        %v5922 = vrot.slane %v5915, 4
        %v5923 = vrot.slane %v5917, 4
        %v5924 = vrot.slane %v5919, 4
        %v5925 = vsel %vm662, %v5920, %v5921
        %v5926 = vsel %vm746, %v5911, %v5925
        %v5927 = vsel %vm662, %v5921, %v5922
        %v5928 = vsel %vm746, %v5913, %v5927
        %v5929 = vsel %vm662, %v5922, %v5923
        %v5930 = vsel %vm746, %v5915, %v5929
        %v5931 = vsel %vm662, %v5923, %v5924
        %v5932 = vsel %vm746, %v5917, %v5931
        %5937 = vst [vmem:[#allocation6 + $0x2a0] sm:$0xff] %v5926
        %5938 = vst [vmem:[#allocation6 + $0x2a8] sm:$0xff] %v5928
        %5939 = vst [vmem:[#allocation6 + $0x2b0] sm:$0xff] %v5930
        %5940 = vst [vmem:[#allocation6 + $0x2b8] sm:$0xff] %v5932
        %v5941 = vld [vmem:[#allocation5 + $0x10] sm:$0xff]
        %v5942 = vld [vmem:[#allocation5 + $0x18] sm:$0xff]
        %v5943 = vld [vmem:[#allocation5 + $0x20] sm:$0xff]
        %v5944 = vld [vmem:[#allocation5 + $0x28] sm:$0xff]
        %v5945 = vld [vmem:[#allocation5 + $0x30] sm:$0xff]
        %v5946 = vld [vmem:[#allocation5 + $0x38] sm:$0xff]
        %v5947 = vld [vmem:[#allocation5 + $0x40] sm:$0xff]
        %v5948 = vld [vmem:[#allocation5 + $0x48] sm:$0xff]
        %v5949 = vld [vmem:[#allocation5 + $0x50] sm:$0xff]
        %v5950 = vpack.c.bf16 %v5942, %v5941
        %v5951 = vpack.c.bf16 %v5944, %v5943
        %v5952 = vpack.c.bf16 %v5946, %v5945
        %v5953 = vpack.c.bf16 %v5948, %v5947
        %v5954 = vpack.c.bf16 %v5949, %v5949
        %5960 = vrot.lane.b32.xlu0 %v5950, 124
        %v5961 = vpop.permute.xlu0 %5960
        %5962 = vrot.lane.b32.xlu0 %v5951, 124
        %v5963 = vpop.permute.xlu0 %5962
        %5964 = vrot.lane.b32.xlu0 %v5952, 124
        %v5965 = vpop.permute.xlu0 %5964
        %5966 = vrot.lane.b32.xlu0 %v5953, 124
        %v5967 = vpop.permute.xlu0 %5966
        %5968 = vrot.lane.b32.xlu0 %v5954, 124
        %v5969 = vpop.permute.xlu0 %5968
        %v5970 = vrot.slane %v5961, 4
        %v5971 = vrot.slane %v5963, 4
        %v5972 = vrot.slane %v5965, 4
        %v5973 = vrot.slane %v5967, 4
        %v5974 = vrot.slane %v5969, 4
        %v5975 = vsel %vm662, %v5970, %v5971
        %v5976 = vsel %vm922, %v5961, %v5975
        %v5977 = vsel %vm662, %v5971, %v5972
        %v5978 = vsel %vm922, %v5963, %v5977
        %v5979 = vsel %vm662, %v5972, %v5973
        %v5980 = vsel %vm922, %v5965, %v5979
        %v5981 = vsel %vm662, %v5973, %v5974
        %v5982 = vsel %vm922, %v5967, %v5981
        %5987 = vst [vmem:[#allocation6 + $0x2c0] sm:$0xff] %v5976
        %5988 = vst [vmem:[#allocation6 + $0x2c8] sm:$0xff] %v5978
        %5989 = vst [vmem:[#allocation6 + $0x2d0] sm:$0xff] %v5980
        %5990 = vst [vmem:[#allocation6 + $0x2d8] sm:$0xff] %v5982
        %v5991 = vld [vmem:[#allocation5 + $0x10] sm:$0xff]
        %v5992 = vld [vmem:[#allocation5 + $0x18] sm:$0xff]
        %v5993 = vld [vmem:[#allocation5 + $0x20] sm:$0xff]
        %v5994 = vld [vmem:[#allocation5 + $0x28] sm:$0xff]
        %v5995 = vld [vmem:[#allocation5 + $0x30] sm:$0xff]
        %v5996 = vld [vmem:[#allocation5 + $0x38] sm:$0xff]
        %v5997 = vld [vmem:[#allocation5 + $0x40] sm:$0xff]
        %v5998 = vld [vmem:[#allocation5 + $0x48] sm:$0xff]
        %v5999 = vld [vmem:[#allocation5 + $0x50] sm:$0xff]
        %v6000 = vpack.c.bf16 %v5992, %v5991
        %v6001 = vpack.c.bf16 %v5994, %v5993
        %v6002 = vpack.c.bf16 %v5996, %v5995
        %v6003 = vpack.c.bf16 %v5998, %v5997
        %v6004 = vpack.c.bf16 %v5999, %v5999
        %6010 = vrot.lane.b32.xlu0 %v6000, 122
        %v6011 = vpop.permute.xlu0 %6010
        %6012 = vrot.lane.b32.xlu0 %v6001, 122
        %v6013 = vpop.permute.xlu0 %6012
        %6014 = vrot.lane.b32.xlu0 %v6002, 122
        %v6015 = vpop.permute.xlu0 %6014
        %6016 = vrot.lane.b32.xlu0 %v6003, 122
        %v6017 = vpop.permute.xlu0 %6016
        %6018 = vrot.lane.b32.xlu0 %v6004, 122
        %v6019 = vpop.permute.xlu0 %6018
        %v6020 = vrot.slane %v6011, 4
        %v6021 = vrot.slane %v6013, 4
        %v6022 = vrot.slane %v6015, 4
        %v6023 = vrot.slane %v6017, 4
        %v6024 = vrot.slane %v6019, 4
        %v6025 = vsel %vm662, %v6020, %v6021
        %v6026 = vsel %vm1098, %v6011, %v6025
        %v6027 = vsel %vm662, %v6021, %v6022
        %v6028 = vsel %vm1098, %v6013, %v6027
        %v6029 = vsel %vm662, %v6022, %v6023
        %v6030 = vsel %vm1098, %v6015, %v6029
        %v6031 = vsel %vm662, %v6023, %v6024
        %v6032 = vsel %vm1098, %v6017, %v6031
        %6037 = vst [vmem:[#allocation6 + $0x2e0] sm:$0xff] %v6026
        %6038 = vst [vmem:[#allocation6 + $0x2e8] sm:$0xff] %v6028
        %6039 = vst [vmem:[#allocation6 + $0x2f0] sm:$0xff] %v6030
        %6040 = vst [vmem:[#allocation6 + $0x2f8] sm:$0xff] %v6032
        %v6041 = vld [vmem:[#allocation5 + $0x10] sm:$0xff]
        %v6042 = vld [vmem:[#allocation5 + $0x18] sm:$0xff]
        %v6043 = vld [vmem:[#allocation5 + $0x20] sm:$0xff]
        %v6044 = vld [vmem:[#allocation5 + $0x28] sm:$0xff]
        %v6045 = vld [vmem:[#allocation5 + $0x30] sm:$0xff]
        %v6046 = vld [vmem:[#allocation5 + $0x38] sm:$0xff]
        %v6047 = vld [vmem:[#allocation5 + $0x40] sm:$0xff]
        %v6048 = vld [vmem:[#allocation5 + $0x48] sm:$0xff]
        %v6049 = vld [vmem:[#allocation5 + $0x50] sm:$0xff]
        %v6050 = vpack.c.bf16 %v6042, %v6041
        %v6051 = vpack.c.bf16 %v6044, %v6043
        %v6052 = vpack.c.bf16 %v6046, %v6045
        %v6053 = vpack.c.bf16 %v6048, %v6047
        %v6054 = vpack.c.bf16 %v6049, %v6049
        %6060 = vrot.lane.b32.xlu0 %v6050, 120
        %v6061 = vpop.permute.xlu0 %6060
        %6062 = vrot.lane.b32.xlu0 %v6051, 120
        %v6063 = vpop.permute.xlu0 %6062
        %6064 = vrot.lane.b32.xlu0 %v6052, 120
        %v6065 = vpop.permute.xlu0 %6064
        %6066 = vrot.lane.b32.xlu0 %v6053, 120
        %v6067 = vpop.permute.xlu0 %6066
        %6068 = vrot.lane.b32.xlu0 %v6054, 120
        %v6069 = vpop.permute.xlu0 %6068
        %v6070 = vrot.slane %v6061, 4
        %v6071 = vrot.slane %v6063, 4
        %v6072 = vrot.slane %v6065, 4
        %v6073 = vrot.slane %v6067, 4
        %v6074 = vrot.slane %v6069, 4
        %v6075 = vsel %vm662, %v6070, %v6071
        %v6076 = vsel %vm5142, %v6061, %v6075
        %v6077 = vsel %vm662, %v6071, %v6072
        %v6078 = vsel %vm5142, %v6063, %v6077
        %v6079 = vsel %vm662, %v6072, %v6073
        %v6080 = vsel %vm5142, %v6065, %v6079
        %v6081 = vsel %vm662, %v6073, %v6074
        %v6082 = vsel %vm5142, %v6067, %v6081
        %6087 = vst [vmem:[#allocation6 + $0x300] sm:$0xff] %v6076
        %6088 = vst [vmem:[#allocation6 + $0x308] sm:$0xff] %v6078
        %6089 = vst [vmem:[#allocation6 + $0x310] sm:$0xff] %v6080
        %6090 = vst [vmem:[#allocation6 + $0x318] sm:$0xff] %v6082
        %v6091 = vld [vmem:[%s4] sm:$0xff]
        %v6092 = vld [vmem:[%s4 + $0x8] sm:$0x11]
        %v6093 = vld [vmem:[#allocation6] sm:$0xff]
        %v6094 = vld [vmem:[#allocation6 + $0x8] sm:$0xff]
        %v6095 = vld [vmem:[#allocation6 + $0x10] sm:$0xff]
        %v6096 = vld [vmem:[#allocation6 + $0x18] sm:$0xff]
        %v6097 = vld [vmem:[#allocation6 + $0x20] sm:$0xff]
        %v6098 = vld [vmem:[#allocation6 + $0x28] sm:$0xff]
        %v6099 = vld [vmem:[#allocation6 + $0x30] sm:$0xff]
        %v6100 = vld [vmem:[#allocation6 + $0x38] sm:$0xff]
        %v6101 = vld [vmem:[#allocation6 + $0x40] sm:$0xff]
        %v6102 = vld [vmem:[#allocation6 + $0x48] sm:$0xff]
        %v6103 = vld [vmem:[#allocation6 + $0x50] sm:$0xff]
        %v6104 = vld [vmem:[#allocation6 + $0x58] sm:$0xff]
        %v6105 = vld [vmem:[#allocation6 + $0x60] sm:$0xff]
        %v6106 = vld [vmem:[#allocation6 + $0x68] sm:$0xff]
        %v6107 = vld [vmem:[#allocation6 + $0x70] sm:$0xff]
        %v6108 = vld [vmem:[#allocation6 + $0x78] sm:$0xff]
        %v6109 = vld [vmem:[#allocation6 + $0x80] sm:$0xff]
        %v6110 = vld [vmem:[#allocation6 + $0x88] sm:$0xff]
        %v6111 = vld [vmem:[#allocation6 + $0x90] sm:$0xff]
        %v6112 = vld [vmem:[#allocation6 + $0x98] sm:$0xff]
        %v6113 = vld [vmem:[#allocation6 + $0xa0] sm:$0xff]
        %v6114 = vld [vmem:[#allocation6 + $0xa8] sm:$0xff]
        %v6115 = vld [vmem:[#allocation6 + $0xb0] sm:$0xff]
        %v6116 = vld [vmem:[#allocation6 + $0xb8] sm:$0xff]
        %v6117 = vld [vmem:[#allocation6 + $0xc0] sm:$0xff]
        %v6118 = vld [vmem:[#allocation6 + $0xc8] sm:$0xff]
        %v6119 = vld [vmem:[#allocation6 + $0xd0] sm:$0xff]
        %v6120 = vld [vmem:[#allocation6 + $0xd8] sm:$0xff]
        %v6121 = vld [vmem:[#allocation6 + $0xe0] sm:$0xff]
        %v6122 = vld [vmem:[#allocation6 + $0xe8] sm:$0xff]
        %v6123 = vld [vmem:[#allocation6 + $0xf0] sm:$0xff]
        %v6124 = vld [vmem:[#allocation6 + $0xf8] sm:$0xff]
        %v6125 = vld [vmem:[#allocation6 + $0x100] sm:$0xff]
        %v6126 = vld [vmem:[#allocation6 + $0x108] sm:$0xff]
        %v6127 = vld [vmem:[#allocation6 + $0x110] sm:$0xff]
        %v6128 = vld [vmem:[#allocation6 + $0x118] sm:$0xff]
        %v6129 = vld [vmem:[#allocation6 + $0x120] sm:$0xff]
        %v6130 = vld [vmem:[#allocation6 + $0x128] sm:$0xff]
        %v6131 = vld [vmem:[#allocation6 + $0x130] sm:$0xff]
        %v6132 = vld [vmem:[#allocation6 + $0x138] sm:$0xff]
        %v6133 = vld [vmem:[#allocation6 + $0x140] sm:$0xff]
        %v6134 = vld [vmem:[#allocation6 + $0x148] sm:$0xff]
        %v6135 = vld [vmem:[#allocation6 + $0x150] sm:$0xff]
        %v6136 = vld [vmem:[#allocation6 + $0x158] sm:$0xff]
        %v6137 = vld [vmem:[#allocation6 + $0x160] sm:$0xff]
        %v6138 = vld [vmem:[#allocation6 + $0x168] sm:$0xff]
        %v6139 = vld [vmem:[#allocation6 + $0x170] sm:$0xff]
        %v6140 = vld [vmem:[#allocation6 + $0x178] sm:$0xff]
        %v6141 = vld [vmem:[#allocation6 + $0x180] sm:$0xff]
        %v6142 = vld [vmem:[#allocation6 + $0x188] sm:$0xff]
        %v6143 = vld [vmem:[#allocation6 + $0x190] sm:$0xff]
        %v6144 = vld [vmem:[#allocation6 + $0x198] sm:$0xff]
        %v6145 = vld [vmem:[#allocation6 + $0x1a0] sm:$0xff]
        %v6146 = vld [vmem:[#allocation6 + $0x1a8] sm:$0xff]
        %v6147 = vld [vmem:[#allocation6 + $0x1b0] sm:$0xff]
        %v6148 = vld [vmem:[#allocation6 + $0x1b8] sm:$0xff]
        %v6149 = vld [vmem:[#allocation6 + $0x1c0] sm:$0xff]
        %v6150 = vld [vmem:[#allocation6 + $0x1c8] sm:$0xff]
        %v6151 = vld [vmem:[#allocation6 + $0x1d0] sm:$0xff]
        %v6152 = vld [vmem:[#allocation6 + $0x1d8] sm:$0xff]
        %v6153 = vld [vmem:[#allocation6 + $0x1e0] sm:$0xff]
        %v6154 = vld [vmem:[#allocation6 + $0x1e8] sm:$0xff]
        %v6155 = vld [vmem:[#allocation6 + $0x1f0] sm:$0xff]
        %v6156 = vld [vmem:[#allocation6 + $0x1f8] sm:$0xff]
        %v6157 = vld [vmem:[#allocation6 + $0x200] sm:$0xff]
        %v6158 = vld [vmem:[#allocation6 + $0x208] sm:$0xff]
        %v6159 = vld [vmem:[#allocation6 + $0x210] sm:$0xff]
        %v6160 = vld [vmem:[#allocation6 + $0x218] sm:$0xff]
        %v6161 = vld [vmem:[#allocation6 + $0x220] sm:$0xff]
        %v6162 = vld [vmem:[#allocation6 + $0x228] sm:$0xff]
        %v6163 = vld [vmem:[#allocation6 + $0x230] sm:$0xff]
        %v6164 = vld [vmem:[#allocation6 + $0x238] sm:$0xff]
        %v6165 = vld [vmem:[#allocation6 + $0x240] sm:$0xff]
        %v6166 = vld [vmem:[#allocation6 + $0x248] sm:$0xff]
        %v6167 = vld [vmem:[#allocation6 + $0x250] sm:$0xff]
        %v6168 = vld [vmem:[#allocation6 + $0x258] sm:$0xff]
        %v6169 = vld [vmem:[#allocation6 + $0x260] sm:$0xff]
        %v6170 = vld [vmem:[#allocation6 + $0x268] sm:$0xff]
        %v6171 = vld [vmem:[#allocation6 + $0x270] sm:$0xff]
        %v6172 = vld [vmem:[#allocation6 + $0x278] sm:$0xff]
        %v6173 = vld [vmem:[#allocation6 + $0x280] sm:$0xff]
        %v6174 = vld [vmem:[#allocation6 + $0x288] sm:$0xff]
        %v6175 = vld [vmem:[#allocation6 + $0x290] sm:$0xff]
        %v6176 = vld [vmem:[#allocation6 + $0x298] sm:$0xff]
        %v6177 = vld [vmem:[#allocation6 + $0x2a0] sm:$0xff]
        %v6178 = vld [vmem:[#allocation6 + $0x2a8] sm:$0xff]
        %v6179 = vld [vmem:[#allocation6 + $0x2b0] sm:$0xff]
        %v6180 = vld [vmem:[#allocation6 + $0x2b8] sm:$0xff]
        %v6181 = vld [vmem:[#allocation6 + $0x2c0] sm:$0xff]
        %v6182 = vld [vmem:[#allocation6 + $0x2c8] sm:$0xff]
        %v6183 = vld [vmem:[#allocation6 + $0x2d0] sm:$0xff]
        %v6184 = vld [vmem:[#allocation6 + $0x2d8] sm:$0xff]
        %v6185 = vld [vmem:[#allocation6 + $0x2e0] sm:$0xff]
        %v6186 = vld [vmem:[#allocation6 + $0x2e8] sm:$0xff]
        %v6187 = vld [vmem:[#allocation6 + $0x2f0] sm:$0xff]
        %v6188 = vld [vmem:[#allocation6 + $0x2f8] sm:$0xff]
        %v6189 = vld [vmem:[#allocation6 + $0x300] sm:$0xff]
        %v6190 = vld [vmem:[#allocation6 + $0x308] sm:$0xff]
        %v6191 = vld [vmem:[#allocation6 + $0x310] sm:$0xff]
        %v6192 = vld [vmem:[#allocation6 + $0x318] sm:$0xff]
        %v6193 = vld [vmem:[#allocation10] sm:$0xff]
        %v6194 = vld [vmem:[#allocation10 + $0x8] sm:$0x3]
        %6196 = vset.pattern.permute.xlu0 0
        %6197 = vperm.xlu0 %6196, %v6193
        %v6198 = vpop.permute.xlu0 %6197
        %6201 = vset.pattern.permute.xlu0 0
        %6202 = vperm.xlu0 %6201, %v6194
        %v6203 = vpop.permute.xlu0 %6202
        %v6207 = vunpack.c.l.b16 %v6091
        %v6208 = vunpack.c.h.b16 %v6091
        %v6209 = vunpack.c.l.b16 %v6092
        %v6210 = vunpack.c.h.b16 %v6092
        %v6211 = vpack.c.b16 %v6209, %v6207
        %v6212 = vpack.c.b16 %v6210, %v6208
        %v6314 = vunpack.c.l.b16 %v6093
        %v6315 = vunpack.c.h.b16 %v6093
        %v6316 = vunpack.c.l.b16 %v6094
        %v6317 = vunpack.c.h.b16 %v6094
        %v6318 = vunpack.c.l.b16 %v6095
        %v6319 = vunpack.c.h.b16 %v6095
        %v6320 = vunpack.c.l.b16 %v6096
        %v6321 = vunpack.c.h.b16 %v6096
        %v6322 = vunpack.c.l.b16 %v6097
        %v6323 = vunpack.c.h.b16 %v6097
        %v6324 = vunpack.c.l.b16 %v6098
        %v6325 = vunpack.c.h.b16 %v6098
        %v6326 = vunpack.c.l.b16 %v6099
        %v6327 = vunpack.c.h.b16 %v6099
        %v6328 = vunpack.c.l.b16 %v6100
        %v6329 = vunpack.c.h.b16 %v6100
        %v6330 = vunpack.c.l.b16 %v6101
        %v6331 = vunpack.c.h.b16 %v6101
        %v6332 = vunpack.c.l.b16 %v6102
        %v6333 = vunpack.c.h.b16 %v6102
        %v6334 = vunpack.c.l.b16 %v6103
        %v6335 = vunpack.c.h.b16 %v6103
        %v6336 = vunpack.c.l.b16 %v6104
        %v6337 = vunpack.c.h.b16 %v6104
        %v6338 = vunpack.c.l.b16 %v6105
        %v6339 = vunpack.c.h.b16 %v6105
        %v6340 = vunpack.c.l.b16 %v6106
        %v6341 = vunpack.c.h.b16 %v6106
        %v6342 = vunpack.c.l.b16 %v6107
        %v6343 = vunpack.c.h.b16 %v6107
        %v6344 = vunpack.c.l.b16 %v6108
        %v6345 = vunpack.c.h.b16 %v6108
        %v6346 = vunpack.c.l.b16 %v6109
        %v6347 = vunpack.c.h.b16 %v6109
        %v6348 = vunpack.c.l.b16 %v6110
        %v6349 = vunpack.c.h.b16 %v6110
        %v6350 = vunpack.c.l.b16 %v6111
        %v6351 = vunpack.c.h.b16 %v6111
        %v6352 = vunpack.c.l.b16 %v6112
        %v6353 = vunpack.c.h.b16 %v6112
        %v6354 = vunpack.c.l.b16 %v6113
        %v6355 = vunpack.c.h.b16 %v6113
        %v6356 = vunpack.c.l.b16 %v6114
        %v6357 = vunpack.c.h.b16 %v6114
        %v6358 = vunpack.c.l.b16 %v6115
        %v6359 = vunpack.c.h.b16 %v6115
        %v6360 = vunpack.c.l.b16 %v6116
        %v6361 = vunpack.c.h.b16 %v6116
        %v6362 = vunpack.c.l.b16 %v6117
        %v6363 = vunpack.c.h.b16 %v6117
        %v6364 = vunpack.c.l.b16 %v6118
        %v6365 = vunpack.c.h.b16 %v6118
        %v6366 = vunpack.c.l.b16 %v6119
        %v6367 = vunpack.c.h.b16 %v6119
        %v6368 = vunpack.c.l.b16 %v6120
        %v6369 = vunpack.c.h.b16 %v6120
        %v6370 = vunpack.c.l.b16 %v6121
        %v6371 = vunpack.c.h.b16 %v6121
        %v6372 = vunpack.c.l.b16 %v6122
        %v6373 = vunpack.c.h.b16 %v6122
        %v6374 = vunpack.c.l.b16 %v6123
        %v6375 = vunpack.c.h.b16 %v6123
        %v6376 = vunpack.c.l.b16 %v6124
        %v6377 = vunpack.c.h.b16 %v6124
        %v6378 = vunpack.c.l.b16 %v6125
        %v6379 = vunpack.c.h.b16 %v6125
        %v6380 = vunpack.c.l.b16 %v6126
        %v6381 = vunpack.c.h.b16 %v6126
        %v6382 = vunpack.c.l.b16 %v6127
        %v6383 = vunpack.c.h.b16 %v6127
        %v6384 = vunpack.c.l.b16 %v6128
        %v6385 = vunpack.c.h.b16 %v6128
        %v6386 = vunpack.c.l.b16 %v6129
        %v6387 = vunpack.c.h.b16 %v6129
        %v6388 = vunpack.c.l.b16 %v6130
        %v6389 = vunpack.c.h.b16 %v6130
        %v6390 = vunpack.c.l.b16 %v6131
        %v6391 = vunpack.c.h.b16 %v6131
        %v6392 = vunpack.c.l.b16 %v6132
        %v6393 = vunpack.c.h.b16 %v6132
        %v6394 = vunpack.c.l.b16 %v6133
        %v6395 = vunpack.c.h.b16 %v6133
        %v6396 = vunpack.c.l.b16 %v6134
        %v6397 = vunpack.c.h.b16 %v6134
        %v6398 = vunpack.c.l.b16 %v6135
        %v6399 = vunpack.c.h.b16 %v6135
        %v6400 = vunpack.c.l.b16 %v6136
        %v6401 = vunpack.c.h.b16 %v6136
        %v6402 = vunpack.c.l.b16 %v6137
        %v6403 = vunpack.c.h.b16 %v6137
        %v6404 = vunpack.c.l.b16 %v6138
        %v6405 = vunpack.c.h.b16 %v6138
        %v6406 = vunpack.c.l.b16 %v6139
        %v6407 = vunpack.c.h.b16 %v6139
        %v6408 = vunpack.c.l.b16 %v6140
        %v6409 = vunpack.c.h.b16 %v6140
        %v6410 = vunpack.c.l.b16 %v6141
        %v6411 = vunpack.c.h.b16 %v6141
        %v6412 = vunpack.c.l.b16 %v6142
        %v6413 = vunpack.c.h.b16 %v6142
        %v6414 = vunpack.c.l.b16 %v6143
        %v6415 = vunpack.c.h.b16 %v6143
        %v6416 = vunpack.c.l.b16 %v6144
        %v6417 = vunpack.c.h.b16 %v6144
        %v6418 = vunpack.c.l.b16 %v6145
        %v6419 = vunpack.c.h.b16 %v6145
        %v6420 = vunpack.c.l.b16 %v6146
        %v6421 = vunpack.c.h.b16 %v6146
        %v6422 = vunpack.c.l.b16 %v6147
        %v6423 = vunpack.c.h.b16 %v6147
        %v6424 = vunpack.c.l.b16 %v6148
        %v6425 = vunpack.c.h.b16 %v6148
        %v6426 = vunpack.c.l.b16 %v6149
        %v6427 = vunpack.c.h.b16 %v6149
        %v6428 = vunpack.c.l.b16 %v6150
        %v6429 = vunpack.c.h.b16 %v6150
        %v6430 = vunpack.c.l.b16 %v6151
        %v6431 = vunpack.c.h.b16 %v6151
        %v6432 = vunpack.c.l.b16 %v6152
        %v6433 = vunpack.c.h.b16 %v6152
        %v6434 = vunpack.c.l.b16 %v6153
        %v6435 = vunpack.c.h.b16 %v6153
        %v6436 = vunpack.c.l.b16 %v6154
        %v6437 = vunpack.c.h.b16 %v6154
        %v6438 = vunpack.c.l.b16 %v6155
        %v6439 = vunpack.c.h.b16 %v6155
        %v6440 = vunpack.c.l.b16 %v6156
        %v6441 = vunpack.c.h.b16 %v6156
        %v6442 = vunpack.c.l.b16 %v6157
        %v6443 = vunpack.c.h.b16 %v6157
        %v6444 = vunpack.c.l.b16 %v6158
        %v6445 = vunpack.c.h.b16 %v6158
        %v6446 = vunpack.c.l.b16 %v6159
        %v6447 = vunpack.c.h.b16 %v6159
        %v6448 = vunpack.c.l.b16 %v6160
        %v6449 = vunpack.c.h.b16 %v6160
        %v6450 = vunpack.c.l.b16 %v6161
        %v6451 = vunpack.c.h.b16 %v6161
        %v6452 = vunpack.c.l.b16 %v6162
        %v6453 = vunpack.c.h.b16 %v6162
        %v6454 = vunpack.c.l.b16 %v6163
        %v6455 = vunpack.c.h.b16 %v6163
        %v6456 = vunpack.c.l.b16 %v6164
        %v6457 = vunpack.c.h.b16 %v6164
        %v6458 = vunpack.c.l.b16 %v6165
        %v6459 = vunpack.c.h.b16 %v6165
        %v6460 = vunpack.c.l.b16 %v6166
        %v6461 = vunpack.c.h.b16 %v6166
        %v6462 = vunpack.c.l.b16 %v6167
        %v6463 = vunpack.c.h.b16 %v6167
        %v6464 = vunpack.c.l.b16 %v6168
        %v6465 = vunpack.c.h.b16 %v6168
        %v6466 = vunpack.c.l.b16 %v6169
        %v6467 = vunpack.c.h.b16 %v6169
        %v6468 = vunpack.c.l.b16 %v6170
        %v6469 = vunpack.c.h.b16 %v6170
        %v6470 = vunpack.c.l.b16 %v6171
        %v6471 = vunpack.c.h.b16 %v6171
        %v6472 = vunpack.c.l.b16 %v6172
        %v6473 = vunpack.c.h.b16 %v6172
        %v6474 = vunpack.c.l.b16 %v6173
        %v6475 = vunpack.c.h.b16 %v6173
        %v6476 = vunpack.c.l.b16 %v6174
        %v6477 = vunpack.c.h.b16 %v6174
        %v6478 = vunpack.c.l.b16 %v6175
        %v6479 = vunpack.c.h.b16 %v6175
        %v6480 = vunpack.c.l.b16 %v6176
        %v6481 = vunpack.c.h.b16 %v6176
        %v6482 = vunpack.c.l.b16 %v6177
        %v6483 = vunpack.c.h.b16 %v6177
        %v6484 = vunpack.c.l.b16 %v6178
        %v6485 = vunpack.c.h.b16 %v6178
        %v6486 = vunpack.c.l.b16 %v6179
        %v6487 = vunpack.c.h.b16 %v6179
        %v6488 = vunpack.c.l.b16 %v6180
        %v6489 = vunpack.c.h.b16 %v6180
        %v6490 = vunpack.c.l.b16 %v6181
        %v6491 = vunpack.c.h.b16 %v6181
        %v6492 = vunpack.c.l.b16 %v6182
        %v6493 = vunpack.c.h.b16 %v6182
        %v6494 = vunpack.c.l.b16 %v6183
        %v6495 = vunpack.c.h.b16 %v6183
        %v6496 = vunpack.c.l.b16 %v6184
        %v6497 = vunpack.c.h.b16 %v6184
        %v6498 = vunpack.c.l.b16 %v6185
        %v6499 = vunpack.c.h.b16 %v6185
        %v6500 = vunpack.c.l.b16 %v6186
        %v6501 = vunpack.c.h.b16 %v6186
        %v6502 = vunpack.c.l.b16 %v6187
        %v6503 = vunpack.c.h.b16 %v6187
        %v6504 = vunpack.c.l.b16 %v6188
        %v6505 = vunpack.c.h.b16 %v6188
        %v6506 = vunpack.c.l.b16 %v6189
        %v6507 = vunpack.c.h.b16 %v6189
        %v6508 = vunpack.c.l.b16 %v6190
        %v6509 = vunpack.c.h.b16 %v6190
        %v6510 = vunpack.c.l.b16 %v6191
        %v6511 = vunpack.c.h.b16 %v6191
        %v6512 = vunpack.c.l.b16 %v6192
        %v6513 = vunpack.c.h.b16 %v6192
        %v6514 = vpack.c.b16 %v6322, %v6314
        %v6515 = vpack.c.b16 %v6323, %v6315
        %v6516 = vpack.c.b16 %v6324, %v6316
        %v6517 = vpack.c.b16 %v6325, %v6317
        %v6518 = vpack.c.b16 %v6326, %v6318
        %v6519 = vpack.c.b16 %v6327, %v6319
        %v6520 = vpack.c.b16 %v6328, %v6320
        %v6521 = vpack.c.b16 %v6329, %v6321
        %v6522 = vpack.c.b16 %v6338, %v6330
        %v6523 = vpack.c.b16 %v6339, %v6331
        %v6524 = vpack.c.b16 %v6340, %v6332
        %v6525 = vpack.c.b16 %v6341, %v6333
        %v6526 = vpack.c.b16 %v6342, %v6334
        %v6527 = vpack.c.b16 %v6343, %v6335
        %v6528 = vpack.c.b16 %v6344, %v6336
        %v6529 = vpack.c.b16 %v6345, %v6337
        %v6530 = vpack.c.b16 %v6354, %v6346
        %v6531 = vpack.c.b16 %v6355, %v6347
        %v6532 = vpack.c.b16 %v6356, %v6348
        %v6533 = vpack.c.b16 %v6357, %v6349
        %v6534 = vpack.c.b16 %v6358, %v6350
        %v6535 = vpack.c.b16 %v6359, %v6351
        %v6536 = vpack.c.b16 %v6360, %v6352
        %v6537 = vpack.c.b16 %v6361, %v6353
        %v6538 = vpack.c.b16 %v6370, %v6362
        %v6539 = vpack.c.b16 %v6371, %v6363
        %v6540 = vpack.c.b16 %v6372, %v6364
        %v6541 = vpack.c.b16 %v6373, %v6365
        %v6542 = vpack.c.b16 %v6374, %v6366
        %v6543 = vpack.c.b16 %v6375, %v6367
        %v6544 = vpack.c.b16 %v6376, %v6368
        %v6545 = vpack.c.b16 %v6377, %v6369
        %v6546 = vpack.c.b16 %v6386, %v6378
        %v6547 = vpack.c.b16 %v6387, %v6379
        %v6548 = vpack.c.b16 %v6388, %v6380
        %v6549 = vpack.c.b16 %v6389, %v6381
        %v6550 = vpack.c.b16 %v6390, %v6382
        %v6551 = vpack.c.b16 %v6391, %v6383
        %v6552 = vpack.c.b16 %v6392, %v6384
        %v6553 = vpack.c.b16 %v6393, %v6385
        %v6554 = vpack.c.b16 %v6402, %v6394
        %v6555 = vpack.c.b16 %v6403, %v6395
        %v6556 = vpack.c.b16 %v6404, %v6396
        %v6557 = vpack.c.b16 %v6405, %v6397
        %v6558 = vpack.c.b16 %v6406, %v6398
        %v6559 = vpack.c.b16 %v6407, %v6399
        %v6560 = vpack.c.b16 %v6408, %v6400
        %v6561 = vpack.c.b16 %v6409, %v6401
        %v6562 = vpack.c.b16 %v6418, %v6410
        %v6563 = vpack.c.b16 %v6419, %v6411
        %v6564 = vpack.c.b16 %v6420, %v6412
        %v6565 = vpack.c.b16 %v6421, %v6413
        %v6566 = vpack.c.b16 %v6422, %v6414
        %v6567 = vpack.c.b16 %v6423, %v6415
        %v6568 = vpack.c.b16 %v6424, %v6416
        %v6569 = vpack.c.b16 %v6425, %v6417
        %v6570 = vpack.c.b16 %v6434, %v6426
        %v6571 = vpack.c.b16 %v6435, %v6427
        %v6572 = vpack.c.b16 %v6436, %v6428
        %v6573 = vpack.c.b16 %v6437, %v6429
        %v6574 = vpack.c.b16 %v6438, %v6430
        %v6575 = vpack.c.b16 %v6439, %v6431
        %v6576 = vpack.c.b16 %v6440, %v6432
        %v6577 = vpack.c.b16 %v6441, %v6433
        %v6578 = vpack.c.b16 %v6450, %v6442
        %v6579 = vpack.c.b16 %v6451, %v6443
        %v6580 = vpack.c.b16 %v6452, %v6444
        %v6581 = vpack.c.b16 %v6453, %v6445
        %v6582 = vpack.c.b16 %v6454, %v6446
        %v6583 = vpack.c.b16 %v6455, %v6447
        %v6584 = vpack.c.b16 %v6456, %v6448
        %v6585 = vpack.c.b16 %v6457, %v6449
        %v6586 = vpack.c.b16 %v6466, %v6458
        %v6587 = vpack.c.b16 %v6467, %v6459
        %v6588 = vpack.c.b16 %v6468, %v6460
        %v6589 = vpack.c.b16 %v6469, %v6461
        %v6590 = vpack.c.b16 %v6470, %v6462
        %v6591 = vpack.c.b16 %v6471, %v6463
        %v6592 = vpack.c.b16 %v6472, %v6464
        %v6593 = vpack.c.b16 %v6473, %v6465
        %v6594 = vpack.c.b16 %v6482, %v6474
        %v6595 = vpack.c.b16 %v6483, %v6475
        %v6596 = vpack.c.b16 %v6484, %v6476
        %v6597 = vpack.c.b16 %v6485, %v6477
        %v6598 = vpack.c.b16 %v6486, %v6478
        %v6599 = vpack.c.b16 %v6487, %v6479
        %v6600 = vpack.c.b16 %v6488, %v6480
        %v6601 = vpack.c.b16 %v6489, %v6481
        %v6602 = vpack.c.b16 %v6498, %v6490
        %v6603 = vpack.c.b16 %v6499, %v6491
        %v6604 = vpack.c.b16 %v6500, %v6492
        %v6605 = vpack.c.b16 %v6501, %v6493
        %v6606 = vpack.c.b16 %v6502, %v6494
        %v6607 = vpack.c.b16 %v6503, %v6495
        %v6608 = vpack.c.b16 %v6504, %v6496
        %v6609 = vpack.c.b16 %v6505, %v6497
        %v6610 = vpack.c.b16 %v6506, %v6506
        %v6611 = vpack.c.b16 %v6507, %v6507
        %v6612 = vpack.c.b16 %v6508, %v6508
        %v6613 = vpack.c.b16 %v6509, %v6509
        %v6614 = vpack.c.b16 %v6510, %v6510
        %v6615 = vpack.c.b16 %v6511, %v6511
        %v6616 = vpack.c.b16 %v6512, %v6512
        %v6617 = vpack.c.b16 %v6513, %v6513
        %vm6714 = vcmask 588800
        %v6716 = vsel %vm6714, %v6212, 0
        %vm6718 = vcmask 1043456
        %v6720 = vsel %vm6718, %v6610, 0
        %v6723 = vsel %vm6718, %v6611, 0
        %v6726 = vsel %vm6718, %v6612, 0
        %v6729 = vsel %vm6718, %v6613, 0
        %v6732 = vsel %vm6718, %v6614, 0
        %v6735 = vsel %vm6718, %v6615, 0
        %v6738 = vsel %vm6718, %v6616, 0
        %v6741 = vsel %vm6718, %v6617, 0
        %6743 = vmatpush.bf16.msra.mxu0 %v6570
        %6744 = vmatpush.bf16.msra.mxu0 %v6562
        %6745 = vmatpush.bf16.msra.mxu0 %v6554
        %6746 = vmatpush.bf16.msra.mxu0 %v6546
        %6747 = vmatpush.bf16.msra.mxu0 %v6538
        %6748 = vmatpush.bf16.msra.mxu0 %v6530
        %6749 = vmatpush.bf16.msra.mxu0 %v6522
        %6750 = vmatpush.bf16.msra.mxu0 %v6514
        %6751 = vmatmul.bf16.gmra.mxu0 %v6211
        %v6752 = vpop.f32.mrf.mxu0
        %v6753 = vadd.f32 %v6198, %v6752
        %v6754 = vpop.f32.mrf.mxu0
        %v6755 = vadd.f32 %v6203, %v6754
        %6756 = vdwg.mxu0
        %6757 = vmatpush.bf16.msra.mxu0 0
        %6758 = vmatpush.bf16.msra.mxu0 0
        %6759 = vmatpush.bf16.msra.mxu0 0
        %6760 = vmatpush.bf16.msra.mxu0 %v6720
        %6761 = vmatpush.bf16.msra.mxu0 %v6602
        %6762 = vmatpush.bf16.msra.mxu0 %v6594
        %6763 = vmatpush.bf16.msra.mxu0 %v6586
        %6764 = vmatpush.bf16.msra.mxu0 %v6578
        %6765 = vmatmul.bf16.gmra.mxu0 %v6716
        %v6766 = vpop.f32.mrf.mxu0
        %v6767 = vadd.f32 %v6753, %v6766
        %v6768 = vpop.f32.mrf.mxu0
        %v6769 = vadd.f32 %v6755, %v6768
        %6770 = vdwg.mxu0
        %6771 = vmatpush.bf16.msra.mxu0 %v6571
        %6772 = vmatpush.bf16.msra.mxu0 %v6563
        %6773 = vmatpush.bf16.msra.mxu0 %v6555
        %6774 = vmatpush.bf16.msra.mxu0 %v6547
        %6775 = vmatpush.bf16.msra.mxu0 %v6539
        %6776 = vmatpush.bf16.msra.mxu0 %v6531
        %6777 = vmatpush.bf16.msra.mxu0 %v6523
        %6778 = vmatpush.bf16.msra.mxu0 %v6515
        %6779 = vmatmul.bf16.gmra.mxu0 %v6211
        %v6780 = vpop.f32.mrf.mxu0
        %v6781 = vadd.f32 %v6198, %v6780
        %v6782 = vpop.f32.mrf.mxu0
        %v6783 = vadd.f32 %v6203, %v6782
        %6784 = vdwg.mxu0
        %6785 = vmatpush.bf16.msra.mxu0 0
        %6786 = vmatpush.bf16.msra.mxu0 0
        %6787 = vmatpush.bf16.msra.mxu0 0
        %6788 = vmatpush.bf16.msra.mxu0 %v6723
        %6789 = vmatpush.bf16.msra.mxu0 %v6603
        %6790 = vmatpush.bf16.msra.mxu0 %v6595
        %6791 = vmatpush.bf16.msra.mxu0 %v6587
        %6792 = vmatpush.bf16.msra.mxu0 %v6579
        %6793 = vmatmul.bf16.gmra.mxu0 %v6716
        %v6794 = vpop.f32.mrf.mxu0
        %v6795 = vadd.f32 %v6781, %v6794
        %v6796 = vpop.f32.mrf.mxu0
        %v6797 = vadd.f32 %v6783, %v6796
        %6798 = vdwg.mxu0
        %6799 = vmatpush.bf16.msra.mxu0 %v6572
        %6800 = vmatpush.bf16.msra.mxu0 %v6564
        %6801 = vmatpush.bf16.msra.mxu0 %v6556
        %6802 = vmatpush.bf16.msra.mxu0 %v6548
        %6803 = vmatpush.bf16.msra.mxu0 %v6540
        %6804 = vmatpush.bf16.msra.mxu0 %v6532
        %6805 = vmatpush.bf16.msra.mxu0 %v6524
        %6806 = vmatpush.bf16.msra.mxu0 %v6516
        %6807 = vmatmul.bf16.gmra.mxu0 %v6211
        %v6808 = vpop.f32.mrf.mxu0
        %v6809 = vadd.f32 %v6198, %v6808
        %v6810 = vpop.f32.mrf.mxu0
        %v6811 = vadd.f32 %v6203, %v6810
        %6812 = vdwg.mxu0
        %6813 = vmatpush.bf16.msra.mxu0 0
        %6814 = vmatpush.bf16.msra.mxu0 0
        %6815 = vmatpush.bf16.msra.mxu0 0
        %6816 = vmatpush.bf16.msra.mxu0 %v6726
        %6817 = vmatpush.bf16.msra.mxu0 %v6604
        %6818 = vmatpush.bf16.msra.mxu0 %v6596
        %6819 = vmatpush.bf16.msra.mxu0 %v6588
        %6820 = vmatpush.bf16.msra.mxu0 %v6580
        %6821 = vmatmul.bf16.gmra.mxu0 %v6716
        %v6822 = vpop.f32.mrf.mxu0
        %v6823 = vadd.f32 %v6809, %v6822
        %v6824 = vpop.f32.mrf.mxu0
        %v6825 = vadd.f32 %v6811, %v6824
        %6826 = vdwg.mxu0
        %6827 = vmatpush.bf16.msra.mxu0 %v6573
        %6828 = vmatpush.bf16.msra.mxu0 %v6565
        %6829 = vmatpush.bf16.msra.mxu0 %v6557
        %6830 = vmatpush.bf16.msra.mxu0 %v6549
        %6831 = vmatpush.bf16.msra.mxu0 %v6541
        %6832 = vmatpush.bf16.msra.mxu0 %v6533
        %6833 = vmatpush.bf16.msra.mxu0 %v6525
        %6834 = vmatpush.bf16.msra.mxu0 %v6517
        %6835 = vmatmul.bf16.gmra.mxu0 %v6211
        %v6836 = vpop.f32.mrf.mxu0
        %v6837 = vadd.f32 %v6198, %v6836
        %v6838 = vpop.f32.mrf.mxu0
        %v6839 = vadd.f32 %v6203, %v6838
        %6840 = vdwg.mxu0
        %6841 = vmatpush.bf16.msra.mxu0 0
        %6842 = vmatpush.bf16.msra.mxu0 0
        %6843 = vmatpush.bf16.msra.mxu0 0
        %6844 = vmatpush.bf16.msra.mxu0 %v6729
        %6845 = vmatpush.bf16.msra.mxu0 %v6605
        %6846 = vmatpush.bf16.msra.mxu0 %v6597
        %6847 = vmatpush.bf16.msra.mxu0 %v6589
        %6848 = vmatpush.bf16.msra.mxu0 %v6581
        %6849 = vmatmul.bf16.gmra.mxu0 %v6716
        %v6850 = vpop.f32.mrf.mxu0
        %v6851 = vadd.f32 %v6837, %v6850
        %v6852 = vpop.f32.mrf.mxu0
        %v6853 = vadd.f32 %v6839, %v6852
        %6854 = vdwg.mxu0
        %6855 = vmatpush.bf16.msra.mxu0 %v6574
        %6856 = vmatpush.bf16.msra.mxu0 %v6566
        %6857 = vmatpush.bf16.msra.mxu0 %v6558
        %6858 = vmatpush.bf16.msra.mxu0 %v6550
        %6859 = vmatpush.bf16.msra.mxu0 %v6542
        %6860 = vmatpush.bf16.msra.mxu0 %v6534
        %6861 = vmatpush.bf16.msra.mxu0 %v6526
        %6862 = vmatpush.bf16.msra.mxu0 %v6518
        %6863 = vmatmul.bf16.gmra.mxu0 %v6211
        %v6864 = vpop.f32.mrf.mxu0
        %v6865 = vadd.f32 %v6198, %v6864
        %v6866 = vpop.f32.mrf.mxu0
        %v6867 = vadd.f32 %v6203, %v6866
        %6868 = vdwg.mxu0
        %6869 = vmatpush.bf16.msra.mxu0 0
        %6870 = vmatpush.bf16.msra.mxu0 0
        %6871 = vmatpush.bf16.msra.mxu0 0
        %6872 = vmatpush.bf16.msra.mxu0 %v6732
        %6873 = vmatpush.bf16.msra.mxu0 %v6606
        %6874 = vmatpush.bf16.msra.mxu0 %v6598
        %6875 = vmatpush.bf16.msra.mxu0 %v6590
        %6876 = vmatpush.bf16.msra.mxu0 %v6582
        %6877 = vmatmul.bf16.gmra.mxu0 %v6716
        %v6878 = vpop.f32.mrf.mxu0
        %v6879 = vadd.f32 %v6865, %v6878
        %v6880 = vpop.f32.mrf.mxu0
        %v6881 = vadd.f32 %v6867, %v6880
        %6882 = vdwg.mxu0
        %6883 = vmatpush.bf16.msra.mxu0 %v6575
        %6884 = vmatpush.bf16.msra.mxu0 %v6567
        %6885 = vmatpush.bf16.msra.mxu0 %v6559
        %6886 = vmatpush.bf16.msra.mxu0 %v6551
        %6887 = vmatpush.bf16.msra.mxu0 %v6543
        %6888 = vmatpush.bf16.msra.mxu0 %v6535
        %6889 = vmatpush.bf16.msra.mxu0 %v6527
        %6890 = vmatpush.bf16.msra.mxu0 %v6519
        %6891 = vmatmul.bf16.gmra.mxu0 %v6211
        %v6892 = vpop.f32.mrf.mxu0
        %v6893 = vadd.f32 %v6198, %v6892
        %v6894 = vpop.f32.mrf.mxu0
        %v6895 = vadd.f32 %v6203, %v6894
        %6896 = vdwg.mxu0
        %6897 = vmatpush.bf16.msra.mxu0 0
        %6898 = vmatpush.bf16.msra.mxu0 0
        %6899 = vmatpush.bf16.msra.mxu0 0
        %6900 = vmatpush.bf16.msra.mxu0 %v6735
        %6901 = vmatpush.bf16.msra.mxu0 %v6607
        %6902 = vmatpush.bf16.msra.mxu0 %v6599
        %6903 = vmatpush.bf16.msra.mxu0 %v6591
        %6904 = vmatpush.bf16.msra.mxu0 %v6583
        %6905 = vmatmul.bf16.gmra.mxu0 %v6716
        %v6906 = vpop.f32.mrf.mxu0
        %v6907 = vadd.f32 %v6893, %v6906
        %v6908 = vpop.f32.mrf.mxu0
        %v6909 = vadd.f32 %v6895, %v6908
        %6910 = vdwg.mxu0
        %6911 = vmatpush.bf16.msra.mxu0 %v6576
        %6912 = vmatpush.bf16.msra.mxu0 %v6568
        %6913 = vmatpush.bf16.msra.mxu0 %v6560
        %6914 = vmatpush.bf16.msra.mxu0 %v6552
        %6915 = vmatpush.bf16.msra.mxu0 %v6544
        %6916 = vmatpush.bf16.msra.mxu0 %v6536
        %6917 = vmatpush.bf16.msra.mxu0 %v6528
        %6918 = vmatpush.bf16.msra.mxu0 %v6520
        %6919 = vmatmul.bf16.gmra.mxu0 %v6211
        %v6920 = vpop.f32.mrf.mxu0
        %v6921 = vadd.f32 %v6198, %v6920
        %v6922 = vpop.f32.mrf.mxu0
        %v6923 = vadd.f32 %v6203, %v6922
        %6924 = vdwg.mxu0
        %6925 = vmatpush.bf16.msra.mxu0 0
        %6926 = vmatpush.bf16.msra.mxu0 0
        %6927 = vmatpush.bf16.msra.mxu0 0
        %6928 = vmatpush.bf16.msra.mxu0 %v6738
        %6929 = vmatpush.bf16.msra.mxu0 %v6608
        %6930 = vmatpush.bf16.msra.mxu0 %v6600
        %6931 = vmatpush.bf16.msra.mxu0 %v6592
        %6932 = vmatpush.bf16.msra.mxu0 %v6584
        %6933 = vmatmul.bf16.gmra.mxu0 %v6716
        %v6934 = vpop.f32.mrf.mxu0
        %v6935 = vadd.f32 %v6921, %v6934
        %v6936 = vpop.f32.mrf.mxu0
        %v6937 = vadd.f32 %v6923, %v6936
        %6938 = vdwg.mxu0
        %6939 = vmatpush.bf16.msra.mxu0 %v6577
        %6940 = vmatpush.bf16.msra.mxu0 %v6569
        %6941 = vmatpush.bf16.msra.mxu0 %v6561
        %6942 = vmatpush.bf16.msra.mxu0 %v6553
        %6943 = vmatpush.bf16.msra.mxu0 %v6545
        %6944 = vmatpush.bf16.msra.mxu0 %v6537
        %6945 = vmatpush.bf16.msra.mxu0 %v6529
        %6946 = vmatpush.bf16.msra.mxu0 %v6521
        %6947 = vmatmul.bf16.gmra.mxu0 %v6211
        %v6948 = vpop.f32.mrf.mxu0
        %v6949 = vadd.f32 %v6198, %v6948
        %v6950 = vpop.f32.mrf.mxu0
        %v6951 = vadd.f32 %v6203, %v6950
        %6952 = vdwg.mxu0
        %6953 = vmatpush.bf16.msra.mxu0 0
        %6954 = vmatpush.bf16.msra.mxu0 0
        %6955 = vmatpush.bf16.msra.mxu0 0
        %6956 = vmatpush.bf16.msra.mxu0 %v6741
        %6957 = vmatpush.bf16.msra.mxu0 %v6609
        %6958 = vmatpush.bf16.msra.mxu0 %v6601
        %6959 = vmatpush.bf16.msra.mxu0 %v6593
        %6960 = vmatpush.bf16.msra.mxu0 %v6585
        %6961 = vmatmul.bf16.gmra.mxu0 %v6716
        %v6962 = vpop.f32.mrf.mxu0
        %v6963 = vadd.f32 %v6949, %v6962
        %v6964 = vpop.f32.mrf.mxu0
        %v6965 = vadd.f32 %v6951, %v6964
        %6966 = vdwg.mxu0
        %6967 = vst [vmem:[#allocation7] sm:$0xff] %v6767
        %6968 = vst [vmem:[#allocation7 + $0x8] sm:$0xff] %v6795
        %6969 = vst [vmem:[#allocation7 + $0x10] sm:$0xff] %v6823
        %6970 = vst [vmem:[#allocation7 + $0x18] sm:$0xff] %v6851
        %6971 = vst [vmem:[#allocation7 + $0x20] sm:$0xff] %v6879
        %6972 = vst [vmem:[#allocation7 + $0x28] sm:$0xff] %v6907
        %6973 = vst [vmem:[#allocation7 + $0x30] sm:$0xff] %v6935
        %6974 = vst [vmem:[#allocation7 + $0x38] sm:$0xff] %v6963
        %6975 = vst [vmem:[#allocation7 + $0x48] sm:$0x3] %v6769
        %6976 = vst [vmem:[#allocation7 + $0x50] sm:$0x3] %v6797
        %6977 = vst [vmem:[#allocation7 + $0x58] sm:$0x3] %v6825
        %6978 = vst [vmem:[#allocation7 + $0x60] sm:$0x3] %v6853
        %6979 = vst [vmem:[#allocation7 + $0x68] sm:$0x3] %v6881
        %6980 = vst [vmem:[#allocation7 + $0x70] sm:$0x3] %v6909
        %6981 = vst [vmem:[#allocation7 + $0x78] sm:$0x3] %v6937
        %6982 = vst [vmem:[#allocation7 + $0x80] sm:$0x3] %v6965
        %6983 = vst [vmem:[#allocation7 + $0x40] sm:$0xff] 0.0
        %6984 = vst [vmem:[#allocation7 + $0x88] sm:$0x3] 0.0
        %v6985 = vld [vmem:[#allocation7] sm:$0xff]
        %v6986 = vld [vmem:[#allocation7 + $0x8] sm:$0xff]
        %v6987 = vld [vmem:[#allocation7 + $0x10] sm:$0xff]
        %v6988 = vld [vmem:[#allocation7 + $0x18] sm:$0xff]
        %v6989 = vld [vmem:[#allocation7 + $0x20] sm:$0xff]
        %v6990 = vld [vmem:[#allocation7 + $0x28] sm:$0xff]
        %v6991 = vld [vmem:[#allocation7 + $0x30] sm:$0xff]
        %v6992 = vld [vmem:[#allocation7 + $0x38] sm:$0xff]
        %v6993 = vld [vmem:[#allocation7 + $0x48] sm:$0x3]
        %v6994 = vld [vmem:[#allocation7 + $0x50] sm:$0x3]
        %v6995 = vld [vmem:[#allocation7 + $0x58] sm:$0x3]
        %v6996 = vld [vmem:[#allocation7 + $0x60] sm:$0x3]
        %v6997 = vld [vmem:[#allocation7 + $0x68] sm:$0x3]
        %v6998 = vld [vmem:[#allocation7 + $0x70] sm:$0x3]
        %v6999 = vld [vmem:[#allocation7 + $0x78] sm:$0x3]
        %v7000 = vld [vmem:[#allocation7 + $0x80] sm:$0x3]
        %v7001 = vld [vmem:[#allocation7 + $0x40] sm:$0xff]
        %v7002 = vld [vmem:[#allocation7 + $0x88] sm:$0x3]
        %7021 = vrot.lane.b32.xlu0 %v6985, 126
        %v7022 = vpop.permute.xlu0 %7021
        %7023 = vrot.lane.b32.xlu0 %v6986, 126
        %v7024 = vpop.permute.xlu0 %7023
        %7025 = vrot.lane.b32.xlu0 %v6987, 126
        %v7026 = vpop.permute.xlu0 %7025
        %7027 = vrot.lane.b32.xlu0 %v6988, 126
        %v7028 = vpop.permute.xlu0 %7027
        %7029 = vrot.lane.b32.xlu0 %v6989, 126
        %v7030 = vpop.permute.xlu0 %7029
        %7031 = vrot.lane.b32.xlu0 %v6990, 126
        %v7032 = vpop.permute.xlu0 %7031
        %7033 = vrot.lane.b32.xlu0 %v6991, 126
        %v7034 = vpop.permute.xlu0 %7033
        %7035 = vrot.lane.b32.xlu0 %v6992, 126
        %v7036 = vpop.permute.xlu0 %7035
        %7037 = vrot.lane.b32.xlu0 %v7001, 126
        %v7038 = vpop.permute.xlu0 %7037
        %7039 = vrot.lane.b32.xlu0 %v6993, 126
        %v7040 = vpop.permute.xlu0 %7039
        %7041 = vrot.lane.b32.xlu0 %v6994, 126
        %v7042 = vpop.permute.xlu0 %7041
        %7043 = vrot.lane.b32.xlu0 %v6995, 126
        %v7044 = vpop.permute.xlu0 %7043
        %7045 = vrot.lane.b32.xlu0 %v6996, 126
        %v7046 = vpop.permute.xlu0 %7045
        %7047 = vrot.lane.b32.xlu0 %v6997, 126
        %v7048 = vpop.permute.xlu0 %7047
        %7049 = vrot.lane.b32.xlu0 %v6998, 126
        %v7050 = vpop.permute.xlu0 %7049
        %7051 = vrot.lane.b32.xlu0 %v6999, 126
        %v7052 = vpop.permute.xlu0 %7051
        %7053 = vrot.lane.b32.xlu0 %v7000, 126
        %v7054 = vpop.permute.xlu0 %7053
        %7055 = vrot.lane.b32.xlu0 %v7002, 126
        %v7056 = vpop.permute.xlu0 %7055
        %vm7057 = vcmask 1031168
        %v7058 = vsel %vm7057, %v7022, %v7024
        %v7059 = vsel %vm7057, %v7024, %v7026
        %v7060 = vsel %vm7057, %v7026, %v7028
        %v7061 = vsel %vm7057, %v7028, %v7030
        %v7062 = vsel %vm7057, %v7030, %v7032
        %v7063 = vsel %vm7057, %v7032, %v7034
        %v7064 = vsel %vm7057, %v7034, %v7036
        %v7065 = vsel %vm7057, %v7036, %v7038
        %v7066 = vsel %vm7057, %v7040, %v7042
        %v7067 = vsel %vm7057, %v7042, %v7044
        %v7068 = vsel %vm7057, %v7044, %v7046
        %v7069 = vsel %vm7057, %v7046, %v7048
        %v7070 = vsel %vm7057, %v7048, %v7050
        %v7071 = vsel %vm7057, %v7050, %v7052
        %v7072 = vsel %vm7057, %v7052, %v7054
        %v7073 = vsel %vm7057, %v7054, %v7056
        %v7090 = vmax.f32 %v6985, %v7058
        %v7091 = vmax.f32 %v6986, %v7059
        %v7092 = vmax.f32 %v6987, %v7060
        %v7093 = vmax.f32 %v6988, %v7061
        %v7094 = vmax.f32 %v6989, %v7062
        %v7095 = vmax.f32 %v6990, %v7063
        %v7096 = vmax.f32 %v6991, %v7064
        %v7097 = vmax.f32 %v6992, %v7065
        %v7098 = vmax.f32 %v6993, %v7066
        %v7099 = vmax.f32 %v6994, %v7067
        %v7100 = vmax.f32 %v6995, %v7068
        %v7101 = vmax.f32 %v6996, %v7069
        %v7102 = vmax.f32 %v6997, %v7070
        %v7103 = vmax.f32 %v6998, %v7071
        %v7104 = vmax.f32 %v6999, %v7072
        %v7105 = vmax.f32 %v7000, %v7073
        %v7108 = vmax.f32 %v7001, %v7038
        %v7109 = vmax.f32 %v7002, %v7056
        %7128 = vrot.lane.b32.xlu0 %v7090, 64
        %v7129 = vpop.permute.xlu0 %7128
        %7130 = vrot.lane.b32.xlu0 %v7091, 64
        %v7131 = vpop.permute.xlu0 %7130
        %7132 = vrot.lane.b32.xlu0 %v7092, 64
        %v7133 = vpop.permute.xlu0 %7132
        %7134 = vrot.lane.b32.xlu0 %v7093, 64
        %v7135 = vpop.permute.xlu0 %7134
        %7136 = vrot.lane.b32.xlu0 %v7094, 64
        %v7137 = vpop.permute.xlu0 %7136
        %7138 = vrot.lane.b32.xlu0 %v7095, 64
        %v7139 = vpop.permute.xlu0 %7138
        %7140 = vrot.lane.b32.xlu0 %v7096, 64
        %v7141 = vpop.permute.xlu0 %7140
        %7142 = vrot.lane.b32.xlu0 %v7097, 64
        %v7143 = vpop.permute.xlu0 %7142
        %7144 = vrot.lane.b32.xlu0 %v7108, 64
        %v7145 = vpop.permute.xlu0 %7144
        %7146 = vrot.lane.b32.xlu0 %v7098, 64
        %v7147 = vpop.permute.xlu0 %7146
        %7148 = vrot.lane.b32.xlu0 %v7099, 64
        %v7149 = vpop.permute.xlu0 %7148
        %7150 = vrot.lane.b32.xlu0 %v7100, 64
        %v7151 = vpop.permute.xlu0 %7150
        %7152 = vrot.lane.b32.xlu0 %v7101, 64
        %v7153 = vpop.permute.xlu0 %7152
        %7154 = vrot.lane.b32.xlu0 %v7102, 64
        %v7155 = vpop.permute.xlu0 %7154
        %7156 = vrot.lane.b32.xlu0 %v7103, 64
        %v7157 = vpop.permute.xlu0 %7156
        %7158 = vrot.lane.b32.xlu0 %v7104, 64
        %v7159 = vpop.permute.xlu0 %7158
        %7160 = vrot.lane.b32.xlu0 %v7105, 64
        %v7161 = vpop.permute.xlu0 %7160
        %7162 = vrot.lane.b32.xlu0 %v7109, 64
        %v7163 = vpop.permute.xlu0 %7162
        %vm7164 = vcmask 523264
        %v7165 = vsel %vm7164, %v7129, %v7131
        %v7166 = vsel %vm7164, %v7131, %v7133
        %v7167 = vsel %vm7164, %v7133, %v7135
        %v7168 = vsel %vm7164, %v7135, %v7137
        %v7169 = vsel %vm7164, %v7137, %v7139
        %v7170 = vsel %vm7164, %v7139, %v7141
        %v7171 = vsel %vm7164, %v7141, %v7143
        %v7172 = vsel %vm7164, %v7143, %v7145
        %v7173 = vsel %vm7164, %v7147, %v7149
        %v7174 = vsel %vm7164, %v7149, %v7151
        %v7175 = vsel %vm7164, %v7151, %v7153
        %v7176 = vsel %vm7164, %v7153, %v7155
        %v7177 = vsel %vm7164, %v7155, %v7157
        %v7178 = vsel %vm7164, %v7157, %v7159
        %v7179 = vsel %vm7164, %v7159, %v7161
        %v7180 = vsel %vm7164, %v7161, %v7163
        %v7197 = vmax.f32 %v7090, %v7165
        %v7198 = vmax.f32 %v7091, %v7166
        %v7199 = vmax.f32 %v7092, %v7167
        %v7200 = vmax.f32 %v7093, %v7168
        %v7201 = vmax.f32 %v7094, %v7169
        %v7202 = vmax.f32 %v7095, %v7170
        %v7203 = vmax.f32 %v7096, %v7171
        %v7204 = vmax.f32 %v7097, %v7172
        %v7205 = vmax.f32 %v7098, %v7173
        %v7206 = vmax.f32 %v7099, %v7174
        %v7207 = vmax.f32 %v7100, %v7175
        %v7208 = vmax.f32 %v7101, %v7176
        %v7209 = vmax.f32 %v7102, %v7177
        %v7210 = vmax.f32 %v7103, %v7178
        %v7211 = vmax.f32 %v7104, %v7179
        %v7212 = vmax.f32 %v7105, %v7180
        %v7213 = vmax.f32 %v7197, 0.0
        %v7214 = vmax.f32 %v7198, 0.0
        %v7215 = vmax.f32 %v7199, 0.0
        %v7216 = vmax.f32 %v7200, 0.0
        %v7217 = vmax.f32 %v7201, 0.0
        %v7218 = vmax.f32 %v7202, 0.0
        %v7219 = vmax.f32 %v7203, 0.0
        %v7220 = vmax.f32 %v7204, 0.0
        %v7221 = vmax.f32 %v7205, 0.0
        %v7222 = vmax.f32 %v7206, 0.0
        %v7223 = vmax.f32 %v7207, 0.0
        %v7224 = vmax.f32 %v7208, 0.0
        %v7225 = vmax.f32 %v7209, 0.0
        %v7226 = vmax.f32 %v7210, 0.0
        %v7227 = vmax.f32 %v7211, 0.0
        %v7228 = vmax.f32 %v7212, 0.0
        %v7229 = vpack.c.bf16 %v7221, %v7213
        %v7230 = vpack.c.bf16 %v7222, %v7214
        %v7231 = vpack.c.bf16 %v7223, %v7215
        %v7232 = vpack.c.bf16 %v7224, %v7216
        %v7233 = vpack.c.bf16 %v7225, %v7217
        %v7234 = vpack.c.bf16 %v7226, %v7218
        %v7235 = vpack.c.bf16 %v7227, %v7219
        %v7236 = vpack.c.bf16 %v7228, %v7220
        %v7237 = vld [vmem:[#allocation12] sm:$0xff]
        %v7238 = vld [vmem:[#allocation12 + $0x8] sm:$0xff]
        %v7239 = vld [vmem:[#allocation12 + $0x10] sm:$0xff]
        %v7240 = vld [vmem:[#allocation12 + $0x18] sm:$0xff]
        %v7241 = vld [vmem:[#allocation12 + $0x20] sm:$0xff]
        %v7242 = vld [vmem:[#allocation12 + $0x28] sm:$0xff]
        %v7243 = vld [vmem:[#allocation12 + $0x30] sm:$0xff]
        %v7244 = vld [vmem:[#allocation12 + $0x38] sm:$0xff]
        %v7245 = vld [vmem:[#allocation12 + $0x40] sm:$0xff]
        %v7246 = vld [vmem:[#allocation12 + $0x48] sm:$0xff]
        %v7247 = vld [vmem:[#allocation12 + $0x50] sm:$0xff]
        %v7248 = vld [vmem:[#allocation12 + $0x58] sm:$0xff]
        %v7249 = vld [vmem:[#allocation12 + $0x60] sm:$0xff]
        %v7250 = vld [vmem:[#allocation12 + $0x68] sm:$0xff]
        %v7251 = vld [vmem:[#allocation12 + $0x70] sm:$0xff]
        %v7252 = vld [vmem:[#allocation12 + $0x78] sm:$0xff]
        %v7253 = vld [vmem:[#allocation12 + $0x80] sm:$0xff]
        %v7254 = vld [vmem:[#allocation12 + $0x88] sm:$0xff]
        %v7255 = vld [vmem:[#allocation12 + $0x90] sm:$0xff]
        %v7256 = vld [vmem:[#allocation12 + $0x98] sm:$0xff]
        %v7257 = vld [vmem:[#allocation12 + $0xa0] sm:$0xff]
        %v7258 = vld [vmem:[#allocation12 + $0xa8] sm:$0xff]
        %v7259 = vld [vmem:[#allocation12 + $0xb0] sm:$0xff]
        %v7260 = vld [vmem:[#allocation12 + $0xb8] sm:$0xff]
        %v7261 = vld [vmem:[#allocation12 + $0xc0] sm:$0xff]
        %v7262 = vld [vmem:[#allocation12 + $0xc8] sm:$0xff]
        %v7263 = vld [vmem:[#allocation12 + $0xd0] sm:$0xff]
        %v7264 = vld [vmem:[#allocation12 + $0xd8] sm:$0xff]
        %v7265 = vld [vmem:[#allocation12 + $0xe0] sm:$0xff]
        %v7266 = vld [vmem:[#allocation12 + $0xe8] sm:$0xff]
        %v7267 = vld [vmem:[#allocation12 + $0xf0] sm:$0xff]
        %v7268 = vld [vmem:[#allocation12 + $0xf8] sm:$0xff]
        %v7269 = vld [vmem:[#allocation12 + $0x100] sm:$0xff]
        %v7270 = vld [vmem:[#allocation12 + $0x108] sm:$0xff]
        %v7271 = vld [vmem:[#allocation12 + $0x110] sm:$0xff]
        %v7272 = vld [vmem:[#allocation12 + $0x118] sm:$0xff]
        %v7273 = vld [vmem:[#allocation12 + $0x120] sm:$0xff]
        %v7274 = vld [vmem:[#allocation12 + $0x128] sm:$0xff]
        %v7275 = vld [vmem:[#allocation12 + $0x130] sm:$0xff]
        %v7276 = vld [vmem:[#allocation12 + $0x138] sm:$0xff]
        %v7277 = vld [vmem:[#allocation12 + $0x140] sm:$0xff]
        %v7278 = vld [vmem:[#allocation12 + $0x148] sm:$0xff]
        %v7279 = vld [vmem:[#allocation12 + $0x150] sm:$0xff]
        %v7280 = vld [vmem:[#allocation12 + $0x158] sm:$0xff]
        %v7281 = vld [vmem:[#allocation12 + $0x160] sm:$0xff]
        %v7282 = vld [vmem:[#allocation12 + $0x168] sm:$0xff]
        %v7283 = vld [vmem:[#allocation12 + $0x170] sm:$0xff]
        %v7284 = vld [vmem:[#allocation12 + $0x178] sm:$0xff]
        %v7285 = vld [vmem:[#allocation12 + $0x180] sm:$0xff]
        %v7286 = vld [vmem:[#allocation12 + $0x188] sm:$0xff]
        %v7287 = vld [vmem:[#allocation12 + $0x190] sm:$0xff]
        %v7288 = vld [vmem:[#allocation12 + $0x198] sm:$0xff]
        %v7289 = vld [vmem:[#allocation12 + $0x1a0] sm:$0xff]
        %v7290 = vld [vmem:[#allocation12 + $0x1a8] sm:$0xff]
        %v7291 = vld [vmem:[#allocation12 + $0x1b0] sm:$0xff]
        %v7292 = vld [vmem:[#allocation12 + $0x1b8] sm:$0xff]
        %v7293 = vld [vmem:[#allocation12 + $0x1c0] sm:$0xff]
        %v7294 = vld [vmem:[#allocation12 + $0x1c8] sm:$0xff]
        %v7295 = vld [vmem:[#allocation12 + $0x1d0] sm:$0xff]
        %v7296 = vld [vmem:[#allocation12 + $0x1d8] sm:$0xff]
        %v7297 = vld [vmem:[#allocation12 + $0x1e0] sm:$0xff]
        %v7298 = vld [vmem:[#allocation12 + $0x1e8] sm:$0xff]
        %v7299 = vld [vmem:[#allocation12 + $0x1f0] sm:$0xff]
        %v7300 = vld [vmem:[#allocation12 + $0x1f8] sm:$0xff]
        %v7301 = vld [vmem:[#allocation12 + $0x200] sm:$0xff]
        %v7302 = vld [vmem:[#allocation12 + $0x208] sm:$0xff]
        %v7303 = vld [vmem:[#allocation12 + $0x210] sm:$0xff]
        %v7304 = vld [vmem:[#allocation12 + $0x218] sm:$0xff]
        %v7305 = vld [vmem:[#allocation12 + $0x220] sm:$0xff]
        %v7306 = vld [vmem:[#allocation12 + $0x228] sm:$0xff]
        %v7307 = vld [vmem:[#allocation12 + $0x230] sm:$0xff]
        %v7308 = vld [vmem:[#allocation12 + $0x238] sm:$0xff]
        %v7309 = vld [vmem:[#allocation12 + $0x240] sm:$0xff]
        %v7310 = vld [vmem:[#allocation12 + $0x248] sm:$0xff]
        %v7311 = vld [vmem:[#allocation12 + $0x250] sm:$0xff]
        %v7312 = vld [vmem:[#allocation12 + $0x258] sm:$0xff]
        %v7313 = vld [vmem:[#allocation12 + $0x260] sm:$0xff]
        %v7314 = vld [vmem:[#allocation12 + $0x268] sm:$0xff]
        %v7315 = vld [vmem:[#allocation12 + $0x270] sm:$0xff]
        %v7316 = vld [vmem:[#allocation12 + $0x278] sm:$0xff]
        %v7317 = vld [vmem:[#allocation12 + $0x280] sm:$0xff]
        %v7318 = vld [vmem:[#allocation12 + $0x288] sm:$0xff]
        %v7319 = vld [vmem:[#allocation12 + $0x290] sm:$0xff]
        %v7320 = vld [vmem:[#allocation12 + $0x298] sm:$0xff]
        %v7321 = vld [vmem:[#allocation12 + $0x2a0] sm:$0xff]
        %v7322 = vld [vmem:[#allocation12 + $0x2a8] sm:$0xff]
        %v7323 = vld [vmem:[#allocation12 + $0x2b0] sm:$0xff]
        %v7324 = vld [vmem:[#allocation12 + $0x2b8] sm:$0xff]
        %v7325 = vld [vmem:[#allocation12 + $0x2c0] sm:$0xff]
        %v7326 = vld [vmem:[#allocation12 + $0x2c8] sm:$0xff]
        %v7327 = vld [vmem:[#allocation12 + $0x2d0] sm:$0xff]
        %v7328 = vld [vmem:[#allocation12 + $0x2d8] sm:$0xff]
        %v7329 = vld [vmem:[#allocation12 + $0x2e0] sm:$0xff]
        %v7330 = vld [vmem:[#allocation12 + $0x2e8] sm:$0xff]
        %v7331 = vld [vmem:[#allocation12 + $0x2f0] sm:$0xff]
        %v7332 = vld [vmem:[#allocation12 + $0x2f8] sm:$0xff]
        %v7333 = vld [vmem:[#allocation12 + $0x300] sm:$0xff]
        %v7334 = vld [vmem:[#allocation12 + $0x308] sm:$0xff]
        %v7335 = vld [vmem:[#allocation12 + $0x310] sm:$0xff]
        %v7336 = vld [vmem:[#allocation12 + $0x318] sm:$0xff]
        %v7337 = vld [vmem:[#allocation12 + $0x320] sm:$0xff]
        %v7338 = vld [vmem:[#allocation12 + $0x328] sm:$0xff]
        %v7339 = vld [vmem:[#allocation12 + $0x330] sm:$0xff]
        %v7340 = vld [vmem:[#allocation12 + $0x338] sm:$0xff]
        %v7341 = vld [vmem:[#allocation12 + $0x340] sm:$0xff]
        %v7342 = vld [vmem:[#allocation12 + $0x348] sm:$0xff]
        %v7343 = vld [vmem:[#allocation12 + $0x350] sm:$0xff]
        %v7344 = vld [vmem:[#allocation12 + $0x358] sm:$0xff]
        %v7345 = vld [vmem:[#allocation12 + $0x360] sm:$0xff]
        %v7346 = vld [vmem:[#allocation12 + $0x368] sm:$0xff]
        %v7347 = vld [vmem:[#allocation12 + $0x370] sm:$0xff]
        %v7348 = vld [vmem:[#allocation12 + $0x378] sm:$0xff]
        %v7349 = vld [vmem:[#allocation12 + $0x380] sm:$0xff]
        %v7350 = vld [vmem:[#allocation12 + $0x388] sm:$0xff]
        %v7351 = vld [vmem:[#allocation12 + $0x390] sm:$0xff]
        %v7352 = vld [vmem:[#allocation12 + $0x398] sm:$0xff]
        %v7353 = vld [vmem:[#allocation12 + $0x3a0] sm:$0xff]
        %v7354 = vld [vmem:[#allocation12 + $0x3a8] sm:$0xff]
        %v7355 = vld [vmem:[#allocation12 + $0x3b0] sm:$0xff]
        %v7356 = vld [vmem:[#allocation12 + $0x3b8] sm:$0xff]
        %v7357 = vld [vmem:[#allocation12 + $0x3c0] sm:$0xff]
        %v7358 = vld [vmem:[#allocation12 + $0x3c8] sm:$0xff]
        %v7359 = vld [vmem:[#allocation12 + $0x3d0] sm:$0xff]
        %v7360 = vld [vmem:[#allocation12 + $0x3d8] sm:$0xff]
        %v7361 = vld [vmem:[#allocation12 + $0x3e0] sm:$0xff]
        %v7362 = vld [vmem:[#allocation12 + $0x3e8] sm:$0xff]
        %v7363 = vld [vmem:[#allocation12 + $0x3f0] sm:$0xff]
        %v7364 = vld [vmem:[#allocation12 + $0x3f8] sm:$0xff]
        %v7493 = vunpack.c.l.b16 %v7237
        %v7494 = vunpack.c.h.b16 %v7237
        %v7495 = vunpack.c.l.b16 %v7238
        %v7496 = vunpack.c.h.b16 %v7238
        %v7497 = vunpack.c.l.b16 %v7239
        %v7498 = vunpack.c.h.b16 %v7239
        %v7499 = vunpack.c.l.b16 %v7240
        %v7500 = vunpack.c.h.b16 %v7240
        %v7501 = vunpack.c.l.b16 %v7241
        %v7502 = vunpack.c.h.b16 %v7241
        %v7503 = vunpack.c.l.b16 %v7242
        %v7504 = vunpack.c.h.b16 %v7242
        %v7505 = vunpack.c.l.b16 %v7243
        %v7506 = vunpack.c.h.b16 %v7243
        %v7507 = vunpack.c.l.b16 %v7244
        %v7508 = vunpack.c.h.b16 %v7244
        %v7509 = vunpack.c.l.b16 %v7245
        %v7510 = vunpack.c.h.b16 %v7245
        %v7511 = vunpack.c.l.b16 %v7246
        %v7512 = vunpack.c.h.b16 %v7246
        %v7513 = vunpack.c.l.b16 %v7247
        %v7514 = vunpack.c.h.b16 %v7247
        %v7515 = vunpack.c.l.b16 %v7248
        %v7516 = vunpack.c.h.b16 %v7248
        %v7517 = vunpack.c.l.b16 %v7249
        %v7518 = vunpack.c.h.b16 %v7249
        %v7519 = vunpack.c.l.b16 %v7250
        %v7520 = vunpack.c.h.b16 %v7250
        %v7521 = vunpack.c.l.b16 %v7251
        %v7522 = vunpack.c.h.b16 %v7251
        %v7523 = vunpack.c.l.b16 %v7252
        %v7524 = vunpack.c.h.b16 %v7252
        %v7525 = vunpack.c.l.b16 %v7253
        %v7526 = vunpack.c.h.b16 %v7253
        %v7527 = vunpack.c.l.b16 %v7254
        %v7528 = vunpack.c.h.b16 %v7254
        %v7529 = vunpack.c.l.b16 %v7255
        %v7530 = vunpack.c.h.b16 %v7255
        %v7531 = vunpack.c.l.b16 %v7256
        %v7532 = vunpack.c.h.b16 %v7256
        %v7533 = vunpack.c.l.b16 %v7257
        %v7534 = vunpack.c.h.b16 %v7257
        %v7535 = vunpack.c.l.b16 %v7258
        %v7536 = vunpack.c.h.b16 %v7258
        %v7537 = vunpack.c.l.b16 %v7259
        %v7538 = vunpack.c.h.b16 %v7259
        %v7539 = vunpack.c.l.b16 %v7260
        %v7540 = vunpack.c.h.b16 %v7260
        %v7541 = vunpack.c.l.b16 %v7261
        %v7542 = vunpack.c.h.b16 %v7261
        %v7543 = vunpack.c.l.b16 %v7262
        %v7544 = vunpack.c.h.b16 %v7262
        %v7545 = vunpack.c.l.b16 %v7263
        %v7546 = vunpack.c.h.b16 %v7263
        %v7547 = vunpack.c.l.b16 %v7264
        %v7548 = vunpack.c.h.b16 %v7264
        %v7549 = vunpack.c.l.b16 %v7265
        %v7550 = vunpack.c.h.b16 %v7265
        %v7551 = vunpack.c.l.b16 %v7266
        %v7552 = vunpack.c.h.b16 %v7266
        %v7553 = vunpack.c.l.b16 %v7267
        %v7554 = vunpack.c.h.b16 %v7267
        %v7555 = vunpack.c.l.b16 %v7268
        %v7556 = vunpack.c.h.b16 %v7268
        %v7557 = vunpack.c.l.b16 %v7269
        %v7558 = vunpack.c.h.b16 %v7269
        %v7559 = vunpack.c.l.b16 %v7270
        %v7560 = vunpack.c.h.b16 %v7270
        %v7561 = vunpack.c.l.b16 %v7271
        %v7562 = vunpack.c.h.b16 %v7271
        %v7563 = vunpack.c.l.b16 %v7272
        %v7564 = vunpack.c.h.b16 %v7272
        %v7565 = vunpack.c.l.b16 %v7273
        %v7566 = vunpack.c.h.b16 %v7273
        %v7567 = vunpack.c.l.b16 %v7274
        %v7568 = vunpack.c.h.b16 %v7274
        %v7569 = vunpack.c.l.b16 %v7275
        %v7570 = vunpack.c.h.b16 %v7275
        %v7571 = vunpack.c.l.b16 %v7276
        %v7572 = vunpack.c.h.b16 %v7276
        %v7573 = vunpack.c.l.b16 %v7277
        %v7574 = vunpack.c.h.b16 %v7277
        %v7575 = vunpack.c.l.b16 %v7278
        %v7576 = vunpack.c.h.b16 %v7278
        %v7577 = vunpack.c.l.b16 %v7279
        %v7578 = vunpack.c.h.b16 %v7279
        %v7579 = vunpack.c.l.b16 %v7280
        %v7580 = vunpack.c.h.b16 %v7280
        %v7581 = vunpack.c.l.b16 %v7281
        %v7582 = vunpack.c.h.b16 %v7281
        %v7583 = vunpack.c.l.b16 %v7282
        %v7584 = vunpack.c.h.b16 %v7282
        %v7585 = vunpack.c.l.b16 %v7283
        %v7586 = vunpack.c.h.b16 %v7283
        %v7587 = vunpack.c.l.b16 %v7284
        %v7588 = vunpack.c.h.b16 %v7284
        %v7589 = vunpack.c.l.b16 %v7285
        %v7590 = vunpack.c.h.b16 %v7285
        %v7591 = vunpack.c.l.b16 %v7286
        %v7592 = vunpack.c.h.b16 %v7286
        %v7593 = vunpack.c.l.b16 %v7287
        %v7594 = vunpack.c.h.b16 %v7287
        %v7595 = vunpack.c.l.b16 %v7288
        %v7596 = vunpack.c.h.b16 %v7288
        %v7597 = vunpack.c.l.b16 %v7289
        %v7598 = vunpack.c.h.b16 %v7289
        %v7599 = vunpack.c.l.b16 %v7290
        %v7600 = vunpack.c.h.b16 %v7290
        %v7601 = vunpack.c.l.b16 %v7291
        %v7602 = vunpack.c.h.b16 %v7291
        %v7603 = vunpack.c.l.b16 %v7292
        %v7604 = vunpack.c.h.b16 %v7292
        %v7605 = vunpack.c.l.b16 %v7293
        %v7606 = vunpack.c.h.b16 %v7293
        %v7607 = vunpack.c.l.b16 %v7294
        %v7608 = vunpack.c.h.b16 %v7294
        %v7609 = vunpack.c.l.b16 %v7295
        %v7610 = vunpack.c.h.b16 %v7295
        %v7611 = vunpack.c.l.b16 %v7296
        %v7612 = vunpack.c.h.b16 %v7296
        %v7613 = vunpack.c.l.b16 %v7297
        %v7614 = vunpack.c.h.b16 %v7297
        %v7615 = vunpack.c.l.b16 %v7298
        %v7616 = vunpack.c.h.b16 %v7298
        %v7617 = vunpack.c.l.b16 %v7299
        %v7618 = vunpack.c.h.b16 %v7299
        %v7619 = vunpack.c.l.b16 %v7300
        %v7620 = vunpack.c.h.b16 %v7300
        %v7621 = vunpack.c.l.b16 %v7301
        %v7622 = vunpack.c.h.b16 %v7301
        %v7623 = vunpack.c.l.b16 %v7302
        %v7624 = vunpack.c.h.b16 %v7302
        %v7625 = vunpack.c.l.b16 %v7303
        %v7626 = vunpack.c.h.b16 %v7303
        %v7627 = vunpack.c.l.b16 %v7304
        %v7628 = vunpack.c.h.b16 %v7304
        %v7629 = vunpack.c.l.b16 %v7305
        %v7630 = vunpack.c.h.b16 %v7305
        %v7631 = vunpack.c.l.b16 %v7306
        %v7632 = vunpack.c.h.b16 %v7306
        %v7633 = vunpack.c.l.b16 %v7307
        %v7634 = vunpack.c.h.b16 %v7307
        %v7635 = vunpack.c.l.b16 %v7308
        %v7636 = vunpack.c.h.b16 %v7308
        %v7637 = vunpack.c.l.b16 %v7309
        %v7638 = vunpack.c.h.b16 %v7309
        %v7639 = vunpack.c.l.b16 %v7310
        %v7640 = vunpack.c.h.b16 %v7310
        %v7641 = vunpack.c.l.b16 %v7311
        %v7642 = vunpack.c.h.b16 %v7311
        %v7643 = vunpack.c.l.b16 %v7312
        %v7644 = vunpack.c.h.b16 %v7312
        %v7645 = vunpack.c.l.b16 %v7313
        %v7646 = vunpack.c.h.b16 %v7313
        %v7647 = vunpack.c.l.b16 %v7314
        %v7648 = vunpack.c.h.b16 %v7314
        %v7649 = vunpack.c.l.b16 %v7315
        %v7650 = vunpack.c.h.b16 %v7315
        %v7651 = vunpack.c.l.b16 %v7316
        %v7652 = vunpack.c.h.b16 %v7316
        %v7653 = vunpack.c.l.b16 %v7317
        %v7654 = vunpack.c.h.b16 %v7317
        %v7655 = vunpack.c.l.b16 %v7318
        %v7656 = vunpack.c.h.b16 %v7318
        %v7657 = vunpack.c.l.b16 %v7319
        %v7658 = vunpack.c.h.b16 %v7319
        %v7659 = vunpack.c.l.b16 %v7320
        %v7660 = vunpack.c.h.b16 %v7320
        %v7661 = vunpack.c.l.b16 %v7321
        %v7662 = vunpack.c.h.b16 %v7321
        %v7663 = vunpack.c.l.b16 %v7322
        %v7664 = vunpack.c.h.b16 %v7322
        %v7665 = vunpack.c.l.b16 %v7323
        %v7666 = vunpack.c.h.b16 %v7323
        %v7667 = vunpack.c.l.b16 %v7324
        %v7668 = vunpack.c.h.b16 %v7324
        %v7669 = vunpack.c.l.b16 %v7325
        %v7670 = vunpack.c.h.b16 %v7325
        %v7671 = vunpack.c.l.b16 %v7326
        %v7672 = vunpack.c.h.b16 %v7326
        %v7673 = vunpack.c.l.b16 %v7327
        %v7674 = vunpack.c.h.b16 %v7327
        %v7675 = vunpack.c.l.b16 %v7328
        %v7676 = vunpack.c.h.b16 %v7328
        %v7677 = vunpack.c.l.b16 %v7329
        %v7678 = vunpack.c.h.b16 %v7329
        %v7679 = vunpack.c.l.b16 %v7330
        %v7680 = vunpack.c.h.b16 %v7330
        %v7681 = vunpack.c.l.b16 %v7331
        %v7682 = vunpack.c.h.b16 %v7331
        %v7683 = vunpack.c.l.b16 %v7332
        %v7684 = vunpack.c.h.b16 %v7332
        %v7685 = vunpack.c.l.b16 %v7333
        %v7686 = vunpack.c.h.b16 %v7333
        %v7687 = vunpack.c.l.b16 %v7334
        %v7688 = vunpack.c.h.b16 %v7334
        %v7689 = vunpack.c.l.b16 %v7335
        %v7690 = vunpack.c.h.b16 %v7335
        %v7691 = vunpack.c.l.b16 %v7336
        %v7692 = vunpack.c.h.b16 %v7336
        %v7693 = vunpack.c.l.b16 %v7337
        %v7694 = vunpack.c.h.b16 %v7337
        %v7695 = vunpack.c.l.b16 %v7338
        %v7696 = vunpack.c.h.b16 %v7338
        %v7697 = vunpack.c.l.b16 %v7339
        %v7698 = vunpack.c.h.b16 %v7339
        %v7699 = vunpack.c.l.b16 %v7340
        %v7700 = vunpack.c.h.b16 %v7340
        %v7701 = vunpack.c.l.b16 %v7341
        %v7702 = vunpack.c.h.b16 %v7341
        %v7703 = vunpack.c.l.b16 %v7342
        %v7704 = vunpack.c.h.b16 %v7342
        %v7705 = vunpack.c.l.b16 %v7343
        %v7706 = vunpack.c.h.b16 %v7343
        %v7707 = vunpack.c.l.b16 %v7344
        %v7708 = vunpack.c.h.b16 %v7344
        %v7709 = vunpack.c.l.b16 %v7345
        %v7710 = vunpack.c.h.b16 %v7345
        %v7711 = vunpack.c.l.b16 %v7346
        %v7712 = vunpack.c.h.b16 %v7346
        %v7713 = vunpack.c.l.b16 %v7347
        %v7714 = vunpack.c.h.b16 %v7347
        %v7715 = vunpack.c.l.b16 %v7348
        %v7716 = vunpack.c.h.b16 %v7348
        %v7717 = vunpack.c.l.b16 %v7349
        %v7718 = vunpack.c.h.b16 %v7349
        %v7719 = vunpack.c.l.b16 %v7350
        %v7720 = vunpack.c.h.b16 %v7350
        %v7721 = vunpack.c.l.b16 %v7351
        %v7722 = vunpack.c.h.b16 %v7351
        %v7723 = vunpack.c.l.b16 %v7352
        %v7724 = vunpack.c.h.b16 %v7352
        %v7725 = vunpack.c.l.b16 %v7353
        %v7726 = vunpack.c.h.b16 %v7353
        %v7727 = vunpack.c.l.b16 %v7354
        %v7728 = vunpack.c.h.b16 %v7354
        %v7729 = vunpack.c.l.b16 %v7355
        %v7730 = vunpack.c.h.b16 %v7355
        %v7731 = vunpack.c.l.b16 %v7356
        %v7732 = vunpack.c.h.b16 %v7356
        %v7733 = vunpack.c.l.b16 %v7357
        %v7734 = vunpack.c.h.b16 %v7357
        %v7735 = vunpack.c.l.b16 %v7358
        %v7736 = vunpack.c.h.b16 %v7358
        %v7737 = vunpack.c.l.b16 %v7359
        %v7738 = vunpack.c.h.b16 %v7359
        %v7739 = vunpack.c.l.b16 %v7360
        %v7740 = vunpack.c.h.b16 %v7360
        %v7741 = vunpack.c.l.b16 %v7361
        %v7742 = vunpack.c.h.b16 %v7361
        %v7743 = vunpack.c.l.b16 %v7362
        %v7744 = vunpack.c.h.b16 %v7362
        %v7745 = vunpack.c.l.b16 %v7363
        %v7746 = vunpack.c.h.b16 %v7363
        %v7747 = vunpack.c.l.b16 %v7364
        %v7748 = vunpack.c.h.b16 %v7364
        %v7749 = vpack.c.b16 %v7495, %v7493
        %v7750 = vpack.c.b16 %v7496, %v7494
        %v7751 = vpack.c.b16 %v7499, %v7497
        %v7752 = vpack.c.b16 %v7500, %v7498
        %v7753 = vpack.c.b16 %v7503, %v7501
        %v7754 = vpack.c.b16 %v7504, %v7502
        %v7755 = vpack.c.b16 %v7507, %v7505
        %v7756 = vpack.c.b16 %v7508, %v7506
        %v7757 = vpack.c.b16 %v7511, %v7509
        %v7758 = vpack.c.b16 %v7512, %v7510
        %v7759 = vpack.c.b16 %v7515, %v7513
        %v7760 = vpack.c.b16 %v7516, %v7514
        %v7761 = vpack.c.b16 %v7519, %v7517
        %v7762 = vpack.c.b16 %v7520, %v7518
        %v7763 = vpack.c.b16 %v7523, %v7521
        %v7764 = vpack.c.b16 %v7524, %v7522
        %v7765 = vpack.c.b16 %v7527, %v7525
        %v7766 = vpack.c.b16 %v7528, %v7526
        %v7767 = vpack.c.b16 %v7531, %v7529
        %v7768 = vpack.c.b16 %v7532, %v7530
        %v7769 = vpack.c.b16 %v7535, %v7533
        %v7770 = vpack.c.b16 %v7536, %v7534
        %v7771 = vpack.c.b16 %v7539, %v7537
        %v7772 = vpack.c.b16 %v7540, %v7538
        %v7773 = vpack.c.b16 %v7543, %v7541
        %v7774 = vpack.c.b16 %v7544, %v7542
        %v7775 = vpack.c.b16 %v7547, %v7545
        %v7776 = vpack.c.b16 %v7548, %v7546
        %v7777 = vpack.c.b16 %v7551, %v7549
        %v7778 = vpack.c.b16 %v7552, %v7550
        %v7779 = vpack.c.b16 %v7555, %v7553
        %v7780 = vpack.c.b16 %v7556, %v7554
        %v7781 = vpack.c.b16 %v7559, %v7557
        %v7782 = vpack.c.b16 %v7560, %v7558
        %v7783 = vpack.c.b16 %v7563, %v7561
        %v7784 = vpack.c.b16 %v7564, %v7562
        %v7785 = vpack.c.b16 %v7567, %v7565
        %v7786 = vpack.c.b16 %v7568, %v7566
        %v7787 = vpack.c.b16 %v7571, %v7569
        %v7788 = vpack.c.b16 %v7572, %v7570
        %v7789 = vpack.c.b16 %v7575, %v7573
        %v7790 = vpack.c.b16 %v7576, %v7574
        %v7791 = vpack.c.b16 %v7579, %v7577
        %v7792 = vpack.c.b16 %v7580, %v7578
        %v7793 = vpack.c.b16 %v7583, %v7581
        %v7794 = vpack.c.b16 %v7584, %v7582
        %v7795 = vpack.c.b16 %v7587, %v7585
        %v7796 = vpack.c.b16 %v7588, %v7586
        %v7797 = vpack.c.b16 %v7591, %v7589
        %v7798 = vpack.c.b16 %v7592, %v7590
        %v7799 = vpack.c.b16 %v7595, %v7593
        %v7800 = vpack.c.b16 %v7596, %v7594
        %v7801 = vpack.c.b16 %v7599, %v7597
        %v7802 = vpack.c.b16 %v7600, %v7598
        %v7803 = vpack.c.b16 %v7603, %v7601
        %v7804 = vpack.c.b16 %v7604, %v7602
        %v7805 = vpack.c.b16 %v7607, %v7605
        %v7806 = vpack.c.b16 %v7608, %v7606
        %v7807 = vpack.c.b16 %v7611, %v7609
        %v7808 = vpack.c.b16 %v7612, %v7610
        %v7809 = vpack.c.b16 %v7615, %v7613
        %v7810 = vpack.c.b16 %v7616, %v7614
        %v7811 = vpack.c.b16 %v7619, %v7617
        %v7812 = vpack.c.b16 %v7620, %v7618
        %v7813 = vpack.c.b16 %v7623, %v7621
        %v7814 = vpack.c.b16 %v7624, %v7622
        %v7815 = vpack.c.b16 %v7627, %v7625
        %v7816 = vpack.c.b16 %v7628, %v7626
        %v7817 = vpack.c.b16 %v7631, %v7629
        %v7818 = vpack.c.b16 %v7632, %v7630
        %v7819 = vpack.c.b16 %v7635, %v7633
        %v7820 = vpack.c.b16 %v7636, %v7634
        %v7821 = vpack.c.b16 %v7639, %v7637
        %v7822 = vpack.c.b16 %v7640, %v7638
        %v7823 = vpack.c.b16 %v7643, %v7641
        %v7824 = vpack.c.b16 %v7644, %v7642
        %v7825 = vpack.c.b16 %v7647, %v7645
        %v7826 = vpack.c.b16 %v7648, %v7646
        %v7827 = vpack.c.b16 %v7651, %v7649
        %v7828 = vpack.c.b16 %v7652, %v7650
        %v7829 = vpack.c.b16 %v7655, %v7653
        %v7830 = vpack.c.b16 %v7656, %v7654
        %v7831 = vpack.c.b16 %v7659, %v7657
        %v7832 = vpack.c.b16 %v7660, %v7658
        %v7833 = vpack.c.b16 %v7663, %v7661
        %v7834 = vpack.c.b16 %v7664, %v7662
        %v7835 = vpack.c.b16 %v7667, %v7665
        %v7836 = vpack.c.b16 %v7668, %v7666
        %v7837 = vpack.c.b16 %v7671, %v7669
        %v7838 = vpack.c.b16 %v7672, %v7670
        %v7839 = vpack.c.b16 %v7675, %v7673
        %v7840 = vpack.c.b16 %v7676, %v7674
        %v7841 = vpack.c.b16 %v7679, %v7677
        %v7842 = vpack.c.b16 %v7680, %v7678
        %v7843 = vpack.c.b16 %v7683, %v7681
        %v7844 = vpack.c.b16 %v7684, %v7682
        %v7845 = vpack.c.b16 %v7687, %v7685
        %v7846 = vpack.c.b16 %v7688, %v7686
        %v7847 = vpack.c.b16 %v7691, %v7689
        %v7848 = vpack.c.b16 %v7692, %v7690
        %v7849 = vpack.c.b16 %v7695, %v7693
        %v7850 = vpack.c.b16 %v7696, %v7694
        %v7851 = vpack.c.b16 %v7699, %v7697
        %v7852 = vpack.c.b16 %v7700, %v7698
        %v7853 = vpack.c.b16 %v7703, %v7701
        %v7854 = vpack.c.b16 %v7704, %v7702
        %v7855 = vpack.c.b16 %v7707, %v7705
        %v7856 = vpack.c.b16 %v7708, %v7706
        %v7857 = vpack.c.b16 %v7711, %v7709
        %v7858 = vpack.c.b16 %v7712, %v7710
        %v7859 = vpack.c.b16 %v7715, %v7713
        %v7860 = vpack.c.b16 %v7716, %v7714
        %v7861 = vpack.c.b16 %v7719, %v7717
        %v7862 = vpack.c.b16 %v7720, %v7718
        %v7863 = vpack.c.b16 %v7723, %v7721
        %v7864 = vpack.c.b16 %v7724, %v7722
        %v7865 = vpack.c.b16 %v7727, %v7725
        %v7866 = vpack.c.b16 %v7728, %v7726
        %v7867 = vpack.c.b16 %v7731, %v7729
        %v7868 = vpack.c.b16 %v7732, %v7730
        %v7869 = vpack.c.b16 %v7735, %v7733
        %v7870 = vpack.c.b16 %v7736, %v7734
        %v7871 = vpack.c.b16 %v7739, %v7737
        %v7872 = vpack.c.b16 %v7740, %v7738
        %v7873 = vpack.c.b16 %v7743, %v7741
        %v7874 = vpack.c.b16 %v7744, %v7742
        %v7875 = vpack.c.b16 %v7747, %v7745
        %v7876 = vpack.c.b16 %v7748, %v7746
        %8005 = vmatpush.bf16.msra.mxu0 %v7763
        %8006 = vmatpush.bf16.msra.mxu0 %v7761
        %8007 = vmatpush.bf16.msra.mxu0 %v7759
        %8008 = vmatpush.bf16.msra.mxu0 %v7757
        %8009 = vmatpush.bf16.msra.mxu0 %v7755
        %8010 = vmatpush.bf16.msra.mxu0 %v7753
        %8011 = vmatpush.bf16.msra.mxu0 %v7751
        %8012 = vmatpush.bf16.msra.mxu0 %v7749
        %8013 = vmatmul.bf16.gmra.mxu0 %v7229
        %v8014 = vpop.f32.mrf.mxu0
        %v8015 = vadd.f32 0.0, %v8014
        %v8016 = vpop.f32.mrf.mxu0
        %v8017 = vadd.f32 0.0, %v8016
        %8018 = vdwg.mxu0
        %8019 = vmatpush.bf16.msra.mxu0 %v7779
        %8020 = vmatpush.bf16.msra.mxu0 %v7777
        %8021 = vmatpush.bf16.msra.mxu0 %v7775
        %8022 = vmatpush.bf16.msra.mxu0 %v7773
        %8023 = vmatpush.bf16.msra.mxu0 %v7771
        %8024 = vmatpush.bf16.msra.mxu0 %v7769
        %8025 = vmatpush.bf16.msra.mxu0 %v7767
        %8026 = vmatpush.bf16.msra.mxu0 %v7765
        %8027 = vmatmul.bf16.gmra.mxu0 %v7230
        %v8028 = vpop.f32.mrf.mxu0
        %v8029 = vadd.f32 %v8015, %v8028
        %v8030 = vpop.f32.mrf.mxu0
        %v8031 = vadd.f32 %v8017, %v8030
        %8032 = vdwg.mxu0
        %8033 = vmatpush.bf16.msra.mxu0 %v7795
        %8034 = vmatpush.bf16.msra.mxu0 %v7793
        %8035 = vmatpush.bf16.msra.mxu0 %v7791
        %8036 = vmatpush.bf16.msra.mxu0 %v7789
        %8037 = vmatpush.bf16.msra.mxu0 %v7787
        %8038 = vmatpush.bf16.msra.mxu0 %v7785
        %8039 = vmatpush.bf16.msra.mxu0 %v7783
        %8040 = vmatpush.bf16.msra.mxu0 %v7781
        %8041 = vmatmul.bf16.gmra.mxu0 %v7231
        %v8042 = vpop.f32.mrf.mxu0
        %v8043 = vadd.f32 %v8029, %v8042
        %v8044 = vpop.f32.mrf.mxu0
        %v8045 = vadd.f32 %v8031, %v8044
        %8046 = vdwg.mxu0
        %8047 = vmatpush.bf16.msra.mxu0 %v7811
        %8048 = vmatpush.bf16.msra.mxu0 %v7809
        %8049 = vmatpush.bf16.msra.mxu0 %v7807
        %8050 = vmatpush.bf16.msra.mxu0 %v7805
        %8051 = vmatpush.bf16.msra.mxu0 %v7803
        %8052 = vmatpush.bf16.msra.mxu0 %v7801
        %8053 = vmatpush.bf16.msra.mxu0 %v7799
        %8054 = vmatpush.bf16.msra.mxu0 %v7797
        %8055 = vmatmul.bf16.gmra.mxu0 %v7232
        %v8056 = vpop.f32.mrf.mxu0
        %v8057 = vadd.f32 %v8043, %v8056
        %v8058 = vpop.f32.mrf.mxu0
        %v8059 = vadd.f32 %v8045, %v8058
        %8060 = vdwg.mxu0
        %8061 = vmatpush.bf16.msra.mxu0 %v7827
        %8062 = vmatpush.bf16.msra.mxu0 %v7825
        %8063 = vmatpush.bf16.msra.mxu0 %v7823
        %8064 = vmatpush.bf16.msra.mxu0 %v7821
        %8065 = vmatpush.bf16.msra.mxu0 %v7819
        %8066 = vmatpush.bf16.msra.mxu0 %v7817
        %8067 = vmatpush.bf16.msra.mxu0 %v7815
        %8068 = vmatpush.bf16.msra.mxu0 %v7813
        %8069 = vmatmul.bf16.gmra.mxu0 %v7233
        %v8070 = vpop.f32.mrf.mxu0
        %v8071 = vadd.f32 %v8057, %v8070
        %v8072 = vpop.f32.mrf.mxu0
        %v8073 = vadd.f32 %v8059, %v8072
        %8074 = vdwg.mxu0
        %8075 = vmatpush.bf16.msra.mxu0 %v7843
        %8076 = vmatpush.bf16.msra.mxu0 %v7841
        %8077 = vmatpush.bf16.msra.mxu0 %v7839
        %8078 = vmatpush.bf16.msra.mxu0 %v7837
        %8079 = vmatpush.bf16.msra.mxu0 %v7835
        %8080 = vmatpush.bf16.msra.mxu0 %v7833
        %8081 = vmatpush.bf16.msra.mxu0 %v7831
        %8082 = vmatpush.bf16.msra.mxu0 %v7829
        %8083 = vmatmul.bf16.gmra.mxu0 %v7234
        %v8084 = vpop.f32.mrf.mxu0
        %v8085 = vadd.f32 %v8071, %v8084
        %v8086 = vpop.f32.mrf.mxu0
        %v8087 = vadd.f32 %v8073, %v8086
        %8088 = vdwg.mxu0
        %8089 = vmatpush.bf16.msra.mxu0 %v7859
        %8090 = vmatpush.bf16.msra.mxu0 %v7857
        %8091 = vmatpush.bf16.msra.mxu0 %v7855
        %8092 = vmatpush.bf16.msra.mxu0 %v7853
        %8093 = vmatpush.bf16.msra.mxu0 %v7851
        %8094 = vmatpush.bf16.msra.mxu0 %v7849
        %8095 = vmatpush.bf16.msra.mxu0 %v7847
        %8096 = vmatpush.bf16.msra.mxu0 %v7845
        %8097 = vmatmul.bf16.gmra.mxu0 %v7235
        %v8098 = vpop.f32.mrf.mxu0
        %v8099 = vadd.f32 %v8085, %v8098
        %v8100 = vpop.f32.mrf.mxu0
        %v8101 = vadd.f32 %v8087, %v8100
        %8102 = vdwg.mxu0
        %8103 = vmatpush.bf16.msra.mxu0 %v7875
        %8104 = vmatpush.bf16.msra.mxu0 %v7873
        %8105 = vmatpush.bf16.msra.mxu0 %v7871
        %8106 = vmatpush.bf16.msra.mxu0 %v7869
        %8107 = vmatpush.bf16.msra.mxu0 %v7867
        %8108 = vmatpush.bf16.msra.mxu0 %v7865
        %8109 = vmatpush.bf16.msra.mxu0 %v7863
        %8110 = vmatpush.bf16.msra.mxu0 %v7861
        %8111 = vmatmul.bf16.gmra.mxu0 %v7236
        %v8112 = vpop.f32.mrf.mxu0
        %v8113 = vadd.f32 %v8099, %v8112
        %v8114 = vpop.f32.mrf.mxu0
        %v8115 = vadd.f32 %v8101, %v8114
        %8116 = vdwg.mxu0
        %8117 = vmatpush.bf16.msra.mxu0 %v7764
        %8118 = vmatpush.bf16.msra.mxu0 %v7762
        %8119 = vmatpush.bf16.msra.mxu0 %v7760
        %8120 = vmatpush.bf16.msra.mxu0 %v7758
        %8121 = vmatpush.bf16.msra.mxu0 %v7756
        %8122 = vmatpush.bf16.msra.mxu0 %v7754
        %8123 = vmatpush.bf16.msra.mxu0 %v7752
        %8124 = vmatpush.bf16.msra.mxu0 %v7750
        %8125 = vmatmul.bf16.gmra.mxu0 %v7229
        %v8126 = vpop.f32.mrf.mxu0
        %v8127 = vadd.f32 0.0, %v8126
        %v8128 = vpop.f32.mrf.mxu0
        %v8129 = vadd.f32 0.0, %v8128
        %8130 = vdwg.mxu0
        %8131 = vmatpush.bf16.msra.mxu0 %v7780
        %8132 = vmatpush.bf16.msra.mxu0 %v7778
        %8133 = vmatpush.bf16.msra.mxu0 %v7776
        %8134 = vmatpush.bf16.msra.mxu0 %v7774
        %8135 = vmatpush.bf16.msra.mxu0 %v7772
        %8136 = vmatpush.bf16.msra.mxu0 %v7770
        %8137 = vmatpush.bf16.msra.mxu0 %v7768
        %8138 = vmatpush.bf16.msra.mxu0 %v7766
        %8139 = vmatmul.bf16.gmra.mxu0 %v7230
        %v8140 = vpop.f32.mrf.mxu0
        %v8141 = vadd.f32 %v8127, %v8140
        %v8142 = vpop.f32.mrf.mxu0
        %v8143 = vadd.f32 %v8129, %v8142
        %8144 = vdwg.mxu0
        %8145 = vmatpush.bf16.msra.mxu0 %v7796
        %8146 = vmatpush.bf16.msra.mxu0 %v7794
        %8147 = vmatpush.bf16.msra.mxu0 %v7792
        %8148 = vmatpush.bf16.msra.mxu0 %v7790
        %8149 = vmatpush.bf16.msra.mxu0 %v7788
        %8150 = vmatpush.bf16.msra.mxu0 %v7786
        %8151 = vmatpush.bf16.msra.mxu0 %v7784
        %8152 = vmatpush.bf16.msra.mxu0 %v7782
        %8153 = vmatmul.bf16.gmra.mxu0 %v7231
        %v8154 = vpop.f32.mrf.mxu0
        %v8155 = vadd.f32 %v8141, %v8154
        %v8156 = vpop.f32.mrf.mxu0
        %v8157 = vadd.f32 %v8143, %v8156
        %8158 = vdwg.mxu0
        %8159 = vmatpush.bf16.msra.mxu0 %v7812
        %8160 = vmatpush.bf16.msra.mxu0 %v7810
        %8161 = vmatpush.bf16.msra.mxu0 %v7808
        %8162 = vmatpush.bf16.msra.mxu0 %v7806
        %8163 = vmatpush.bf16.msra.mxu0 %v7804
        %8164 = vmatpush.bf16.msra.mxu0 %v7802
        %8165 = vmatpush.bf16.msra.mxu0 %v7800
        %8166 = vmatpush.bf16.msra.mxu0 %v7798
        %8167 = vmatmul.bf16.gmra.mxu0 %v7232
        %v8168 = vpop.f32.mrf.mxu0
        %v8169 = vadd.f32 %v8155, %v8168
        %v8170 = vpop.f32.mrf.mxu0
        %v8171 = vadd.f32 %v8157, %v8170
        %8172 = vdwg.mxu0
        %8173 = vmatpush.bf16.msra.mxu0 %v7828
        %8174 = vmatpush.bf16.msra.mxu0 %v7826
        %8175 = vmatpush.bf16.msra.mxu0 %v7824
        %8176 = vmatpush.bf16.msra.mxu0 %v7822
        %8177 = vmatpush.bf16.msra.mxu0 %v7820
        %8178 = vmatpush.bf16.msra.mxu0 %v7818
        %8179 = vmatpush.bf16.msra.mxu0 %v7816
        %8180 = vmatpush.bf16.msra.mxu0 %v7814
        %8181 = vmatmul.bf16.gmra.mxu0 %v7233
        %v8182 = vpop.f32.mrf.mxu0
        %v8183 = vadd.f32 %v8169, %v8182
        %v8184 = vpop.f32.mrf.mxu0
        %v8185 = vadd.f32 %v8171, %v8184
        %8186 = vdwg.mxu0
        %8187 = vmatpush.bf16.msra.mxu0 %v7844
        %8188 = vmatpush.bf16.msra.mxu0 %v7842
        %8189 = vmatpush.bf16.msra.mxu0 %v7840
        %8190 = vmatpush.bf16.msra.mxu0 %v7838
        %8191 = vmatpush.bf16.msra.mxu0 %v7836
        %8192 = vmatpush.bf16.msra.mxu0 %v7834
        %8193 = vmatpush.bf16.msra.mxu0 %v7832
        %8194 = vmatpush.bf16.msra.mxu0 %v7830
        %8195 = vmatmul.bf16.gmra.mxu0 %v7234
        %v8196 = vpop.f32.mrf.mxu0
        %v8197 = vadd.f32 %v8183, %v8196
        %v8198 = vpop.f32.mrf.mxu0
        %v8199 = vadd.f32 %v8185, %v8198
        %8200 = vdwg.mxu0
        %8201 = vmatpush.bf16.msra.mxu0 %v7860
        %8202 = vmatpush.bf16.msra.mxu0 %v7858
        %8203 = vmatpush.bf16.msra.mxu0 %v7856
        %8204 = vmatpush.bf16.msra.mxu0 %v7854
        %8205 = vmatpush.bf16.msra.mxu0 %v7852
        %8206 = vmatpush.bf16.msra.mxu0 %v7850
        %8207 = vmatpush.bf16.msra.mxu0 %v7848
        %8208 = vmatpush.bf16.msra.mxu0 %v7846
        %8209 = vmatmul.bf16.gmra.mxu0 %v7235
        %v8210 = vpop.f32.mrf.mxu0
        %v8211 = vadd.f32 %v8197, %v8210
        %v8212 = vpop.f32.mrf.mxu0
        %v8213 = vadd.f32 %v8199, %v8212
        %8214 = vdwg.mxu0
        %8215 = vmatpush.bf16.msra.mxu0 %v7876
        %8216 = vmatpush.bf16.msra.mxu0 %v7874
        %8217 = vmatpush.bf16.msra.mxu0 %v7872
        %8218 = vmatpush.bf16.msra.mxu0 %v7870
        %8219 = vmatpush.bf16.msra.mxu0 %v7868
        %8220 = vmatpush.bf16.msra.mxu0 %v7866
        %8221 = vmatpush.bf16.msra.mxu0 %v7864
        %8222 = vmatpush.bf16.msra.mxu0 %v7862
        %8223 = vmatmul.bf16.gmra.mxu0 %v7236
        %v8224 = vpop.f32.mrf.mxu0
        %v8225 = vadd.f32 %v8211, %v8224
        %v8226 = vpop.f32.mrf.mxu0
        %v8227 = vadd.f32 %v8213, %v8226
        %8228 = vdwg.mxu0
        %v8229 = vld [vmem:[#allocation13] sm:$0xff]
        %v8230 = vld [vmem:[#allocation13 + $0x8] sm:$0xff]
        %v8231 = vld [vmem:[#allocation13 + $0x10] sm:$0x3]
        %v8232 = vld [vmem:[#allocation13 + $0x18] sm:$0x3]
        %v8233 = vmul.f32 %v8113, %v8229
        %v8234 = vmul.f32 %v8225, %v8230
        %v8235 = vmul.f32 %v8115, %v8231
        %v8236 = vmul.f32 %v8227, %v8232
        %vm8237 = vcmask 1041408
        %v8238 = vsel %vm8237, %v8235, 0.0
        %v8239 = vadd.f32 %v8233, %v8238
        %v8240 = vrot.slane %v8239, 4
        %v8241 = vadd.f32 %v8239, %v8240
        %v8242 = vrot.slane %v8241, 2
        %v8243 = vadd.f32 %v8241, %v8242
        %v8244 = vrot.slane %v8243, 1
        %v8245 = vadd.f32 %v8243, %v8244
        %vm8246 = vcmask 261120
        %v8247 = vsel %vm8246, %v8234, 0.0
        %vm8248 = vcmask 254976
        %v8249 = vsel %vm8248, %v8236, 0.0
        %v8250 = vadd.f32 %v8247, %v8249
        %v8251 = vrot.slane %v8250, 4
        %v8252 = vadd.f32 %v8250, %v8251
        %v8253 = vrot.slane %v8252, 2
        %v8254 = vadd.f32 %v8252, %v8253
        %v8255 = vrot.slane %v8254, 1
        %v8256 = vadd.f32 %v8254, %v8255
        %v8257 = vld [vmem:[#allocation15] sm:$0xff]
        %v8258 = vld [vmem:[#allocation15 + $0x8] sm:$0xff]
        %v8259 = vld [vmem:[#allocation15 + $0x10] sm:$0xff]
        %v8260 = vld [vmem:[#allocation15 + $0x18] sm:$0xff]
        %v8261 = vld [vmem:[#allocation15 + $0x20] sm:$0xff]
        %v8262 = vld [vmem:[#allocation15 + $0x28] sm:$0xff]
        %v8263 = vld [vmem:[#allocation15 + $0x30] sm:$0xff]
        %v8264 = vld [vmem:[#allocation15 + $0x38] sm:$0xff]
        %v8265 = vld [vmem:[#allocation15 + $0x40] sm:$0xff]
        %v8266 = vld [vmem:[#allocation15 + $0x48] sm:$0xff]
        %v8267 = vld [vmem:[#allocation15 + $0x50] sm:$0xff]
        %v8268 = vld [vmem:[#allocation15 + $0x58] sm:$0xff]
        %v8269 = vld [vmem:[#allocation15 + $0x60] sm:$0xff]
        %v8270 = vld [vmem:[#allocation15 + $0x68] sm:$0xff]
        %v8271 = vld [vmem:[#allocation15 + $0x70] sm:$0xff]
        %v8272 = vld [vmem:[#allocation15 + $0x78] sm:$0xff]
        %v8273 = vld [vmem:[#allocation15 + $0x80] sm:$0xff]
        %v8274 = vld [vmem:[#allocation15 + $0x88] sm:$0xff]
        %v8275 = vld [vmem:[#allocation15 + $0x90] sm:$0xff]
        %v8276 = vld [vmem:[#allocation15 + $0x98] sm:$0xff]
        %v8277 = vld [vmem:[#allocation16] sm:$0x1]
        %v8279 = vsel %vm8246, %v8256, 0
        %8281 = vmatpush.msra.mxu0 %v8272
        %8282 = vmatpush.msra.mxu0 %v8271
        %8283 = vmatpush.msra.mxu0 %v8270
        %8284 = vmatpush.msra.mxu0 %v8269
        %8285 = vmatpush.msra.mxu0 %v8268
        %8286 = vmatpush.msra.mxu0 %v8267
        %8287 = vmatpush.msra.mxu0 %v8266
        %8288 = vmatpush.msra.mxu0 %v8265
        %8289 = vmatpush.msra.mxu0 %v8264
        %8290 = vmatpush.msra.mxu0 %v8263
        %8291 = vmatpush.msra.mxu0 %v8262
        %8292 = vmatpush.msra.mxu0 %v8261
        %8293 = vmatpush.msra.mxu0 %v8260
        %8294 = vmatpush.msra.mxu0 %v8259
        %8295 = vmatpush.msra.mxu0 %v8258
        %8296 = vmatpush.msra.mxu0 %v8257
        %8297 = vmatmul.f32.gmra.mxu0 %v8245
        %v8298 = vpop.f32.mrf.mxu0
        %v8299 = vadd.f32 %v8277, %v8298
        %8300 = vdwg.mxu0
        %8301 = vmatpush.msra.mxu0 0.0
        %8302 = vmatpush.msra.mxu0 0.0
        %8303 = vmatpush.msra.mxu0 0.0
        %8304 = vmatpush.msra.mxu0 0.0
        %8305 = vmatpush.msra.mxu0 0.0
        %8306 = vmatpush.msra.mxu0 0.0
        %8307 = vmatpush.msra.mxu0 0.0
        %8308 = vmatpush.msra.mxu0 0.0
        %8309 = vmatpush.msra.mxu0 0.0
        %8310 = vmatpush.msra.mxu0 0.0
        %8311 = vmatpush.msra.mxu0 0.0
        %8312 = vmatpush.msra.mxu0 0.0
        %8313 = vmatpush.msra.mxu0 %v8276
        %8314 = vmatpush.msra.mxu0 %v8275
        %8315 = vmatpush.msra.mxu0 %v8274
        %8316 = vmatpush.msra.mxu0 %v8273
        %8317 = vmatmul.f32.gmra.mxu0 %v8279
        %v8318 = vpop.f32.mrf.mxu0
        %v8319 = vadd.f32 %v8299, %v8318
        %8320 = vdwg.mxu0
        %v8321 = vmax.f32 %v8319, 0.0
        %v8322 = vld [vmem:[#allocation18] sm:$0xff]
        %v8323 = vld [vmem:[#allocation18 + $0x8] sm:$0xff]
        %v8324 = vld [vmem:[#allocation18 + $0x10] sm:$0xff]
        %v8325 = vld [vmem:[#allocation18 + $0x18] sm:$0xff]
        %v8326 = vld [vmem:[#allocation19] sm:$0x1]
        %v8328 = vsel %vm8246, %v8321, 0
        %8330 = vmatpush.msra.mxu0 0.0
        %8331 = vmatpush.msra.mxu0 0.0
        %8332 = vmatpush.msra.mxu0 0.0
        %8333 = vmatpush.msra.mxu0 0.0
        %8334 = vmatpush.msra.mxu0 0.0
        %8335 = vmatpush.msra.mxu0 0.0
        %8336 = vmatpush.msra.mxu0 0.0
        %8337 = vmatpush.msra.mxu0 0.0
        %8338 = vmatpush.msra.mxu0 0.0
        %8339 = vmatpush.msra.mxu0 0.0
        %8340 = vmatpush.msra.mxu0 0.0
        %8341 = vmatpush.msra.mxu0 0.0
        %8342 = vmatpush.msra.mxu0 %v8325
        %8343 = vmatpush.msra.mxu0 %v8324
        %8344 = vmatpush.msra.mxu0 %v8323
        %8345 = vmatpush.msra.mxu0 %v8322
        %8346 = vmatmul.f32.gmra.mxu0 %v8328
        %v8347 = vpop.f32.mrf.mxu0
        %v8348 = vadd.f32 %v8326, %v8347
        %8349 = vdwg.mxu0
        %v8350 = vlaneseq
        %v8351 = vand.u32 %v8350, 127
        %v8352 = vadd.s32 %v8351, 128
        %v8353 = vcvt.s32.f32 %v8351
        %v8354 = vcvt.s32.f32 %v8352
        %v8355 = vadd.f32 %v8353, 0.5
        %v8356 = vadd.f32 %v8354, 0.5
        %v8357 = vmul.f32 %v8355, 0.0625
        %v8358 = vmul.f32 %v8356, 0.0625
        %v8359 = vfloor.f32 %v8357
        %v8360 = vfloor.f32 %v8358
        %v8361 = vmul.f32 %v8359, 16.0
        %v8362 = vmul.f32 %v8360, 16.0
        %v8363 = vsub.f32 %v8353, %v8361
        %v8364 = vsub.f32 %v8354, %v8362
        %v8365 = vmul.f32 %v8363, 2.0
        %v8366 = vmul.f32 %v8364, 2.0
        %v8367 = vadd.f32 %v8365, 1.0
        %v8368 = vadd.f32 %v8366, 1.0
        %v8369 = vrcp.pop 16.0
        %v8370 = vmul.f32 16.0, %v8369
        %v8371 = vsub.f32 1.0, %v8370
        %v8372 = vmul.f32 %v8369, %v8371
        %v8373 = vadd.f32 %v8369, %v8372
        %vm8374 = vweird.f32 %v8369
        %v8375 = vsel %vm8374, %v8369, %v8373
        %v8376 = vmul.f32 %v8367, %v8375
        %v8377 = vmul.f32 %v8368, %v8375
        %v8378 = vsub.f32 %v8376, 1.0
        %v8379 = vsub.f32 %v8377, 1.0
        %v8380 = vmul.f32 %v8359, 2.0
        %v8381 = vmul.f32 %v8360, 2.0
        %v8382 = vadd.f32 %v8380, 1.0
        %v8383 = vadd.f32 %v8381, 1.0
        %v8384 = vmul.f32 %v8382, %v8375
        %v8385 = vmul.f32 %v8383, %v8375
        %v8386 = vsub.f32 %v8384, 1.0
        %v8387 = vsub.f32 %v8385, 1.0
        %8389 = vset.pattern.permute.xlu0 0
        %8390 = vperm.xlu0 %8389, %v8348
        %v8391 = vpop.permute.xlu0 %8390
        %v8393 = vmul.f32 %v8391, %v8378
        %v8394 = vmul.f32 %v8391, %v8379
        %8395 = vset.pattern.permute.xlu0 1
        %8396 = vperm.xlu0 %8395, %v8348
        %v8397 = vpop.permute.xlu0 %8396
        %v8399 = vmul.f32 %v8397, %v8386
        %v8400 = vmul.f32 %v8397, %v8387
        %v8401 = vadd.f32 %v8393, %v8399
        %v8402 = vadd.f32 %v8394, %v8400
        %8403 = vset.pattern.permute.xlu0 2
        %8404 = vperm.xlu0 %8403, %v8348
        %v8405 = vpop.permute.xlu0 %8404
        %v8407 = vadd.f32 %v8401, %v8405
        %v8408 = vadd.f32 %v8402, %v8405
        %8409 = vset.pattern.permute.xlu0 3
        %8410 = vperm.xlu0 %8409, %v8348
        %v8411 = vpop.permute.xlu0 %8410
        %v8413 = vmul.f32 %v8411, %v8378
        %v8414 = vmul.f32 %v8411, %v8379
        %8415 = vset.pattern.permute.xlu0 4
        %8416 = vperm.xlu0 %8415, %v8348
        %v8417 = vpop.permute.xlu0 %8416
        %v8419 = vmul.f32 %v8417, %v8386
        %v8420 = vmul.f32 %v8417, %v8387
        %v8421 = vadd.f32 %v8413, %v8419
        %v8422 = vadd.f32 %v8414, %v8420
        %8423 = vset.pattern.permute.xlu0 5
        %8424 = vperm.xlu0 %8423, %v8348
        %v8425 = vpop.permute.xlu0 %8424
        %v8427 = vadd.f32 %v8421, %v8425
        %v8428 = vadd.f32 %v8422, %v8425
        %v8429 = vadd.f32 %v8407, 1.0
        %v8430 = vadd.f32 %v8408, 1.0
        %v8431 = vmul.f32 %v8429, 32.0
        %v8432 = vmul.f32 %v8430, 32.0
        %v8433 = vsub.f32 %v8431, 1.0
        %v8434 = vsub.f32 %v8432, 1.0
        %v8435 = vmul.f32 %v8433, 0.5
        %v8436 = vmul.f32 %v8434, 0.5
        %v8437 = vadd.f32 %v8427, 1.0
        %v8438 = vadd.f32 %v8428, 1.0
        %v8439 = vmul.f32 %v8437, 32.0
        %v8440 = vmul.f32 %v8438, 32.0
        %v8441 = vsub.f32 %v8439, 1.0
        %v8442 = vsub.f32 %v8440, 1.0
        %v8443 = vmul.f32 %v8441, 0.5
        %v8444 = vmul.f32 %v8442, 0.5
        %v8445 = vfloor.f32 %v8435
        %v8446 = vfloor.f32 %v8436
        %v8447 = vfloor.f32 %v8443
        %v8448 = vfloor.f32 %v8444
        %v8449 = vsub.f32 %v8435, %v8445
        %v8450 = vsub.f32 %v8436, %v8446
        %v8451 = vsub.f32 %v8443, %v8447
        %v8452 = vsub.f32 %v8444, %v8448
        %v8453 = vlaneseq
        %v8454 = vshrl.u32 %v8453, 7
        %v8455 = vadd.s32 %v8454, 8
        %v8456 = vadd.s32 %v8454, 16
        %v8457 = vadd.s32 %v8454, 24
        %v8458 = vcvt.s32.f32 %v8454
        %v8459 = vcvt.s32.f32 %v8455
        %v8460 = vcvt.s32.f32 %v8456
        %v8461 = vcvt.s32.f32 %v8457
        %v8462 = vperm.slane %v8445, 0
        %v8463 = vperm.slane %v8446, 0
        %vm8464 = vcmp.eq.f32.partialorder %v8458, %v8462
        %vm8465 = vcmp.eq.f32.partialorder %v8458, %v8463
        %vm8466 = vcmp.eq.f32.partialorder %v8459, %v8462
        %vm8467 = vcmp.eq.f32.partialorder %v8459, %v8463
        %vm8468 = vcmp.eq.f32.partialorder %v8460, %v8462
        %vm8469 = vcmp.eq.f32.partialorder %v8460, %v8463
        %vm8470 = vcmp.eq.f32.partialorder %v8461, %v8462
        %vm8471 = vcmp.eq.f32.partialorder %v8461, %v8463
        %v8472 = vsub.f32 1.0, %v8449
        %v8473 = vsub.f32 1.0, %v8450
        %v8474 = vperm.slane %v8472, 0
        %v8475 = vperm.slane %v8473, 0
        %v8476 = vsel %vm8464, %v8474, 0.0
        %v8477 = vsel %vm8465, %v8475, 0.0
        %v8478 = vsel %vm8466, %v8474, 0.0
        %v8479 = vsel %vm8467, %v8475, 0.0
        %v8480 = vsel %vm8468, %v8474, 0.0
        %v8481 = vsel %vm8469, %v8475, 0.0
        %v8482 = vsel %vm8470, %v8474, 0.0
        %v8483 = vsel %vm8471, %v8475, 0.0
        %v8484 = vadd.f32 %v8445, 1.0
        %v8485 = vadd.f32 %v8446, 1.0
        %v8486 = vperm.slane %v8484, 0
        %v8487 = vperm.slane %v8485, 0
        %vm8488 = vcmp.eq.f32.partialorder %v8458, %v8486
        %vm8489 = vcmp.eq.f32.partialorder %v8458, %v8487
        %vm8490 = vcmp.eq.f32.partialorder %v8459, %v8486
        %vm8491 = vcmp.eq.f32.partialorder %v8459, %v8487
        %vm8492 = vcmp.eq.f32.partialorder %v8460, %v8486
        %vm8493 = vcmp.eq.f32.partialorder %v8460, %v8487
        %vm8494 = vcmp.eq.f32.partialorder %v8461, %v8486
        %vm8495 = vcmp.eq.f32.partialorder %v8461, %v8487
        %v8496 = vperm.slane %v8449, 0
        %v8497 = vperm.slane %v8450, 0
        %v8498 = vsel %vm8488, %v8496, 0.0
        %v8499 = vsel %vm8489, %v8497, 0.0
        %v8500 = vsel %vm8490, %v8496, 0.0
        %v8501 = vsel %vm8491, %v8497, 0.0
        %v8502 = vsel %vm8492, %v8496, 0.0
        %v8503 = vsel %vm8493, %v8497, 0.0
        %v8504 = vsel %vm8494, %v8496, 0.0
        %v8505 = vsel %vm8495, %v8497, 0.0
        %v8506 = vadd.f32 %v8476, %v8498
        %v8507 = vadd.f32 %v8477, %v8499
        %v8508 = vadd.f32 %v8478, %v8500
        %v8509 = vadd.f32 %v8479, %v8501
        %v8510 = vadd.f32 %v8480, %v8502
        %v8511 = vadd.f32 %v8481, %v8503
        %v8512 = vadd.f32 %v8482, %v8504
        %v8513 = vadd.f32 %v8483, %v8505
        %v8514 = vperm.slane %v8447, 0
        %v8515 = vperm.slane %v8448, 0
        %vm8516 = vcmp.eq.f32.partialorder %v8458, %v8514
        %vm8517 = vcmp.eq.f32.partialorder %v8458, %v8515
        %vm8518 = vcmp.eq.f32.partialorder %v8459, %v8514
        %vm8519 = vcmp.eq.f32.partialorder %v8459, %v8515
        %vm8520 = vcmp.eq.f32.partialorder %v8460, %v8514
        %vm8521 = vcmp.eq.f32.partialorder %v8460, %v8515
        %vm8522 = vcmp.eq.f32.partialorder %v8461, %v8514
        %vm8523 = vcmp.eq.f32.partialorder %v8461, %v8515
        %v8524 = vsub.f32 1.0, %v8451
        %v8525 = vsub.f32 1.0, %v8452
        %v8526 = vperm.slane %v8524, 0
        %v8527 = vperm.slane %v8525, 0
        %v8528 = vsel %vm8516, %v8526, 0.0
        %v8529 = vsel %vm8517, %v8527, 0.0
        %v8530 = vsel %vm8518, %v8526, 0.0
        %v8531 = vsel %vm8519, %v8527, 0.0
        %v8532 = vsel %vm8520, %v8526, 0.0
        %v8533 = vsel %vm8521, %v8527, 0.0
        %v8534 = vsel %vm8522, %v8526, 0.0
        %v8535 = vsel %vm8523, %v8527, 0.0
        %v8536 = vadd.f32 %v8447, 1.0
        %v8537 = vadd.f32 %v8448, 1.0
        %v8538 = vperm.slane %v8536, 0
        %v8539 = vperm.slane %v8537, 0
        %vm8540 = vcmp.eq.f32.partialorder %v8458, %v8538
        %vm8541 = vcmp.eq.f32.partialorder %v8458, %v8539
        %vm8542 = vcmp.eq.f32.partialorder %v8459, %v8538
        %vm8543 = vcmp.eq.f32.partialorder %v8459, %v8539
        %vm8544 = vcmp.eq.f32.partialorder %v8460, %v8538
        %vm8545 = vcmp.eq.f32.partialorder %v8460, %v8539
        %vm8546 = vcmp.eq.f32.partialorder %v8461, %v8538
        %vm8547 = vcmp.eq.f32.partialorder %v8461, %v8539
        %v8548 = vperm.slane %v8451, 0
        %v8549 = vperm.slane %v8452, 0
        %v8550 = vsel %vm8540, %v8548, 0.0
        %v8551 = vsel %vm8541, %v8549, 0.0
        %v8552 = vsel %vm8542, %v8548, 0.0
        %v8553 = vsel %vm8543, %v8549, 0.0
        %v8554 = vsel %vm8544, %v8548, 0.0
        %v8555 = vsel %vm8545, %v8549, 0.0
        %v8556 = vsel %vm8546, %v8548, 0.0
        %v8557 = vsel %vm8547, %v8549, 0.0
        %v8558 = vadd.f32 %v8528, %v8550
        %v8559 = vadd.f32 %v8529, %v8551
        %v8560 = vadd.f32 %v8530, %v8552
        %v8561 = vadd.f32 %v8531, %v8553
        %v8562 = vadd.f32 %v8532, %v8554
        %v8563 = vadd.f32 %v8533, %v8555
        %v8564 = vadd.f32 %v8534, %v8556
        %v8565 = vadd.f32 %v8535, %v8557
        %v8566 = vld [vmem:[%s551] sm:$0xff]
        %v8567 = vld [vmem:[%s551 + $0x8] sm:$0xff]
        %v8568 = vld [vmem:[%s551 + $0x10] sm:$0xff]
        %v8569 = vld [vmem:[%s551 + $0x18] sm:$0xff]
        %v8571 = vsel %vm8246, %v8566, 0
        %v8574 = vsel %vm8246, %v8567, 0
        %v8577 = vsel %vm8246, %v8568, 0
        %v8580 = vsel %vm8246, %v8569, 0
        %8582 = vmatpush.msra.mxu0 0.0
        %8583 = vmatpush.msra.mxu0 0.0
        %8584 = vmatpush.msra.mxu0 0.0
        %8585 = vmatpush.msra.mxu0 0.0
        %8586 = vmatpush.msra.mxu0 0.0
        %8587 = vmatpush.msra.mxu0 0.0
        %8588 = vmatpush.msra.mxu0 0.0
        %8589 = vmatpush.msra.mxu0 0.0
        %8590 = vmatpush.msra.mxu0 0.0
        %8591 = vmatpush.msra.mxu0 0.0
        %8592 = vmatpush.msra.mxu0 0.0
        %8593 = vmatpush.msra.mxu0 0.0
        %8594 = vmatpush.msra.mxu0 %v8512
        %8595 = vmatpush.msra.mxu0 %v8510
        %8596 = vmatpush.msra.mxu0 %v8508
        %8597 = vmatpush.msra.mxu0 %v8506
        %8598 = vmatmul.f32.gmra.mxu0 %v8571
        %v8599 = vpop.f32.mrf.mxu0
        %v8600 = vadd.f32 0.0, %v8599
        %8601 = vmatmul.f32.gmra.mxu0 %v8574
        %v8602 = vpop.f32.mrf.mxu0
        %v8603 = vadd.f32 0.0, %v8602
        %8604 = vmatmul.f32.gmra.mxu0 %v8577
        %v8605 = vpop.f32.mrf.mxu0
        %v8606 = vadd.f32 0.0, %v8605
        %8607 = vmatmul.f32.gmra.mxu0 %v8580
        %v8608 = vpop.f32.mrf.mxu0
        %v8609 = vadd.f32 0.0, %v8608
        %8610 = vdwg.mxu0
        %8611 = vmatpush.msra.mxu0 0.0
        %8612 = vmatpush.msra.mxu0 0.0
        %8613 = vmatpush.msra.mxu0 0.0
        %8614 = vmatpush.msra.mxu0 0.0
        %8615 = vmatpush.msra.mxu0 0.0
        %8616 = vmatpush.msra.mxu0 0.0
        %8617 = vmatpush.msra.mxu0 0.0
        %8618 = vmatpush.msra.mxu0 0.0
        %8619 = vmatpush.msra.mxu0 0.0
        %8620 = vmatpush.msra.mxu0 0.0
        %8621 = vmatpush.msra.mxu0 0.0
        %8622 = vmatpush.msra.mxu0 0.0
        %8623 = vmatpush.msra.mxu0 %v8513
        %8624 = vmatpush.msra.mxu0 %v8511
        %8625 = vmatpush.msra.mxu0 %v8509
        %8626 = vmatpush.msra.mxu0 %v8507
        %8627 = vmatmul.f32.gmra.mxu0 %v8571
        %v8628 = vpop.f32.mrf.mxu0
        %v8629 = vadd.f32 0.0, %v8628
        %8630 = vmatmul.f32.gmra.mxu0 %v8574
        %v8631 = vpop.f32.mrf.mxu0
        %v8632 = vadd.f32 0.0, %v8631
        %8633 = vmatmul.f32.gmra.mxu0 %v8577
        %v8634 = vpop.f32.mrf.mxu0
        %v8635 = vadd.f32 0.0, %v8634
        %8636 = vmatmul.f32.gmra.mxu0 %v8580
        %v8637 = vpop.f32.mrf.mxu0
        %v8638 = vadd.f32 0.0, %v8637
        %8639 = vdwg.mxu0
        %v8640 = vmul.f32 %v8600, %v8558
        %v8641 = vmul.f32 %v8629, %v8559
        %v8642 = vmul.f32 %v8603, %v8560
        %v8643 = vmul.f32 %v8632, %v8561
        %v8644 = vmul.f32 %v8606, %v8562
        %v8645 = vmul.f32 %v8635, %v8563
        %v8646 = vmul.f32 %v8609, %v8564
        %v8647 = vmul.f32 %v8638, %v8565
        %v8648 = vadd.f32 %v8640, %v8642
        %v8649 = vadd.f32 %v8648, %v8644
        %v8650 = vadd.f32 %v8649, %v8646
        %v8651 = vrot.slane %v8650, 4
        %v8652 = vadd.f32 %v8650, %v8651
        %v8653 = vrot.slane %v8652, 2
        %v8654 = vadd.f32 %v8652, %v8653
        %v8655 = vrot.slane %v8654, 1
        %v8656 = vadd.f32 %v8654, %v8655
        %v8657 = vadd.f32 %v8641, %v8643
        %v8658 = vadd.f32 %v8657, %v8645
        %v8659 = vadd.f32 %v8658, %v8647
        %v8660 = vrot.slane %v8659, 4
        %v8661 = vadd.f32 %v8659, %v8660
        %v8662 = vrot.slane %v8661, 2
        %v8663 = vadd.f32 %v8661, %v8662
        %v8664 = vrot.slane %v8663, 1
        %v8665 = vadd.f32 %v8663, %v8664
        %v8668 = vrot.slane %v8665, 7
        %v8669 = vsel %vm4651, %v8656, %v8668
        %8671 = vst.msk [vmem:[%s555] sm:$0x3] %vm562, %v8669
        %p8672 = scmp.lt.s32.totalorder %s28, 1
        %s8673 = scalar_select %p8672, %s28, 1
        %s8674 = smul.addr %s8673, 2
        %s8675 = scalar_lea.vmem %s12, %s8674
        // Predicated region
        $region101: #{forward.1} parent=67 // pred_check
          %p8676 = pneg %p308
        $region102: #{forward.1} parent=67 // pred_check_branch
          %8678 = sbr.rel (%p8676) target = $region104
        $region103: #{forward.1} parent=67 // pred_region
          _
        $region104: #{forward.1} parent=67 // pred_fallthru
          _
      $region68: #{forward.1} parent=5 // pred_fallthru
        _
      %p8679 = scmp.le.s32.totalorder 2, %s23
      // Predicated region
      $region105: #{forward.1} parent=5 // pred_check
        %p8680 = pneg %p8679
      $region106: #{forward.1} parent=5 // pred_check_branch
        %8682 = sbr.rel (%p8680) target = $region108
      $region107: #{forward.1} parent=5 // pred_region
        %s8683 = ssub.s32 %s23, 2
        // Predicated region
        $region109: #{forward.1} parent=107 // pred_check
          %p8684 = pneg %p314
        $region110: #{forward.1} parent=107 // pred_check_branch
          %8686 = sbr.rel (%p8684) target = $region112
        $region111: #{forward.1} parent=107 // pred_region
          %p8687 = scmp.lt.s32.totalorder %s29, 1
          %s8688 = scalar_select %p8687, %s29, 1
          %s8689 = smul.addr %s8688, 2
          %s8690 = scalar_lea.vmem %s12, %s8689
        $region112: #{forward.1} parent=107 // pred_fallthru
          _
      $region108: #{forward.1} parent=5 // pred_fallthru
        _
    $region6: #{forward.1} parent=1 // loop_footer
      %s27 = sadd.s32 1, %s23
    $region7: #{forward.1} parent=1 // loop_footer_branch
      %22 = sbr.rel target = $region3
    $region8: #{forward.1} parent=1 // loop_exit
      _
    %8691 = vsyncpa [#allocation9], 1
    %s8692 = scalar_lea.sflag [#allocation9], 1
    %8693 = vsyncpa %s8692, 1
    %8694 = vsyncpa [#allocation11], 1
    %8695 = vsyncpa [#allocation14], 1
    %8696 = vsyncpa [#allocation17], 1
    %8697 = vsyncpa [#allocation20], 1

</llo_original>
